<compile_context>
chip_gen: v5e
topology: v5e:2x2
jax: 0.10.0
libtpu: 0.0.40
codegen_flags: <defaults>
</compile_context>

<pallas_src>
import functools

import jax
import jax.numpy as jnp
from jax.experimental import pallas as pl
from jax.experimental.pallas import tpu as pltpu


# ----------------------------------------------------------------------------
# Pallas kernel: the full sequential recurrence in ONE invocation (no grid).
# All operands are resident in VMEM; (h, c) are carried as fori_loop values.
# ----------------------------------------------------------------------------
def decoder_recurrence_kernel(
    # inputs -------------------------------------------------------------
    feats_ref,       # (B, N, E_enc)   VMEM  f32
    u_hs_ref,        # (B, N, A)       VMEM  f32  precomputed U(features) + u_b
    emb_gates_ref,   # (S, B, 4H)      VMEM  f32  embeds @ W_ih[:,emb] + (b_ih + b_hh)
    h0_ref,          # (B, H)          f32
    c0_ref,          # (B, H)          f32
    ww_ref,          # (H, A)          bf16  attention W
    wb_ref,          # (1, A)          f32
    aw_ref,          # (1, A)          f32   attention A.weight as a row vector
    ab_ref,          # (1, 1)          SMEM  scalar bias
    fusedw_ref,      # (E_enc + H, 4H) bf16  [W_ih[:,ctx] ; W_hh] fused
    # outputs ------------------------------------------------------------
    hids_ref,        # (S, B, H)       f32   per-step hidden states (time-major)
    alphas_ref,      # (S, B, PAD_N)   f32   attention weights, lane-padded
    *,
    seq_len,
    hidden,
    pad_n,
):
    H = hidden
    ab = ab_ref[0, 0]            # scalar bias lives on the scalar path (SMEM)

    def step(s, carry):
        h, c = carry
        h_bf = h.astype(jnp.bfloat16)

        # ---------------- Attention ----------------
        # (B,H)x(H,A) on the MXU in bf16, f32 accumulate
        w_ah = jnp.dot(h_bf, ww_ref[...], preferred_element_type=jnp.float32) + wb_ref[...]
        # u_hs read from VMEM here (not hoisted) -> no pinned vregs across the loop
        combined = jnp.tanh(u_hs_ref[...] + w_ah[:, None, :])            # (B, N, A) f32
        scores = jnp.sum(combined * aw_ref[...][None], axis=-1) + ab      # (B, N)

        smax = jnp.max(scores, axis=-1, keepdims=True)
        e = jnp.exp(scores - smax)
        alpha = e / jnp.sum(e, axis=-1, keepdims=True)                    # exact softmax

        # context: VPU multiply + reduce over N (keeps the MXU out of an M=1/K=16 stall)
        context = jnp.sum(feats_ref[...] * alpha[:, :, None], axis=1)     # (B, E_enc) f32

        # ---------------- LSTMCell ----------------
        # hoisted embedding part + ONE fused K=(E_enc+H)=256 MXU matmul
        xh = jnp.concatenate([context.astype(jnp.bfloat16), h_bf], axis=-1)   # (B, E_enc+H)
        gates = emb_gates_ref[s] + jnp.dot(
            xh, fusedw_ref[...], preferred_element_type=jnp.float32)          # (B, 4H) f32

        # H is a multiple of 128 -> lane-aligned gate slices
        i_g = jax.nn.sigmoid(gates[:, 0 * H:1 * H])
        f_g = jax.nn.sigmoid(gates[:, 1 * H:2 * H])
        g_g = jnp.tanh(gates[:, 2 * H:3 * H])
        o_g = jax.nn.sigmoid(gates[:, 3 * H:4 * H])
        c_new = f_g * c + i_g * g_g
        h_new = o_g * jnp.tanh(c_new)

        # accumulate outputs in VMEM; hidden states are (B,H=128) dense stores and
        # alpha is padded to 128 lanes so the store is unmasked (lane-dense).
        hids_ref[s] = h_new
        alphas_ref[s] = jnp.pad(alpha, ((0, 0), (0, pad_n - alpha.shape[-1])))
        return (h_new, c_new)

    # S=8: fully unroll. TODO(synk): for long captions switch to unroll=2/4 to avoid
    # code-size / live-range blowup.
    jax.lax.fori_loop(0, seq_len, step, (h0_ref[...], c0_ref[...]), unroll=True)


# ----------------------------------------------------------------------------
# Wrapper: glue (embedding gather, init state, hoisted projections) + kernel
# ----------------------------------------------------------------------------
@jax.jit
def encoder_decoder_forward(params, video_frames, captions):
    B, N, E_enc = video_frames.shape
    T = captions.shape[1]
    S = T - 1                                    # seq_length = len(captions[0]) - 1
    E_emb = params['embedding'].shape[1]
    H = params['init_h_w'].shape[1]
    V = params['fcn_w'].shape[1]
    A = params['u_w'].shape[1]
    PAD_N = max(128, ((N + 127) // 128) * 128)   # lane-dense alphas output width

    # glue: embedding gather (only the first S tokens feed the recurrence), time-major
    embeds_tm = jnp.transpose(params['embedding'][captions[:, :S]], (1, 0, 2))   # (S, B, E_emb)

    # glue: init_hidden_state (mean over frames -> two linears)
    mean_feat = jnp.mean(video_frames, axis=1)                                   # (B, E_enc)
    h0 = mean_feat @ params['init_h_w'] + params['init_h_b'][0]
    c0 = mean_feat @ params['init_c_w'] + params['init_c_b'][0]

    # hoisted time-invariant attention feature projection (ONCE, not per step)
    u_hs = jnp.einsum('bne,ea->bna', video_frames, params['u_w']) + params['u_b']  # (B, N, A)

    # hoisted embedding->gates matmul + fused biases (off the serial critical path)
    emb_gates = (jnp.einsum('sbe,eg->sbg', embeds_tm, params['wih_e'])
                 + params['lstm_b'][0])                                            # (S, B, 4H)

    # fused (context,h) -> gates weight, bf16 MXU inputs (f32 accumulate in-kernel)
    fused_w_bf = jnp.concatenate([params['wih_c'], params['whh']], axis=0
                                 ).astype(jnp.bfloat16)                            # (E_enc+H, 4H)
    ww_bf = params['w_w'].astype(jnp.bfloat16)                                     # (H, A)

    vmem = pl.BlockSpec(memory_space=pltpu.MemorySpace.VMEM)
    smem = pl.BlockSpec(memory_space=pltpu.MemorySpace.SMEM)

    # explicit VMEM budget (demo shapes are tiny; keep headroom but stay under v7x's 64 MiB)
    operand_bytes = (video_frames.size * 4 + u_hs.size * 4 + emb_gates.size * 4
                     + h0.size * 4 + c0.size * 4 + ww_bf.size * 2
                     + params['w_b'].size * 4 + params['a_w'].size * 4 + 4
                     + fused_w_bf.size * 2 + S * B * H * 4 + S * B * PAD_N * 4)
    vmem_limit = int(min(max(4 * operand_bytes, 16 * 1024 * 1024), 48 * 1024 * 1024))

    # advisory cost estimate so XLA schedules the wrapper-side einsums around the call
    flops_per_step = (2 * B * H * A            # attention W matmul
                      + 2 * B * N * A          # score reduction
                      + 2 * B * N * E_enc      # context reduction
                      + 2 * B * (E_enc + H) * 4 * H)   # fused LSTM gates matmul
    cost = pl.CostEstimate(
        flops=int(S * flops_per_step),
        transcendentals=int(S * (B * N * A + B * N + 5 * B * H)),
        bytes_accessed=int(operand_bytes),
    )

    hids_tm, alphas_pad = pl.pallas_call(
        functools.partial(decoder_recurrence_kernel, seq_len=S, hidden=H, pad_n=PAD_N),
        out_shape=(jax.ShapeDtypeStruct((S, B, H), jnp.float32),
                   jax.ShapeDtypeStruct((S, B, PAD_N), jnp.float32)),
        in_specs=[vmem, vmem, vmem, vmem, vmem,      # feats, u_hs, emb_gates, h0, c0
                  vmem, vmem, vmem, smem,            # w_w, w_b, a_w, a_b (scalar in SMEM)
                  vmem],                             # fused [wih_c ; whh]
        out_specs=(vmem, vmem),
        compiler_params=pltpu.CompilerParams(vmem_limit_bytes=vmem_limit),
        cost_estimate=cost,
    )(
        video_frames, u_hs, emb_gates, h0, c0,
        ww_bf, params['w_b'], params['a_w'], params['a_b'],
        fused_w_bf,
    )

    # hoisted vocab projection: one batched (S*B,H)@(H,V) matmul instead of S tiny ones,
    # written directly in (B, S, V) layout.
    preds = jnp.einsum('sbh,hv->bsv', hids_tm, params['fcn_w']) + params['fcn_b'][0]
    alphas = jnp.transpose(alphas_pad[:, :, :N], (1, 0, 2))                       # (B, S, N)
    return preds, alphas


# ----------------------------------------------------------------------------
# Pure-JAX reference (mirrors the PyTorch forward, inference mode, full f32)
# ----------------------------------------------------------------------------
def reference_forward(params, video_frames, captions):
    B, N, E_enc = video_frames.shape
    T = captions.shape[1]
    S = T - 1
    H = params['init_h_w'].shape[1]

    embeds = params['embedding'][captions]
    mean_feat = jnp.mean(video_frames, axis=1)
    h = mean_feat @ params['init_h_w'] + params['init_h_b'][0]
    c = mean_feat @ params['init_c_w'] + params['init_c_b'][0]

    preds, alphas = [], []
    for s in range(S):
        u_hs = jnp.einsum('bne,ea->bna', video_frames, params['u_w']) + params['u_b']
        w_ah = h @ params['w_w'] + params['w_b'][0]
        combined = jnp.tanh(u_hs + w_ah[:, None, :])
        scores = jnp.sum(combined * params['a_w'][None], axis=-1) + params['a_b'][0, 0]
        alpha = jax.nn.softmax(scores, axis=1)
        context = jnp.sum(video_frames * alpha[:, :, None], axis=1)
        gates = (embeds[:, s] @ params['wih_e'] + context @ params['wih_c']
                 + h @ params['whh'] + params['lstm_b'][0])
        i_g = jax.nn.sigmoid(gates[:, 0 * H:1 * H])
        f_g = jax.nn.sigmoid(gates[:, 1 * H:2 * H])
        g_g = jnp.tanh(gates[:, 2 * H:3 * H])
        o_g = jax.nn.sigmoid(gates[:, 3 * H:4 * H])
        c = f_g * c + i_g * g_g
        h = o_g * jnp.tanh(c)
        preds.append(h @ params['fcn_w'] + params['fcn_b'][0])
        alphas.append(alpha)
    return jnp.stack(preds, axis=1), jnp.stack(alphas, axis=1)


# ----------------------------------------------------------------------------
# Deterministic parameter construction + demo
# ----------------------------------------------------------------------------
def make_params(key, *, embed_size, vocab_size, attention_dim, encoder_dim, decoder_dim):
    ks = jax.random.split(key, 16)
    s = 0.1
    f32 = jnp.float32
    params = {
        'embedding': jax.random.normal(ks[0], (vocab_size, embed_size), f32) * s,
        # Attention (weights stored pre-transposed: (in, out))
        'u_w': jax.random.normal(ks[1], (encoder_dim, attention_dim), f32) * s,
        'u_b': jax.random.normal(ks[2], (1, attention_dim), f32) * s,
        'w_w': jax.random.normal(ks[3], (decoder_dim, attention_dim), f32) * s,
        'w_b': jax.random.normal(ks[4], (1, attention_dim), f32) * s,
        'a_w': jax.random.normal(ks[5], (1, attention_dim), f32) * s,
        'a_b': jax.random.normal(ks[6], (1, 1), f32) * s,
        # LSTMCell: W_ih split into embedding / context halves; biases fused
        'wih_e': jax.random.normal(ks[7], (embed_size, 4 * decoder_dim), f32) * s,
        'wih_c': jax.random.normal(ks[8], (encoder_dim, 4 * decoder_dim), f32) * s,
        'whh': jax.random.normal(ks[9], (decoder_dim, 4 * decoder_dim), f32) * s,
        'lstm_b': jax.random.normal(ks[10], (1, 4 * decoder_dim), f32) * s,
        # init_h / init_c
        'init_h_w': jax.random.normal(ks[11], (encoder_dim, decoder_dim), f32) * s,
        'init_h_b': jax.random.normal(ks[12], (1, decoder_dim), f32) * s,
        'init_c_w': jax.random.normal(ks[13], (encoder_dim, decoder_dim), f32) * s,
        'init_c_b': jax.random.normal(ks[14], (1, decoder_dim), f32) * s,
        # fcn
        'fcn_w': jax.random.normal(ks[15], (decoder_dim, vocab_size), f32) * s,
    }
    params['fcn_b'] = jnp.zeros((1, vocab_size), f32)
    return params


if __name__ == "__main__":
    # Small but (8,128)-aligned shapes: B mult of 8, feature dims = 128, V mult of 128.
    B = 8              # batch
    N = 16             # num_features (video frames)
    encoder_dim = 128
    decoder_dim = 128
    attention_dim = 128
    embed_size = 128
    vocab_size = 256
    T = 9              # caption length  -> seq_length = 8

    key = jax.random.PRNGKey(0)
    kp, kf, kc = jax.random.split(key, 3)

    params = make_params(kp, embed_size=embed_size, vocab_size=vocab_size,
                         attention_dim=attention_dim, encoder_dim=encoder_dim,
                         decoder_dim=decoder_dim)

    video_frames = jax.random.normal(kf, (B, N, encoder_dim), jnp.float32)
    captions = jax.random.randint(kc, (B, T), 0, vocab_size, dtype=jnp.int32)

    preds, alphas = encoder_decoder_forward(params, video_frames, captions)
    preds, alphas = jax.block_until_ready((preds, alphas))

    # sanity check against a full-f32 pure-JAX reference of the same math.
    # bf16 MXU inputs inside the recurrence -> slightly looser tolerance than pure f32.
    preds_ref, alphas_ref = reference_forward(params, video_frames, captions)
    assert preds.shape == (B, T - 1, vocab_size)
    assert alphas.shape == (B, T - 1, N)
    assert jnp.allclose(preds, preds_ref, atol=3e-2, rtol=3e-2)
    assert jnp.allclose(alphas, alphas_ref, atol=3e-2, rtol=3e-2)

    print("KERNEL_OK")
</pallas_src>

<mosaic_0001>
module attributes {stable_mosaic.version = 11 : i64} {
  func.func @decoder_recurrence_kernel(%arg0: memref<8x16x128xf32, #tpu.memory_space<vmem>>, %arg1: memref<8x16x128xf32, #tpu.memory_space<vmem>>, %arg2: memref<8x8x512xf32, #tpu.memory_space<vmem>>, %arg3: memref<8x128xf32, #tpu.memory_space<vmem>>, %arg4: memref<8x128xf32, #tpu.memory_space<vmem>>, %arg5: memref<128x128xbf16, #tpu.memory_space<vmem>>, %arg6: memref<1x128xf32, #tpu.memory_space<vmem>>, %arg7: memref<1x128xf32, #tpu.memory_space<vmem>>, %arg8: memref<1x1xf32, #tpu.memory_space<smem>>, %arg9: memref<256x512xbf16, #tpu.memory_space<vmem>>, %arg10: memref<8x8x128xf32, #tpu.memory_space<vmem>>, %arg11: memref<8x8x128xf32, #tpu.memory_space<vmem>>) attributes {dimension_semantics = [], scalar_prefetch = 0 : i64, scratch_operands = 0 : i64, tpu.core_type = #tpu.core_type<tc>} {
    %c0 = arith.constant 0 : index
    %c0_0 = arith.constant 0 : index
    %0 = memref.load %arg8[%c0, %c0_0] : memref<1x1xf32, #tpu.memory_space<smem>>
    %c0_1 = arith.constant 0 : index
    %c0_2 = arith.constant 0 : index
    %1 = vector.load %arg3[%c0_1, %c0_2] : memref<8x128xf32, #tpu.memory_space<vmem>>, vector<8x128xf32>
    %c0_3 = arith.constant 0 : index
    %c0_4 = arith.constant 0 : index
    %2 = vector.load %arg4[%c0_3, %c0_4] : memref<8x128xf32, #tpu.memory_space<vmem>>, vector<8x128xf32>
    %c0_i32 = arith.constant 0 : i32
    %3 = arith.truncf %1 : vector<8x128xf32> to vector<8x128xbf16>
    %c0_5 = arith.constant 0 : index
    %c0_6 = arith.constant 0 : index
    %4 = vector.load %arg5[%c0_5, %c0_6] : memref<128x128xbf16, #tpu.memory_space<vmem>>, vector<128x128xbf16>
    %cst = arith.constant dense<0.000000e+00> : vector<8x128xf32>
    %5 = tpu.matmul %3, %4, %cst {dimension_numbers = #tpu.dot_dimension_numbers<[1], [0], [0], [1], [0, 0, 1, 1], [], []>} : vector<8x128xbf16>, vector<128x128xbf16>, vector<8x128xf32> -> vector<8x128xf32>
    %c0_7 = arith.constant 0 : index
    %c0_8 = arith.constant 0 : index
    %6 = vector.load %arg6[%c0_7, %c0_8] : memref<1x128xf32, #tpu.memory_space<vmem>>, vector<1x128xf32>
    %7 = vector.broadcast %6 : vector<1x128xf32> to vector<8x128xf32>
    %8 = arith.addf %5, %7 : vector<8x128xf32>
    %c0_9 = arith.constant 0 : index
    %c0_10 = arith.constant 0 : index
    %c0_11 = arith.constant 0 : index
    %9 = vector.load %arg1[%c0_9, %c0_10, %c0_11] : memref<8x16x128xf32, #tpu.memory_space<vmem>>, vector<8x16x128xf32>
    %10 = vector.shape_cast %8 : vector<8x128xf32> to vector<8x1x128xf32>
    %11 = vector.broadcast %10 : vector<8x1x128xf32> to vector<8x16x128xf32>
    %12 = arith.addf %9, %11 : vector<8x16x128xf32>
    %13 = math.tanh %12 : vector<8x16x128xf32>
    %c0_12 = arith.constant 0 : index
    %c0_13 = arith.constant 0 : index
    %14 = vector.load %arg7[%c0_12, %c0_13] : memref<1x128xf32, #tpu.memory_space<vmem>>, vector<1x128xf32>
    %15 = vector.shape_cast %14 : vector<1x128xf32> to vector<1x1x128xf32>
    %16 = vector.broadcast %15 : vector<1x1x128xf32> to vector<8x16x128xf32>
    %17 = arith.mulf %13, %16 : vector<8x16x128xf32>
    %cst_14 = arith.constant dense<0.000000e+00> : vector<8x16xf32>
    %18 = vector.multi_reduction <add>, %17, %cst_14 [2] : vector<8x16x128xf32> to vector<8x16xf32>
    %19 = vector.broadcast %0 : f32 to vector<8x16xf32>
    %20 = arith.addf %18, %19 : vector<8x16xf32>
    %cst_15 = arith.constant dense<0xFF800000> : vector<8xf32>
    %21 = vector.multi_reduction <maximumf>, %20, %cst_15 [1] : vector<8x16xf32> to vector<8xf32>
    %22 = vector.shape_cast %21 : vector<8xf32> to vector<8x1xf32>
    %23 = vector.broadcast %22 : vector<8x1xf32> to vector<8x16xf32>
    %24 = arith.subf %20, %23 : vector<8x16xf32>
    %25 = math.exp %24 : vector<8x16xf32>
    %cst_16 = arith.constant dense<0.000000e+00> : vector<8xf32>
    %26 = vector.multi_reduction <add>, %25, %cst_16 [1] : vector<8x16xf32> to vector<8xf32>
    %27 = vector.shape_cast %26 : vector<8xf32> to vector<8x1xf32>
    %28 = vector.broadcast %27 : vector<8x1xf32> to vector<8x16xf32>
    %29 = arith.divf %25, %28 : vector<8x16xf32>
    %c0_17 = arith.constant 0 : index
    %c0_18 = arith.constant 0 : index
    %c0_19 = arith.constant 0 : index
    %30 = vector.load %arg0[%c0_17, %c0_18, %c0_19] : memref<8x16x128xf32, #tpu.memory_space<vmem>>, vector<8x16x128xf32>
    %31 = vector.shape_cast %29 : vector<8x16xf32> to vector<8x16x1xf32>
    %32 = vector.broadcast %31 : vector<8x16x1xf32> to vector<8x16x128xf32>
    %33 = arith.mulf %30, %32 : vector<8x16x128xf32>
    %cst_20 = arith.constant dense<0.000000e+00> : vector<8x128xf32>
    %34 = vector.multi_reduction <add>, %33, %cst_20 [1] : vector<8x16x128xf32> to vector<8x128xf32>
    %35 = arith.truncf %34 : vector<8x128xf32> to vector<8x128xbf16>
    %36 = tpu.concatenate %35, %3 in 1 : vector<8x128xbf16>, vector<8x128xbf16> -> vector<8x256xbf16>
    %37 = arith.index_cast %c0_i32 : i32 to index
    %c0_21 = arith.constant 0 : index
    %c0_22 = arith.constant 0 : index
    %38 = vector.load %arg2[%37, %c0_21, %c0_22] : memref<8x8x512xf32, #tpu.memory_space<vmem>>, vector<1x8x512xf32>
    %39 = vector.shape_cast %38 : vector<1x8x512xf32> to vector<8x512xf32>
    %c0_23 = arith.constant 0 : index
    %c0_24 = arith.constant 0 : index
    %40 = vector.load %arg9[%c0_23, %c0_24] : memref<256x512xbf16, #tpu.memory_space<vmem>>, vector<256x512xbf16>
    %cst_25 = arith.constant dense<0.000000e+00> : vector<8x512xf32>
    %41 = tpu.matmul %36, %40, %cst_25 {dimension_numbers = #tpu.dot_dimension_numbers<[1], [0], [0], [1], [0, 0, 1, 1], [], []>} : vector<8x256xbf16>, vector<256x512xbf16>, vector<8x512xf32> -> vector<8x512xf32>
    %42 = arith.addf %39, %41 : vector<8x512xf32>
    %43 = vector.extract_strided_slice %42 {offsets = [0, 0], sizes = [8, 128], strides = [1, 1]} : vector<8x512xf32> to vector<8x128xf32>
    %44 = arith.negf %43 : vector<8x128xf32>
    %45 = math.exp %44 : vector<8x128xf32>
    %cst_26 = arith.constant 1.000000e+00 : f32
    %46 = vector.broadcast %cst_26 : f32 to vector<8x128xf32>
    %47 = arith.addf %46, %45 : vector<8x128xf32>
    %48 = arith.divf %46, %47 : vector<8x128xf32>
    %49 = vector.extract_strided_slice %42 {offsets = [0, 128], sizes = [8, 128], strides = [1, 1]} : vector<8x512xf32> to vector<8x128xf32>
    %50 = arith.negf %49 : vector<8x128xf32>
    %51 = math.exp %50 : vector<8x128xf32>
    %cst_27 = arith.constant 1.000000e+00 : f32
    %52 = vector.broadcast %cst_27 : f32 to vector<8x128xf32>
    %53 = arith.addf %52, %51 : vector<8x128xf32>
    %54 = arith.divf %52, %53 : vector<8x128xf32>
    %55 = vector.extract_strided_slice %42 {offsets = [0, 256], sizes = [8, 128], strides = [1, 1]} : vector<8x512xf32> to vector<8x128xf32>
    %56 = math.tanh %55 : vector<8x128xf32>
    %57 = vector.extract_strided_slice %42 {offsets = [0, 384], sizes = [8, 128], strides = [1, 1]} : vector<8x512xf32> to vector<8x128xf32>
    %58 = arith.negf %57 : vector<8x128xf32>
    %59 = math.exp %58 : vector<8x128xf32>
    %cst_28 = arith.constant 1.000000e+00 : f32
    %60 = vector.broadcast %cst_28 : f32 to vector<8x128xf32>
    %61 = arith.addf %60, %59 : vector<8x128xf32>
    %62 = arith.divf %60, %61 : vector<8x128xf32>
    %63 = arith.mulf %54, %2 : vector<8x128xf32>
    %64 = arith.mulf %48, %56 : vector<8x128xf32>
    %65 = arith.addf %63, %64 : vector<8x128xf32>
    %66 = math.tanh %65 : vector<8x128xf32>
    %67 = arith.mulf %62, %66 : vector<8x128xf32>
    %68 = arith.index_cast %c0_i32 : i32 to index
    %c0_29 = arith.constant 0 : index
    %c0_30 = arith.constant 0 : index
    %69 = vector.load %arg10[%68, %c0_29, %c0_30] : memref<8x8x128xf32, #tpu.memory_space<vmem>>, vector<1x8x128xf32>
    %70 = vector.shape_cast %69 : vector<1x8x128xf32> to vector<8x128xf32>
    %71 = vector.shape_cast %67 : vector<8x128xf32> to vector<1x8x128xf32>
    tpu.vector_store %arg10[%68, %c0_29, %c0_30], %71 {strides = array<i32>} : memref<8x8x128xf32, #tpu.memory_space<vmem>>, vector<1x8x128xf32>,
    %c0_i32_31 = arith.constant 0 : i32
    %72 = arith.sitofp %c0_i32_31 : i32 to f32
    %73 = vector.broadcast %72 : f32 to vector<8x112xf32>
    %74 = tpu.concatenate %29, %73 in 1 : vector<8x16xf32>, vector<8x112xf32> -> vector<8x128xf32>
    %75 = arith.index_cast %c0_i32 : i32 to index
    %c0_32 = arith.constant 0 : index
    %c0_33 = arith.constant 0 : index
    %76 = vector.load %arg11[%75, %c0_32, %c0_33] : memref<8x8x128xf32, #tpu.memory_space<vmem>>, vector<1x8x128xf32>
    %77 = vector.shape_cast %76 : vector<1x8x128xf32> to vector<8x128xf32>
    %78 = vector.shape_cast %74 : vector<8x128xf32> to vector<1x8x128xf32>
    tpu.vector_store %arg11[%75, %c0_32, %c0_33], %78 {strides = array<i32>} : memref<8x8x128xf32, #tpu.memory_space<vmem>>, vector<1x8x128xf32>,
    %c1_i32 = arith.constant 1 : i32
    %79 = arith.truncf %67 : vector<8x128xf32> to vector<8x128xbf16>
    %c0_34 = arith.constant 0 : index
    %c0_35 = arith.constant 0 : index
    %80 = vector.load %arg5[%c0_34, %c0_35] : memref<128x128xbf16, #tpu.memory_space<vmem>>, vector<128x128xbf16>
    %cst_36 = arith.constant dense<0.000000e+00> : vector<8x128xf32>
    %81 = tpu.matmul %79, %80, %cst_36 {dimension_numbers = #tpu.dot_dimension_numbers<[1], [0], [0], [1], [0, 0, 1, 1], [], []>} : vector<8x128xbf16>, vector<128x128xbf16>, vector<8x128xf32> -> vector<8x128xf32>
    %c0_37 = arith.constant 0 : index
    %c0_38 = arith.constant 0 : index
    %82 = vector.load %arg6[%c0_37, %c0_38] : memref<1x128xf32, #tpu.memory_space<vmem>>, vector<1x128xf32>
    %83 = vector.broadcast %82 : vector<1x128xf32> to vector<8x128xf32>
    %84 = arith.addf %81, %83 : vector<8x128xf32>
    %c0_39 = arith.constant 0 : index
    %c0_40 = arith.constant 0 : index
    %c0_41 = arith.constant 0 : index
    %85 = vector.load %arg1[%c0_39, %c0_40, %c0_41] : memref<8x16x128xf32, #tpu.memory_space<vmem>>, vector<8x16x128xf32>
    %86 = vector.shape_cast %84 : vector<8x128xf32> to vector<8x1x128xf32>
    %87 = vector.broadcast %86 : vector<8x1x128xf32> to vector<8x16x128xf32>
    %88 = arith.addf %85, %87 : vector<8x16x128xf32>
    %89 = math.tanh %88 : vector<8x16x128xf32>
    %c0_42 = arith.constant 0 : index
    %c0_43 = arith.constant 0 : index
    %90 = vector.load %arg7[%c0_42, %c0_43] : memref<1x128xf32, #tpu.memory_space<vmem>>, vector<1x128xf32>
    %91 = vector.shape_cast %90 : vector<1x128xf32> to vector<1x1x128xf32>
    %92 = vector.broadcast %91 : vector<1x1x128xf32> to vector<8x16x128xf32>
    %93 = arith.mulf %89, %92 : vector<8x16x128xf32>
    %cst_44 = arith.constant dense<0.000000e+00> : vector<8x16xf32>
    %94 = vector.multi_reduction <add>, %93, %cst_44 [2] : vector<8x16x128xf32> to vector<8x16xf32>
    %95 = vector.broadcast %0 : f32 to vector<8x16xf32>
    %96 = arith.addf %94, %95 : vector<8x16xf32>
    %cst_45 = arith.constant dense<0xFF800000> : vector<8xf32>
    %97 = vector.multi_reduction <maximumf>, %96, %cst_45 [1] : vector<8x16xf32> to vector<8xf32>
    %98 = vector.shape_cast %97 : vector<8xf32> to vector<8x1xf32>
    %99 = vector.broadcast %98 : vector<8x1xf32> to vector<8x16xf32>
    %100 = arith.subf %96, %99 : vector<8x16xf32>
    %101 = math.exp %100 : vector<8x16xf32>
    %cst_46 = arith.constant dense<0.000000e+00> : vector<8xf32>
    %102 = vector.multi_reduction <add>, %101, %cst_46 [1] : vector<8x16xf32> to vector<8xf32>
    %103 = vector.shape_cast %102 : vector<8xf32> to vector<8x1xf32>
    %104 = vector.broadcast %103 : vector<8x1xf32> to vector<8x16xf32>
    %105 = arith.divf %101, %104 : vector<8x16xf32>
    %c0_47 = arith.constant 0 : index
    %c0_48 = arith.constant 0 : index
    %c0_49 = arith.constant 0 : index
    %106 = vector.load %arg0[%c0_47, %c0_48, %c0_49] : memref<8x16x128xf32, #tpu.memory_space<vmem>>, vector<8x16x128xf32>
    %107 = vector.shape_cast %105 : vector<8x16xf32> to vector<8x16x1xf32>
    %108 = vector.broadcast %107 : vector<8x16x1xf32> to vector<8x16x128xf32>
    %109 = arith.mulf %106, %108 : vector<8x16x128xf32>
    %cst_50 = arith.constant dense<0.000000e+00> : vector<8x128xf32>
    %110 = vector.multi_reduction <add>, %109, %cst_50 [1] : vector<8x16x128xf32> to vector<8x128xf32>
    %111 = arith.truncf %110 : vector<8x128xf32> to vector<8x128xbf16>
    %112 = tpu.concatenate %111, %79 in 1 : vector<8x128xbf16>, vector<8x128xbf16> -> vector<8x256xbf16>
    %113 = arith.index_cast %c1_i32 : i32 to index
    %c0_51 = arith.constant 0 : index
    %c0_52 = arith.constant 0 : index
    %114 = vector.load %arg2[%113, %c0_51, %c0_52] : memref<8x8x512xf32, #tpu.memory_space<vmem>>, vector<1x8x512xf32>
    %115 = vector.shape_cast %114 : vector<1x8x512xf32> to vector<8x512xf32>
    %c0_53 = arith.constant 0 : index
    %c0_54 = arith.constant 0 : index
    %116 = vector.load %arg9[%c0_53, %c0_54] : memref<256x512xbf16, #tpu.memory_space<vmem>>, vector<256x512xbf16>
    %cst_55 = arith.constant dense<0.000000e+00> : vector<8x512xf32>
    %117 = tpu.matmul %112, %116, %cst_55 {dimension_numbers = #tpu.dot_dimension_numbers<[1], [0], [0], [1], [0, 0, 1, 1], [], []>} : vector<8x256xbf16>, vector<256x512xbf16>, vector<8x512xf32> -> vector<8x512xf32>
    %118 = arith.addf %115, %117 : vector<8x512xf32>
    %119 = vector.extract_strided_slice %118 {offsets = [0, 0], sizes = [8, 128], strides = [1, 1]} : vector<8x512xf32> to vector<8x128xf32>
    %120 = arith.negf %119 : vector<8x128xf32>
    %121 = math.exp %120 : vector<8x128xf32>
    %cst_56 = arith.constant 1.000000e+00 : f32
    %122 = vector.broadcast %cst_56 : f32 to vector<8x128xf32>
    %123 = arith.addf %122, %121 : vector<8x128xf32>
    %124 = arith.divf %122, %123 : vector<8x128xf32>
    %125 = vector.extract_strided_slice %118 {offsets = [0, 128], sizes = [8, 128], strides = [1, 1]} : vector<8x512xf32> to vector<8x128xf32>
    %126 = arith.negf %125 : vector<8x128xf32>
    %127 = math.exp %126 : vector<8x128xf32>
    %cst_57 = arith.constant 1.000000e+00 : f32
    %128 = vector.broadcast %cst_57 : f32 to vector<8x128xf32>
    %129 = arith.addf %128, %127 : vector<8x128xf32>
    %130 = arith.divf %128, %129 : vector<8x128xf32>
    %131 = vector.extract_strided_slice %118 {offsets = [0, 256], sizes = [8, 128], strides = [1, 1]} : vector<8x512xf32> to vector<8x128xf32>
    %132 = math.tanh %131 : vector<8x128xf32>
    %133 = vector.extract_strided_slice %118 {offsets = [0, 384], sizes = [8, 128], strides = [1, 1]} : vector<8x512xf32> to vector<8x128xf32>
    %134 = arith.negf %133 : vector<8x128xf32>
    %135 = math.exp %134 : vector<8x128xf32>
    %cst_58 = arith.constant 1.000000e+00 : f32
    %136 = vector.broadcast %cst_58 : f32 to vector<8x128xf32>
    %137 = arith.addf %136, %135 : vector<8x128xf32>
    %138 = arith.divf %136, %137 : vector<8x128xf32>
    %139 = arith.mulf %130, %65 : vector<8x128xf32>
    %140 = arith.mulf %124, %132 : vector<8x128xf32>
    %141 = arith.addf %139, %140 : vector<8x128xf32>
    %142 = math.tanh %141 : vector<8x128xf32>
    %143 = arith.mulf %138, %142 : vector<8x128xf32>
    %144 = arith.index_cast %c1_i32 : i32 to index
    %c0_59 = arith.constant 0 : index
    %c0_60 = arith.constant 0 : index
    %145 = vector.load %arg10[%144, %c0_59, %c0_60] : memref<8x8x128xf32, #tpu.memory_space<vmem>>, vector<1x8x128xf32>
    %146 = vector.shape_cast %145 : vector<1x8x128xf32> to vector<8x128xf32>
    %147 = vector.shape_cast %143 : vector<8x128xf32> to vector<1x8x128xf32>
    tpu.vector_store %arg10[%144, %c0_59, %c0_60], %147 {strides = array<i32>} : memref<8x8x128xf32, #tpu.memory_space<vmem>>, vector<1x8x128xf32>,
    %c0_i32_61 = arith.constant 0 : i32
    %148 = arith.sitofp %c0_i32_61 : i32 to f32
    %149 = vector.broadcast %148 : f32 to vector<8x112xf32>
    %150 = tpu.concatenate %105, %149 in 1 : vector<8x16xf32>, vector<8x112xf32> -> vector<8x128xf32>
    %151 = arith.index_cast %c1_i32 : i32 to index
    %c0_62 = arith.constant 0 : index
    %c0_63 = arith.constant 0 : index
    %152 = vector.load %arg11[%151, %c0_62, %c0_63] : memref<8x8x128xf32, #tpu.memory_space<vmem>>, vector<1x8x128xf32>
    %153 = vector.shape_cast %152 : vector<1x8x128xf32> to vector<8x128xf32>
    %154 = vector.shape_cast %150 : vector<8x128xf32> to vector<1x8x128xf32>
    tpu.vector_store %arg11[%151, %c0_62, %c0_63], %154 {strides = array<i32>} : memref<8x8x128xf32, #tpu.memory_space<vmem>>, vector<1x8x128xf32>,
    %c2_i32 = arith.constant 2 : i32
    %155 = arith.truncf %143 : vector<8x128xf32> to vector<8x128xbf16>
    %c0_64 = arith.constant 0 : index
    %c0_65 = arith.constant 0 : index
    %156 = vector.load %arg5[%c0_64, %c0_65] : memref<128x128xbf16, #tpu.memory_space<vmem>>, vector<128x128xbf16>
    %cst_66 = arith.constant dense<0.000000e+00> : vector<8x128xf32>
    %157 = tpu.matmul %155, %156, %cst_66 {dimension_numbers = #tpu.dot_dimension_numbers<[1], [0], [0], [1], [0, 0, 1, 1], [], []>} : vector<8x128xbf16>, vector<128x128xbf16>, vector<8x128xf32> -> vector<8x128xf32>
    %c0_67 = arith.constant 0 : index
    %c0_68 = arith.constant 0 : index
    %158 = vector.load %arg6[%c0_67, %c0_68] : memref<1x128xf32, #tpu.memory_space<vmem>>, vector<1x128xf32>
    %159 = vector.broadcast %158 : vector<1x128xf32> to vector<8x128xf32>
    %160 = arith.addf %157, %159 : vector<8x128xf32>
    %c0_69 = arith.constant 0 : index
    %c0_70 = arith.constant 0 : index
    %c0_71 = arith.constant 0 : index
    %161 = vector.load %arg1[%c0_69, %c0_70, %c0_71] : memref<8x16x128xf32, #tpu.memory_space<vmem>>, vector<8x16x128xf32>
    %162 = vector.shape_cast %160 : vector<8x128xf32> to vector<8x1x128xf32>
    %163 = vector.broadcast %162 : vector<8x1x128xf32> to vector<8x16x128xf32>
    %164 = arith.addf %161, %163 : vector<8x16x128xf32>
    %165 = math.tanh %164 : vector<8x16x128xf32>
    %c0_72 = arith.constant 0 : index
    %c0_73 = arith.constant 0 : index
    %166 = vector.load %arg7[%c0_72, %c0_73] : memref<1x128xf32, #tpu.memory_space<vmem>>, vector<1x128xf32>
    %167 = vector.shape_cast %166 : vector<1x128xf32> to vector<1x1x128xf32>
    %168 = vector.broadcast %167 : vector<1x1x128xf32> to vector<8x16x128xf32>
    %169 = arith.mulf %165, %168 : vector<8x16x128xf32>
    %cst_74 = arith.constant dense<0.000000e+00> : vector<8x16xf32>
    %170 = vector.multi_reduction <add>, %169, %cst_74 [2] : vector<8x16x128xf32> to vector<8x16xf32>
    %171 = vector.broadcast %0 : f32 to vector<8x16xf32>
    %172 = arith.addf %170, %171 : vector<8x16xf32>
    %cst_75 = arith.constant dense<0xFF800000> : vector<8xf32>
    %173 = vector.multi_reduction <maximumf>, %172, %cst_75 [1] : vector<8x16xf32> to vector<8xf32>
    %174 = vector.shape_cast %173 : vector<8xf32> to vector<8x1xf32>
    %175 = vector.broadcast %174 : vector<8x1xf32> to vector<8x16xf32>
    %176 = arith.subf %172, %175 : vector<8x16xf32>
    %177 = math.exp %176 : vector<8x16xf32>
    %cst_76 = arith.constant dense<0.000000e+00> : vector<8xf32>
    %178 = vector.multi_reduction <add>, %177, %cst_76 [1] : vector<8x16xf32> to vector<8xf32>
    %179 = vector.shape_cast %178 : vector<8xf32> to vector<8x1xf32>
    %180 = vector.broadcast %179 : vector<8x1xf32> to vector<8x16xf32>
    %181 = arith.divf %177, %180 : vector<8x16xf32>
    %c0_77 = arith.constant 0 : index
    %c0_78 = arith.constant 0 : index
    %c0_79 = arith.constant 0 : index
    %182 = vector.load %arg0[%c0_77, %c0_78, %c0_79] : memref<8x16x128xf32, #tpu.memory_space<vmem>>, vector<8x16x128xf32>
    %183 = vector.shape_cast %181 : vector<8x16xf32> to vector<8x16x1xf32>
    %184 = vector.broadcast %183 : vector<8x16x1xf32> to vector<8x16x128xf32>
    %185 = arith.mulf %182, %184 : vector<8x16x128xf32>
    %cst_80 = arith.constant dense<0.000000e+00> : vector<8x128xf32>
    %186 = vector.multi_reduction <add>, %185, %cst_80 [1] : vector<8x16x128xf32> to vector<8x128xf32>
    %187 = arith.truncf %186 : vector<8x128xf32> to vector<8x128xbf16>
    %188 = tpu.concatenate %187, %155 in 1 : vector<8x128xbf16>, vector<8x128xbf16> -> vector<8x256xbf16>
    %189 = arith.index_cast %c2_i32 : i32 to index
    %c0_81 = arith.constant 0 : index
    %c0_82 = arith.constant 0 : index
    %190 = vector.load %arg2[%189, %c0_81, %c0_82] : memref<8x8x512xf32, #tpu.memory_space<vmem>>, vector<1x8x512xf32>
    %191 = vector.shape_cast %190 : vector<1x8x512xf32> to vector<8x512xf32>
    %c0_83 = arith.constant 0 : index
    %c0_84 = arith.constant 0 : index
    %192 = vector.load %arg9[%c0_83, %c0_84] : memref<256x512xbf16, #tpu.memory_space<vmem>>, vector<256x512xbf16>
    %cst_85 = arith.constant dense<0.000000e+00> : vector<8x512xf32>
    %193 = tpu.matmul %188, %192, %cst_85 {dimension_numbers = #tpu.dot_dimension_numbers<[1], [0], [0], [1], [0, 0, 1, 1], [], []>} : vector<8x256xbf16>, vector<256x512xbf16>, vector<8x512xf32> -> vector<8x512xf32>
    %194 = arith.addf %191, %193 : vector<8x512xf32>
    %195 = vector.extract_strided_slice %194 {offsets = [0, 0], sizes = [8, 128], strides = [1, 1]} : vector<8x512xf32> to vector<8x128xf32>
    %196 = arith.negf %195 : vector<8x128xf32>
    %197 = math.exp %196 : vector<8x128xf32>
    %cst_86 = arith.constant 1.000000e+00 : f32
    %198 = vector.broadcast %cst_86 : f32 to vector<8x128xf32>
    %199 = arith.addf %198, %197 : vector<8x128xf32>
    %200 = arith.divf %198, %199 : vector<8x128xf32>
    %201 = vector.extract_strided_slice %194 {offsets = [0, 128], sizes = [8, 128], strides = [1, 1]} : vector<8x512xf32> to vector<8x128xf32>
    %202 = arith.negf %201 : vector<8x128xf32>
    %203 = math.exp %202 : vector<8x128xf32>
    %cst_87 = arith.constant 1.000000e+00 : f32
    %204 = vector.broadcast %cst_87 : f32 to vector<8x128xf32>
    %205 = arith.addf %204, %203 : vector<8x128xf32>
    %206 = arith.divf %204, %205 : vector<8x128xf32>
    %207 = vector.extract_strided_slice %194 {offsets = [0, 256], sizes = [8, 128], strides = [1, 1]} : vector<8x512xf32> to vector<8x128xf32>
    %208 = math.tanh %207 : vector<8x128xf32>
    %209 = vector.extract_strided_slice %194 {offsets = [0, 384], sizes = [8, 128], strides = [1, 1]} : vector<8x512xf32> to vector<8x128xf32>
    %210 = arith.negf %209 : vector<8x128xf32>
    %211 = math.exp %210 : vector<8x128xf32>
    %cst_88 = arith.constant 1.000000e+00 : f32
    %212 = vector.broadcast %cst_88 : f32 to vector<8x128xf32>
    %213 = arith.addf %212, %211 : vector<8x128xf32>
    %214 = arith.divf %212, %213 : vector<8x128xf32>
    %215 = arith.mulf %206, %141 : vector<8x128xf32>
    %216 = arith.mulf %200, %208 : vector<8x128xf32>
    %217 = arith.addf %215, %216 : vector<8x128xf32>
    %218 = math.tanh %217 : vector<8x128xf32>
    %219 = arith.mulf %214, %218 : vector<8x128xf32>
    %220 = arith.index_cast %c2_i32 : i32 to index
    %c0_89 = arith.constant 0 : index
    %c0_90 = arith.constant 0 : index
    %221 = vector.load %arg10[%220, %c0_89, %c0_90] : memref<8x8x128xf32, #tpu.memory_space<vmem>>, vector<1x8x128xf32>
    %222 = vector.shape_cast %221 : vector<1x8x128xf32> to vector<8x128xf32>
    %223 = vector.shape_cast %219 : vector<8x128xf32> to vector<1x8x128xf32>
    tpu.vector_store %arg10[%220, %c0_89, %c0_90], %223 {strides = array<i32>} : memref<8x8x128xf32, #tpu.memory_space<vmem>>, vector<1x8x128xf32>,
    %c0_i32_91 = arith.constant 0 : i32
    %224 = arith.sitofp %c0_i32_91 : i32 to f32
    %225 = vector.broadcast %224 : f32 to vector<8x112xf32>
    %226 = tpu.concatenate %181, %225 in 1 : vector<8x16xf32>, vector<8x112xf32> -> vector<8x128xf32>
    %227 = arith.index_cast %c2_i32 : i32 to index
    %c0_92 = arith.constant 0 : index
    %c0_93 = arith.constant 0 : index
    %228 = vector.load %arg11[%227, %c0_92, %c0_93] : memref<8x8x128xf32, #tpu.memory_space<vmem>>, vector<1x8x128xf32>
    %229 = vector.shape_cast %228 : vector<1x8x128xf32> to vector<8x128xf32>
    %230 = vector.shape_cast %226 : vector<8x128xf32> to vector<1x8x128xf32>
    tpu.vector_store %arg11[%227, %c0_92, %c0_93], %230 {strides = array<i32>} : memref<8x8x128xf32, #tpu.memory_space<vmem>>, vector<1x8x128xf32>,
    %c3_i32 = arith.constant 3 : i32
    %231 = arith.truncf %219 : vector<8x128xf32> to vector<8x128xbf16>
    %c0_94 = arith.constant 0 : index
    %c0_95 = arith.constant 0 : index
    %232 = vector.load %arg5[%c0_94, %c0_95] : memref<128x128xbf16, #tpu.memory_space<vmem>>, vector<128x128xbf16>
    %cst_96 = arith.constant dense<0.000000e+00> : vector<8x128xf32>
    %233 = tpu.matmul %231, %232, %cst_96 {dimension_numbers = #tpu.dot_dimension_numbers<[1], [0], [0], [1], [0, 0, 1, 1], [], []>} : vector<8x128xbf16>, vector<128x128xbf16>, vector<8x128xf32> -> vector<8x128xf32>
    %c0_97 = arith.constant 0 : index
    %c0_98 = arith.constant 0 : index
    %234 = vector.load %arg6[%c0_97, %c0_98] : memref<1x128xf32, #tpu.memory_space<vmem>>, vector<1x128xf32>
    %235 = vector.broadcast %234 : vector<1x128xf32> to vector<8x128xf32>
    %236 = arith.addf %233, %235 : vector<8x128xf32>
    %c0_99 = arith.constant 0 : index
    %c0_100 = arith.constant 0 : index
    %c0_101 = arith.constant 0 : index
    %237 = vector.load %arg1[%c0_99, %c0_100, %c0_101] : memref<8x16x128xf32, #tpu.memory_space<vmem>>, vector<8x16x128xf32>
    %238 = vector.shape_cast %236 : vector<8x128xf32> to vector<8x1x128xf32>
    %239 = vector.broadcast %238 : vector<8x1x128xf32> to vector<8x16x128xf32>
    %240 = arith.addf %237, %239 : vector<8x16x128xf32>
    %241 = math.tanh %240 : vector<8x16x128xf32>
    %c0_102 = arith.constant 0 : index
    %c0_103 = arith.constant 0 : index
    %242 = vector.load %arg7[%c0_102, %c0_103] : memref<1x128xf32, #tpu.memory_space<vmem>>, vector<1x128xf32>
    %243 = vector.shape_cast %242 : vector<1x128xf32> to vector<1x1x128xf32>
    %244 = vector.broadcast %243 : vector<1x1x128xf32> to vector<8x16x128xf32>
    %245 = arith.mulf %241, %244 : vector<8x16x128xf32>
    %cst_104 = arith.constant dense<0.000000e+00> : vector<8x16xf32>
    %246 = vector.multi_reduction <add>, %245, %cst_104 [2] : vector<8x16x128xf32> to vector<8x16xf32>
    %247 = vector.broadcast %0 : f32 to vector<8x16xf32>
    %248 = arith.addf %246, %247 : vector<8x16xf32>
    %cst_105 = arith.constant dense<0xFF800000> : vector<8xf32>
    %249 = vector.multi_reduction <maximumf>, %248, %cst_105 [1] : vector<8x16xf32> to vector<8xf32>
    %250 = vector.shape_cast %249 : vector<8xf32> to vector<8x1xf32>
    %251 = vector.broadcast %250 : vector<8x1xf32> to vector<8x16xf32>
    %252 = arith.subf %248, %251 : vector<8x16xf32>
    %253 = math.exp %252 : vector<8x16xf32>
    %cst_106 = arith.constant dense<0.000000e+00> : vector<8xf32>
    %254 = vector.multi_reduction <add>, %253, %cst_106 [1] : vector<8x16xf32> to vector<8xf32>
    %255 = vector.shape_cast %254 : vector<8xf32> to vector<8x1xf32>
    %256 = vector.broadcast %255 : vector<8x1xf32> to vector<8x16xf32>
    %257 = arith.divf %253, %256 : vector<8x16xf32>
    %c0_107 = arith.constant 0 : index
    %c0_108 = arith.constant 0 : index
    %c0_109 = arith.constant 0 : index
    %258 = vector.load %arg0[%c0_107, %c0_108, %c0_109] : memref<8x16x128xf32, #tpu.memory_space<vmem>>, vector<8x16x128xf32>
    %259 = vector.shape_cast %257 : vector<8x16xf32> to vector<8x16x1xf32>
    %260 = vector.broadcast %259 : vector<8x16x1xf32> to vector<8x16x128xf32>
    %261 = arith.mulf %258, %260 : vector<8x16x128xf32>
    %cst_110 = arith.constant dense<0.000000e+00> : vector<8x128xf32>
    %262 = vector.multi_reduction <add>, %261, %cst_110 [1] : vector<8x16x128xf32> to vector<8x128xf32>
    %263 = arith.truncf %262 : vector<8x128xf32> to vector<8x128xbf16>
    %264 = tpu.concatenate %263, %231 in 1 : vector<8x128xbf16>, vector<8x128xbf16> -> vector<8x256xbf16>
    %265 = arith.index_cast %c3_i32 : i32 to index
    %c0_111 = arith.constant 0 : index
    %c0_112 = arith.constant 0 : index
    %266 = vector.load %arg2[%265, %c0_111, %c0_112] : memref<8x8x512xf32, #tpu.memory_space<vmem>>, vector<1x8x512xf32>
    %267 = vector.shape_cast %266 : vector<1x8x512xf32> to vector<8x512xf32>
    %c0_113 = arith.constant 0 : index
    %c0_114 = arith.constant 0 : index
    %268 = vector.load %arg9[%c0_113, %c0_114] : memref<256x512xbf16, #tpu.memory_space<vmem>>, vector<256x512xbf16>
    %cst_115 = arith.constant dense<0.000000e+00> : vector<8x512xf32>
    %269 = tpu.matmul %264, %268, %cst_115 {dimension_numbers = #tpu.dot_dimension_numbers<[1], [0], [0], [1], [0, 0, 1, 1], [], []>} : vector<8x256xbf16>, vector<256x512xbf16>, vector<8x512xf32> -> vector<8x512xf32>
    %270 = arith.addf %267, %269 : vector<8x512xf32>
    %271 = vector.extract_strided_slice %270 {offsets = [0, 0], sizes = [8, 128], strides = [1, 1]} : vector<8x512xf32> to vector<8x128xf32>
    %272 = arith.negf %271 : vector<8x128xf32>
    %273 = math.exp %272 : vector<8x128xf32>
    %cst_116 = arith.constant 1.000000e+00 : f32
    %274 = vector.broadcast %cst_116 : f32 to vector<8x128xf32>
    %275 = arith.addf %274, %273 : vector<8x128xf32>
    %276 = arith.divf %274, %275 : vector<8x128xf32>
    %277 = vector.extract_strided_slice %270 {offsets = [0, 128], sizes = [8, 128], strides = [1, 1]} : vector<8x512xf32> to vector<8x128xf32>
    %278 = arith.negf %277 : vector<8x128xf32>
    %279 = math.exp %278 : vector<8x128xf32>
    %cst_117 = arith.constant 1.000000e+00 : f32
    %280 = vector.broadcast %cst_117 : f32 to vector<8x128xf32>
    %281 = arith.addf %280, %279 : vector<8x128xf32>
    %282 = arith.divf %280, %281 : vector<8x128xf32>
    %283 = vector.extract_strided_slice %270 {offsets = [0, 256], sizes = [8, 128], strides = [1, 1]} : vector<8x512xf32> to vector<8x128xf32>
    %284 = math.tanh %283 : vector<8x128xf32>
    %285 = vector.extract_strided_slice %270 {offsets = [0, 384], sizes = [8, 128], strides = [1, 1]} : vector<8x512xf32> to vector<8x128xf32>
    %286 = arith.negf %285 : vector<8x128xf32>
    %287 = math.exp %286 : vector<8x128xf32>
    %cst_118 = arith.constant 1.000000e+00 : f32
    %288 = vector.broadcast %cst_118 : f32 to vector<8x128xf32>
    %289 = arith.addf %288, %287 : vector<8x128xf32>
    %290 = arith.divf %288, %289 : vector<8x128xf32>
    %291 = arith.mulf %282, %217 : vector<8x128xf32>
    %292 = arith.mulf %276, %284 : vector<8x128xf32>
    %293 = arith.addf %291, %292 : vector<8x128xf32>
    %294 = math.tanh %293 : vector<8x128xf32>
    %295 = arith.mulf %290, %294 : vector<8x128xf32>
    %296 = arith.index_cast %c3_i32 : i32 to index
    %c0_119 = arith.constant 0 : index
    %c0_120 = arith.constant 0 : index
    %297 = vector.load %arg10[%296, %c0_119, %c0_120] : memref<8x8x128xf32, #tpu.memory_space<vmem>>, vector<1x8x128xf32>
    %298 = vector.shape_cast %297 : vector<1x8x128xf32> to vector<8x128xf32>
    %299 = vector.shape_cast %295 : vector<8x128xf32> to vector<1x8x128xf32>
    tpu.vector_store %arg10[%296, %c0_119, %c0_120], %299 {strides = array<i32>} : memref<8x8x128xf32, #tpu.memory_space<vmem>>, vector<1x8x128xf32>,
    %c0_i32_121 = arith.constant 0 : i32
    %300 = arith.sitofp %c0_i32_121 : i32 to f32
    %301 = vector.broadcast %300 : f32 to vector<8x112xf32>
    %302 = tpu.concatenate %257, %301 in 1 : vector<8x16xf32>, vector<8x112xf32> -> vector<8x128xf32>
    %303 = arith.index_cast %c3_i32 : i32 to index
    %c0_122 = arith.constant 0 : index
    %c0_123 = arith.constant 0 : index
    %304 = vector.load %arg11[%303, %c0_122, %c0_123] : memref<8x8x128xf32, #tpu.memory_space<vmem>>, vector<1x8x128xf32>
    %305 = vector.shape_cast %304 : vector<1x8x128xf32> to vector<8x128xf32>
    %306 = vector.shape_cast %302 : vector<8x128xf32> to vector<1x8x128xf32>
    tpu.vector_store %arg11[%303, %c0_122, %c0_123], %306 {strides = array<i32>} : memref<8x8x128xf32, #tpu.memory_space<vmem>>, vector<1x8x128xf32>,
    %c4_i32 = arith.constant 4 : i32
    %307 = arith.truncf %295 : vector<8x128xf32> to vector<8x128xbf16>
    %c0_124 = arith.constant 0 : index
    %c0_125 = arith.constant 0 : index
    %308 = vector.load %arg5[%c0_124, %c0_125] : memref<128x128xbf16, #tpu.memory_space<vmem>>, vector<128x128xbf16>
    %cst_126 = arith.constant dense<0.000000e+00> : vector<8x128xf32>
    %309 = tpu.matmul %307, %308, %cst_126 {dimension_numbers = #tpu.dot_dimension_numbers<[1], [0], [0], [1], [0, 0, 1, 1], [], []>} : vector<8x128xbf16>, vector<128x128xbf16>, vector<8x128xf32> -> vector<8x128xf32>
    %c0_127 = arith.constant 0 : index
    %c0_128 = arith.constant 0 : index
    %310 = vector.load %arg6[%c0_127, %c0_128] : memref<1x128xf32, #tpu.memory_space<vmem>>, vector<1x128xf32>
    %311 = vector.broadcast %310 : vector<1x128xf32> to vector<8x128xf32>
    %312 = arith.addf %309, %311 : vector<8x128xf32>
    %c0_129 = arith.constant 0 : index
    %c0_130 = arith.constant 0 : index
    %c0_131 = arith.constant 0 : index
    %313 = vector.load %arg1[%c0_129, %c0_130, %c0_131] : memref<8x16x128xf32, #tpu.memory_space<vmem>>, vector<8x16x128xf32>
    %314 = vector.shape_cast %312 : vector<8x128xf32> to vector<8x1x128xf32>
    %315 = vector.broadcast %314 : vector<8x1x128xf32> to vector<8x16x128xf32>
    %316 = arith.addf %313, %315 : vector<8x16x128xf32>
    %317 = math.tanh %316 : vector<8x16x128xf32>
    %c0_132 = arith.constant 0 : index
    %c0_133 = arith.constant 0 : index
    %318 = vector.load %arg7[%c0_132, %c0_133] : memref<1x128xf32, #tpu.memory_space<vmem>>, vector<1x128xf32>
    %319 = vector.shape_cast %318 : vector<1x128xf32> to vector<1x1x128xf32>
    %320 = vector.broadcast %319 : vector<1x1x128xf32> to vector<8x16x128xf32>
    %321 = arith.mulf %317, %320 : vector<8x16x128xf32>
    %cst_134 = arith.constant dense<0.000000e+00> : vector<8x16xf32>
    %322 = vector.multi_reduction <add>, %321, %cst_134 [2] : vector<8x16x128xf32> to vector<8x16xf32>
    %323 = vector.broadcast %0 : f32 to vector<8x16xf32>
    %324 = arith.addf %322, %323 : vector<8x16xf32>
    %cst_135 = arith.constant dense<0xFF800000> : vector<8xf32>
    %325 = vector.multi_reduction <maximumf>, %324, %cst_135 [1] : vector<8x16xf32> to vector<8xf32>
    %326 = vector.shape_cast %325 : vector<8xf32> to vector<8x1xf32>
    %327 = vector.broadcast %326 : vector<8x1xf32> to vector<8x16xf32>
    %328 = arith.subf %324, %327 : vector<8x16xf32>
    %329 = math.exp %328 : vector<8x16xf32>
    %cst_136 = arith.constant dense<0.000000e+00> : vector<8xf32>
    %330 = vector.multi_reduction <add>, %329, %cst_136 [1] : vector<8x16xf32> to vector<8xf32>
    %331 = vector.shape_cast %330 : vector<8xf32> to vector<8x1xf32>
    %332 = vector.broadcast %331 : vector<8x1xf32> to vector<8x16xf32>
    %333 = arith.divf %329, %332 : vector<8x16xf32>
    %c0_137 = arith.constant 0 : index
    %c0_138 = arith.constant 0 : index
    %c0_139 = arith.constant 0 : index
    %334 = vector.load %arg0[%c0_137, %c0_138, %c0_139] : memref<8x16x128xf32, #tpu.memory_space<vmem>>, vector<8x16x128xf32>
    %335 = vector.shape_cast %333 : vector<8x16xf32> to vector<8x16x1xf32>
    %336 = vector.broadcast %335 : vector<8x16x1xf32> to vector<8x16x128xf32>
    %337 = arith.mulf %334, %336 : vector<8x16x128xf32>
    %cst_140 = arith.constant dense<0.000000e+00> : vector<8x128xf32>
    %338 = vector.multi_reduction <add>, %337, %cst_140 [1] : vector<8x16x128xf32> to vector<8x128xf32>
    %339 = arith.truncf %338 : vector<8x128xf32> to vector<8x128xbf16>
    %340 = tpu.concatenate %339, %307 in 1 : vector<8x128xbf16>, vector<8x128xbf16> -> vector<8x256xbf16>
    %341 = arith.index_cast %c4_i32 : i32 to index
    %c0_141 = arith.constant 0 : index
    %c0_142 = arith.constant 0 : index
    %342 = vector.load %arg2[%341, %c0_141, %c0_142] : memref<8x8x512xf32, #tpu.memory_space<vmem>>, vector<1x8x512xf32>
    %343 = vector.shape_cast %342 : vector<1x8x512xf32> to vector<8x512xf32>
    %c0_143 = arith.constant 0 : index
    %c0_144 = arith.constant 0 : index
    %344 = vector.load %arg9[%c0_143, %c0_144] : memref<256x512xbf16, #tpu.memory_space<vmem>>, vector<256x512xbf16>
    %cst_145 = arith.constant dense<0.000000e+00> : vector<8x512xf32>
    %345 = tpu.matmul %340, %344, %cst_145 {dimension_numbers = #tpu.dot_dimension_numbers<[1], [0], [0], [1], [0, 0, 1, 1], [], []>} : vector<8x256xbf16>, vector<256x512xbf16>, vector<8x512xf32> -> vector<8x512xf32>
    %346 = arith.addf %343, %345 : vector<8x512xf32>
    %347 = vector.extract_strided_slice %346 {offsets = [0, 0], sizes = [8, 128], strides = [1, 1]} : vector<8x512xf32> to vector<8x128xf32>
    %348 = arith.negf %347 : vector<8x128xf32>
    %349 = math.exp %348 : vector<8x128xf32>
    %cst_146 = arith.constant 1.000000e+00 : f32
    %350 = vector.broadcast %cst_146 : f32 to vector<8x128xf32>
    %351 = arith.addf %350, %349 : vector<8x128xf32>
    %352 = arith.divf %350, %351 : vector<8x128xf32>
    %353 = vector.extract_strided_slice %346 {offsets = [0, 128], sizes = [8, 128], strides = [1, 1]} : vector<8x512xf32> to vector<8x128xf32>
    %354 = arith.negf %353 : vector<8x128xf32>
    %355 = math.exp %354 : vector<8x128xf32>
    %cst_147 = arith.constant 1.000000e+00 : f32
    %356 = vector.broadcast %cst_147 : f32 to vector<8x128xf32>
    %357 = arith.addf %356, %355 : vector<8x128xf32>
    %358 = arith.divf %356, %357 : vector<8x128xf32>
    %359 = vector.extract_strided_slice %346 {offsets = [0, 256], sizes = [8, 128], strides = [1, 1]} : vector<8x512xf32> to vector<8x128xf32>
    %360 = math.tanh %359 : vector<8x128xf32>
    %361 = vector.extract_strided_slice %346 {offsets = [0, 384], sizes = [8, 128], strides = [1, 1]} : vector<8x512xf32> to vector<8x128xf32>
    %362 = arith.negf %361 : vector<8x128xf32>
    %363 = math.exp %362 : vector<8x128xf32>
    %cst_148 = arith.constant 1.000000e+00 : f32
    %364 = vector.broadcast %cst_148 : f32 to vector<8x128xf32>
    %365 = arith.addf %364, %363 : vector<8x128xf32>
    %366 = arith.divf %364, %365 : vector<8x128xf32>
    %367 = arith.mulf %358, %293 : vector<8x128xf32>
    %368 = arith.mulf %352, %360 : vector<8x128xf32>
    %369 = arith.addf %367, %368 : vector<8x128xf32>
    %370 = math.tanh %369 : vector<8x128xf32>
    %371 = arith.mulf %366, %370 : vector<8x128xf32>
    %372 = arith.index_cast %c4_i32 : i32 to index
    %c0_149 = arith.constant 0 : index
    %c0_150 = arith.constant 0 : index
    %373 = vector.load %arg10[%372, %c0_149, %c0_150] : memref<8x8x128xf32, #tpu.memory_space<vmem>>, vector<1x8x128xf32>
    %374 = vector.shape_cast %373 : vector<1x8x128xf32> to vector<8x128xf32>
    %375 = vector.shape_cast %371 : vector<8x128xf32> to vector<1x8x128xf32>
    tpu.vector_store %arg10[%372, %c0_149, %c0_150], %375 {strides = array<i32>} : memref<8x8x128xf32, #tpu.memory_space<vmem>>, vector<1x8x128xf32>,
    %c0_i32_151 = arith.constant 0 : i32
    %376 = arith.sitofp %c0_i32_151 : i32 to f32
    %377 = vector.broadcast %376 : f32 to vector<8x112xf32>
    %378 = tpu.concatenate %333, %377 in 1 : vector<8x16xf32>, vector<8x112xf32> -> vector<8x128xf32>
    %379 = arith.index_cast %c4_i32 : i32 to index
    %c0_152 = arith.constant 0 : index
    %c0_153 = arith.constant 0 : index
    %380 = vector.load %arg11[%379, %c0_152, %c0_153] : memref<8x8x128xf32, #tpu.memory_space<vmem>>, vector<1x8x128xf32>
    %381 = vector.shape_cast %380 : vector<1x8x128xf32> to vector<8x128xf32>
    %382 = vector.shape_cast %378 : vector<8x128xf32> to vector<1x8x128xf32>
    tpu.vector_store %arg11[%379, %c0_152, %c0_153], %382 {strides = array<i32>} : memref<8x8x128xf32, #tpu.memory_space<vmem>>, vector<1x8x128xf32>,
    %c5_i32 = arith.constant 5 : i32
    %383 = arith.truncf %371 : vector<8x128xf32> to vector<8x128xbf16>
    %c0_154 = arith.constant 0 : index
    %c0_155 = arith.constant 0 : index
    %384 = vector.load %arg5[%c0_154, %c0_155] : memref<128x128xbf16, #tpu.memory_space<vmem>>, vector<128x128xbf16>
    %cst_156 = arith.constant dense<0.000000e+00> : vector<8x128xf32>
    %385 = tpu.matmul %383, %384, %cst_156 {dimension_numbers = #tpu.dot_dimension_numbers<[1], [0], [0], [1], [0, 0, 1, 1], [], []>} : vector<8x128xbf16>, vector<128x128xbf16>, vector<8x128xf32> -> vector<8x128xf32>
    %c0_157 = arith.constant 0 : index
    %c0_158 = arith.constant 0 : index
    %386 = vector.load %arg6[%c0_157, %c0_158] : memref<1x128xf32, #tpu.memory_space<vmem>>, vector<1x128xf32>
    %387 = vector.broadcast %386 : vector<1x128xf32> to vector<8x128xf32>
    %388 = arith.addf %385, %387 : vector<8x128xf32>
    %c0_159 = arith.constant 0 : index
    %c0_160 = arith.constant 0 : index
    %c0_161 = arith.constant 0 : index
    %389 = vector.load %arg1[%c0_159, %c0_160, %c0_161] : memref<8x16x128xf32, #tpu.memory_space<vmem>>, vector<8x16x128xf32>
    %390 = vector.shape_cast %388 : vector<8x128xf32> to vector<8x1x128xf32>
    %391 = vector.broadcast %390 : vector<8x1x128xf32> to vector<8x16x128xf32>
    %392 = arith.addf %389, %391 : vector<8x16x128xf32>
    %393 = math.tanh %392 : vector<8x16x128xf32>
    %c0_162 = arith.constant 0 : index
    %c0_163 = arith.constant 0 : index
    %394 = vector.load %arg7[%c0_162, %c0_163] : memref<1x128xf32, #tpu.memory_space<vmem>>, vector<1x128xf32>
    %395 = vector.shape_cast %394 : vector<1x128xf32> to vector<1x1x128xf32>
    %396 = vector.broadcast %395 : vector<1x1x128xf32> to vector<8x16x128xf32>
    %397 = arith.mulf %393, %396 : vector<8x16x128xf32>
    %cst_164 = arith.constant dense<0.000000e+00> : vector<8x16xf32>
    %398 = vector.multi_reduction <add>, %397, %cst_164 [2] : vector<8x16x128xf32> to vector<8x16xf32>
    %399 = vector.broadcast %0 : f32 to vector<8x16xf32>
    %400 = arith.addf %398, %399 : vector<8x16xf32>
    %cst_165 = arith.constant dense<0xFF800000> : vector<8xf32>
    %401 = vector.multi_reduction <maximumf>, %400, %cst_165 [1] : vector<8x16xf32> to vector<8xf32>
    %402 = vector.shape_cast %401 : vector<8xf32> to vector<8x1xf32>
    %403 = vector.broadcast %402 : vector<8x1xf32> to vector<8x16xf32>
    %404 = arith.subf %400, %403 : vector<8x16xf32>
    %405 = math.exp %404 : vector<8x16xf32>
    %cst_166 = arith.constant dense<0.000000e+00> : vector<8xf32>
    %406 = vector.multi_reduction <add>, %405, %cst_166 [1] : vector<8x16xf32> to vector<8xf32>
    %407 = vector.shape_cast %406 : vector<8xf32> to vector<8x1xf32>
    %408 = vector.broadcast %407 : vector<8x1xf32> to vector<8x16xf32>
    %409 = arith.divf %405, %408 : vector<8x16xf32>
    %c0_167 = arith.constant 0 : index
    %c0_168 = arith.constant 0 : index
    %c0_169 = arith.constant 0 : index
    %410 = vector.load %arg0[%c0_167, %c0_168, %c0_169] : memref<8x16x128xf32, #tpu.memory_space<vmem>>, vector<8x16x128xf32>
    %411 = vector.shape_cast %409 : vector<8x16xf32> to vector<8x16x1xf32>
    %412 = vector.broadcast %411 : vector<8x16x1xf32> to vector<8x16x128xf32>
    %413 = arith.mulf %410, %412 : vector<8x16x128xf32>
    %cst_170 = arith.constant dense<0.000000e+00> : vector<8x128xf32>
    %414 = vector.multi_reduction <add>, %413, %cst_170 [1] : vector<8x16x128xf32> to vector<8x128xf32>
    %415 = arith.truncf %414 : vector<8x128xf32> to vector<8x128xbf16>
    %416 = tpu.concatenate %415, %383 in 1 : vector<8x128xbf16>, vector<8x128xbf16> -> vector<8x256xbf16>
    %417 = arith.index_cast %c5_i32 : i32 to index
    %c0_171 = arith.constant 0 : index
    %c0_172 = arith.constant 0 : index
    %418 = vector.load %arg2[%417, %c0_171, %c0_172] : memref<8x8x512xf32, #tpu.memory_space<vmem>>, vector<1x8x512xf32>
    %419 = vector.shape_cast %418 : vector<1x8x512xf32> to vector<8x512xf32>
    %c0_173 = arith.constant 0 : index
    %c0_174 = arith.constant 0 : index
    %420 = vector.load %arg9[%c0_173, %c0_174] : memref<256x512xbf16, #tpu.memory_space<vmem>>, vector<256x512xbf16>
    %cst_175 = arith.constant dense<0.000000e+00> : vector<8x512xf32>
    %421 = tpu.matmul %416, %420, %cst_175 {dimension_numbers = #tpu.dot_dimension_numbers<[1], [0], [0], [1], [0, 0, 1, 1], [], []>} : vector<8x256xbf16>, vector<256x512xbf16>, vector<8x512xf32> -> vector<8x512xf32>
    %422 = arith.addf %419, %421 : vector<8x512xf32>
    %423 = vector.extract_strided_slice %422 {offsets = [0, 0], sizes = [8, 128], strides = [1, 1]} : vector<8x512xf32> to vector<8x128xf32>
    %424 = arith.negf %423 : vector<8x128xf32>
    %425 = math.exp %424 : vector<8x128xf32>
    %cst_176 = arith.constant 1.000000e+00 : f32
    %426 = vector.broadcast %cst_176 : f32 to vector<8x128xf32>
    %427 = arith.addf %426, %425 : vector<8x128xf32>
    %428 = arith.divf %426, %427 : vector<8x128xf32>
    %429 = vector.extract_strided_slice %422 {offsets = [0, 128], sizes = [8, 128], strides = [1, 1]} : vector<8x512xf32> to vector<8x128xf32>
    %430 = arith.negf %429 : vector<8x128xf32>
    %431 = math.exp %430 : vector<8x128xf32>
    %cst_177 = arith.constant 1.000000e+00 : f32
    %432 = vector.broadcast %cst_177 : f32 to vector<8x128xf32>
    %433 = arith.addf %432, %431 : vector<8x128xf32>
    %434 = arith.divf %432, %433 : vector<8x128xf32>
    %435 = vector.extract_strided_slice %422 {offsets = [0, 256], sizes = [8, 128], strides = [1, 1]} : vector<8x512xf32> to vector<8x128xf32>
    %436 = math.tanh %435 : vector<8x128xf32>
    %437 = vector.extract_strided_slice %422 {offsets = [0, 384], sizes = [8, 128], strides = [1, 1]} : vector<8x512xf32> to vector<8x128xf32>
    %438 = arith.negf %437 : vector<8x128xf32>
    %439 = math.exp %438 : vector<8x128xf32>
    %cst_178 = arith.constant 1.000000e+00 : f32
    %440 = vector.broadcast %cst_178 : f32 to vector<8x128xf32>
    %441 = arith.addf %440, %439 : vector<8x128xf32>
    %442 = arith.divf %440, %441 : vector<8x128xf32>
    %443 = arith.mulf %434, %369 : vector<8x128xf32>
    %444 = arith.mulf %428, %436 : vector<8x128xf32>
    %445 = arith.addf %443, %444 : vector<8x128xf32>
    %446 = math.tanh %445 : vector<8x128xf32>
    %447 = arith.mulf %442, %446 : vector<8x128xf32>
    %448 = arith.index_cast %c5_i32 : i32 to index
    %c0_179 = arith.constant 0 : index
    %c0_180 = arith.constant 0 : index
    %449 = vector.load %arg10[%448, %c0_179, %c0_180] : memref<8x8x128xf32, #tpu.memory_space<vmem>>, vector<1x8x128xf32>
    %450 = vector.shape_cast %449 : vector<1x8x128xf32> to vector<8x128xf32>
    %451 = vector.shape_cast %447 : vector<8x128xf32> to vector<1x8x128xf32>
    tpu.vector_store %arg10[%448, %c0_179, %c0_180], %451 {strides = array<i32>} : memref<8x8x128xf32, #tpu.memory_space<vmem>>, vector<1x8x128xf32>,
    %c0_i32_181 = arith.constant 0 : i32
    %452 = arith.sitofp %c0_i32_181 : i32 to f32
    %453 = vector.broadcast %452 : f32 to vector<8x112xf32>
    %454 = tpu.concatenate %409, %453 in 1 : vector<8x16xf32>, vector<8x112xf32> -> vector<8x128xf32>
    %455 = arith.index_cast %c5_i32 : i32 to index
    %c0_182 = arith.constant 0 : index
    %c0_183 = arith.constant 0 : index
    %456 = vector.load %arg11[%455, %c0_182, %c0_183] : memref<8x8x128xf32, #tpu.memory_space<vmem>>, vector<1x8x128xf32>
    %457 = vector.shape_cast %456 : vector<1x8x128xf32> to vector<8x128xf32>
    %458 = vector.shape_cast %454 : vector<8x128xf32> to vector<1x8x128xf32>
    tpu.vector_store %arg11[%455, %c0_182, %c0_183], %458 {strides = array<i32>} : memref<8x8x128xf32, #tpu.memory_space<vmem>>, vector<1x8x128xf32>,
    %c6_i32 = arith.constant 6 : i32
    %459 = arith.truncf %447 : vector<8x128xf32> to vector<8x128xbf16>
    %c0_184 = arith.constant 0 : index
    %c0_185 = arith.constant 0 : index
    %460 = vector.load %arg5[%c0_184, %c0_185] : memref<128x128xbf16, #tpu.memory_space<vmem>>, vector<128x128xbf16>
    %cst_186 = arith.constant dense<0.000000e+00> : vector<8x128xf32>
    %461 = tpu.matmul %459, %460, %cst_186 {dimension_numbers = #tpu.dot_dimension_numbers<[1], [0], [0], [1], [0, 0, 1, 1], [], []>} : vector<8x128xbf16>, vector<128x128xbf16>, vector<8x128xf32> -> vector<8x128xf32>
    %c0_187 = arith.constant 0 : index
    %c0_188 = arith.constant 0 : index
    %462 = vector.load %arg6[%c0_187, %c0_188] : memref<1x128xf32, #tpu.memory_space<vmem>>, vector<1x128xf32>
    %463 = vector.broadcast %462 : vector<1x128xf32> to vector<8x128xf32>
    %464 = arith.addf %461, %463 : vector<8x128xf32>
    %c0_189 = arith.constant 0 : index
    %c0_190 = arith.constant 0 : index
    %c0_191 = arith.constant 0 : index
    %465 = vector.load %arg1[%c0_189, %c0_190, %c0_191] : memref<8x16x128xf32, #tpu.memory_space<vmem>>, vector<8x16x128xf32>
    %466 = vector.shape_cast %464 : vector<8x128xf32> to vector<8x1x128xf32>
    %467 = vector.broadcast %466 : vector<8x1x128xf32> to vector<8x16x128xf32>
    %468 = arith.addf %465, %467 : vector<8x16x128xf32>
    %469 = math.tanh %468 : vector<8x16x128xf32>
    %c0_192 = arith.constant 0 : index
    %c0_193 = arith.constant 0 : index
    %470 = vector.load %arg7[%c0_192, %c0_193] : memref<1x128xf32, #tpu.memory_space<vmem>>, vector<1x128xf32>
    %471 = vector.shape_cast %470 : vector<1x128xf32> to vector<1x1x128xf32>
    %472 = vector.broadcast %471 : vector<1x1x128xf32> to vector<8x16x128xf32>
    %473 = arith.mulf %469, %472 : vector<8x16x128xf32>
    %cst_194 = arith.constant dense<0.000000e+00> : vector<8x16xf32>
    %474 = vector.multi_reduction <add>, %473, %cst_194 [2] : vector<8x16x128xf32> to vector<8x16xf32>
    %475 = vector.broadcast %0 : f32 to vector<8x16xf32>
    %476 = arith.addf %474, %475 : vector<8x16xf32>
    %cst_195 = arith.constant dense<0xFF800000> : vector<8xf32>
    %477 = vector.multi_reduction <maximumf>, %476, %cst_195 [1] : vector<8x16xf32> to vector<8xf32>
    %478 = vector.shape_cast %477 : vector<8xf32> to vector<8x1xf32>
    %479 = vector.broadcast %478 : vector<8x1xf32> to vector<8x16xf32>
    %480 = arith.subf %476, %479 : vector<8x16xf32>
    %481 = math.exp %480 : vector<8x16xf32>
    %cst_196 = arith.constant dense<0.000000e+00> : vector<8xf32>
    %482 = vector.multi_reduction <add>, %481, %cst_196 [1] : vector<8x16xf32> to vector<8xf32>
    %483 = vector.shape_cast %482 : vector<8xf32> to vector<8x1xf32>
    %484 = vector.broadcast %483 : vector<8x1xf32> to vector<8x16xf32>
    %485 = arith.divf %481, %484 : vector<8x16xf32>
    %c0_197 = arith.constant 0 : index
    %c0_198 = arith.constant 0 : index
    %c0_199 = arith.constant 0 : index
    %486 = vector.load %arg0[%c0_197, %c0_198, %c0_199] : memref<8x16x128xf32, #tpu.memory_space<vmem>>, vector<8x16x128xf32>
    %487 = vector.shape_cast %485 : vector<8x16xf32> to vector<8x16x1xf32>
    %488 = vector.broadcast %487 : vector<8x16x1xf32> to vector<8x16x128xf32>
    %489 = arith.mulf %486, %488 : vector<8x16x128xf32>
    %cst_200 = arith.constant dense<0.000000e+00> : vector<8x128xf32>
    %490 = vector.multi_reduction <add>, %489, %cst_200 [1] : vector<8x16x128xf32> to vector<8x128xf32>
    %491 = arith.truncf %490 : vector<8x128xf32> to vector<8x128xbf16>
    %492 = tpu.concatenate %491, %459 in 1 : vector<8x128xbf16>, vector<8x128xbf16> -> vector<8x256xbf16>
    %493 = arith.index_cast %c6_i32 : i32 to index
    %c0_201 = arith.constant 0 : index
    %c0_202 = arith.constant 0 : index
    %494 = vector.load %arg2[%493, %c0_201, %c0_202] : memref<8x8x512xf32, #tpu.memory_space<vmem>>, vector<1x8x512xf32>
    %495 = vector.shape_cast %494 : vector<1x8x512xf32> to vector<8x512xf32>
    %c0_203 = arith.constant 0 : index
    %c0_204 = arith.constant 0 : index
    %496 = vector.load %arg9[%c0_203, %c0_204] : memref<256x512xbf16, #tpu.memory_space<vmem>>, vector<256x512xbf16>
    %cst_205 = arith.constant dense<0.000000e+00> : vector<8x512xf32>
    %497 = tpu.matmul %492, %496, %cst_205 {dimension_numbers = #tpu.dot_dimension_numbers<[1], [0], [0], [1], [0, 0, 1, 1], [], []>} : vector<8x256xbf16>, vector<256x512xbf16>, vector<8x512xf32> -> vector<8x512xf32>
    %498 = arith.addf %495, %497 : vector<8x512xf32>
    %499 = vector.extract_strided_slice %498 {offsets = [0, 0], sizes = [8, 128], strides = [1, 1]} : vector<8x512xf32> to vector<8x128xf32>
    %500 = arith.negf %499 : vector<8x128xf32>
    %501 = math.exp %500 : vector<8x128xf32>
    %cst_206 = arith.constant 1.000000e+00 : f32
    %502 = vector.broadcast %cst_206 : f32 to vector<8x128xf32>
    %503 = arith.addf %502, %501 : vector<8x128xf32>
    %504 = arith.divf %502, %503 : vector<8x128xf32>
    %505 = vector.extract_strided_slice %498 {offsets = [0, 128], sizes = [8, 128], strides = [1, 1]} : vector<8x512xf32> to vector<8x128xf32>
    %506 = arith.negf %505 : vector<8x128xf32>
    %507 = math.exp %506 : vector<8x128xf32>
    %cst_207 = arith.constant 1.000000e+00 : f32
    %508 = vector.broadcast %cst_207 : f32 to vector<8x128xf32>
    %509 = arith.addf %508, %507 : vector<8x128xf32>
    %510 = arith.divf %508, %509 : vector<8x128xf32>
    %511 = vector.extract_strided_slice %498 {offsets = [0, 256], sizes = [8, 128], strides = [1, 1]} : vector<8x512xf32> to vector<8x128xf32>
    %512 = math.tanh %511 : vector<8x128xf32>
    %513 = vector.extract_strided_slice %498 {offsets = [0, 384], sizes = [8, 128], strides = [1, 1]} : vector<8x512xf32> to vector<8x128xf32>
    %514 = arith.negf %513 : vector<8x128xf32>
    %515 = math.exp %514 : vector<8x128xf32>
    %cst_208 = arith.constant 1.000000e+00 : f32
    %516 = vector.broadcast %cst_208 : f32 to vector<8x128xf32>
    %517 = arith.addf %516, %515 : vector<8x128xf32>
    %518 = arith.divf %516, %517 : vector<8x128xf32>
    %519 = arith.mulf %510, %445 : vector<8x128xf32>
    %520 = arith.mulf %504, %512 : vector<8x128xf32>
    %521 = arith.addf %519, %520 : vector<8x128xf32>
    %522 = math.tanh %521 : vector<8x128xf32>
    %523 = arith.mulf %518, %522 : vector<8x128xf32>
    %524 = arith.index_cast %c6_i32 : i32 to index
    %c0_209 = arith.constant 0 : index
    %c0_210 = arith.constant 0 : index
    %525 = vector.load %arg10[%524, %c0_209, %c0_210] : memref<8x8x128xf32, #tpu.memory_space<vmem>>, vector<1x8x128xf32>
    %526 = vector.shape_cast %525 : vector<1x8x128xf32> to vector<8x128xf32>
    %527 = vector.shape_cast %523 : vector<8x128xf32> to vector<1x8x128xf32>
    tpu.vector_store %arg10[%524, %c0_209, %c0_210], %527 {strides = array<i32>} : memref<8x8x128xf32, #tpu.memory_space<vmem>>, vector<1x8x128xf32>,
    %c0_i32_211 = arith.constant 0 : i32
    %528 = arith.sitofp %c0_i32_211 : i32 to f32
    %529 = vector.broadcast %528 : f32 to vector<8x112xf32>
    %530 = tpu.concatenate %485, %529 in 1 : vector<8x16xf32>, vector<8x112xf32> -> vector<8x128xf32>
    %531 = arith.index_cast %c6_i32 : i32 to index
    %c0_212 = arith.constant 0 : index
    %c0_213 = arith.constant 0 : index
    %532 = vector.load %arg11[%531, %c0_212, %c0_213] : memref<8x8x128xf32, #tpu.memory_space<vmem>>, vector<1x8x128xf32>
    %533 = vector.shape_cast %532 : vector<1x8x128xf32> to vector<8x128xf32>
    %534 = vector.shape_cast %530 : vector<8x128xf32> to vector<1x8x128xf32>
    tpu.vector_store %arg11[%531, %c0_212, %c0_213], %534 {strides = array<i32>} : memref<8x8x128xf32, #tpu.memory_space<vmem>>, vector<1x8x128xf32>,
    %c7_i32 = arith.constant 7 : i32
    %535 = arith.truncf %523 : vector<8x128xf32> to vector<8x128xbf16>
    %c0_214 = arith.constant 0 : index
    %c0_215 = arith.constant 0 : index
    %536 = vector.load %arg5[%c0_214, %c0_215] : memref<128x128xbf16, #tpu.memory_space<vmem>>, vector<128x128xbf16>
    %cst_216 = arith.constant dense<0.000000e+00> : vector<8x128xf32>
    %537 = tpu.matmul %535, %536, %cst_216 {dimension_numbers = #tpu.dot_dimension_numbers<[1], [0], [0], [1], [0, 0, 1, 1], [], []>} : vector<8x128xbf16>, vector<128x128xbf16>, vector<8x128xf32> -> vector<8x128xf32>
    %c0_217 = arith.constant 0 : index
    %c0_218 = arith.constant 0 : index
    %538 = vector.load %arg6[%c0_217, %c0_218] : memref<1x128xf32, #tpu.memory_space<vmem>>, vector<1x128xf32>
    %539 = vector.broadcast %538 : vector<1x128xf32> to vector<8x128xf32>
    %540 = arith.addf %537, %539 : vector<8x128xf32>
    %c0_219 = arith.constant 0 : index
    %c0_220 = arith.constant 0 : index
    %c0_221 = arith.constant 0 : index
    %541 = vector.load %arg1[%c0_219, %c0_220, %c0_221] : memref<8x16x128xf32, #tpu.memory_space<vmem>>, vector<8x16x128xf32>
    %542 = vector.shape_cast %540 : vector<8x128xf32> to vector<8x1x128xf32>
    %543 = vector.broadcast %542 : vector<8x1x128xf32> to vector<8x16x128xf32>
    %544 = arith.addf %541, %543 : vector<8x16x128xf32>
    %545 = math.tanh %544 : vector<8x16x128xf32>
    %c0_222 = arith.constant 0 : index
    %c0_223 = arith.constant 0 : index
    %546 = vector.load %arg7[%c0_222, %c0_223] : memref<1x128xf32, #tpu.memory_space<vmem>>, vector<1x128xf32>
    %547 = vector.shape_cast %546 : vector<1x128xf32> to vector<1x1x128xf32>
    %548 = vector.broadcast %547 : vector<1x1x128xf32> to vector<8x16x128xf32>
    %549 = arith.mulf %545, %548 : vector<8x16x128xf32>
    %cst_224 = arith.constant dense<0.000000e+00> : vector<8x16xf32>
    %550 = vector.multi_reduction <add>, %549, %cst_224 [2] : vector<8x16x128xf32> to vector<8x16xf32>
    %551 = vector.broadcast %0 : f32 to vector<8x16xf32>
    %552 = arith.addf %550, %551 : vector<8x16xf32>
    %cst_225 = arith.constant dense<0xFF800000> : vector<8xf32>
    %553 = vector.multi_reduction <maximumf>, %552, %cst_225 [1] : vector<8x16xf32> to vector<8xf32>
    %554 = vector.shape_cast %553 : vector<8xf32> to vector<8x1xf32>
    %555 = vector.broadcast %554 : vector<8x1xf32> to vector<8x16xf32>
    %556 = arith.subf %552, %555 : vector<8x16xf32>
    %557 = math.exp %556 : vector<8x16xf32>
    %cst_226 = arith.constant dense<0.000000e+00> : vector<8xf32>
    %558 = vector.multi_reduction <add>, %557, %cst_226 [1] : vector<8x16xf32> to vector<8xf32>
    %559 = vector.shape_cast %558 : vector<8xf32> to vector<8x1xf32>
    %560 = vector.broadcast %559 : vector<8x1xf32> to vector<8x16xf32>
    %561 = arith.divf %557, %560 : vector<8x16xf32>
    %c0_227 = arith.constant 0 : index
    %c0_228 = arith.constant 0 : index
    %c0_229 = arith.constant 0 : index
    %562 = vector.load %arg0[%c0_227, %c0_228, %c0_229] : memref<8x16x128xf32, #tpu.memory_space<vmem>>, vector<8x16x128xf32>
    %563 = vector.shape_cast %561 : vector<8x16xf32> to vector<8x16x1xf32>
    %564 = vector.broadcast %563 : vector<8x16x1xf32> to vector<8x16x128xf32>
    %565 = arith.mulf %562, %564 : vector<8x16x128xf32>
    %cst_230 = arith.constant dense<0.000000e+00> : vector<8x128xf32>
    %566 = vector.multi_reduction <add>, %565, %cst_230 [1] : vector<8x16x128xf32> to vector<8x128xf32>
    %567 = arith.truncf %566 : vector<8x128xf32> to vector<8x128xbf16>
    %568 = tpu.concatenate %567, %535 in 1 : vector<8x128xbf16>, vector<8x128xbf16> -> vector<8x256xbf16>
    %569 = arith.index_cast %c7_i32 : i32 to index
    %c0_231 = arith.constant 0 : index
    %c0_232 = arith.constant 0 : index
    %570 = vector.load %arg2[%569, %c0_231, %c0_232] : memref<8x8x512xf32, #tpu.memory_space<vmem>>, vector<1x8x512xf32>
    %571 = vector.shape_cast %570 : vector<1x8x512xf32> to vector<8x512xf32>
    %c0_233 = arith.constant 0 : index
    %c0_234 = arith.constant 0 : index
    %572 = vector.load %arg9[%c0_233, %c0_234] : memref<256x512xbf16, #tpu.memory_space<vmem>>, vector<256x512xbf16>
    %cst_235 = arith.constant dense<0.000000e+00> : vector<8x512xf32>
    %573 = tpu.matmul %568, %572, %cst_235 {dimension_numbers = #tpu.dot_dimension_numbers<[1], [0], [0], [1], [0, 0, 1, 1], [], []>} : vector<8x256xbf16>, vector<256x512xbf16>, vector<8x512xf32> -> vector<8x512xf32>
    %574 = arith.addf %571, %573 : vector<8x512xf32>
    %575 = vector.extract_strided_slice %574 {offsets = [0, 0], sizes = [8, 128], strides = [1, 1]} : vector<8x512xf32> to vector<8x128xf32>
    %576 = arith.negf %575 : vector<8x128xf32>
    %577 = math.exp %576 : vector<8x128xf32>
    %cst_236 = arith.constant 1.000000e+00 : f32
    %578 = vector.broadcast %cst_236 : f32 to vector<8x128xf32>
    %579 = arith.addf %578, %577 : vector<8x128xf32>
    %580 = arith.divf %578, %579 : vector<8x128xf32>
    %581 = vector.extract_strided_slice %574 {offsets = [0, 128], sizes = [8, 128], strides = [1, 1]} : vector<8x512xf32> to vector<8x128xf32>
    %582 = arith.negf %581 : vector<8x128xf32>
    %583 = math.exp %582 : vector<8x128xf32>
    %cst_237 = arith.constant 1.000000e+00 : f32
    %584 = vector.broadcast %cst_237 : f32 to vector<8x128xf32>
    %585 = arith.addf %584, %583 : vector<8x128xf32>
    %586 = arith.divf %584, %585 : vector<8x128xf32>
    %587 = vector.extract_strided_slice %574 {offsets = [0, 256], sizes = [8, 128], strides = [1, 1]} : vector<8x512xf32> to vector<8x128xf32>
    %588 = math.tanh %587 : vector<8x128xf32>
    %589 = vector.extract_strided_slice %574 {offsets = [0, 384], sizes = [8, 128], strides = [1, 1]} : vector<8x512xf32> to vector<8x128xf32>
    %590 = arith.negf %589 : vector<8x128xf32>
    %591 = math.exp %590 : vector<8x128xf32>
    %cst_238 = arith.constant 1.000000e+00 : f32
    %592 = vector.broadcast %cst_238 : f32 to vector<8x128xf32>
    %593 = arith.addf %592, %591 : vector<8x128xf32>
    %594 = arith.divf %592, %593 : vector<8x128xf32>
    %595 = arith.mulf %586, %521 : vector<8x128xf32>
    %596 = arith.mulf %580, %588 : vector<8x128xf32>
    %597 = arith.addf %595, %596 : vector<8x128xf32>
    %598 = math.tanh %597 : vector<8x128xf32>
    %599 = arith.mulf %594, %598 : vector<8x128xf32>
    %600 = arith.index_cast %c7_i32 : i32 to index
    %c0_239 = arith.constant 0 : index
    %c0_240 = arith.constant 0 : index
    %601 = vector.load %arg10[%600, %c0_239, %c0_240] : memref<8x8x128xf32, #tpu.memory_space<vmem>>, vector<1x8x128xf32>
    %602 = vector.shape_cast %601 : vector<1x8x128xf32> to vector<8x128xf32>
    %603 = vector.shape_cast %599 : vector<8x128xf32> to vector<1x8x128xf32>
    tpu.vector_store %arg10[%600, %c0_239, %c0_240], %603 {strides = array<i32>} : memref<8x8x128xf32, #tpu.memory_space<vmem>>, vector<1x8x128xf32>,
    %c0_i32_241 = arith.constant 0 : i32
    %604 = arith.sitofp %c0_i32_241 : i32 to f32
    %605 = vector.broadcast %604 : f32 to vector<8x112xf32>
    %606 = tpu.concatenate %561, %605 in 1 : vector<8x16xf32>, vector<8x112xf32> -> vector<8x128xf32>
    %607 = arith.index_cast %c7_i32 : i32 to index
    %c0_242 = arith.constant 0 : index
    %c0_243 = arith.constant 0 : index
    %608 = vector.load %arg11[%607, %c0_242, %c0_243] : memref<8x8x128xf32, #tpu.memory_space<vmem>>, vector<1x8x128xf32>
    %609 = vector.shape_cast %608 : vector<1x8x128xf32> to vector<8x128xf32>
    %610 = vector.shape_cast %606 : vector<8x128xf32> to vector<1x8x128xf32>
    tpu.vector_store %arg11[%607, %c0_242, %c0_243], %610 {strides = array<i32>} : memref<8x8x128xf32, #tpu.memory_space<vmem>>, vector<1x8x128xf32>,
    %c8_i32 = arith.constant 8 : i32
    return
  }
}

</mosaic_0001>

<llo_original>
// kernel: encoder_decoder_forward.1
$region0: #{encoder_decoder_forward.1}
  #allocation0 [shape = 'u32[]', space=smem, size = 0x4, offset = 0x4, fixed_abs, tag = 'smem constant byte address 0x4 - core index']
  #allocation1 [shape = 'u32[72,128]{1,0:T(1,128)}', space=vmem, size = 0x9000, scoped, tag = 'internal scratch']
  #allocation2 [shape = 'f32[1,1]{1,0:T(1,128)S(6)}', space=smem, size = 0x200, scoped, tag = 'scoped memory for encoder_decoder_forward.1']
  %s0 = inlined_call_operand.vmem [shape: f32[8,16,128], index: 0, kind: input, shape index: {}]
  %s1 = inlined_call_operand.vmem [shape: f32[8,16,128], index: 1, kind: input, shape index: {}]
  %s2 = inlined_call_operand.vmem [shape: f32[8,8,512], index: 2, kind: input, shape index: {}]
  %s3 = inlined_call_operand.vmem [shape: f32[8,128], index: 3, kind: input, shape index: {}]
  %s4 = inlined_call_operand.vmem [shape: f32[8,128], index: 4, kind: input, shape index: {}]
  %s5 = inlined_call_operand.vmem [shape: bf16[128,128], index: 5, kind: input, shape index: {}]
  %s6 = inlined_call_operand.vmem [shape: f32[1,128], index: 6, kind: input, shape index: {}]
  %s7 = inlined_call_operand.vmem [shape: f32[1,128], index: 7, kind: input, shape index: {}]
  %s8 = inlined_call_operand.<no memory space> [shape: f32[1,1], index: 8, kind: input, shape index: {}]
  %s9 = inlined_call_operand.vmem [shape: bf16[256,512], index: 9, kind: input, shape index: {}]
  %s10 = inlined_call_operand.vmem [shape: f32[8,8,128], index: 10, kind: output, shape index: {0}]
  %s11 = inlined_call_operand.vmem [shape: f32[8,8,128], index: 11, kind: output, shape index: {1}]
  %12 = xla_tuple %s10, %s11
  %s13 = sld [smem:[#allocation0]]
  $region58: #{encoder_decoder_forward.1} parent=0
    _
  %s15 = ssub.s32 1, %s13
  %s16 = scalar_select 0, %s15, %s13
  %17 = sst [smem:[#allocation2]] %s8
  // Predicated region
  $region2: #{encoder_decoder_forward.1} parent=0 // pred_check
    _
  $region3: #{encoder_decoder_forward.1} parent=0 // pred_check_branch
    %19 = sbr.rel (0) target = $region5
  $region4: #{encoder_decoder_forward.1} parent=0 // pred_region
    _
  $region5: #{encoder_decoder_forward.1} parent=0 // pred_fallthru
    _
  // Predicated region
  $region6: #{encoder_decoder_forward.1} parent=0 // pred_check
    _
  $region7: #{encoder_decoder_forward.1} parent=0 // pred_check_branch
    %21 = sbr.rel (0) target = $region9
  $region8: #{encoder_decoder_forward.1} parent=0 // pred_region
    _
  $region9: #{encoder_decoder_forward.1} parent=0 // pred_fallthru
    _
  // Predicated region
  $region10: #{encoder_decoder_forward.1} parent=0 // pred_check
    _
  $region11: #{encoder_decoder_forward.1} parent=0 // pred_check_branch
    %23 = sbr.rel (0) target = $region13
  $region12: #{encoder_decoder_forward.1} parent=0 // pred_region
    _
  $region13: #{encoder_decoder_forward.1} parent=0 // pred_fallthru
    _
  // Predicated region
  $region14: #{encoder_decoder_forward.1} parent=0 // pred_check
    _
  $region15: #{encoder_decoder_forward.1} parent=0 // pred_check_branch
    %25 = sbr.rel (0) target = $region17
  $region16: #{encoder_decoder_forward.1} parent=0 // pred_region
    _
  $region17: #{encoder_decoder_forward.1} parent=0 // pred_fallthru
    _
  // Predicated region
  $region18: #{encoder_decoder_forward.1} parent=0 // pred_check
    _
  $region19: #{encoder_decoder_forward.1} parent=0 // pred_check_branch
    %27 = sbr.rel (0) target = $region21
  $region20: #{encoder_decoder_forward.1} parent=0 // pred_region
    _
  $region21: #{encoder_decoder_forward.1} parent=0 // pred_fallthru
    _
  // Predicated region
  $region22: #{encoder_decoder_forward.1} parent=0 // pred_check
    _
  $region23: #{encoder_decoder_forward.1} parent=0 // pred_check_branch
    %29 = sbr.rel (0) target = $region25
  $region24: #{encoder_decoder_forward.1} parent=0 // pred_region
    _
  $region25: #{encoder_decoder_forward.1} parent=0 // pred_fallthru
    _
  // Predicated region
  $region26: #{encoder_decoder_forward.1} parent=0 // pred_check
    _
  $region27: #{encoder_decoder_forward.1} parent=0 // pred_check_branch
    %31 = sbr.rel (0) target = $region29
  $region28: #{encoder_decoder_forward.1} parent=0 // pred_region
    _
  $region29: #{encoder_decoder_forward.1} parent=0 // pred_fallthru
    _
  // Predicated region
  $region30: #{encoder_decoder_forward.1} parent=0 // pred_check
    _
  $region31: #{encoder_decoder_forward.1} parent=0 // pred_check_branch
    %33 = sbr.rel (0) target = $region33
  $region32: #{encoder_decoder_forward.1} parent=0 // pred_region
    _
  $region33: #{encoder_decoder_forward.1} parent=0 // pred_fallthru
    _
  // Predicated region
  $region34: #{encoder_decoder_forward.1} parent=0 // pred_check
    _
  $region35: #{encoder_decoder_forward.1} parent=0 // pred_check_branch
    %35 = sbr.rel (0) target = $region37
  $region36: #{encoder_decoder_forward.1} parent=0 // pred_region
    _
  $region37: #{encoder_decoder_forward.1} parent=0 // pred_fallthru
    _
  // Predicated region
  $region38: #{encoder_decoder_forward.1} parent=0 // pred_check
    _
  $region39: #{encoder_decoder_forward.1} parent=0 // pred_check_branch
    %37 = sbr.rel (0) target = $region41
  $region40: #{encoder_decoder_forward.1} parent=0 // pred_region
    _
  $region41: #{encoder_decoder_forward.1} parent=0 // pred_fallthru
    _
  %s38 = sld [smem:[#allocation2]]
  %v39 = vld [vmem:[%s3] sm:$0xff]
  %v40 = vld [vmem:[%s4] sm:$0xff]
  %v41 = vpack.c.bf16 %v39, %v39
  %v42 = vld [vmem:[%s5] sm:$0xf]
  %v43 = vld [vmem:[%s5 + $0x4] sm:$0xf]
  %v44 = vld [vmem:[%s5 + $0x8] sm:$0xf]
  %v45 = vld [vmem:[%s5 + $0xc] sm:$0xf]
  %v46 = vld [vmem:[%s5 + $0x10] sm:$0xf]
  %v47 = vld [vmem:[%s5 + $0x14] sm:$0xf]
  %v48 = vld [vmem:[%s5 + $0x18] sm:$0xf]
  %v49 = vld [vmem:[%s5 + $0x1c] sm:$0xf]
  %v50 = vld [vmem:[%s5 + $0x20] sm:$0xf]
  %v51 = vld [vmem:[%s5 + $0x24] sm:$0xf]
  %v52 = vld [vmem:[%s5 + $0x28] sm:$0xf]
  %v53 = vld [vmem:[%s5 + $0x2c] sm:$0xf]
  %v54 = vld [vmem:[%s5 + $0x30] sm:$0xf]
  %v55 = vld [vmem:[%s5 + $0x34] sm:$0xf]
  %v56 = vld [vmem:[%s5 + $0x38] sm:$0xf]
  %v57 = vld [vmem:[%s5 + $0x3c] sm:$0xf]
  %v58 = vld [vmem:[%s6] sm:$0x1]
  %v60 = vperm.slane %v58, 0
  %v78 = vunpack.c.l.b16 %v42
  %v79 = vunpack.c.l.b16 %v43
  %v80 = vunpack.c.l.b16 %v44
  %v81 = vunpack.c.l.b16 %v45
  %v82 = vunpack.c.l.b16 %v46
  %v83 = vunpack.c.l.b16 %v47
  %v84 = vunpack.c.l.b16 %v48
  %v85 = vunpack.c.l.b16 %v49
  %v86 = vunpack.c.l.b16 %v50
  %v87 = vunpack.c.l.b16 %v51
  %v88 = vunpack.c.l.b16 %v52
  %v89 = vunpack.c.l.b16 %v53
  %v90 = vunpack.c.l.b16 %v54
  %v91 = vunpack.c.l.b16 %v55
  %v92 = vunpack.c.l.b16 %v56
  %v93 = vunpack.c.l.b16 %v57
  %v94 = vpack.c.b16 %v79, %v78
  %v95 = vpack.c.b16 %v81, %v80
  %v96 = vpack.c.b16 %v83, %v82
  %v97 = vpack.c.b16 %v85, %v84
  %v98 = vpack.c.b16 %v87, %v86
  %v99 = vpack.c.b16 %v89, %v88
  %v100 = vpack.c.b16 %v91, %v90
  %v101 = vpack.c.b16 %v93, %v92
  %110 = vmatpush.bf16.msra.mxu0 %v101
  %111 = vmatpush.bf16.msra.mxu0 %v100
  %112 = vmatpush.bf16.msra.mxu0 %v99
  %113 = vmatpush.bf16.msra.mxu0 %v98
  %114 = vmatpush.bf16.msra.mxu0 %v97
  %115 = vmatpush.bf16.msra.mxu0 %v96
  %116 = vmatpush.bf16.msra.mxu0 %v95
  %117 = vmatpush.bf16.msra.mxu0 %v94
  %118 = vmatmul.bf16.gmra.mxu0 %v41
  %v119 = vpop.f32.mrf.mxu0
  %v120 = vadd.f32 %v60, %v119
  %v121 = vpop.f32.mrf.mxu0
  %122 = vdwg.mxu0
  %v123 = vld [vmem:[%s1] sm:$0xff]
  %v124 = vld [vmem:[%s1 + $0x8] sm:$0xff]
  %v125 = vld [vmem:[%s1 + $0x10] sm:$0xff]
  %v126 = vld [vmem:[%s1 + $0x18] sm:$0xff]
  %v127 = vld [vmem:[%s1 + $0x20] sm:$0xff]
  %v128 = vld [vmem:[%s1 + $0x28] sm:$0xff]
  %v129 = vld [vmem:[%s1 + $0x30] sm:$0xff]
  %v130 = vld [vmem:[%s1 + $0x38] sm:$0xff]
  %v131 = vld [vmem:[%s1 + $0x40] sm:$0xff]
  %v132 = vld [vmem:[%s1 + $0x48] sm:$0xff]
  %v133 = vld [vmem:[%s1 + $0x50] sm:$0xff]
  %v134 = vld [vmem:[%s1 + $0x58] sm:$0xff]
  %v135 = vld [vmem:[%s1 + $0x60] sm:$0xff]
  %v136 = vld [vmem:[%s1 + $0x68] sm:$0xff]
  %v137 = vld [vmem:[%s1 + $0x70] sm:$0xff]
  %v138 = vld [vmem:[%s1 + $0x78] sm:$0xff]
  %v140 = vrot.slane %v120, 1
  %v141 = vrot.slane %v120, 2
  %v142 = vrot.slane %v120, 3
  %v143 = vrot.slane %v120, 4
  %v144 = vrot.slane %v120, 5
  %v145 = vrot.slane %v120, 6
  %v146 = vrot.slane %v120, 7
  %v147 = vperm.slane %v120, 0
  %v148 = vperm.slane %v140, 0
  %v149 = vperm.slane %v141, 0
  %v150 = vperm.slane %v142, 0
  %v151 = vperm.slane %v143, 0
  %v152 = vperm.slane %v144, 0
  %v153 = vperm.slane %v145, 0
  %v154 = vperm.slane %v146, 0
  %v163 = vadd.f32 %v123, %v147
  %v164 = vadd.f32 %v124, %v147
  %v165 = vadd.f32 %v125, %v148
  %v166 = vadd.f32 %v126, %v148
  %v167 = vadd.f32 %v127, %v149
  %v168 = vadd.f32 %v128, %v149
  %v169 = vadd.f32 %v129, %v150
  %v170 = vadd.f32 %v130, %v150
  %v171 = vadd.f32 %v131, %v151
  %v172 = vadd.f32 %v132, %v151
  %v173 = vadd.f32 %v133, %v152
  %v174 = vadd.f32 %v134, %v152
  %v175 = vadd.f32 %v135, %v153
  %v176 = vadd.f32 %v136, %v153
  %v177 = vadd.f32 %v137, %v154
  %v178 = vadd.f32 %v138, %v154
  %v179 = vtanh.pop %v163
  %v180 = vtanh.pop %v164
  %v181 = vtanh.pop %v165
  %v182 = vtanh.pop %v166
  %v183 = vtanh.pop %v167
  %v184 = vtanh.pop %v168
  %v185 = vtanh.pop %v169
  %v186 = vtanh.pop %v170
  %v187 = vtanh.pop %v171
  %v188 = vtanh.pop %v172
  %v189 = vtanh.pop %v173
  %v190 = vtanh.pop %v174
  %v191 = vtanh.pop %v175
  %v192 = vtanh.pop %v176
  %v193 = vtanh.pop %v177
  %v194 = vtanh.pop %v178
  %v195 = vld [vmem:[%s7] sm:$0x1]
  %v197 = vperm.slane %v195, 0
  %v199 = vmul.f32 %v179, %v197
  %v200 = vmul.f32 %v180, %v197
  %v201 = vmul.f32 %v181, %v197
  %v202 = vmul.f32 %v182, %v197
  %v203 = vmul.f32 %v183, %v197
  %v204 = vmul.f32 %v184, %v197
  %v205 = vmul.f32 %v185, %v197
  %v206 = vmul.f32 %v186, %v197
  %v207 = vmul.f32 %v187, %v197
  %v208 = vmul.f32 %v188, %v197
  %v209 = vmul.f32 %v189, %v197
  %v210 = vmul.f32 %v190, %v197
  %v211 = vmul.f32 %v191, %v197
  %v212 = vmul.f32 %v192, %v197
  %v213 = vmul.f32 %v193, %v197
  %v214 = vmul.f32 %v194, %v197
  %215 = vadd.xlane.f32.xlu0 %v199
  %v216 = vpop.xlane.xlu0 %215
  %217 = vadd.xlane.f32.xlu0 %v200
  %v218 = vpop.xlane.xlu0 %217
  %219 = vadd.xlane.f32.xlu0 %v201
  %v220 = vpop.xlane.xlu0 %219
  %221 = vadd.xlane.f32.xlu0 %v202
  %v222 = vpop.xlane.xlu0 %221
  %223 = vadd.xlane.f32.xlu0 %v203
  %v224 = vpop.xlane.xlu0 %223
  %225 = vadd.xlane.f32.xlu0 %v204
  %v226 = vpop.xlane.xlu0 %225
  %227 = vadd.xlane.f32.xlu0 %v205
  %v228 = vpop.xlane.xlu0 %227
  %229 = vadd.xlane.f32.xlu0 %v206
  %v230 = vpop.xlane.xlu0 %229
  %231 = vadd.xlane.f32.xlu0 %v207
  %v232 = vpop.xlane.xlu0 %231
  %233 = vadd.xlane.f32.xlu0 %v208
  %v234 = vpop.xlane.xlu0 %233
  %235 = vadd.xlane.f32.xlu0 %v209
  %v236 = vpop.xlane.xlu0 %235
  %237 = vadd.xlane.f32.xlu0 %v210
  %v238 = vpop.xlane.xlu0 %237
  %239 = vadd.xlane.f32.xlu0 %v211
  %v240 = vpop.xlane.xlu0 %239
  %241 = vadd.xlane.f32.xlu0 %v212
  %v242 = vpop.xlane.xlu0 %241
  %243 = vadd.xlane.f32.xlu0 %v213
  %v244 = vpop.xlane.xlu0 %243
  %245 = vadd.xlane.f32.xlu0 %v214
  %v246 = vpop.xlane.xlu0 %245
  %v247 = vstv %s38
  %v248 = vadd.f32 %v216, %v247
  %v249 = vadd.f32 %v218, %v247
  %v250 = vadd.f32 %v220, %v247
  %v251 = vadd.f32 %v222, %v247
  %v252 = vadd.f32 %v224, %v247
  %v253 = vadd.f32 %v226, %v247
  %v254 = vadd.f32 %v228, %v247
  %v255 = vadd.f32 %v230, %v247
  %v256 = vadd.f32 %v232, %v247
  %v257 = vadd.f32 %v234, %v247
  %v258 = vadd.f32 %v236, %v247
  %v259 = vadd.f32 %v238, %v247
  %v260 = vadd.f32 %v240, %v247
  %v261 = vadd.f32 %v242, %v247
  %v262 = vadd.f32 %v244, %v247
  %v263 = vadd.f32 %v246, %v247
  %v280 = vlaneseq
  %v281 = vand.u32 %v280, 127
  %v282 = vperm.slane %v248, %v281
  %v283 = vadd.s32 %v281, 4294967288
  %v284 = vperm.slane %v249, %v283
  %vm285 = vcmask 130112
  %v286 = vsel %vm285, %v284, %v282
  %v287 = vperm.slane %v250, %v281
  %v288 = vperm.slane %v251, %v283
  %v289 = vsel %vm285, %v288, %v287
  %v290 = vperm.slane %v252, %v281
  %v291 = vperm.slane %v253, %v283
  %v292 = vsel %vm285, %v291, %v290
  %v293 = vperm.slane %v254, %v281
  %v294 = vperm.slane %v255, %v283
  %v295 = vsel %vm285, %v294, %v293
  %v296 = vperm.slane %v256, %v281
  %v297 = vperm.slane %v257, %v283
  %v298 = vsel %vm285, %v297, %v296
  %v299 = vperm.slane %v258, %v281
  %v300 = vperm.slane %v259, %v283
  %v301 = vsel %vm285, %v300, %v299
  %v302 = vperm.slane %v260, %v281
  %v303 = vperm.slane %v261, %v283
  %v304 = vsel %vm285, %v303, %v302
  %v305 = vperm.slane %v262, %v281
  %v306 = vperm.slane %v263, %v283
  %v307 = vsel %vm285, %v306, %v305
  %vm308 = vcmask 1041409
  %v309 = vsel %vm308, %v289, %v286
  %vm310 = vcmask 1042434
  %v311 = vsel %vm310, %v292, %v309
  %vm312 = vcmask 1043459
  %v313 = vsel %vm312, %v295, %v311
  %vm314 = vcmask 1044484
  %v315 = vsel %vm314, %v298, %v313
  %vm316 = vcmask 1045509
  %v317 = vsel %vm316, %v301, %v315
  %vm318 = vcmask 1046534
  %v319 = vsel %vm318, %v304, %v317
  %vm320 = vcmask 1047559
  %v321 = vsel %vm320, %v307, %v319
  %vm323 = vcmask 130048
  %v324 = vsel %vm323, %v321, -inf
  %325 = vmax.xlane.f32.xlu0 %v324
  %v326 = vpop.xlane.xlu0 %325
  %v328 = vperm.slane %v326, 0
  %v329 = vperm.slane %v326, 1
  %v330 = vperm.slane %v326, 2
  %v331 = vperm.slane %v326, 3
  %v332 = vperm.slane %v326, 4
  %v333 = vperm.slane %v326, 5
  %v334 = vperm.slane %v326, 6
  %v335 = vperm.slane %v326, 7
  %v344 = vsub.f32 %v248, %v328
  %v345 = vsub.f32 %v249, %v328
  %v346 = vsub.f32 %v250, %v329
  %v347 = vsub.f32 %v251, %v329
  %v348 = vsub.f32 %v252, %v330
  %v349 = vsub.f32 %v253, %v330
  %v350 = vsub.f32 %v254, %v331
  %v351 = vsub.f32 %v255, %v331
  %v352 = vsub.f32 %v256, %v332
  %v353 = vsub.f32 %v257, %v332
  %v354 = vsub.f32 %v258, %v333
  %v355 = vsub.f32 %v259, %v333
  %v356 = vsub.f32 %v260, %v334
  %v357 = vsub.f32 %v261, %v334
  %v358 = vsub.f32 %v262, %v335
  %v359 = vsub.f32 %v263, %v335
  %v360 = vmul.f32 %v344, 1.442695
  %v361 = vpow.pop %v360
  %v362 = vmul.f32 %v345, 1.442695
  %v363 = vpow.pop %v362
  %v364 = vmul.f32 %v346, 1.442695
  %v365 = vpow.pop %v364
  %v366 = vmul.f32 %v347, 1.442695
  %v367 = vpow.pop %v366
  %v368 = vmul.f32 %v348, 1.442695
  %v369 = vpow.pop %v368
  %v370 = vmul.f32 %v349, 1.442695
  %v371 = vpow.pop %v370
  %v372 = vmul.f32 %v350, 1.442695
  %v373 = vpow.pop %v372
  %v374 = vmul.f32 %v351, 1.442695
  %v375 = vpow.pop %v374
  %v376 = vmul.f32 %v352, 1.442695
  %v377 = vpow.pop %v376
  %v378 = vmul.f32 %v353, 1.442695
  %v379 = vpow.pop %v378
  %v380 = vmul.f32 %v354, 1.442695
  %v381 = vpow.pop %v380
  %v382 = vmul.f32 %v355, 1.442695
  %v383 = vpow.pop %v382
  %v384 = vmul.f32 %v356, 1.442695
  %v385 = vpow.pop %v384
  %v386 = vmul.f32 %v357, 1.442695
  %v387 = vpow.pop %v386
  %v388 = vmul.f32 %v358, 1.442695
  %v389 = vpow.pop %v388
  %v390 = vmul.f32 %v359, 1.442695
  %v391 = vpow.pop %v390
  %408 = vset.pattern.permute.xlu0 0
  %409 = vperm.xlu0 %408, %v361
  %v410 = vpop.permute.xlu0 %409
  %411 = vset.pattern.permute.xlu0 0
  %412 = vperm.xlu0 %411, %v363
  %v413 = vpop.permute.xlu0 %412
  %414 = vset.pattern.permute.xlu0 0
  %415 = vperm.xlu0 %414, %v365
  %v416 = vpop.permute.xlu0 %415
  %417 = vset.pattern.permute.xlu0 0
  %418 = vperm.xlu0 %417, %v367
  %v419 = vpop.permute.xlu0 %418
  %420 = vset.pattern.permute.xlu0 0
  %421 = vperm.xlu0 %420, %v369
  %v422 = vpop.permute.xlu0 %421
  %423 = vset.pattern.permute.xlu0 0
  %424 = vperm.xlu0 %423, %v371
  %v425 = vpop.permute.xlu0 %424
  %426 = vset.pattern.permute.xlu0 0
  %427 = vperm.xlu0 %426, %v373
  %v428 = vpop.permute.xlu0 %427
  %429 = vset.pattern.permute.xlu0 0
  %430 = vperm.xlu0 %429, %v375
  %v431 = vpop.permute.xlu0 %430
  %432 = vset.pattern.permute.xlu0 0
  %433 = vperm.xlu0 %432, %v377
  %v434 = vpop.permute.xlu0 %433
  %435 = vset.pattern.permute.xlu0 0
  %436 = vperm.xlu0 %435, %v379
  %v437 = vpop.permute.xlu0 %436
  %438 = vset.pattern.permute.xlu0 0
  %439 = vperm.xlu0 %438, %v381
  %v440 = vpop.permute.xlu0 %439
  %441 = vset.pattern.permute.xlu0 0
  %442 = vperm.xlu0 %441, %v383
  %v443 = vpop.permute.xlu0 %442
  %444 = vset.pattern.permute.xlu0 0
  %445 = vperm.xlu0 %444, %v385
  %v446 = vpop.permute.xlu0 %445
  %447 = vset.pattern.permute.xlu0 0
  %448 = vperm.xlu0 %447, %v387
  %v449 = vpop.permute.xlu0 %448
  %450 = vset.pattern.permute.xlu0 0
  %451 = vperm.xlu0 %450, %v389
  %v452 = vpop.permute.xlu0 %451
  %453 = vset.pattern.permute.xlu0 0
  %454 = vperm.xlu0 %453, %v391
  %v455 = vpop.permute.xlu0 %454
  %v456 = vperm.slane %v410, %v281
  %v457 = vperm.slane %v413, %v283
  %v458 = vsel %vm285, %v457, %v456
  %v459 = vperm.slane %v416, %v281
  %v460 = vperm.slane %v419, %v283
  %v461 = vsel %vm285, %v460, %v459
  %v462 = vperm.slane %v422, %v281
  %v463 = vperm.slane %v425, %v283
  %v464 = vsel %vm285, %v463, %v462
  %v465 = vperm.slane %v428, %v281
  %v466 = vperm.slane %v431, %v283
  %v467 = vsel %vm285, %v466, %v465
  %v468 = vperm.slane %v434, %v281
  %v469 = vperm.slane %v437, %v283
  %v470 = vsel %vm285, %v469, %v468
  %v471 = vperm.slane %v440, %v281
  %v472 = vperm.slane %v443, %v283
  %v473 = vsel %vm285, %v472, %v471
  %v474 = vperm.slane %v446, %v281
  %v475 = vperm.slane %v449, %v283
  %v476 = vsel %vm285, %v475, %v474
  %v477 = vperm.slane %v452, %v281
  %v478 = vperm.slane %v455, %v283
  %v479 = vsel %vm285, %v478, %v477
  %v480 = vsel %vm308, %v461, %v458
  %v481 = vsel %vm310, %v464, %v480
  %v482 = vsel %vm312, %v467, %v481
  %v483 = vsel %vm314, %v470, %v482
  %v484 = vsel %vm316, %v473, %v483
  %v485 = vsel %vm318, %v476, %v484
  %v486 = vsel %vm320, %v479, %v485
  %v488 = vsel %vm323, %v486, 0.0
  %489 = vadd.xlane.f32.xlu0 %v488
  %v490 = vpop.xlane.xlu0 %489
  %v492 = vperm.slane %v490, 0
  %v493 = vperm.slane %v490, 1
  %v494 = vperm.slane %v490, 2
  %v495 = vperm.slane %v490, 3
  %v496 = vperm.slane %v490, 4
  %v497 = vperm.slane %v490, 5
  %v498 = vperm.slane %v490, 6
  %v499 = vperm.slane %v490, 7
  %v508 = vrcp.pop %v492
  %v509 = vmul.f32 %v492, %v508
  %v510 = vsub.f32 1.0, %v509
  %v511 = vmul.f32 %v508, %v510
  %v512 = vadd.f32 %v508, %v511
  %vm513 = vweird.f32 %v492
  %vm514 = vweird.f32 %v508
  %vm515 = vmor %vm513, %vm514
  %v516 = vsel %vm515, %v508, %v512
  %v517 = vand.u32 2147483647, %v492
  %vm518 = vcmp.eq.f32.partialorder %v517, 8.507059e+37
  %v519 = vand.u32 %v492, 2147483648
  %v520 = vor.u32 1.1754944e-38, %v519
  %v521 = vsel %vm518, %v520, %v516
  %v522 = vmul.f32 %v361, %v521
  %v523 = vmul.f32 %v363, %v521
  %v524 = vrcp.pop %v493
  %v525 = vmul.f32 %v493, %v524
  %v526 = vsub.f32 1.0, %v525
  %v527 = vmul.f32 %v524, %v526
  %v528 = vadd.f32 %v524, %v527
  %vm529 = vweird.f32 %v493
  %vm530 = vweird.f32 %v524
  %vm531 = vmor %vm529, %vm530
  %v532 = vsel %vm531, %v524, %v528
  %v533 = vand.u32 2147483647, %v493
  %vm534 = vcmp.eq.f32.partialorder %v533, 8.507059e+37
  %v535 = vand.u32 %v493, 2147483648
  %v536 = vor.u32 1.1754944e-38, %v535
  %v537 = vsel %vm534, %v536, %v532
  %v538 = vmul.f32 %v365, %v537
  %v539 = vmul.f32 %v367, %v537
  %v540 = vrcp.pop %v494
  %v541 = vmul.f32 %v494, %v540
  %v542 = vsub.f32 1.0, %v541
  %v543 = vmul.f32 %v540, %v542
  %v544 = vadd.f32 %v540, %v543
  %vm545 = vweird.f32 %v494
  %vm546 = vweird.f32 %v540
  %vm547 = vmor %vm545, %vm546
  %v548 = vsel %vm547, %v540, %v544
  %v549 = vand.u32 2147483647, %v494
  %vm550 = vcmp.eq.f32.partialorder %v549, 8.507059e+37
  %v551 = vand.u32 %v494, 2147483648
  %v552 = vor.u32 1.1754944e-38, %v551
  %v553 = vsel %vm550, %v552, %v548
  %v554 = vmul.f32 %v369, %v553
  %v555 = vmul.f32 %v371, %v553
  %v556 = vrcp.pop %v495
  %v557 = vmul.f32 %v495, %v556
  %v558 = vsub.f32 1.0, %v557
  %v559 = vmul.f32 %v556, %v558
  %v560 = vadd.f32 %v556, %v559
  %vm561 = vweird.f32 %v495
  %vm562 = vweird.f32 %v556
  %vm563 = vmor %vm561, %vm562
  %v564 = vsel %vm563, %v556, %v560
  %v565 = vand.u32 2147483647, %v495
  %vm566 = vcmp.eq.f32.partialorder %v565, 8.507059e+37
  %v567 = vand.u32 %v495, 2147483648
  %v568 = vor.u32 1.1754944e-38, %v567
  %v569 = vsel %vm566, %v568, %v564
  %v570 = vmul.f32 %v373, %v569
  %v571 = vmul.f32 %v375, %v569
  %v572 = vrcp.pop %v496
  %v573 = vmul.f32 %v496, %v572
  %v574 = vsub.f32 1.0, %v573
  %v575 = vmul.f32 %v572, %v574
  %v576 = vadd.f32 %v572, %v575
  %vm577 = vweird.f32 %v496
  %vm578 = vweird.f32 %v572
  %vm579 = vmor %vm577, %vm578
  %v580 = vsel %vm579, %v572, %v576
  %v581 = vand.u32 2147483647, %v496
  %vm582 = vcmp.eq.f32.partialorder %v581, 8.507059e+37
  %v583 = vand.u32 %v496, 2147483648
  %v584 = vor.u32 1.1754944e-38, %v583
  %v585 = vsel %vm582, %v584, %v580
  %v586 = vmul.f32 %v377, %v585
  %v587 = vmul.f32 %v379, %v585
  %v588 = vrcp.pop %v497
  %v589 = vmul.f32 %v497, %v588
  %v590 = vsub.f32 1.0, %v589
  %v591 = vmul.f32 %v588, %v590
  %v592 = vadd.f32 %v588, %v591
  %vm593 = vweird.f32 %v497
  %vm594 = vweird.f32 %v588
  %vm595 = vmor %vm593, %vm594
  %v596 = vsel %vm595, %v588, %v592
  %v597 = vand.u32 2147483647, %v497
  %vm598 = vcmp.eq.f32.partialorder %v597, 8.507059e+37
  %v599 = vand.u32 %v497, 2147483648
  %v600 = vor.u32 1.1754944e-38, %v599
  %v601 = vsel %vm598, %v600, %v596
  %v602 = vmul.f32 %v381, %v601
  %v603 = vmul.f32 %v383, %v601
  %v604 = vrcp.pop %v498
  %v605 = vmul.f32 %v498, %v604
  %v606 = vsub.f32 1.0, %v605
  %v607 = vmul.f32 %v604, %v606
  %v608 = vadd.f32 %v604, %v607
  %vm609 = vweird.f32 %v498
  %vm610 = vweird.f32 %v604
  %vm611 = vmor %vm609, %vm610
  %v612 = vsel %vm611, %v604, %v608
  %v613 = vand.u32 2147483647, %v498
  %vm614 = vcmp.eq.f32.partialorder %v613, 8.507059e+37
  %v615 = vand.u32 %v498, 2147483648
  %v616 = vor.u32 1.1754944e-38, %v615
  %v617 = vsel %vm614, %v616, %v612
  %v618 = vmul.f32 %v385, %v617
  %v619 = vmul.f32 %v387, %v617
  %v620 = vrcp.pop %v499
  %v621 = vmul.f32 %v499, %v620
  %v622 = vsub.f32 1.0, %v621
  %v623 = vmul.f32 %v620, %v622
  %v624 = vadd.f32 %v620, %v623
  %vm625 = vweird.f32 %v499
  %vm626 = vweird.f32 %v620
  %vm627 = vmor %vm625, %vm626
  %v628 = vsel %vm627, %v620, %v624
  %v629 = vand.u32 2147483647, %v499
  %vm630 = vcmp.eq.f32.partialorder %v629, 8.507059e+37
  %v631 = vand.u32 %v499, 2147483648
  %v632 = vor.u32 1.1754944e-38, %v631
  %v633 = vsel %vm630, %v632, %v628
  %v634 = vmul.f32 %v389, %v633
  %v635 = vmul.f32 %v391, %v633
  %v636 = vld [vmem:[%s0] sm:$0xff]
  %v637 = vld [vmem:[%s0 + $0x8] sm:$0xff]
  %v638 = vld [vmem:[%s0 + $0x10] sm:$0xff]
  %v639 = vld [vmem:[%s0 + $0x18] sm:$0xff]
  %v640 = vld [vmem:[%s0 + $0x20] sm:$0xff]
  %v641 = vld [vmem:[%s0 + $0x28] sm:$0xff]
  %v642 = vld [vmem:[%s0 + $0x30] sm:$0xff]
  %v643 = vld [vmem:[%s0 + $0x38] sm:$0xff]
  %v644 = vld [vmem:[%s0 + $0x40] sm:$0xff]
  %v645 = vld [vmem:[%s0 + $0x48] sm:$0xff]
  %v646 = vld [vmem:[%s0 + $0x50] sm:$0xff]
  %v647 = vld [vmem:[%s0 + $0x58] sm:$0xff]
  %v648 = vld [vmem:[%s0 + $0x60] sm:$0xff]
  %v649 = vld [vmem:[%s0 + $0x68] sm:$0xff]
  %v650 = vld [vmem:[%s0 + $0x70] sm:$0xff]
  %v651 = vld [vmem:[%s0 + $0x78] sm:$0xff]
  %653 = vset.pattern.permute.xlu0 0
  %654 = vperm.xlu0 %653, %v522
  %v655 = vpop.permute.xlu0 %654
  %658 = vset.pattern.permute.xlu0 0
  %659 = vperm.xlu0 %658, %v523
  %v660 = vpop.permute.xlu0 %659
  %663 = vset.pattern.permute.xlu0 0
  %664 = vperm.xlu0 %663, %v538
  %v665 = vpop.permute.xlu0 %664
  %668 = vset.pattern.permute.xlu0 0
  %669 = vperm.xlu0 %668, %v539
  %v670 = vpop.permute.xlu0 %669
  %673 = vset.pattern.permute.xlu0 0
  %674 = vperm.xlu0 %673, %v554
  %v675 = vpop.permute.xlu0 %674
  %678 = vset.pattern.permute.xlu0 0
  %679 = vperm.xlu0 %678, %v555
  %v680 = vpop.permute.xlu0 %679
  %683 = vset.pattern.permute.xlu0 0
  %684 = vperm.xlu0 %683, %v570
  %v685 = vpop.permute.xlu0 %684
  %688 = vset.pattern.permute.xlu0 0
  %689 = vperm.xlu0 %688, %v571
  %v690 = vpop.permute.xlu0 %689
  %693 = vset.pattern.permute.xlu0 0
  %694 = vperm.xlu0 %693, %v586
  %v695 = vpop.permute.xlu0 %694
  %698 = vset.pattern.permute.xlu0 0
  %699 = vperm.xlu0 %698, %v587
  %v700 = vpop.permute.xlu0 %699
  %703 = vset.pattern.permute.xlu0 0
  %704 = vperm.xlu0 %703, %v602
  %v705 = vpop.permute.xlu0 %704
  %708 = vset.pattern.permute.xlu0 0
  %709 = vperm.xlu0 %708, %v603
  %v710 = vpop.permute.xlu0 %709
  %713 = vset.pattern.permute.xlu0 0
  %714 = vperm.xlu0 %713, %v618
  %v715 = vpop.permute.xlu0 %714
  %718 = vset.pattern.permute.xlu0 0
  %719 = vperm.xlu0 %718, %v619
  %v720 = vpop.permute.xlu0 %719
  %723 = vset.pattern.permute.xlu0 0
  %724 = vperm.xlu0 %723, %v634
  %v725 = vpop.permute.xlu0 %724
  %728 = vset.pattern.permute.xlu0 0
  %729 = vperm.xlu0 %728, %v635
  %v730 = vpop.permute.xlu0 %729
  %v732 = vmul.f32 %v636, %v655
  %v733 = vmul.f32 %v637, %v660
  %v734 = vmul.f32 %v638, %v665
  %v735 = vmul.f32 %v639, %v670
  %v736 = vmul.f32 %v640, %v675
  %v737 = vmul.f32 %v641, %v680
  %v738 = vmul.f32 %v642, %v685
  %v739 = vmul.f32 %v643, %v690
  %v740 = vmul.f32 %v644, %v695
  %v741 = vmul.f32 %v645, %v700
  %v742 = vmul.f32 %v646, %v705
  %v743 = vmul.f32 %v647, %v710
  %v744 = vmul.f32 %v648, %v715
  %v745 = vmul.f32 %v649, %v720
  %v746 = vmul.f32 %v650, %v725
  %v747 = vmul.f32 %v651, %v730
  %v748 = vadd.f32 %v732, %v733
  %v749 = vrot.slane %v748, 4
  %v750 = vadd.f32 %v748, %v749
  %v751 = vrot.slane %v750, 2
  %v752 = vadd.f32 %v750, %v751
  %v753 = vrot.slane %v752, 1
  %v754 = vadd.f32 %v752, %v753
  %v755 = vadd.f32 %v734, %v735
  %v756 = vrot.slane %v755, 4
  %v757 = vadd.f32 %v755, %v756
  %v758 = vrot.slane %v757, 2
  %v759 = vadd.f32 %v757, %v758
  %v760 = vrot.slane %v759, 1
  %v761 = vadd.f32 %v759, %v760
  %v762 = vadd.f32 %v736, %v737
  %v763 = vrot.slane %v762, 4
  %v764 = vadd.f32 %v762, %v763
  %v765 = vrot.slane %v764, 2
  %v766 = vadd.f32 %v764, %v765
  %v767 = vrot.slane %v766, 1
  %v768 = vadd.f32 %v766, %v767
  %v769 = vadd.f32 %v738, %v739
  %v770 = vrot.slane %v769, 4
  %v771 = vadd.f32 %v769, %v770
  %v772 = vrot.slane %v771, 2
  %v773 = vadd.f32 %v771, %v772
  %v774 = vrot.slane %v773, 1
  %v775 = vadd.f32 %v773, %v774
  %v776 = vadd.f32 %v740, %v741
  %v777 = vrot.slane %v776, 4
  %v778 = vadd.f32 %v776, %v777
  %v779 = vrot.slane %v778, 2
  %v780 = vadd.f32 %v778, %v779
  %v781 = vrot.slane %v780, 1
  %v782 = vadd.f32 %v780, %v781
  %v783 = vadd.f32 %v742, %v743
  %v784 = vrot.slane %v783, 4
  %v785 = vadd.f32 %v783, %v784
  %v786 = vrot.slane %v785, 2
  %v787 = vadd.f32 %v785, %v786
  %v788 = vrot.slane %v787, 1
  %v789 = vadd.f32 %v787, %v788
  %v790 = vadd.f32 %v744, %v745
  %v791 = vrot.slane %v790, 4
  %v792 = vadd.f32 %v790, %v791
  %v793 = vrot.slane %v792, 2
  %v794 = vadd.f32 %v792, %v793
  %v795 = vrot.slane %v794, 1
  %v796 = vadd.f32 %v794, %v795
  %v797 = vadd.f32 %v746, %v747
  %v798 = vrot.slane %v797, 4
  %v799 = vadd.f32 %v797, %v798
  %v800 = vrot.slane %v799, 2
  %v801 = vadd.f32 %v799, %v800
  %v802 = vrot.slane %v801, 1
  %v803 = vadd.f32 %v801, %v802
  %v804 = vpack.c.bf16 %v754, %v754
  %v805 = vpack.c.bf16 %v761, %v761
  %v806 = vpack.c.bf16 %v768, %v768
  %v807 = vpack.c.bf16 %v775, %v775
  %v808 = vpack.c.bf16 %v782, %v782
  %v809 = vpack.c.bf16 %v789, %v789
  %v810 = vpack.c.bf16 %v796, %v796
  %v811 = vpack.c.bf16 %v803, %v803
  %v820 = vperm.slane %v804, 0
  %v821 = vperm.slane %v805, 0
  %v822 = vperm.slane %v806, 0
  %v823 = vperm.slane %v807, 0
  %v824 = vperm.slane %v808, 0
  %v825 = vperm.slane %v809, 0
  %v826 = vperm.slane %v810, 0
  %v827 = vperm.slane %v811, 0
  %v828 = vunpack.c.l.b16 %v820
  %v829 = vunpack.c.l.b16 %v821
  %v830 = vunpack.c.l.b16 %v822
  %v831 = vunpack.c.l.b16 %v823
  %v832 = vunpack.c.l.b16 %v824
  %v833 = vunpack.c.l.b16 %v825
  %v834 = vunpack.c.l.b16 %v826
  %v835 = vunpack.c.l.b16 %v827
  %v836 = vsel %vm308, %v829, %v828
  %v837 = vsel %vm310, %v830, %v836
  %v838 = vsel %vm312, %v831, %v837
  %v839 = vsel %vm314, %v832, %v838
  %v840 = vsel %vm316, %v833, %v839
  %v841 = vsel %vm318, %v834, %v840
  %v842 = vsel %vm320, %v835, %v841
  %v843 = vpack.c.b16 %v842, %v842
  %v845 = vld [vmem:[%s2] sm:$0xff]
  %v846 = vld [vmem:[%s2 + $0x8] sm:$0xff]
  %v847 = vld [vmem:[%s2 + $0x10] sm:$0xff]
  %v848 = vld [vmem:[%s2 + $0x18] sm:$0xff]
  %v849 = vld [vmem:[%s9] sm:$0xff]
  %v850 = vld [vmem:[%s9 + $0x8] sm:$0xff]
  %v851 = vld [vmem:[%s9 + $0x10] sm:$0xff]
  %v852 = vld [vmem:[%s9 + $0x18] sm:$0xff]
  %v853 = vld [vmem:[%s9 + $0x20] sm:$0xff]
  %v854 = vld [vmem:[%s9 + $0x28] sm:$0xff]
  %v855 = vld [vmem:[%s9 + $0x30] sm:$0xff]
  %v856 = vld [vmem:[%s9 + $0x38] sm:$0xff]
  %v857 = vld [vmem:[%s9 + $0x40] sm:$0xff]
  %v858 = vld [vmem:[%s9 + $0x48] sm:$0xff]
  %v859 = vld [vmem:[%s9 + $0x50] sm:$0xff]
  %v860 = vld [vmem:[%s9 + $0x58] sm:$0xff]
  %v861 = vld [vmem:[%s9 + $0x60] sm:$0xff]
  %v862 = vld [vmem:[%s9 + $0x68] sm:$0xff]
  %v863 = vld [vmem:[%s9 + $0x70] sm:$0xff]
  %v864 = vld [vmem:[%s9 + $0x78] sm:$0xff]
  %v865 = vld [vmem:[%s9 + $0x80] sm:$0xff]
  %v866 = vld [vmem:[%s9 + $0x88] sm:$0xff]
  %v867 = vld [vmem:[%s9 + $0x90] sm:$0xff]
  %v868 = vld [vmem:[%s9 + $0x98] sm:$0xff]
  %v869 = vld [vmem:[%s9 + $0xa0] sm:$0xff]
  %v870 = vld [vmem:[%s9 + $0xa8] sm:$0xff]
  %v871 = vld [vmem:[%s9 + $0xb0] sm:$0xff]
  %v872 = vld [vmem:[%s9 + $0xb8] sm:$0xff]
  %v873 = vld [vmem:[%s9 + $0xc0] sm:$0xff]
  %v874 = vld [vmem:[%s9 + $0xc8] sm:$0xff]
  %v875 = vld [vmem:[%s9 + $0xd0] sm:$0xff]
  %v876 = vld [vmem:[%s9 + $0xd8] sm:$0xff]
  %v877 = vld [vmem:[%s9 + $0xe0] sm:$0xff]
  %v878 = vld [vmem:[%s9 + $0xe8] sm:$0xff]
  %v879 = vld [vmem:[%s9 + $0xf0] sm:$0xff]
  %v880 = vld [vmem:[%s9 + $0xf8] sm:$0xff]
  %v881 = vld [vmem:[%s9 + $0x100] sm:$0xff]
  %v882 = vld [vmem:[%s9 + $0x108] sm:$0xff]
  %v883 = vld [vmem:[%s9 + $0x110] sm:$0xff]
  %v884 = vld [vmem:[%s9 + $0x118] sm:$0xff]
  %v885 = vld [vmem:[%s9 + $0x120] sm:$0xff]
  %v886 = vld [vmem:[%s9 + $0x128] sm:$0xff]
  %v887 = vld [vmem:[%s9 + $0x130] sm:$0xff]
  %v888 = vld [vmem:[%s9 + $0x138] sm:$0xff]
  %v889 = vld [vmem:[%s9 + $0x140] sm:$0xff]
  %v890 = vld [vmem:[%s9 + $0x148] sm:$0xff]
  %v891 = vld [vmem:[%s9 + $0x150] sm:$0xff]
  %v892 = vld [vmem:[%s9 + $0x158] sm:$0xff]
  %v893 = vld [vmem:[%s9 + $0x160] sm:$0xff]
  %v894 = vld [vmem:[%s9 + $0x168] sm:$0xff]
  %v895 = vld [vmem:[%s9 + $0x170] sm:$0xff]
  %v896 = vld [vmem:[%s9 + $0x178] sm:$0xff]
  %v897 = vld [vmem:[%s9 + $0x180] sm:$0xff]
  %v898 = vld [vmem:[%s9 + $0x188] sm:$0xff]
  %v899 = vld [vmem:[%s9 + $0x190] sm:$0xff]
  %v900 = vld [vmem:[%s9 + $0x198] sm:$0xff]
  %v901 = vld [vmem:[%s9 + $0x1a0] sm:$0xff]
  %v902 = vld [vmem:[%s9 + $0x1a8] sm:$0xff]
  %v903 = vld [vmem:[%s9 + $0x1b0] sm:$0xff]
  %v904 = vld [vmem:[%s9 + $0x1b8] sm:$0xff]
  %v905 = vld [vmem:[%s9 + $0x1c0] sm:$0xff]
  %v906 = vld [vmem:[%s9 + $0x1c8] sm:$0xff]
  %v907 = vld [vmem:[%s9 + $0x1d0] sm:$0xff]
  %v908 = vld [vmem:[%s9 + $0x1d8] sm:$0xff]
  %v909 = vld [vmem:[%s9 + $0x1e0] sm:$0xff]
  %v910 = vld [vmem:[%s9 + $0x1e8] sm:$0xff]
  %v911 = vld [vmem:[%s9 + $0x1f0] sm:$0xff]
  %v912 = vld [vmem:[%s9 + $0x1f8] sm:$0xff]
  %v977 = vunpack.c.l.b16 %v849
  %v978 = vunpack.c.h.b16 %v849
  %v979 = vunpack.c.l.b16 %v850
  %v980 = vunpack.c.h.b16 %v850
  %v981 = vunpack.c.l.b16 %v851
  %v982 = vunpack.c.h.b16 %v851
  %v983 = vunpack.c.l.b16 %v852
  %v984 = vunpack.c.h.b16 %v852
  %v985 = vunpack.c.l.b16 %v853
  %v986 = vunpack.c.h.b16 %v853
  %v987 = vunpack.c.l.b16 %v854
  %v988 = vunpack.c.h.b16 %v854
  %v989 = vunpack.c.l.b16 %v855
  %v990 = vunpack.c.h.b16 %v855
  %v991 = vunpack.c.l.b16 %v856
  %v992 = vunpack.c.h.b16 %v856
  %v993 = vunpack.c.l.b16 %v857
  %v994 = vunpack.c.h.b16 %v857
  %v995 = vunpack.c.l.b16 %v858
  %v996 = vunpack.c.h.b16 %v858
  %v997 = vunpack.c.l.b16 %v859
  %v998 = vunpack.c.h.b16 %v859
  %v999 = vunpack.c.l.b16 %v860
  %v1000 = vunpack.c.h.b16 %v860
  %v1001 = vunpack.c.l.b16 %v861
  %v1002 = vunpack.c.h.b16 %v861
  %v1003 = vunpack.c.l.b16 %v862
  %v1004 = vunpack.c.h.b16 %v862
  %v1005 = vunpack.c.l.b16 %v863
  %v1006 = vunpack.c.h.b16 %v863
  %v1007 = vunpack.c.l.b16 %v864
  %v1008 = vunpack.c.h.b16 %v864
  %v1009 = vunpack.c.l.b16 %v865
  %v1010 = vunpack.c.h.b16 %v865
  %v1011 = vunpack.c.l.b16 %v866
  %v1012 = vunpack.c.h.b16 %v866
  %v1013 = vunpack.c.l.b16 %v867
  %v1014 = vunpack.c.h.b16 %v867
  %v1015 = vunpack.c.l.b16 %v868
  %v1016 = vunpack.c.h.b16 %v868
  %v1017 = vunpack.c.l.b16 %v869
  %v1018 = vunpack.c.h.b16 %v869
  %v1019 = vunpack.c.l.b16 %v870
  %v1020 = vunpack.c.h.b16 %v870
  %v1021 = vunpack.c.l.b16 %v871
  %v1022 = vunpack.c.h.b16 %v871
  %v1023 = vunpack.c.l.b16 %v872
  %v1024 = vunpack.c.h.b16 %v872
  %v1025 = vunpack.c.l.b16 %v873
  %v1026 = vunpack.c.h.b16 %v873
  %v1027 = vunpack.c.l.b16 %v874
  %v1028 = vunpack.c.h.b16 %v874
  %v1029 = vunpack.c.l.b16 %v875
  %v1030 = vunpack.c.h.b16 %v875
  %v1031 = vunpack.c.l.b16 %v876
  %v1032 = vunpack.c.h.b16 %v876
  %v1033 = vunpack.c.l.b16 %v877
  %v1034 = vunpack.c.h.b16 %v877
  %v1035 = vunpack.c.l.b16 %v878
  %v1036 = vunpack.c.h.b16 %v878
  %v1037 = vunpack.c.l.b16 %v879
  %v1038 = vunpack.c.h.b16 %v879
  %v1039 = vunpack.c.l.b16 %v880
  %v1040 = vunpack.c.h.b16 %v880
  %v1041 = vunpack.c.l.b16 %v881
  %v1042 = vunpack.c.h.b16 %v881
  %v1043 = vunpack.c.l.b16 %v882
  %v1044 = vunpack.c.h.b16 %v882
  %v1045 = vunpack.c.l.b16 %v883
  %v1046 = vunpack.c.h.b16 %v883
  %v1047 = vunpack.c.l.b16 %v884
  %v1048 = vunpack.c.h.b16 %v884
  %v1049 = vunpack.c.l.b16 %v885
  %v1050 = vunpack.c.h.b16 %v885
  %v1051 = vunpack.c.l.b16 %v886
  %v1052 = vunpack.c.h.b16 %v886
  %v1053 = vunpack.c.l.b16 %v887
  %v1054 = vunpack.c.h.b16 %v887
  %v1055 = vunpack.c.l.b16 %v888
  %v1056 = vunpack.c.h.b16 %v888
  %v1057 = vunpack.c.l.b16 %v889
  %v1058 = vunpack.c.h.b16 %v889
  %v1059 = vunpack.c.l.b16 %v890
  %v1060 = vunpack.c.h.b16 %v890
  %v1061 = vunpack.c.l.b16 %v891
  %v1062 = vunpack.c.h.b16 %v891
  %v1063 = vunpack.c.l.b16 %v892
  %v1064 = vunpack.c.h.b16 %v892
  %v1065 = vunpack.c.l.b16 %v893
  %v1066 = vunpack.c.h.b16 %v893
  %v1067 = vunpack.c.l.b16 %v894
  %v1068 = vunpack.c.h.b16 %v894
  %v1069 = vunpack.c.l.b16 %v895
  %v1070 = vunpack.c.h.b16 %v895
  %v1071 = vunpack.c.l.b16 %v896
  %v1072 = vunpack.c.h.b16 %v896
  %v1073 = vunpack.c.l.b16 %v897
  %v1074 = vunpack.c.h.b16 %v897
  %v1075 = vunpack.c.l.b16 %v898
  %v1076 = vunpack.c.h.b16 %v898
  %v1077 = vunpack.c.l.b16 %v899
  %v1078 = vunpack.c.h.b16 %v899
  %v1079 = vunpack.c.l.b16 %v900
  %v1080 = vunpack.c.h.b16 %v900
  %v1081 = vunpack.c.l.b16 %v901
  %v1082 = vunpack.c.h.b16 %v901
  %v1083 = vunpack.c.l.b16 %v902
  %v1084 = vunpack.c.h.b16 %v902
  %v1085 = vunpack.c.l.b16 %v903
  %v1086 = vunpack.c.h.b16 %v903
  %v1087 = vunpack.c.l.b16 %v904
  %v1088 = vunpack.c.h.b16 %v904
  %v1089 = vunpack.c.l.b16 %v905
  %v1090 = vunpack.c.h.b16 %v905
  %v1091 = vunpack.c.l.b16 %v906
  %v1092 = vunpack.c.h.b16 %v906
  %v1093 = vunpack.c.l.b16 %v907
  %v1094 = vunpack.c.h.b16 %v907
  %v1095 = vunpack.c.l.b16 %v908
  %v1096 = vunpack.c.h.b16 %v908
  %v1097 = vunpack.c.l.b16 %v909
  %v1098 = vunpack.c.h.b16 %v909
  %v1099 = vunpack.c.l.b16 %v910
  %v1100 = vunpack.c.h.b16 %v910
  %v1101 = vunpack.c.l.b16 %v911
  %v1102 = vunpack.c.h.b16 %v911
  %v1103 = vunpack.c.l.b16 %v912
  %v1104 = vunpack.c.h.b16 %v912
  %v1105 = vpack.c.b16 %v981, %v977
  %v1106 = vpack.c.b16 %v982, %v978
  %v1107 = vpack.c.b16 %v983, %v979
  %v1108 = vpack.c.b16 %v984, %v980
  %v1109 = vpack.c.b16 %v989, %v985
  %v1110 = vpack.c.b16 %v990, %v986
  %v1111 = vpack.c.b16 %v991, %v987
  %v1112 = vpack.c.b16 %v992, %v988
  %v1113 = vpack.c.b16 %v997, %v993
  %v1114 = vpack.c.b16 %v998, %v994
  %v1115 = vpack.c.b16 %v999, %v995
  %v1116 = vpack.c.b16 %v1000, %v996
  %v1117 = vpack.c.b16 %v1005, %v1001
  %v1118 = vpack.c.b16 %v1006, %v1002
  %v1119 = vpack.c.b16 %v1007, %v1003
  %v1120 = vpack.c.b16 %v1008, %v1004
  %v1121 = vpack.c.b16 %v1013, %v1009
  %v1122 = vpack.c.b16 %v1014, %v1010
  %v1123 = vpack.c.b16 %v1015, %v1011
  %v1124 = vpack.c.b16 %v1016, %v1012
  %v1125 = vpack.c.b16 %v1021, %v1017
  %v1126 = vpack.c.b16 %v1022, %v1018
  %v1127 = vpack.c.b16 %v1023, %v1019
  %v1128 = vpack.c.b16 %v1024, %v1020
  %v1129 = vpack.c.b16 %v1029, %v1025
  %v1130 = vpack.c.b16 %v1030, %v1026
  %v1131 = vpack.c.b16 %v1031, %v1027
  %v1132 = vpack.c.b16 %v1032, %v1028
  %v1133 = vpack.c.b16 %v1037, %v1033
  %v1134 = vpack.c.b16 %v1038, %v1034
  %v1135 = vpack.c.b16 %v1039, %v1035
  %v1136 = vpack.c.b16 %v1040, %v1036
  %v1137 = vpack.c.b16 %v1045, %v1041
  %v1138 = vpack.c.b16 %v1046, %v1042
  %v1139 = vpack.c.b16 %v1047, %v1043
  %v1140 = vpack.c.b16 %v1048, %v1044
  %v1141 = vpack.c.b16 %v1053, %v1049
  %v1142 = vpack.c.b16 %v1054, %v1050
  %v1143 = vpack.c.b16 %v1055, %v1051
  %v1144 = vpack.c.b16 %v1056, %v1052
  %v1145 = vpack.c.b16 %v1061, %v1057
  %v1146 = vpack.c.b16 %v1062, %v1058
  %v1147 = vpack.c.b16 %v1063, %v1059
  %v1148 = vpack.c.b16 %v1064, %v1060
  %v1149 = vpack.c.b16 %v1069, %v1065
  %v1150 = vpack.c.b16 %v1070, %v1066
  %v1151 = vpack.c.b16 %v1071, %v1067
  %v1152 = vpack.c.b16 %v1072, %v1068
  %v1153 = vpack.c.b16 %v1077, %v1073
  %v1154 = vpack.c.b16 %v1078, %v1074
  %v1155 = vpack.c.b16 %v1079, %v1075
  %v1156 = vpack.c.b16 %v1080, %v1076
  %v1157 = vpack.c.b16 %v1085, %v1081
  %v1158 = vpack.c.b16 %v1086, %v1082
  %v1159 = vpack.c.b16 %v1087, %v1083
  %v1160 = vpack.c.b16 %v1088, %v1084
  %v1161 = vpack.c.b16 %v1093, %v1089
  %v1162 = vpack.c.b16 %v1094, %v1090
  %v1163 = vpack.c.b16 %v1095, %v1091
  %v1164 = vpack.c.b16 %v1096, %v1092
  %v1165 = vpack.c.b16 %v1101, %v1097
  %v1166 = vpack.c.b16 %v1102, %v1098
  %v1167 = vpack.c.b16 %v1103, %v1099
  %v1168 = vpack.c.b16 %v1104, %v1100
  %1233 = vmatpush.bf16.msra.mxu0 %v1133
  %1234 = vmatpush.bf16.msra.mxu0 %v1129
  %1235 = vmatpush.bf16.msra.mxu0 %v1125
  %1236 = vmatpush.bf16.msra.mxu0 %v1121
  %1237 = vmatpush.bf16.msra.mxu0 %v1117
  %1238 = vmatpush.bf16.msra.mxu0 %v1113
  %1239 = vmatpush.bf16.msra.mxu0 %v1109
  %1240 = vmatpush.bf16.msra.mxu0 %v1105
  %1241 = vmatmul.bf16.gmra.mxu0 %v843
  %v1242 = vpop.f32.mrf.mxu0
  %v1243 = vadd.f32 0.0, %v1242
  %v1244 = vpop.f32.mrf.mxu0
  %1245 = vdwg.mxu0
  %1246 = vmatpush.bf16.msra.mxu0 %v1165
  %1247 = vmatpush.bf16.msra.mxu0 %v1161
  %1248 = vmatpush.bf16.msra.mxu0 %v1157
  %1249 = vmatpush.bf16.msra.mxu0 %v1153
  %1250 = vmatpush.bf16.msra.mxu0 %v1149
  %1251 = vmatpush.bf16.msra.mxu0 %v1145
  %1252 = vmatpush.bf16.msra.mxu0 %v1141
  %1253 = vmatpush.bf16.msra.mxu0 %v1137
  %1254 = vmatmul.bf16.gmra.mxu0 %v41
  %v1255 = vpop.f32.mrf.mxu0
  %v1256 = vadd.f32 %v1243, %v1255
  %v1257 = vpop.f32.mrf.mxu0
  %1258 = vdwg.mxu0
  %1259 = vmatpush.bf16.msra.mxu0 %v1134
  %1260 = vmatpush.bf16.msra.mxu0 %v1130
  %1261 = vmatpush.bf16.msra.mxu0 %v1126
  %1262 = vmatpush.bf16.msra.mxu0 %v1122
  %1263 = vmatpush.bf16.msra.mxu0 %v1118
  %1264 = vmatpush.bf16.msra.mxu0 %v1114
  %1265 = vmatpush.bf16.msra.mxu0 %v1110
  %1266 = vmatpush.bf16.msra.mxu0 %v1106
  %1267 = vmatmul.bf16.gmra.mxu0 %v843
  %v1268 = vpop.f32.mrf.mxu0
  %v1269 = vadd.f32 0.0, %v1268
  %v1270 = vpop.f32.mrf.mxu0
  %1271 = vdwg.mxu0
  %1272 = vmatpush.bf16.msra.mxu0 %v1166
  %1273 = vmatpush.bf16.msra.mxu0 %v1162
  %1274 = vmatpush.bf16.msra.mxu0 %v1158
  %1275 = vmatpush.bf16.msra.mxu0 %v1154
  %1276 = vmatpush.bf16.msra.mxu0 %v1150
  %1277 = vmatpush.bf16.msra.mxu0 %v1146
  %1278 = vmatpush.bf16.msra.mxu0 %v1142
  %1279 = vmatpush.bf16.msra.mxu0 %v1138
  %1280 = vmatmul.bf16.gmra.mxu0 %v41
  %v1281 = vpop.f32.mrf.mxu0
  %v1282 = vadd.f32 %v1269, %v1281
  %v1283 = vpop.f32.mrf.mxu0
  %1284 = vdwg.mxu0
  %1285 = vmatpush.bf16.msra.mxu0 %v1135
  %1286 = vmatpush.bf16.msra.mxu0 %v1131
  %1287 = vmatpush.bf16.msra.mxu0 %v1127
  %1288 = vmatpush.bf16.msra.mxu0 %v1123
  %1289 = vmatpush.bf16.msra.mxu0 %v1119
  %1290 = vmatpush.bf16.msra.mxu0 %v1115
  %1291 = vmatpush.bf16.msra.mxu0 %v1111
  %1292 = vmatpush.bf16.msra.mxu0 %v1107
  %1293 = vmatmul.bf16.gmra.mxu0 %v843
  %v1294 = vpop.f32.mrf.mxu0
  %v1295 = vadd.f32 0.0, %v1294
  %v1296 = vpop.f32.mrf.mxu0
  %1297 = vdwg.mxu0
  %1298 = vmatpush.bf16.msra.mxu0 %v1167
  %1299 = vmatpush.bf16.msra.mxu0 %v1163
  %1300 = vmatpush.bf16.msra.mxu0 %v1159
  %1301 = vmatpush.bf16.msra.mxu0 %v1155
  %1302 = vmatpush.bf16.msra.mxu0 %v1151
  %1303 = vmatpush.bf16.msra.mxu0 %v1147
  %1304 = vmatpush.bf16.msra.mxu0 %v1143
  %1305 = vmatpush.bf16.msra.mxu0 %v1139
  %1306 = vmatmul.bf16.gmra.mxu0 %v41
  %v1307 = vpop.f32.mrf.mxu0
  %v1308 = vadd.f32 %v1295, %v1307
  %v1309 = vpop.f32.mrf.mxu0
  %1310 = vdwg.mxu0
  %1311 = vmatpush.bf16.msra.mxu0 %v1136
  %1312 = vmatpush.bf16.msra.mxu0 %v1132
  %1313 = vmatpush.bf16.msra.mxu0 %v1128
  %1314 = vmatpush.bf16.msra.mxu0 %v1124
  %1315 = vmatpush.bf16.msra.mxu0 %v1120
  %1316 = vmatpush.bf16.msra.mxu0 %v1116
  %1317 = vmatpush.bf16.msra.mxu0 %v1112
  %1318 = vmatpush.bf16.msra.mxu0 %v1108
  %1319 = vmatmul.bf16.gmra.mxu0 %v843
  %v1320 = vpop.f32.mrf.mxu0
  %v1321 = vadd.f32 0.0, %v1320
  %v1322 = vpop.f32.mrf.mxu0
  %1323 = vdwg.mxu0
  %1324 = vmatpush.bf16.msra.mxu0 %v1168
  %1325 = vmatpush.bf16.msra.mxu0 %v1164
  %1326 = vmatpush.bf16.msra.mxu0 %v1160
  %1327 = vmatpush.bf16.msra.mxu0 %v1156
  %1328 = vmatpush.bf16.msra.mxu0 %v1152
  %1329 = vmatpush.bf16.msra.mxu0 %v1148
  %1330 = vmatpush.bf16.msra.mxu0 %v1144
  %1331 = vmatpush.bf16.msra.mxu0 %v1140
  %1332 = vmatmul.bf16.gmra.mxu0 %v41
  %v1333 = vpop.f32.mrf.mxu0
  %v1334 = vadd.f32 %v1321, %v1333
  %v1335 = vpop.f32.mrf.mxu0
  %1336 = vdwg.mxu0
  %v1337 = vadd.f32 %v845, %v1256
  %v1338 = vadd.f32 %v846, %v1282
  %v1339 = vadd.f32 %v847, %v1308
  %v1340 = vadd.f32 %v848, %v1334
  %v1341 = vxor.u32 %v1337, 2147483648
  %v1342 = vmul.f32 %v1341, 1.442695
  %v1343 = vpow.pop %v1342
  %v1344 = vadd.f32 %v1343, 1.0
  %v1345 = vrcp.pop %v1344
  %v1346 = vmul.f32 %v1344, %v1345
  %v1347 = vsub.f32 1.0, %v1346
  %v1348 = vmul.f32 %v1345, %v1347
  %v1349 = vadd.f32 %v1345, %v1348
  %vm1350 = vweird.f32 %v1344
  %vm1351 = vweird.f32 %v1345
  %vm1352 = vmor %vm1350, %vm1351
  %v1353 = vsel %vm1352, %v1345, %v1349
  %v1354 = vand.u32 2147483647, %v1344
  %vm1355 = vcmp.eq.f32.partialorder %v1354, 8.507059e+37
  %v1356 = vand.u32 %v1344, 2147483648
  %v1357 = vor.u32 1.1754944e-38, %v1356
  %v1358 = vsel %vm1355, %v1357, %v1353
  %v1359 = vmul.f32 1.0, %v1358
  %v1360 = vxor.u32 %v1338, 2147483648
  %v1361 = vmul.f32 %v1360, 1.442695
  %v1362 = vpow.pop %v1361
  %v1363 = vadd.f32 %v1362, 1.0
  %v1364 = vrcp.pop %v1363
  %v1365 = vmul.f32 %v1363, %v1364
  %v1366 = vsub.f32 1.0, %v1365
  %v1367 = vmul.f32 %v1364, %v1366
  %v1368 = vadd.f32 %v1364, %v1367
  %vm1369 = vweird.f32 %v1363
  %vm1370 = vweird.f32 %v1364
  %vm1371 = vmor %vm1369, %vm1370
  %v1372 = vsel %vm1371, %v1364, %v1368
  %v1373 = vand.u32 2147483647, %v1363
  %vm1374 = vcmp.eq.f32.partialorder %v1373, 8.507059e+37
  %v1375 = vand.u32 %v1363, 2147483648
  %v1376 = vor.u32 1.1754944e-38, %v1375
  %v1377 = vsel %vm1374, %v1376, %v1372
  %v1378 = vmul.f32 1.0, %v1377
  %v1379 = vtanh.pop %v1339
  %v1380 = vxor.u32 %v1340, 2147483648
  %v1381 = vmul.f32 %v1380, 1.442695
  %v1382 = vpow.pop %v1381
  %v1383 = vadd.f32 %v1382, 1.0
  %v1384 = vrcp.pop %v1383
  %v1385 = vmul.f32 %v1383, %v1384
  %v1386 = vsub.f32 1.0, %v1385
  %v1387 = vmul.f32 %v1384, %v1386
  %v1388 = vadd.f32 %v1384, %v1387
  %vm1389 = vweird.f32 %v1383
  %vm1390 = vweird.f32 %v1384
  %vm1391 = vmor %vm1389, %vm1390
  %v1392 = vsel %vm1391, %v1384, %v1388
  %v1393 = vand.u32 2147483647, %v1383
  %vm1394 = vcmp.eq.f32.partialorder %v1393, 8.507059e+37
  %v1395 = vand.u32 %v1383, 2147483648
  %v1396 = vor.u32 1.1754944e-38, %v1395
  %v1397 = vsel %vm1394, %v1396, %v1392
  %v1398 = vmul.f32 1.0, %v1397
  %v1399 = vmul.f32 %v1378, %v40
  %v1400 = vmul.f32 %v1359, %v1379
  %v1401 = vadd.f32 %v1399, %v1400
  %v1402 = vtanh.pop %v1401
  %v1403 = vmul.f32 %v1398, %v1402
  %1404 = vst [vmem:[%s10] sm:$0xff] %v1403
  %v1405 = vperm.slane %v655, %v281
  %v1406 = vperm.slane %v660, %v283
  %v1407 = vsel %vm285, %v1406, %v1405
  %v1408 = vperm.slane %v665, %v281
  %v1409 = vperm.slane %v670, %v283
  %v1410 = vsel %vm285, %v1409, %v1408
  %v1411 = vperm.slane %v675, %v281
  %v1412 = vperm.slane %v680, %v283
  %v1413 = vsel %vm285, %v1412, %v1411
  %v1414 = vperm.slane %v685, %v281
  %v1415 = vperm.slane %v690, %v283
  %v1416 = vsel %vm285, %v1415, %v1414
  %v1417 = vperm.slane %v695, %v281
  %v1418 = vperm.slane %v700, %v283
  %v1419 = vsel %vm285, %v1418, %v1417
  %v1420 = vperm.slane %v705, %v281
  %v1421 = vperm.slane %v710, %v283
  %v1422 = vsel %vm285, %v1421, %v1420
  %v1423 = vperm.slane %v715, %v281
  %v1424 = vperm.slane %v720, %v283
  %v1425 = vsel %vm285, %v1424, %v1423
  %v1426 = vperm.slane %v725, %v281
  %v1427 = vperm.slane %v730, %v283
  %v1428 = vsel %vm285, %v1427, %v1426
  %v1429 = vsel %vm308, %v1410, %v1407
  %v1430 = vsel %vm310, %v1413, %v1429
  %v1431 = vsel %vm312, %v1416, %v1430
  %v1432 = vsel %vm314, %v1419, %v1431
  %v1433 = vsel %vm316, %v1422, %v1432
  %v1434 = vsel %vm318, %v1425, %v1433
  %v1435 = vsel %vm320, %v1428, %v1434
  %v1437 = vsel %vm323, %v1435, 0.0
  %1438 = vst [vmem:[%s11] sm:$0xff] %v1437
  %v1439 = vpack.c.bf16 %v1403, %v1403
  %v1440 = vld [vmem:[%s5] sm:$0xf]
  %v1441 = vld [vmem:[%s5 + $0x4] sm:$0xf]
  %v1442 = vld [vmem:[%s5 + $0x8] sm:$0xf]
  %v1443 = vld [vmem:[%s5 + $0xc] sm:$0xf]
  %v1444 = vld [vmem:[%s5 + $0x10] sm:$0xf]
  %v1445 = vld [vmem:[%s5 + $0x14] sm:$0xf]
  %v1446 = vld [vmem:[%s5 + $0x18] sm:$0xf]
  %v1447 = vld [vmem:[%s5 + $0x1c] sm:$0xf]
  %v1448 = vld [vmem:[%s5 + $0x20] sm:$0xf]
  %v1449 = vld [vmem:[%s5 + $0x24] sm:$0xf]
  %v1450 = vld [vmem:[%s5 + $0x28] sm:$0xf]
  %v1451 = vld [vmem:[%s5 + $0x2c] sm:$0xf]
  %v1452 = vld [vmem:[%s5 + $0x30] sm:$0xf]
  %v1453 = vld [vmem:[%s5 + $0x34] sm:$0xf]
  %v1454 = vld [vmem:[%s5 + $0x38] sm:$0xf]
  %v1455 = vld [vmem:[%s5 + $0x3c] sm:$0xf]
  %v1456 = vld [vmem:[%s6] sm:$0x1]
  %v1458 = vperm.slane %v1456, 0
  %v1476 = vunpack.c.l.b16 %v1440
  %v1477 = vunpack.c.l.b16 %v1441
  %v1478 = vunpack.c.l.b16 %v1442
  %v1479 = vunpack.c.l.b16 %v1443
  %v1480 = vunpack.c.l.b16 %v1444
  %v1481 = vunpack.c.l.b16 %v1445
  %v1482 = vunpack.c.l.b16 %v1446
  %v1483 = vunpack.c.l.b16 %v1447
  %v1484 = vunpack.c.l.b16 %v1448
  %v1485 = vunpack.c.l.b16 %v1449
  %v1486 = vunpack.c.l.b16 %v1450
  %v1487 = vunpack.c.l.b16 %v1451
  %v1488 = vunpack.c.l.b16 %v1452
  %v1489 = vunpack.c.l.b16 %v1453
  %v1490 = vunpack.c.l.b16 %v1454
  %v1491 = vunpack.c.l.b16 %v1455
  %v1492 = vpack.c.b16 %v1477, %v1476
  %v1493 = vpack.c.b16 %v1479, %v1478
  %v1494 = vpack.c.b16 %v1481, %v1480
  %v1495 = vpack.c.b16 %v1483, %v1482
  %v1496 = vpack.c.b16 %v1485, %v1484
  %v1497 = vpack.c.b16 %v1487, %v1486
  %v1498 = vpack.c.b16 %v1489, %v1488
  %v1499 = vpack.c.b16 %v1491, %v1490
  %1508 = vmatpush.bf16.msra.mxu0 %v1499
  %1509 = vmatpush.bf16.msra.mxu0 %v1498
  %1510 = vmatpush.bf16.msra.mxu0 %v1497
  %1511 = vmatpush.bf16.msra.mxu0 %v1496
  %1512 = vmatpush.bf16.msra.mxu0 %v1495
  %1513 = vmatpush.bf16.msra.mxu0 %v1494
  %1514 = vmatpush.bf16.msra.mxu0 %v1493
  %1515 = vmatpush.bf16.msra.mxu0 %v1492
  %1516 = vmatmul.bf16.gmra.mxu0 %v1439
  %v1517 = vpop.f32.mrf.mxu0
  %v1518 = vadd.f32 %v1458, %v1517
  %v1519 = vpop.f32.mrf.mxu0
  %1520 = vdwg.mxu0
  %v1521 = vld [vmem:[%s1] sm:$0xff]
  %v1522 = vld [vmem:[%s1 + $0x8] sm:$0xff]
  %v1523 = vld [vmem:[%s1 + $0x10] sm:$0xff]
  %v1524 = vld [vmem:[%s1 + $0x18] sm:$0xff]
  %v1525 = vld [vmem:[%s1 + $0x20] sm:$0xff]
  %v1526 = vld [vmem:[%s1 + $0x28] sm:$0xff]
  %v1527 = vld [vmem:[%s1 + $0x30] sm:$0xff]
  %v1528 = vld [vmem:[%s1 + $0x38] sm:$0xff]
  %v1529 = vld [vmem:[%s1 + $0x40] sm:$0xff]
  %v1530 = vld [vmem:[%s1 + $0x48] sm:$0xff]
  %v1531 = vld [vmem:[%s1 + $0x50] sm:$0xff]
  %v1532 = vld [vmem:[%s1 + $0x58] sm:$0xff]
  %v1533 = vld [vmem:[%s1 + $0x60] sm:$0xff]
  %v1534 = vld [vmem:[%s1 + $0x68] sm:$0xff]
  %v1535 = vld [vmem:[%s1 + $0x70] sm:$0xff]
  %v1536 = vld [vmem:[%s1 + $0x78] sm:$0xff]
  %v1538 = vrot.slane %v1518, 1
  %v1539 = vrot.slane %v1518, 2
  %v1540 = vrot.slane %v1518, 3
  %v1541 = vrot.slane %v1518, 4
  %v1542 = vrot.slane %v1518, 5
  %v1543 = vrot.slane %v1518, 6
  %v1544 = vrot.slane %v1518, 7
  %v1545 = vperm.slane %v1518, 0
  %v1546 = vperm.slane %v1538, 0
  %v1547 = vperm.slane %v1539, 0
  %v1548 = vperm.slane %v1540, 0
  %v1549 = vperm.slane %v1541, 0
  %v1550 = vperm.slane %v1542, 0
  %v1551 = vperm.slane %v1543, 0
  %v1552 = vperm.slane %v1544, 0
  %v1561 = vadd.f32 %v1521, %v1545
  %v1562 = vadd.f32 %v1522, %v1545
  %v1563 = vadd.f32 %v1523, %v1546
  %v1564 = vadd.f32 %v1524, %v1546
  %v1565 = vadd.f32 %v1525, %v1547
  %v1566 = vadd.f32 %v1526, %v1547
  %v1567 = vadd.f32 %v1527, %v1548
  %v1568 = vadd.f32 %v1528, %v1548
  %v1569 = vadd.f32 %v1529, %v1549
  %v1570 = vadd.f32 %v1530, %v1549
  %v1571 = vadd.f32 %v1531, %v1550
  %v1572 = vadd.f32 %v1532, %v1550
  %v1573 = vadd.f32 %v1533, %v1551
  %v1574 = vadd.f32 %v1534, %v1551
  %v1575 = vadd.f32 %v1535, %v1552
  %v1576 = vadd.f32 %v1536, %v1552
  %v1577 = vtanh.pop %v1561
  %v1578 = vtanh.pop %v1562
  %v1579 = vtanh.pop %v1563
  %v1580 = vtanh.pop %v1564
  %v1581 = vtanh.pop %v1565
  %v1582 = vtanh.pop %v1566
  %v1583 = vtanh.pop %v1567
  %v1584 = vtanh.pop %v1568
  %v1585 = vtanh.pop %v1569
  %v1586 = vtanh.pop %v1570
  %v1587 = vtanh.pop %v1571
  %v1588 = vtanh.pop %v1572
  %v1589 = vtanh.pop %v1573
  %v1590 = vtanh.pop %v1574
  %v1591 = vtanh.pop %v1575
  %v1592 = vtanh.pop %v1576
  %v1593 = vld [vmem:[%s7] sm:$0x1]
  %v1595 = vperm.slane %v1593, 0
  %v1597 = vmul.f32 %v1577, %v1595
  %v1598 = vmul.f32 %v1578, %v1595
  %v1599 = vmul.f32 %v1579, %v1595
  %v1600 = vmul.f32 %v1580, %v1595
  %v1601 = vmul.f32 %v1581, %v1595
  %v1602 = vmul.f32 %v1582, %v1595
  %v1603 = vmul.f32 %v1583, %v1595
  %v1604 = vmul.f32 %v1584, %v1595
  %v1605 = vmul.f32 %v1585, %v1595
  %v1606 = vmul.f32 %v1586, %v1595
  %v1607 = vmul.f32 %v1587, %v1595
  %v1608 = vmul.f32 %v1588, %v1595
  %v1609 = vmul.f32 %v1589, %v1595
  %v1610 = vmul.f32 %v1590, %v1595
  %v1611 = vmul.f32 %v1591, %v1595
  %v1612 = vmul.f32 %v1592, %v1595
  %1613 = vadd.xlane.f32.xlu0 %v1597
  %v1614 = vpop.xlane.xlu0 %1613
  %1615 = vadd.xlane.f32.xlu0 %v1598
  %v1616 = vpop.xlane.xlu0 %1615
  %1617 = vadd.xlane.f32.xlu0 %v1599
  %v1618 = vpop.xlane.xlu0 %1617
  %1619 = vadd.xlane.f32.xlu0 %v1600
  %v1620 = vpop.xlane.xlu0 %1619
  %1621 = vadd.xlane.f32.xlu0 %v1601
  %v1622 = vpop.xlane.xlu0 %1621
  %1623 = vadd.xlane.f32.xlu0 %v1602
  %v1624 = vpop.xlane.xlu0 %1623
  %1625 = vadd.xlane.f32.xlu0 %v1603
  %v1626 = vpop.xlane.xlu0 %1625
  %1627 = vadd.xlane.f32.xlu0 %v1604
  %v1628 = vpop.xlane.xlu0 %1627
  %1629 = vadd.xlane.f32.xlu0 %v1605
  %v1630 = vpop.xlane.xlu0 %1629
  %1631 = vadd.xlane.f32.xlu0 %v1606
  %v1632 = vpop.xlane.xlu0 %1631
  %1633 = vadd.xlane.f32.xlu0 %v1607
  %v1634 = vpop.xlane.xlu0 %1633
  %1635 = vadd.xlane.f32.xlu0 %v1608
  %v1636 = vpop.xlane.xlu0 %1635
  %1637 = vadd.xlane.f32.xlu0 %v1609
  %v1638 = vpop.xlane.xlu0 %1637
  %1639 = vadd.xlane.f32.xlu0 %v1610
  %v1640 = vpop.xlane.xlu0 %1639
  %1641 = vadd.xlane.f32.xlu0 %v1611
  %v1642 = vpop.xlane.xlu0 %1641
  %1643 = vadd.xlane.f32.xlu0 %v1612
  %v1644 = vpop.xlane.xlu0 %1643
  %v1645 = vadd.f32 %v1614, %v247
  %v1646 = vadd.f32 %v1616, %v247
  %v1647 = vadd.f32 %v1618, %v247
  %v1648 = vadd.f32 %v1620, %v247
  %v1649 = vadd.f32 %v1622, %v247
  %v1650 = vadd.f32 %v1624, %v247
  %v1651 = vadd.f32 %v1626, %v247
  %v1652 = vadd.f32 %v1628, %v247
  %v1653 = vadd.f32 %v1630, %v247
  %v1654 = vadd.f32 %v1632, %v247
  %v1655 = vadd.f32 %v1634, %v247
  %v1656 = vadd.f32 %v1636, %v247
  %v1657 = vadd.f32 %v1638, %v247
  %v1658 = vadd.f32 %v1640, %v247
  %v1659 = vadd.f32 %v1642, %v247
  %v1660 = vadd.f32 %v1644, %v247
  %v1677 = vperm.slane %v1645, %v281
  %v1678 = vperm.slane %v1646, %v283
  %v1679 = vsel %vm285, %v1678, %v1677
  %v1680 = vperm.slane %v1647, %v281
  %v1681 = vperm.slane %v1648, %v283
  %v1682 = vsel %vm285, %v1681, %v1680
  %v1683 = vperm.slane %v1649, %v281
  %v1684 = vperm.slane %v1650, %v283
  %v1685 = vsel %vm285, %v1684, %v1683
  %v1686 = vperm.slane %v1651, %v281
  %v1687 = vperm.slane %v1652, %v283
  %v1688 = vsel %vm285, %v1687, %v1686
  %v1689 = vperm.slane %v1653, %v281
  %v1690 = vperm.slane %v1654, %v283
  %v1691 = vsel %vm285, %v1690, %v1689
  %v1692 = vperm.slane %v1655, %v281
  %v1693 = vperm.slane %v1656, %v283
  %v1694 = vsel %vm285, %v1693, %v1692
  %v1695 = vperm.slane %v1657, %v281
  %v1696 = vperm.slane %v1658, %v283
  %v1697 = vsel %vm285, %v1696, %v1695
  %v1698 = vperm.slane %v1659, %v281
  %v1699 = vperm.slane %v1660, %v283
  %v1700 = vsel %vm285, %v1699, %v1698
  %v1701 = vsel %vm308, %v1682, %v1679
  %v1702 = vsel %vm310, %v1685, %v1701
  %v1703 = vsel %vm312, %v1688, %v1702
  %v1704 = vsel %vm314, %v1691, %v1703
  %v1705 = vsel %vm316, %v1694, %v1704
  %v1706 = vsel %vm318, %v1697, %v1705
  %v1707 = vsel %vm320, %v1700, %v1706
  %v1709 = vsel %vm323, %v1707, -inf
  %1710 = vmax.xlane.f32.xlu0 %v1709
  %v1711 = vpop.xlane.xlu0 %1710
  %v1713 = vperm.slane %v1711, 0
  %v1714 = vperm.slane %v1711, 1
  %v1715 = vperm.slane %v1711, 2
  %v1716 = vperm.slane %v1711, 3
  %v1717 = vperm.slane %v1711, 4
  %v1718 = vperm.slane %v1711, 5
  %v1719 = vperm.slane %v1711, 6
  %v1720 = vperm.slane %v1711, 7
  %v1729 = vsub.f32 %v1645, %v1713
  %v1730 = vsub.f32 %v1646, %v1713
  %v1731 = vsub.f32 %v1647, %v1714
  %v1732 = vsub.f32 %v1648, %v1714
  %v1733 = vsub.f32 %v1649, %v1715
  %v1734 = vsub.f32 %v1650, %v1715
  %v1735 = vsub.f32 %v1651, %v1716
  %v1736 = vsub.f32 %v1652, %v1716
  %v1737 = vsub.f32 %v1653, %v1717
  %v1738 = vsub.f32 %v1654, %v1717
  %v1739 = vsub.f32 %v1655, %v1718
  %v1740 = vsub.f32 %v1656, %v1718
  %v1741 = vsub.f32 %v1657, %v1719
  %v1742 = vsub.f32 %v1658, %v1719
  %v1743 = vsub.f32 %v1659, %v1720
  %v1744 = vsub.f32 %v1660, %v1720
  %v1745 = vmul.f32 %v1729, 1.442695
  %v1746 = vpow.pop %v1745
  %v1747 = vmul.f32 %v1730, 1.442695
  %v1748 = vpow.pop %v1747
  %v1749 = vmul.f32 %v1731, 1.442695
  %v1750 = vpow.pop %v1749
  %v1751 = vmul.f32 %v1732, 1.442695
  %v1752 = vpow.pop %v1751
  %v1753 = vmul.f32 %v1733, 1.442695
  %v1754 = vpow.pop %v1753
  %v1755 = vmul.f32 %v1734, 1.442695
  %v1756 = vpow.pop %v1755
  %v1757 = vmul.f32 %v1735, 1.442695
  %v1758 = vpow.pop %v1757
  %v1759 = vmul.f32 %v1736, 1.442695
  %v1760 = vpow.pop %v1759
  %v1761 = vmul.f32 %v1737, 1.442695
  %v1762 = vpow.pop %v1761
  %v1763 = vmul.f32 %v1738, 1.442695
  %v1764 = vpow.pop %v1763
  %v1765 = vmul.f32 %v1739, 1.442695
  %v1766 = vpow.pop %v1765
  %v1767 = vmul.f32 %v1740, 1.442695
  %v1768 = vpow.pop %v1767
  %v1769 = vmul.f32 %v1741, 1.442695
  %v1770 = vpow.pop %v1769
  %v1771 = vmul.f32 %v1742, 1.442695
  %v1772 = vpow.pop %v1771
  %v1773 = vmul.f32 %v1743, 1.442695
  %v1774 = vpow.pop %v1773
  %v1775 = vmul.f32 %v1744, 1.442695
  %v1776 = vpow.pop %v1775
  %1793 = vset.pattern.permute.xlu0 0
  %1794 = vperm.xlu0 %1793, %v1746
  %v1795 = vpop.permute.xlu0 %1794
  %1796 = vset.pattern.permute.xlu0 0
  %1797 = vperm.xlu0 %1796, %v1748
  %v1798 = vpop.permute.xlu0 %1797
  %1799 = vset.pattern.permute.xlu0 0
  %1800 = vperm.xlu0 %1799, %v1750
  %v1801 = vpop.permute.xlu0 %1800
  %1802 = vset.pattern.permute.xlu0 0
  %1803 = vperm.xlu0 %1802, %v1752
  %v1804 = vpop.permute.xlu0 %1803
  %1805 = vset.pattern.permute.xlu0 0
  %1806 = vperm.xlu0 %1805, %v1754
  %v1807 = vpop.permute.xlu0 %1806
  %1808 = vset.pattern.permute.xlu0 0
  %1809 = vperm.xlu0 %1808, %v1756
  %v1810 = vpop.permute.xlu0 %1809
  %1811 = vset.pattern.permute.xlu0 0
  %1812 = vperm.xlu0 %1811, %v1758
  %v1813 = vpop.permute.xlu0 %1812
  %1814 = vset.pattern.permute.xlu0 0
  %1815 = vperm.xlu0 %1814, %v1760
  %v1816 = vpop.permute.xlu0 %1815
  %1817 = vset.pattern.permute.xlu0 0
  %1818 = vperm.xlu0 %1817, %v1762
  %v1819 = vpop.permute.xlu0 %1818
  %1820 = vset.pattern.permute.xlu0 0
  %1821 = vperm.xlu0 %1820, %v1764
  %v1822 = vpop.permute.xlu0 %1821
  %1823 = vset.pattern.permute.xlu0 0
  %1824 = vperm.xlu0 %1823, %v1766
  %v1825 = vpop.permute.xlu0 %1824
  %1826 = vset.pattern.permute.xlu0 0
  %1827 = vperm.xlu0 %1826, %v1768
  %v1828 = vpop.permute.xlu0 %1827
  %1829 = vset.pattern.permute.xlu0 0
  %1830 = vperm.xlu0 %1829, %v1770
  %v1831 = vpop.permute.xlu0 %1830
  %1832 = vset.pattern.permute.xlu0 0
  %1833 = vperm.xlu0 %1832, %v1772
  %v1834 = vpop.permute.xlu0 %1833
  %1835 = vset.pattern.permute.xlu0 0
  %1836 = vperm.xlu0 %1835, %v1774
  %v1837 = vpop.permute.xlu0 %1836
  %1838 = vset.pattern.permute.xlu0 0
  %1839 = vperm.xlu0 %1838, %v1776
  %v1840 = vpop.permute.xlu0 %1839
  %v1841 = vperm.slane %v1795, %v281
  %v1842 = vperm.slane %v1798, %v283
  %v1843 = vsel %vm285, %v1842, %v1841
  %v1844 = vperm.slane %v1801, %v281
  %v1845 = vperm.slane %v1804, %v283
  %v1846 = vsel %vm285, %v1845, %v1844
  %v1847 = vperm.slane %v1807, %v281
  %v1848 = vperm.slane %v1810, %v283
  %v1849 = vsel %vm285, %v1848, %v1847
  %v1850 = vperm.slane %v1813, %v281
  %v1851 = vperm.slane %v1816, %v283
  %v1852 = vsel %vm285, %v1851, %v1850
  %v1853 = vperm.slane %v1819, %v281
  %v1854 = vperm.slane %v1822, %v283
  %v1855 = vsel %vm285, %v1854, %v1853
  %v1856 = vperm.slane %v1825, %v281
  %v1857 = vperm.slane %v1828, %v283
  %v1858 = vsel %vm285, %v1857, %v1856
  %v1859 = vperm.slane %v1831, %v281
  %v1860 = vperm.slane %v1834, %v283
  %v1861 = vsel %vm285, %v1860, %v1859
  %v1862 = vperm.slane %v1837, %v281
  %v1863 = vperm.slane %v1840, %v283
  %v1864 = vsel %vm285, %v1863, %v1862
  %v1865 = vsel %vm308, %v1846, %v1843
  %v1866 = vsel %vm310, %v1849, %v1865
  %v1867 = vsel %vm312, %v1852, %v1866
  %v1868 = vsel %vm314, %v1855, %v1867
  %v1869 = vsel %vm316, %v1858, %v1868
  %v1870 = vsel %vm318, %v1861, %v1869
  %v1871 = vsel %vm320, %v1864, %v1870
  %v1873 = vsel %vm323, %v1871, 0.0
  %1874 = vadd.xlane.f32.xlu0 %v1873
  %v1875 = vpop.xlane.xlu0 %1874
  %v1877 = vperm.slane %v1875, 0
  %v1878 = vperm.slane %v1875, 1
  %v1879 = vperm.slane %v1875, 2
  %v1880 = vperm.slane %v1875, 3
  %v1881 = vperm.slane %v1875, 4
  %v1882 = vperm.slane %v1875, 5
  %v1883 = vperm.slane %v1875, 6
  %v1884 = vperm.slane %v1875, 7
  %v1893 = vrcp.pop %v1877
  %v1894 = vmul.f32 %v1877, %v1893
  %v1895 = vsub.f32 1.0, %v1894
  %v1896 = vmul.f32 %v1893, %v1895
  %v1897 = vadd.f32 %v1893, %v1896
  %vm1898 = vweird.f32 %v1877
  %vm1899 = vweird.f32 %v1893
  %vm1900 = vmor %vm1898, %vm1899
  %v1901 = vsel %vm1900, %v1893, %v1897
  %v1902 = vand.u32 2147483647, %v1877
  %vm1903 = vcmp.eq.f32.partialorder %v1902, 8.507059e+37
  %v1904 = vand.u32 %v1877, 2147483648
  %v1905 = vor.u32 1.1754944e-38, %v1904
  %v1906 = vsel %vm1903, %v1905, %v1901
  %v1907 = vmul.f32 %v1746, %v1906
  %v1908 = vmul.f32 %v1748, %v1906
  %v1909 = vrcp.pop %v1878
  %v1910 = vmul.f32 %v1878, %v1909
  %v1911 = vsub.f32 1.0, %v1910
  %v1912 = vmul.f32 %v1909, %v1911
  %v1913 = vadd.f32 %v1909, %v1912
  %vm1914 = vweird.f32 %v1878
  %vm1915 = vweird.f32 %v1909
  %vm1916 = vmor %vm1914, %vm1915
  %v1917 = vsel %vm1916, %v1909, %v1913
  %v1918 = vand.u32 2147483647, %v1878
  %vm1919 = vcmp.eq.f32.partialorder %v1918, 8.507059e+37
  %v1920 = vand.u32 %v1878, 2147483648
  %v1921 = vor.u32 1.1754944e-38, %v1920
  %v1922 = vsel %vm1919, %v1921, %v1917
  %v1923 = vmul.f32 %v1750, %v1922
  %v1924 = vmul.f32 %v1752, %v1922
  %v1925 = vrcp.pop %v1879
  %v1926 = vmul.f32 %v1879, %v1925
  %v1927 = vsub.f32 1.0, %v1926
  %v1928 = vmul.f32 %v1925, %v1927
  %v1929 = vadd.f32 %v1925, %v1928
  %vm1930 = vweird.f32 %v1879
  %vm1931 = vweird.f32 %v1925
  %vm1932 = vmor %vm1930, %vm1931
  %v1933 = vsel %vm1932, %v1925, %v1929
  %v1934 = vand.u32 2147483647, %v1879
  %vm1935 = vcmp.eq.f32.partialorder %v1934, 8.507059e+37
  %v1936 = vand.u32 %v1879, 2147483648
  %v1937 = vor.u32 1.1754944e-38, %v1936
  %v1938 = vsel %vm1935, %v1937, %v1933
  %v1939 = vmul.f32 %v1754, %v1938
  %v1940 = vmul.f32 %v1756, %v1938
  %v1941 = vrcp.pop %v1880
  %v1942 = vmul.f32 %v1880, %v1941
  %v1943 = vsub.f32 1.0, %v1942
  %v1944 = vmul.f32 %v1941, %v1943
  %v1945 = vadd.f32 %v1941, %v1944
  %vm1946 = vweird.f32 %v1880
  %vm1947 = vweird.f32 %v1941
  %vm1948 = vmor %vm1946, %vm1947
  %v1949 = vsel %vm1948, %v1941, %v1945
  %v1950 = vand.u32 2147483647, %v1880
  %vm1951 = vcmp.eq.f32.partialorder %v1950, 8.507059e+37
  %v1952 = vand.u32 %v1880, 2147483648
  %v1953 = vor.u32 1.1754944e-38, %v1952
  %v1954 = vsel %vm1951, %v1953, %v1949
  %v1955 = vmul.f32 %v1758, %v1954
  %v1956 = vmul.f32 %v1760, %v1954
  %v1957 = vrcp.pop %v1881
  %v1958 = vmul.f32 %v1881, %v1957
  %v1959 = vsub.f32 1.0, %v1958
  %v1960 = vmul.f32 %v1957, %v1959
  %v1961 = vadd.f32 %v1957, %v1960
  %vm1962 = vweird.f32 %v1881
  %vm1963 = vweird.f32 %v1957
  %vm1964 = vmor %vm1962, %vm1963
  %v1965 = vsel %vm1964, %v1957, %v1961
  %v1966 = vand.u32 2147483647, %v1881
  %vm1967 = vcmp.eq.f32.partialorder %v1966, 8.507059e+37
  %v1968 = vand.u32 %v1881, 2147483648
  %v1969 = vor.u32 1.1754944e-38, %v1968
  %v1970 = vsel %vm1967, %v1969, %v1965
  %v1971 = vmul.f32 %v1762, %v1970
  %v1972 = vmul.f32 %v1764, %v1970
  %v1973 = vrcp.pop %v1882
  %v1974 = vmul.f32 %v1882, %v1973
  %v1975 = vsub.f32 1.0, %v1974
  %v1976 = vmul.f32 %v1973, %v1975
  %v1977 = vadd.f32 %v1973, %v1976
  %vm1978 = vweird.f32 %v1882
  %vm1979 = vweird.f32 %v1973
  %vm1980 = vmor %vm1978, %vm1979
  %v1981 = vsel %vm1980, %v1973, %v1977
  %v1982 = vand.u32 2147483647, %v1882
  %vm1983 = vcmp.eq.f32.partialorder %v1982, 8.507059e+37
  %v1984 = vand.u32 %v1882, 2147483648
  %v1985 = vor.u32 1.1754944e-38, %v1984
  %v1986 = vsel %vm1983, %v1985, %v1981
  %v1987 = vmul.f32 %v1766, %v1986
  %v1988 = vmul.f32 %v1768, %v1986
  %v1989 = vrcp.pop %v1883
  %v1990 = vmul.f32 %v1883, %v1989
  %v1991 = vsub.f32 1.0, %v1990
  %v1992 = vmul.f32 %v1989, %v1991
  %v1993 = vadd.f32 %v1989, %v1992
  %vm1994 = vweird.f32 %v1883
  %vm1995 = vweird.f32 %v1989
  %vm1996 = vmor %vm1994, %vm1995
  %v1997 = vsel %vm1996, %v1989, %v1993
  %v1998 = vand.u32 2147483647, %v1883
  %vm1999 = vcmp.eq.f32.partialorder %v1998, 8.507059e+37
  %v2000 = vand.u32 %v1883, 2147483648
  %v2001 = vor.u32 1.1754944e-38, %v2000
  %v2002 = vsel %vm1999, %v2001, %v1997
  %v2003 = vmul.f32 %v1770, %v2002
  %v2004 = vmul.f32 %v1772, %v2002
  %v2005 = vrcp.pop %v1884
  %v2006 = vmul.f32 %v1884, %v2005
  %v2007 = vsub.f32 1.0, %v2006
  %v2008 = vmul.f32 %v2005, %v2007
  %v2009 = vadd.f32 %v2005, %v2008
  %vm2010 = vweird.f32 %v1884
  %vm2011 = vweird.f32 %v2005
  %vm2012 = vmor %vm2010, %vm2011
  %v2013 = vsel %vm2012, %v2005, %v2009
  %v2014 = vand.u32 2147483647, %v1884
  %vm2015 = vcmp.eq.f32.partialorder %v2014, 8.507059e+37
  %v2016 = vand.u32 %v1884, 2147483648
  %v2017 = vor.u32 1.1754944e-38, %v2016
  %v2018 = vsel %vm2015, %v2017, %v2013
  %v2019 = vmul.f32 %v1774, %v2018
  %v2020 = vmul.f32 %v1776, %v2018
  %v2021 = vld [vmem:[%s0] sm:$0xff]
  %v2022 = vld [vmem:[%s0 + $0x8] sm:$0xff]
  %v2023 = vld [vmem:[%s0 + $0x10] sm:$0xff]
  %v2024 = vld [vmem:[%s0 + $0x18] sm:$0xff]
  %v2025 = vld [vmem:[%s0 + $0x20] sm:$0xff]
  %v2026 = vld [vmem:[%s0 + $0x28] sm:$0xff]
  %v2027 = vld [vmem:[%s0 + $0x30] sm:$0xff]
  %v2028 = vld [vmem:[%s0 + $0x38] sm:$0xff]
  %v2029 = vld [vmem:[%s0 + $0x40] sm:$0xff]
  %v2030 = vld [vmem:[%s0 + $0x48] sm:$0xff]
  %v2031 = vld [vmem:[%s0 + $0x50] sm:$0xff]
  %v2032 = vld [vmem:[%s0 + $0x58] sm:$0xff]
  %v2033 = vld [vmem:[%s0 + $0x60] sm:$0xff]
  %v2034 = vld [vmem:[%s0 + $0x68] sm:$0xff]
  %v2035 = vld [vmem:[%s0 + $0x70] sm:$0xff]
  %v2036 = vld [vmem:[%s0 + $0x78] sm:$0xff]
  %2038 = vset.pattern.permute.xlu0 0
  %2039 = vperm.xlu0 %2038, %v1907
  %v2040 = vpop.permute.xlu0 %2039
  %2043 = vset.pattern.permute.xlu0 0
  %2044 = vperm.xlu0 %2043, %v1908
  %v2045 = vpop.permute.xlu0 %2044
  %2048 = vset.pattern.permute.xlu0 0
  %2049 = vperm.xlu0 %2048, %v1923
  %v2050 = vpop.permute.xlu0 %2049
  %2053 = vset.pattern.permute.xlu0 0
  %2054 = vperm.xlu0 %2053, %v1924
  %v2055 = vpop.permute.xlu0 %2054
  %2058 = vset.pattern.permute.xlu0 0
  %2059 = vperm.xlu0 %2058, %v1939
  %v2060 = vpop.permute.xlu0 %2059
  %2063 = vset.pattern.permute.xlu0 0
  %2064 = vperm.xlu0 %2063, %v1940
  %v2065 = vpop.permute.xlu0 %2064
  %2068 = vset.pattern.permute.xlu0 0
  %2069 = vperm.xlu0 %2068, %v1955
  %v2070 = vpop.permute.xlu0 %2069
  %2073 = vset.pattern.permute.xlu0 0
  %2074 = vperm.xlu0 %2073, %v1956
  %v2075 = vpop.permute.xlu0 %2074
  %2078 = vset.pattern.permute.xlu0 0
  %2079 = vperm.xlu0 %2078, %v1971
  %v2080 = vpop.permute.xlu0 %2079
  %2083 = vset.pattern.permute.xlu0 0
  %2084 = vperm.xlu0 %2083, %v1972
  %v2085 = vpop.permute.xlu0 %2084
  %2088 = vset.pattern.permute.xlu0 0
  %2089 = vperm.xlu0 %2088, %v1987
  %v2090 = vpop.permute.xlu0 %2089
  %2093 = vset.pattern.permute.xlu0 0
  %2094 = vperm.xlu0 %2093, %v1988
  %v2095 = vpop.permute.xlu0 %2094
  %2098 = vset.pattern.permute.xlu0 0
  %2099 = vperm.xlu0 %2098, %v2003
  %v2100 = vpop.permute.xlu0 %2099
  %2103 = vset.pattern.permute.xlu0 0
  %2104 = vperm.xlu0 %2103, %v2004
  %v2105 = vpop.permute.xlu0 %2104
  %2108 = vset.pattern.permute.xlu0 0
  %2109 = vperm.xlu0 %2108, %v2019
  %v2110 = vpop.permute.xlu0 %2109
  %2113 = vset.pattern.permute.xlu0 0
  %2114 = vperm.xlu0 %2113, %v2020
  %v2115 = vpop.permute.xlu0 %2114
  %v2117 = vmul.f32 %v2021, %v2040
  %v2118 = vmul.f32 %v2022, %v2045
  %v2119 = vmul.f32 %v2023, %v2050
  %v2120 = vmul.f32 %v2024, %v2055
  %v2121 = vmul.f32 %v2025, %v2060
  %v2122 = vmul.f32 %v2026, %v2065
  %v2123 = vmul.f32 %v2027, %v2070
  %v2124 = vmul.f32 %v2028, %v2075
  %v2125 = vmul.f32 %v2029, %v2080
  %v2126 = vmul.f32 %v2030, %v2085
  %v2127 = vmul.f32 %v2031, %v2090
  %v2128 = vmul.f32 %v2032, %v2095
  %v2129 = vmul.f32 %v2033, %v2100
  %v2130 = vmul.f32 %v2034, %v2105
  %v2131 = vmul.f32 %v2035, %v2110
  %v2132 = vmul.f32 %v2036, %v2115
  %v2133 = vadd.f32 %v2117, %v2118
  %v2134 = vrot.slane %v2133, 4
  %v2135 = vadd.f32 %v2133, %v2134
  %v2136 = vrot.slane %v2135, 2
  %v2137 = vadd.f32 %v2135, %v2136
  %v2138 = vrot.slane %v2137, 1
  %v2139 = vadd.f32 %v2137, %v2138
  %v2140 = vadd.f32 %v2119, %v2120
  %v2141 = vrot.slane %v2140, 4
  %v2142 = vadd.f32 %v2140, %v2141
  %v2143 = vrot.slane %v2142, 2
  %v2144 = vadd.f32 %v2142, %v2143
  %v2145 = vrot.slane %v2144, 1
  %v2146 = vadd.f32 %v2144, %v2145
  %v2147 = vadd.f32 %v2121, %v2122
  %v2148 = vrot.slane %v2147, 4
  %v2149 = vadd.f32 %v2147, %v2148
  %v2150 = vrot.slane %v2149, 2
  %v2151 = vadd.f32 %v2149, %v2150
  %v2152 = vrot.slane %v2151, 1
  %v2153 = vadd.f32 %v2151, %v2152
  %v2154 = vadd.f32 %v2123, %v2124
  %v2155 = vrot.slane %v2154, 4
  %v2156 = vadd.f32 %v2154, %v2155
  %v2157 = vrot.slane %v2156, 2
  %v2158 = vadd.f32 %v2156, %v2157
  %v2159 = vrot.slane %v2158, 1
  %v2160 = vadd.f32 %v2158, %v2159
  %v2161 = vadd.f32 %v2125, %v2126
  %v2162 = vrot.slane %v2161, 4
  %v2163 = vadd.f32 %v2161, %v2162
  %v2164 = vrot.slane %v2163, 2
  %v2165 = vadd.f32 %v2163, %v2164
  %v2166 = vrot.slane %v2165, 1
  %v2167 = vadd.f32 %v2165, %v2166
  %v2168 = vadd.f32 %v2127, %v2128
  %v2169 = vrot.slane %v2168, 4
  %v2170 = vadd.f32 %v2168, %v2169
  %v2171 = vrot.slane %v2170, 2
  %v2172 = vadd.f32 %v2170, %v2171
  %v2173 = vrot.slane %v2172, 1
  %v2174 = vadd.f32 %v2172, %v2173
  %v2175 = vadd.f32 %v2129, %v2130
  %v2176 = vrot.slane %v2175, 4
  %v2177 = vadd.f32 %v2175, %v2176
  %v2178 = vrot.slane %v2177, 2
  %v2179 = vadd.f32 %v2177, %v2178
  %v2180 = vrot.slane %v2179, 1
  %v2181 = vadd.f32 %v2179, %v2180
  %v2182 = vadd.f32 %v2131, %v2132
  %v2183 = vrot.slane %v2182, 4
  %v2184 = vadd.f32 %v2182, %v2183
  %v2185 = vrot.slane %v2184, 2
  %v2186 = vadd.f32 %v2184, %v2185
  %v2187 = vrot.slane %v2186, 1
  %v2188 = vadd.f32 %v2186, %v2187
  %v2189 = vpack.c.bf16 %v2139, %v2139
  %v2190 = vpack.c.bf16 %v2146, %v2146
  %v2191 = vpack.c.bf16 %v2153, %v2153
  %v2192 = vpack.c.bf16 %v2160, %v2160
  %v2193 = vpack.c.bf16 %v2167, %v2167
  %v2194 = vpack.c.bf16 %v2174, %v2174
  %v2195 = vpack.c.bf16 %v2181, %v2181
  %v2196 = vpack.c.bf16 %v2188, %v2188
  %v2205 = vperm.slane %v2189, 0
  %v2206 = vperm.slane %v2190, 0
  %v2207 = vperm.slane %v2191, 0
  %v2208 = vperm.slane %v2192, 0
  %v2209 = vperm.slane %v2193, 0
  %v2210 = vperm.slane %v2194, 0
  %v2211 = vperm.slane %v2195, 0
  %v2212 = vperm.slane %v2196, 0
  %v2213 = vunpack.c.l.b16 %v2205
  %v2214 = vunpack.c.l.b16 %v2206
  %v2215 = vunpack.c.l.b16 %v2207
  %v2216 = vunpack.c.l.b16 %v2208
  %v2217 = vunpack.c.l.b16 %v2209
  %v2218 = vunpack.c.l.b16 %v2210
  %v2219 = vunpack.c.l.b16 %v2211
  %v2220 = vunpack.c.l.b16 %v2212
  %v2221 = vsel %vm308, %v2214, %v2213
  %v2222 = vsel %vm310, %v2215, %v2221
  %v2223 = vsel %vm312, %v2216, %v2222
  %v2224 = vsel %vm314, %v2217, %v2223
  %v2225 = vsel %vm316, %v2218, %v2224
  %v2226 = vsel %vm318, %v2219, %v2225
  %v2227 = vsel %vm320, %v2220, %v2226
  %v2228 = vpack.c.b16 %v2227, %v2227
  %s2230 = scalar_lea.vmem %s2, 32
  %v2231 = vld [vmem:[%s2230] sm:$0xff]
  %v2232 = vld [vmem:[%s2230 + $0x8] sm:$0xff]
  %v2233 = vld [vmem:[%s2230 + $0x10] sm:$0xff]
  %v2234 = vld [vmem:[%s2230 + $0x18] sm:$0xff]
  %v2235 = vld [vmem:[%s9] sm:$0xff]
  %v2236 = vld [vmem:[%s9 + $0x8] sm:$0xff]
  %v2237 = vld [vmem:[%s9 + $0x10] sm:$0xff]
  %v2238 = vld [vmem:[%s9 + $0x18] sm:$0xff]
  %v2239 = vld [vmem:[%s9 + $0x20] sm:$0xff]
  %v2240 = vld [vmem:[%s9 + $0x28] sm:$0xff]
  %v2241 = vld [vmem:[%s9 + $0x30] sm:$0xff]
  %v2242 = vld [vmem:[%s9 + $0x38] sm:$0xff]
  %v2243 = vld [vmem:[%s9 + $0x40] sm:$0xff]
  %v2244 = vld [vmem:[%s9 + $0x48] sm:$0xff]
  %v2245 = vld [vmem:[%s9 + $0x50] sm:$0xff]
  %v2246 = vld [vmem:[%s9 + $0x58] sm:$0xff]
  %v2247 = vld [vmem:[%s9 + $0x60] sm:$0xff]
  %v2248 = vld [vmem:[%s9 + $0x68] sm:$0xff]
  %v2249 = vld [vmem:[%s9 + $0x70] sm:$0xff]
  %v2250 = vld [vmem:[%s9 + $0x78] sm:$0xff]
  %v2251 = vld [vmem:[%s9 + $0x80] sm:$0xff]
  %v2252 = vld [vmem:[%s9 + $0x88] sm:$0xff]
  %v2253 = vld [vmem:[%s9 + $0x90] sm:$0xff]
  %v2254 = vld [vmem:[%s9 + $0x98] sm:$0xff]
  %v2255 = vld [vmem:[%s9 + $0xa0] sm:$0xff]
  %v2256 = vld [vmem:[%s9 + $0xa8] sm:$0xff]
  %v2257 = vld [vmem:[%s9 + $0xb0] sm:$0xff]
  %v2258 = vld [vmem:[%s9 + $0xb8] sm:$0xff]
  %v2259 = vld [vmem:[%s9 + $0xc0] sm:$0xff]
  %v2260 = vld [vmem:[%s9 + $0xc8] sm:$0xff]
  %v2261 = vld [vmem:[%s9 + $0xd0] sm:$0xff]
  %v2262 = vld [vmem:[%s9 + $0xd8] sm:$0xff]
  %v2263 = vld [vmem:[%s9 + $0xe0] sm:$0xff]
  %v2264 = vld [vmem:[%s9 + $0xe8] sm:$0xff]
  %v2265 = vld [vmem:[%s9 + $0xf0] sm:$0xff]
  %v2266 = vld [vmem:[%s9 + $0xf8] sm:$0xff]
  %v2267 = vld [vmem:[%s9 + $0x100] sm:$0xff]
  %v2268 = vld [vmem:[%s9 + $0x108] sm:$0xff]
  %v2269 = vld [vmem:[%s9 + $0x110] sm:$0xff]
  %v2270 = vld [vmem:[%s9 + $0x118] sm:$0xff]
  %v2271 = vld [vmem:[%s9 + $0x120] sm:$0xff]
  %v2272 = vld [vmem:[%s9 + $0x128] sm:$0xff]
  %v2273 = vld [vmem:[%s9 + $0x130] sm:$0xff]
  %v2274 = vld [vmem:[%s9 + $0x138] sm:$0xff]
  %v2275 = vld [vmem:[%s9 + $0x140] sm:$0xff]
  %v2276 = vld [vmem:[%s9 + $0x148] sm:$0xff]
  %v2277 = vld [vmem:[%s9 + $0x150] sm:$0xff]
  %v2278 = vld [vmem:[%s9 + $0x158] sm:$0xff]
  %v2279 = vld [vmem:[%s9 + $0x160] sm:$0xff]
  %v2280 = vld [vmem:[%s9 + $0x168] sm:$0xff]
  %v2281 = vld [vmem:[%s9 + $0x170] sm:$0xff]
  %v2282 = vld [vmem:[%s9 + $0x178] sm:$0xff]
  %v2283 = vld [vmem:[%s9 + $0x180] sm:$0xff]
  %v2284 = vld [vmem:[%s9 + $0x188] sm:$0xff]
  %v2285 = vld [vmem:[%s9 + $0x190] sm:$0xff]
  %v2286 = vld [vmem:[%s9 + $0x198] sm:$0xff]
  %v2287 = vld [vmem:[%s9 + $0x1a0] sm:$0xff]
  %v2288 = vld [vmem:[%s9 + $0x1a8] sm:$0xff]
  %v2289 = vld [vmem:[%s9 + $0x1b0] sm:$0xff]
  %v2290 = vld [vmem:[%s9 + $0x1b8] sm:$0xff]
  %v2291 = vld [vmem:[%s9 + $0x1c0] sm:$0xff]
  %v2292 = vld [vmem:[%s9 + $0x1c8] sm:$0xff]
  %v2293 = vld [vmem:[%s9 + $0x1d0] sm:$0xff]
  %v2294 = vld [vmem:[%s9 + $0x1d8] sm:$0xff]
  %v2295 = vld [vmem:[%s9 + $0x1e0] sm:$0xff]
  %v2296 = vld [vmem:[%s9 + $0x1e8] sm:$0xff]
  %v2297 = vld [vmem:[%s9 + $0x1f0] sm:$0xff]
  %v2298 = vld [vmem:[%s9 + $0x1f8] sm:$0xff]
  %v2363 = vunpack.c.l.b16 %v2235
  %v2364 = vunpack.c.h.b16 %v2235
  %v2365 = vunpack.c.l.b16 %v2236
  %v2366 = vunpack.c.h.b16 %v2236
  %v2367 = vunpack.c.l.b16 %v2237
  %v2368 = vunpack.c.h.b16 %v2237
  %v2369 = vunpack.c.l.b16 %v2238
  %v2370 = vunpack.c.h.b16 %v2238
  %v2371 = vunpack.c.l.b16 %v2239
  %v2372 = vunpack.c.h.b16 %v2239
  %v2373 = vunpack.c.l.b16 %v2240
  %v2374 = vunpack.c.h.b16 %v2240
  %v2375 = vunpack.c.l.b16 %v2241
  %v2376 = vunpack.c.h.b16 %v2241
  %v2377 = vunpack.c.l.b16 %v2242
  %v2378 = vunpack.c.h.b16 %v2242
  %v2379 = vunpack.c.l.b16 %v2243
  %v2380 = vunpack.c.h.b16 %v2243
  %v2381 = vunpack.c.l.b16 %v2244
  %v2382 = vunpack.c.h.b16 %v2244
  %v2383 = vunpack.c.l.b16 %v2245
  %v2384 = vunpack.c.h.b16 %v2245
  %v2385 = vunpack.c.l.b16 %v2246
  %v2386 = vunpack.c.h.b16 %v2246
  %v2387 = vunpack.c.l.b16 %v2247
  %v2388 = vunpack.c.h.b16 %v2247
  %v2389 = vunpack.c.l.b16 %v2248
  %v2390 = vunpack.c.h.b16 %v2248
  %v2391 = vunpack.c.l.b16 %v2249
  %v2392 = vunpack.c.h.b16 %v2249
  %v2393 = vunpack.c.l.b16 %v2250
  %v2394 = vunpack.c.h.b16 %v2250
  %v2395 = vunpack.c.l.b16 %v2251
  %v2396 = vunpack.c.h.b16 %v2251
  %v2397 = vunpack.c.l.b16 %v2252
  %v2398 = vunpack.c.h.b16 %v2252
  %v2399 = vunpack.c.l.b16 %v2253
  %v2400 = vunpack.c.h.b16 %v2253
  %v2401 = vunpack.c.l.b16 %v2254
  %v2402 = vunpack.c.h.b16 %v2254
  %v2403 = vunpack.c.l.b16 %v2255
  %v2404 = vunpack.c.h.b16 %v2255
  %v2405 = vunpack.c.l.b16 %v2256
  %v2406 = vunpack.c.h.b16 %v2256
  %v2407 = vunpack.c.l.b16 %v2257
  %v2408 = vunpack.c.h.b16 %v2257
  %v2409 = vunpack.c.l.b16 %v2258
  %v2410 = vunpack.c.h.b16 %v2258
  %v2411 = vunpack.c.l.b16 %v2259
  %v2412 = vunpack.c.h.b16 %v2259
  %v2413 = vunpack.c.l.b16 %v2260
  %v2414 = vunpack.c.h.b16 %v2260
  %v2415 = vunpack.c.l.b16 %v2261
  %v2416 = vunpack.c.h.b16 %v2261
  %v2417 = vunpack.c.l.b16 %v2262
  %v2418 = vunpack.c.h.b16 %v2262
  %v2419 = vunpack.c.l.b16 %v2263
  %v2420 = vunpack.c.h.b16 %v2263
  %v2421 = vunpack.c.l.b16 %v2264
  %v2422 = vunpack.c.h.b16 %v2264
  %v2423 = vunpack.c.l.b16 %v2265
  %v2424 = vunpack.c.h.b16 %v2265
  %v2425 = vunpack.c.l.b16 %v2266
  %v2426 = vunpack.c.h.b16 %v2266
  %v2427 = vunpack.c.l.b16 %v2267
  %v2428 = vunpack.c.h.b16 %v2267
  %v2429 = vunpack.c.l.b16 %v2268
  %v2430 = vunpack.c.h.b16 %v2268
  %v2431 = vunpack.c.l.b16 %v2269
  %v2432 = vunpack.c.h.b16 %v2269
  %v2433 = vunpack.c.l.b16 %v2270
  %v2434 = vunpack.c.h.b16 %v2270
  %v2435 = vunpack.c.l.b16 %v2271
  %v2436 = vunpack.c.h.b16 %v2271
  %v2437 = vunpack.c.l.b16 %v2272
  %v2438 = vunpack.c.h.b16 %v2272
  %v2439 = vunpack.c.l.b16 %v2273
  %v2440 = vunpack.c.h.b16 %v2273
  %v2441 = vunpack.c.l.b16 %v2274
  %v2442 = vunpack.c.h.b16 %v2274
  %v2443 = vunpack.c.l.b16 %v2275
  %v2444 = vunpack.c.h.b16 %v2275
  %v2445 = vunpack.c.l.b16 %v2276
  %v2446 = vunpack.c.h.b16 %v2276
  %v2447 = vunpack.c.l.b16 %v2277
  %v2448 = vunpack.c.h.b16 %v2277
  %v2449 = vunpack.c.l.b16 %v2278
  %v2450 = vunpack.c.h.b16 %v2278
  %v2451 = vunpack.c.l.b16 %v2279
  %v2452 = vunpack.c.h.b16 %v2279
  %v2453 = vunpack.c.l.b16 %v2280
  %v2454 = vunpack.c.h.b16 %v2280
  %v2455 = vunpack.c.l.b16 %v2281
  %v2456 = vunpack.c.h.b16 %v2281
  %v2457 = vunpack.c.l.b16 %v2282
  %v2458 = vunpack.c.h.b16 %v2282
  %v2459 = vunpack.c.l.b16 %v2283
  %v2460 = vunpack.c.h.b16 %v2283
  %v2461 = vunpack.c.l.b16 %v2284
  %v2462 = vunpack.c.h.b16 %v2284
  %v2463 = vunpack.c.l.b16 %v2285
  %v2464 = vunpack.c.h.b16 %v2285
  %v2465 = vunpack.c.l.b16 %v2286
  %v2466 = vunpack.c.h.b16 %v2286
  %v2467 = vunpack.c.l.b16 %v2287
  %v2468 = vunpack.c.h.b16 %v2287
  %v2469 = vunpack.c.l.b16 %v2288
  %v2470 = vunpack.c.h.b16 %v2288
  %v2471 = vunpack.c.l.b16 %v2289
  %v2472 = vunpack.c.h.b16 %v2289
  %v2473 = vunpack.c.l.b16 %v2290
  %v2474 = vunpack.c.h.b16 %v2290
  %v2475 = vunpack.c.l.b16 %v2291
  %v2476 = vunpack.c.h.b16 %v2291
  %v2477 = vunpack.c.l.b16 %v2292
  %v2478 = vunpack.c.h.b16 %v2292
  %v2479 = vunpack.c.l.b16 %v2293
  %v2480 = vunpack.c.h.b16 %v2293
  %v2481 = vunpack.c.l.b16 %v2294
  %v2482 = vunpack.c.h.b16 %v2294
  %v2483 = vunpack.c.l.b16 %v2295
  %v2484 = vunpack.c.h.b16 %v2295
  %v2485 = vunpack.c.l.b16 %v2296
  %v2486 = vunpack.c.h.b16 %v2296
  %v2487 = vunpack.c.l.b16 %v2297
  %v2488 = vunpack.c.h.b16 %v2297
  %v2489 = vunpack.c.l.b16 %v2298
  %v2490 = vunpack.c.h.b16 %v2298
  %v2491 = vpack.c.b16 %v2367, %v2363
  %v2492 = vpack.c.b16 %v2368, %v2364
  %v2493 = vpack.c.b16 %v2369, %v2365
  %v2494 = vpack.c.b16 %v2370, %v2366
  %v2495 = vpack.c.b16 %v2375, %v2371
  %v2496 = vpack.c.b16 %v2376, %v2372
  %v2497 = vpack.c.b16 %v2377, %v2373
  %v2498 = vpack.c.b16 %v2378, %v2374
  %v2499 = vpack.c.b16 %v2383, %v2379
  %v2500 = vpack.c.b16 %v2384, %v2380
  %v2501 = vpack.c.b16 %v2385, %v2381
  %v2502 = vpack.c.b16 %v2386, %v2382
  %v2503 = vpack.c.b16 %v2391, %v2387
  %v2504 = vpack.c.b16 %v2392, %v2388
  %v2505 = vpack.c.b16 %v2393, %v2389
  %v2506 = vpack.c.b16 %v2394, %v2390
  %v2507 = vpack.c.b16 %v2399, %v2395
  %v2508 = vpack.c.b16 %v2400, %v2396
  %v2509 = vpack.c.b16 %v2401, %v2397
  %v2510 = vpack.c.b16 %v2402, %v2398
  %v2511 = vpack.c.b16 %v2407, %v2403
  %v2512 = vpack.c.b16 %v2408, %v2404
  %v2513 = vpack.c.b16 %v2409, %v2405
  %v2514 = vpack.c.b16 %v2410, %v2406
  %v2515 = vpack.c.b16 %v2415, %v2411
  %v2516 = vpack.c.b16 %v2416, %v2412
  %v2517 = vpack.c.b16 %v2417, %v2413
  %v2518 = vpack.c.b16 %v2418, %v2414
  %v2519 = vpack.c.b16 %v2423, %v2419
  %v2520 = vpack.c.b16 %v2424, %v2420
  %v2521 = vpack.c.b16 %v2425, %v2421
  %v2522 = vpack.c.b16 %v2426, %v2422
  %v2523 = vpack.c.b16 %v2431, %v2427
  %v2524 = vpack.c.b16 %v2432, %v2428
  %v2525 = vpack.c.b16 %v2433, %v2429
  %v2526 = vpack.c.b16 %v2434, %v2430
  %v2527 = vpack.c.b16 %v2439, %v2435
  %v2528 = vpack.c.b16 %v2440, %v2436
  %v2529 = vpack.c.b16 %v2441, %v2437
  %v2530 = vpack.c.b16 %v2442, %v2438
  %v2531 = vpack.c.b16 %v2447, %v2443
  %v2532 = vpack.c.b16 %v2448, %v2444
  %v2533 = vpack.c.b16 %v2449, %v2445
  %v2534 = vpack.c.b16 %v2450, %v2446
  %v2535 = vpack.c.b16 %v2455, %v2451
  %v2536 = vpack.c.b16 %v2456, %v2452
  %v2537 = vpack.c.b16 %v2457, %v2453
  %v2538 = vpack.c.b16 %v2458, %v2454
  %v2539 = vpack.c.b16 %v2463, %v2459
  %v2540 = vpack.c.b16 %v2464, %v2460
  %v2541 = vpack.c.b16 %v2465, %v2461
  %v2542 = vpack.c.b16 %v2466, %v2462
  %v2543 = vpack.c.b16 %v2471, %v2467
  %v2544 = vpack.c.b16 %v2472, %v2468
  %v2545 = vpack.c.b16 %v2473, %v2469
  %v2546 = vpack.c.b16 %v2474, %v2470
  %v2547 = vpack.c.b16 %v2479, %v2475
  %v2548 = vpack.c.b16 %v2480, %v2476
  %v2549 = vpack.c.b16 %v2481, %v2477
  %v2550 = vpack.c.b16 %v2482, %v2478
  %v2551 = vpack.c.b16 %v2487, %v2483
  %v2552 = vpack.c.b16 %v2488, %v2484
  %v2553 = vpack.c.b16 %v2489, %v2485
  %v2554 = vpack.c.b16 %v2490, %v2486
  %2619 = vmatpush.bf16.msra.mxu0 %v2519
  %2620 = vmatpush.bf16.msra.mxu0 %v2515
  %2621 = vmatpush.bf16.msra.mxu0 %v2511
  %2622 = vmatpush.bf16.msra.mxu0 %v2507
  %2623 = vmatpush.bf16.msra.mxu0 %v2503
  %2624 = vmatpush.bf16.msra.mxu0 %v2499
  %2625 = vmatpush.bf16.msra.mxu0 %v2495
  %2626 = vmatpush.bf16.msra.mxu0 %v2491
  %2627 = vmatmul.bf16.gmra.mxu0 %v2228
  %v2628 = vpop.f32.mrf.mxu0
  %v2629 = vadd.f32 0.0, %v2628
  %v2630 = vpop.f32.mrf.mxu0
  %2631 = vdwg.mxu0
  %2632 = vmatpush.bf16.msra.mxu0 %v2551
  %2633 = vmatpush.bf16.msra.mxu0 %v2547
  %2634 = vmatpush.bf16.msra.mxu0 %v2543
  %2635 = vmatpush.bf16.msra.mxu0 %v2539
  %2636 = vmatpush.bf16.msra.mxu0 %v2535
  %2637 = vmatpush.bf16.msra.mxu0 %v2531
  %2638 = vmatpush.bf16.msra.mxu0 %v2527
  %2639 = vmatpush.bf16.msra.mxu0 %v2523
  %2640 = vmatmul.bf16.gmra.mxu0 %v1439
  %v2641 = vpop.f32.mrf.mxu0
  %v2642 = vadd.f32 %v2629, %v2641
  %v2643 = vpop.f32.mrf.mxu0
  %2644 = vdwg.mxu0
  %2645 = vmatpush.bf16.msra.mxu0 %v2520
  %2646 = vmatpush.bf16.msra.mxu0 %v2516
  %2647 = vmatpush.bf16.msra.mxu0 %v2512
  %2648 = vmatpush.bf16.msra.mxu0 %v2508
  %2649 = vmatpush.bf16.msra.mxu0 %v2504
  %2650 = vmatpush.bf16.msra.mxu0 %v2500
  %2651 = vmatpush.bf16.msra.mxu0 %v2496
  %2652 = vmatpush.bf16.msra.mxu0 %v2492
  %2653 = vmatmul.bf16.gmra.mxu0 %v2228
  %v2654 = vpop.f32.mrf.mxu0
  %v2655 = vadd.f32 0.0, %v2654
  %v2656 = vpop.f32.mrf.mxu0
  %2657 = vdwg.mxu0
  %2658 = vmatpush.bf16.msra.mxu0 %v2552
  %2659 = vmatpush.bf16.msra.mxu0 %v2548
  %2660 = vmatpush.bf16.msra.mxu0 %v2544
  %2661 = vmatpush.bf16.msra.mxu0 %v2540
  %2662 = vmatpush.bf16.msra.mxu0 %v2536
  %2663 = vmatpush.bf16.msra.mxu0 %v2532
  %2664 = vmatpush.bf16.msra.mxu0 %v2528
  %2665 = vmatpush.bf16.msra.mxu0 %v2524
  %2666 = vmatmul.bf16.gmra.mxu0 %v1439
  %v2667 = vpop.f32.mrf.mxu0
  %v2668 = vadd.f32 %v2655, %v2667
  %v2669 = vpop.f32.mrf.mxu0
  %2670 = vdwg.mxu0
  %2671 = vmatpush.bf16.msra.mxu0 %v2521
  %2672 = vmatpush.bf16.msra.mxu0 %v2517
  %2673 = vmatpush.bf16.msra.mxu0 %v2513
  %2674 = vmatpush.bf16.msra.mxu0 %v2509
  %2675 = vmatpush.bf16.msra.mxu0 %v2505
  %2676 = vmatpush.bf16.msra.mxu0 %v2501
  %2677 = vmatpush.bf16.msra.mxu0 %v2497
  %2678 = vmatpush.bf16.msra.mxu0 %v2493
  %2679 = vmatmul.bf16.gmra.mxu0 %v2228
  %v2680 = vpop.f32.mrf.mxu0
  %v2681 = vadd.f32 0.0, %v2680
  %v2682 = vpop.f32.mrf.mxu0
  %2683 = vdwg.mxu0
  %2684 = vmatpush.bf16.msra.mxu0 %v2553
  %2685 = vmatpush.bf16.msra.mxu0 %v2549
  %2686 = vmatpush.bf16.msra.mxu0 %v2545
  %2687 = vmatpush.bf16.msra.mxu0 %v2541
  %2688 = vmatpush.bf16.msra.mxu0 %v2537
  %2689 = vmatpush.bf16.msra.mxu0 %v2533
  %2690 = vmatpush.bf16.msra.mxu0 %v2529
  %2691 = vmatpush.bf16.msra.mxu0 %v2525
  %2692 = vmatmul.bf16.gmra.mxu0 %v1439
  %v2693 = vpop.f32.mrf.mxu0
  %v2694 = vadd.f32 %v2681, %v2693
  %v2695 = vpop.f32.mrf.mxu0
  %2696 = vdwg.mxu0
  %2697 = vmatpush.bf16.msra.mxu0 %v2522
  %2698 = vmatpush.bf16.msra.mxu0 %v2518
  %2699 = vmatpush.bf16.msra.mxu0 %v2514
  %2700 = vmatpush.bf16.msra.mxu0 %v2510
  %2701 = vmatpush.bf16.msra.mxu0 %v2506
  %2702 = vmatpush.bf16.msra.mxu0 %v2502
  %2703 = vmatpush.bf16.msra.mxu0 %v2498
  %2704 = vmatpush.bf16.msra.mxu0 %v2494
  %2705 = vmatmul.bf16.gmra.mxu0 %v2228
  %v2706 = vpop.f32.mrf.mxu0
  %v2707 = vadd.f32 0.0, %v2706
  %v2708 = vpop.f32.mrf.mxu0
  %2709 = vdwg.mxu0
  %2710 = vmatpush.bf16.msra.mxu0 %v2554
  %2711 = vmatpush.bf16.msra.mxu0 %v2550
  %2712 = vmatpush.bf16.msra.mxu0 %v2546
  %2713 = vmatpush.bf16.msra.mxu0 %v2542
  %2714 = vmatpush.bf16.msra.mxu0 %v2538
  %2715 = vmatpush.bf16.msra.mxu0 %v2534
  %2716 = vmatpush.bf16.msra.mxu0 %v2530
  %2717 = vmatpush.bf16.msra.mxu0 %v2526
  %2718 = vmatmul.bf16.gmra.mxu0 %v1439
  %v2719 = vpop.f32.mrf.mxu0
  %v2720 = vadd.f32 %v2707, %v2719
  %v2721 = vpop.f32.mrf.mxu0
  %2722 = vdwg.mxu0
  %v2723 = vadd.f32 %v2231, %v2642
  %v2724 = vadd.f32 %v2232, %v2668
  %v2725 = vadd.f32 %v2233, %v2694
  %v2726 = vadd.f32 %v2234, %v2720
  %v2727 = vxor.u32 %v2723, 2147483648
  %v2728 = vmul.f32 %v2727, 1.442695
  %v2729 = vpow.pop %v2728
  %v2730 = vadd.f32 %v2729, 1.0
  %v2731 = vrcp.pop %v2730
  %v2732 = vmul.f32 %v2730, %v2731
  %v2733 = vsub.f32 1.0, %v2732
  %v2734 = vmul.f32 %v2731, %v2733
  %v2735 = vadd.f32 %v2731, %v2734
  %vm2736 = vweird.f32 %v2730
  %vm2737 = vweird.f32 %v2731
  %vm2738 = vmor %vm2736, %vm2737
  %v2739 = vsel %vm2738, %v2731, %v2735
  %v2740 = vand.u32 2147483647, %v2730
  %vm2741 = vcmp.eq.f32.partialorder %v2740, 8.507059e+37
  %v2742 = vand.u32 %v2730, 2147483648
  %v2743 = vor.u32 1.1754944e-38, %v2742
  %v2744 = vsel %vm2741, %v2743, %v2739
  %v2745 = vmul.f32 1.0, %v2744
  %v2746 = vxor.u32 %v2724, 2147483648
  %v2747 = vmul.f32 %v2746, 1.442695
  %v2748 = vpow.pop %v2747
  %v2749 = vadd.f32 %v2748, 1.0
  %v2750 = vrcp.pop %v2749
  %v2751 = vmul.f32 %v2749, %v2750
  %v2752 = vsub.f32 1.0, %v2751
  %v2753 = vmul.f32 %v2750, %v2752
  %v2754 = vadd.f32 %v2750, %v2753
  %vm2755 = vweird.f32 %v2749
  %vm2756 = vweird.f32 %v2750
  %vm2757 = vmor %vm2755, %vm2756
  %v2758 = vsel %vm2757, %v2750, %v2754
  %v2759 = vand.u32 2147483647, %v2749
  %vm2760 = vcmp.eq.f32.partialorder %v2759, 8.507059e+37
  %v2761 = vand.u32 %v2749, 2147483648
  %v2762 = vor.u32 1.1754944e-38, %v2761
  %v2763 = vsel %vm2760, %v2762, %v2758
  %v2764 = vmul.f32 1.0, %v2763
  %v2765 = vtanh.pop %v2725
  %v2766 = vxor.u32 %v2726, 2147483648
  %v2767 = vmul.f32 %v2766, 1.442695
  %v2768 = vpow.pop %v2767
  %v2769 = vadd.f32 %v2768, 1.0
  %v2770 = vrcp.pop %v2769
  %v2771 = vmul.f32 %v2769, %v2770
  %v2772 = vsub.f32 1.0, %v2771
  %v2773 = vmul.f32 %v2770, %v2772
  %v2774 = vadd.f32 %v2770, %v2773
  %vm2775 = vweird.f32 %v2769
  %vm2776 = vweird.f32 %v2770
  %vm2777 = vmor %vm2775, %vm2776
  %v2778 = vsel %vm2777, %v2770, %v2774
  %v2779 = vand.u32 2147483647, %v2769
  %vm2780 = vcmp.eq.f32.partialorder %v2779, 8.507059e+37
  %v2781 = vand.u32 %v2769, 2147483648
  %v2782 = vor.u32 1.1754944e-38, %v2781
  %v2783 = vsel %vm2780, %v2782, %v2778
  %v2784 = vmul.f32 1.0, %v2783
  %v2785 = vmul.f32 %v2764, %v1401
  %v2786 = vmul.f32 %v2745, %v2765
  %v2787 = vadd.f32 %v2785, %v2786
  %v2788 = vtanh.pop %v2787
  %v2789 = vmul.f32 %v2784, %v2788
  %s2790 = scalar_lea.vmem %s10, 8
  %2791 = vst [vmem:[%s2790] sm:$0xff] %v2789
  %v2792 = vperm.slane %v2040, %v281
  %v2793 = vperm.slane %v2045, %v283
  %v2794 = vsel %vm285, %v2793, %v2792
  %v2795 = vperm.slane %v2050, %v281
  %v2796 = vperm.slane %v2055, %v283
  %v2797 = vsel %vm285, %v2796, %v2795
  %v2798 = vperm.slane %v2060, %v281
  %v2799 = vperm.slane %v2065, %v283
  %v2800 = vsel %vm285, %v2799, %v2798
  %v2801 = vperm.slane %v2070, %v281
  %v2802 = vperm.slane %v2075, %v283
  %v2803 = vsel %vm285, %v2802, %v2801
  %v2804 = vperm.slane %v2080, %v281
  %v2805 = vperm.slane %v2085, %v283
  %v2806 = vsel %vm285, %v2805, %v2804
  %v2807 = vperm.slane %v2090, %v281
  %v2808 = vperm.slane %v2095, %v283
  %v2809 = vsel %vm285, %v2808, %v2807
  %v2810 = vperm.slane %v2100, %v281
  %v2811 = vperm.slane %v2105, %v283
  %v2812 = vsel %vm285, %v2811, %v2810
  %v2813 = vperm.slane %v2110, %v281
  %v2814 = vperm.slane %v2115, %v283
  %v2815 = vsel %vm285, %v2814, %v2813
  %v2816 = vsel %vm308, %v2797, %v2794
  %v2817 = vsel %vm310, %v2800, %v2816
  %v2818 = vsel %vm312, %v2803, %v2817
  %v2819 = vsel %vm314, %v2806, %v2818
  %v2820 = vsel %vm316, %v2809, %v2819
  %v2821 = vsel %vm318, %v2812, %v2820
  %v2822 = vsel %vm320, %v2815, %v2821
  %v2824 = vsel %vm323, %v2822, 0.0
  %s2825 = scalar_lea.vmem %s11, 8
  %2826 = vst [vmem:[%s2825] sm:$0xff] %v2824
  %v2827 = vpack.c.bf16 %v2789, %v2789
  %v2828 = vld [vmem:[%s5] sm:$0xf]
  %v2829 = vld [vmem:[%s5 + $0x4] sm:$0xf]
  %v2830 = vld [vmem:[%s5 + $0x8] sm:$0xf]
  %v2831 = vld [vmem:[%s5 + $0xc] sm:$0xf]
  %v2832 = vld [vmem:[%s5 + $0x10] sm:$0xf]
  %v2833 = vld [vmem:[%s5 + $0x14] sm:$0xf]
  %v2834 = vld [vmem:[%s5 + $0x18] sm:$0xf]
  %v2835 = vld [vmem:[%s5 + $0x1c] sm:$0xf]
  %v2836 = vld [vmem:[%s5 + $0x20] sm:$0xf]
  %v2837 = vld [vmem:[%s5 + $0x24] sm:$0xf]
  %v2838 = vld [vmem:[%s5 + $0x28] sm:$0xf]
  %v2839 = vld [vmem:[%s5 + $0x2c] sm:$0xf]
  %v2840 = vld [vmem:[%s5 + $0x30] sm:$0xf]
  %v2841 = vld [vmem:[%s5 + $0x34] sm:$0xf]
  %v2842 = vld [vmem:[%s5 + $0x38] sm:$0xf]
  %v2843 = vld [vmem:[%s5 + $0x3c] sm:$0xf]
  %v2844 = vld [vmem:[%s6] sm:$0x1]
  %v2846 = vperm.slane %v2844, 0
  %v2864 = vunpack.c.l.b16 %v2828
  %v2865 = vunpack.c.l.b16 %v2829
  %v2866 = vunpack.c.l.b16 %v2830
  %v2867 = vunpack.c.l.b16 %v2831
  %v2868 = vunpack.c.l.b16 %v2832
  %v2869 = vunpack.c.l.b16 %v2833
  %v2870 = vunpack.c.l.b16 %v2834
  %v2871 = vunpack.c.l.b16 %v2835
  %v2872 = vunpack.c.l.b16 %v2836
  %v2873 = vunpack.c.l.b16 %v2837
  %v2874 = vunpack.c.l.b16 %v2838
  %v2875 = vunpack.c.l.b16 %v2839
  %v2876 = vunpack.c.l.b16 %v2840
  %v2877 = vunpack.c.l.b16 %v2841
  %v2878 = vunpack.c.l.b16 %v2842
  %v2879 = vunpack.c.l.b16 %v2843
  %v2880 = vpack.c.b16 %v2865, %v2864
  %v2881 = vpack.c.b16 %v2867, %v2866
  %v2882 = vpack.c.b16 %v2869, %v2868
  %v2883 = vpack.c.b16 %v2871, %v2870
  %v2884 = vpack.c.b16 %v2873, %v2872
  %v2885 = vpack.c.b16 %v2875, %v2874
  %v2886 = vpack.c.b16 %v2877, %v2876
  %v2887 = vpack.c.b16 %v2879, %v2878
  %2896 = vmatpush.bf16.msra.mxu0 %v2887
  %2897 = vmatpush.bf16.msra.mxu0 %v2886
  %2898 = vmatpush.bf16.msra.mxu0 %v2885
  %2899 = vmatpush.bf16.msra.mxu0 %v2884
  %2900 = vmatpush.bf16.msra.mxu0 %v2883
  %2901 = vmatpush.bf16.msra.mxu0 %v2882
  %2902 = vmatpush.bf16.msra.mxu0 %v2881
  %2903 = vmatpush.bf16.msra.mxu0 %v2880
  %2904 = vmatmul.bf16.gmra.mxu0 %v2827
  %v2905 = vpop.f32.mrf.mxu0
  %v2906 = vadd.f32 %v2846, %v2905
  %v2907 = vpop.f32.mrf.mxu0
  %2908 = vdwg.mxu0
  %v2909 = vld [vmem:[%s1] sm:$0xff]
  %v2910 = vld [vmem:[%s1 + $0x8] sm:$0xff]
  %v2911 = vld [vmem:[%s1 + $0x10] sm:$0xff]
  %v2912 = vld [vmem:[%s1 + $0x18] sm:$0xff]
  %v2913 = vld [vmem:[%s1 + $0x20] sm:$0xff]
  %v2914 = vld [vmem:[%s1 + $0x28] sm:$0xff]
  %v2915 = vld [vmem:[%s1 + $0x30] sm:$0xff]
  %v2916 = vld [vmem:[%s1 + $0x38] sm:$0xff]
  %v2917 = vld [vmem:[%s1 + $0x40] sm:$0xff]
  %v2918 = vld [vmem:[%s1 + $0x48] sm:$0xff]
  %v2919 = vld [vmem:[%s1 + $0x50] sm:$0xff]
  %v2920 = vld [vmem:[%s1 + $0x58] sm:$0xff]
  %v2921 = vld [vmem:[%s1 + $0x60] sm:$0xff]
  %v2922 = vld [vmem:[%s1 + $0x68] sm:$0xff]
  %v2923 = vld [vmem:[%s1 + $0x70] sm:$0xff]
  %v2924 = vld [vmem:[%s1 + $0x78] sm:$0xff]
  %v2926 = vrot.slane %v2906, 1
  %v2927 = vrot.slane %v2906, 2
  %v2928 = vrot.slane %v2906, 3
  %v2929 = vrot.slane %v2906, 4
  %v2930 = vrot.slane %v2906, 5
  %v2931 = vrot.slane %v2906, 6
  %v2932 = vrot.slane %v2906, 7
  %v2933 = vperm.slane %v2906, 0
  %v2934 = vperm.slane %v2926, 0
  %v2935 = vperm.slane %v2927, 0
  %v2936 = vperm.slane %v2928, 0
  %v2937 = vperm.slane %v2929, 0
  %v2938 = vperm.slane %v2930, 0
  %v2939 = vperm.slane %v2931, 0
  %v2940 = vperm.slane %v2932, 0
  %v2949 = vadd.f32 %v2909, %v2933
  %v2950 = vadd.f32 %v2910, %v2933
  %v2951 = vadd.f32 %v2911, %v2934
  %v2952 = vadd.f32 %v2912, %v2934
  %v2953 = vadd.f32 %v2913, %v2935
  %v2954 = vadd.f32 %v2914, %v2935
  %v2955 = vadd.f32 %v2915, %v2936
  %v2956 = vadd.f32 %v2916, %v2936
  %v2957 = vadd.f32 %v2917, %v2937
  %v2958 = vadd.f32 %v2918, %v2937
  %v2959 = vadd.f32 %v2919, %v2938
  %v2960 = vadd.f32 %v2920, %v2938
  %v2961 = vadd.f32 %v2921, %v2939
  %v2962 = vadd.f32 %v2922, %v2939
  %v2963 = vadd.f32 %v2923, %v2940
  %v2964 = vadd.f32 %v2924, %v2940
  %v2965 = vtanh.pop %v2949
  %v2966 = vtanh.pop %v2950
  %v2967 = vtanh.pop %v2951
  %v2968 = vtanh.pop %v2952
  %v2969 = vtanh.pop %v2953
  %v2970 = vtanh.pop %v2954
  %v2971 = vtanh.pop %v2955
  %v2972 = vtanh.pop %v2956
  %v2973 = vtanh.pop %v2957
  %v2974 = vtanh.pop %v2958
  %v2975 = vtanh.pop %v2959
  %v2976 = vtanh.pop %v2960
  %v2977 = vtanh.pop %v2961
  %v2978 = vtanh.pop %v2962
  %v2979 = vtanh.pop %v2963
  %v2980 = vtanh.pop %v2964
  %v2981 = vld [vmem:[%s7] sm:$0x1]
  %v2983 = vperm.slane %v2981, 0
  %v2985 = vmul.f32 %v2965, %v2983
  %v2986 = vmul.f32 %v2966, %v2983
  %v2987 = vmul.f32 %v2967, %v2983
  %v2988 = vmul.f32 %v2968, %v2983
  %v2989 = vmul.f32 %v2969, %v2983
  %v2990 = vmul.f32 %v2970, %v2983
  %v2991 = vmul.f32 %v2971, %v2983
  %v2992 = vmul.f32 %v2972, %v2983
  %v2993 = vmul.f32 %v2973, %v2983
  %v2994 = vmul.f32 %v2974, %v2983
  %v2995 = vmul.f32 %v2975, %v2983
  %v2996 = vmul.f32 %v2976, %v2983
  %v2997 = vmul.f32 %v2977, %v2983
  %v2998 = vmul.f32 %v2978, %v2983
  %v2999 = vmul.f32 %v2979, %v2983
  %v3000 = vmul.f32 %v2980, %v2983
  %3001 = vadd.xlane.f32.xlu0 %v2985
  %v3002 = vpop.xlane.xlu0 %3001
  %3003 = vadd.xlane.f32.xlu0 %v2986
  %v3004 = vpop.xlane.xlu0 %3003
  %3005 = vadd.xlane.f32.xlu0 %v2987
  %v3006 = vpop.xlane.xlu0 %3005
  %3007 = vadd.xlane.f32.xlu0 %v2988
  %v3008 = vpop.xlane.xlu0 %3007
  %3009 = vadd.xlane.f32.xlu0 %v2989
  %v3010 = vpop.xlane.xlu0 %3009
  %3011 = vadd.xlane.f32.xlu0 %v2990
  %v3012 = vpop.xlane.xlu0 %3011
  %3013 = vadd.xlane.f32.xlu0 %v2991
  %v3014 = vpop.xlane.xlu0 %3013
  %3015 = vadd.xlane.f32.xlu0 %v2992
  %v3016 = vpop.xlane.xlu0 %3015
  %3017 = vadd.xlane.f32.xlu0 %v2993
  %v3018 = vpop.xlane.xlu0 %3017
  %3019 = vadd.xlane.f32.xlu0 %v2994
  %v3020 = vpop.xlane.xlu0 %3019
  %3021 = vadd.xlane.f32.xlu0 %v2995
  %v3022 = vpop.xlane.xlu0 %3021
  %3023 = vadd.xlane.f32.xlu0 %v2996
  %v3024 = vpop.xlane.xlu0 %3023
  %3025 = vadd.xlane.f32.xlu0 %v2997
  %v3026 = vpop.xlane.xlu0 %3025
  %3027 = vadd.xlane.f32.xlu0 %v2998
  %v3028 = vpop.xlane.xlu0 %3027
  %3029 = vadd.xlane.f32.xlu0 %v2999
  %v3030 = vpop.xlane.xlu0 %3029
  %3031 = vadd.xlane.f32.xlu0 %v3000
  %v3032 = vpop.xlane.xlu0 %3031
  %v3033 = vadd.f32 %v3002, %v247
  %v3034 = vadd.f32 %v3004, %v247
  %v3035 = vadd.f32 %v3006, %v247
  %v3036 = vadd.f32 %v3008, %v247
  %v3037 = vadd.f32 %v3010, %v247
  %v3038 = vadd.f32 %v3012, %v247
  %v3039 = vadd.f32 %v3014, %v247
  %v3040 = vadd.f32 %v3016, %v247
  %v3041 = vadd.f32 %v3018, %v247
  %v3042 = vadd.f32 %v3020, %v247
  %v3043 = vadd.f32 %v3022, %v247
  %v3044 = vadd.f32 %v3024, %v247
  %v3045 = vadd.f32 %v3026, %v247
  %v3046 = vadd.f32 %v3028, %v247
  %v3047 = vadd.f32 %v3030, %v247
  %v3048 = vadd.f32 %v3032, %v247
  %v3065 = vperm.slane %v3033, %v281
  %v3066 = vperm.slane %v3034, %v283
  %v3067 = vsel %vm285, %v3066, %v3065
  %v3068 = vperm.slane %v3035, %v281
  %v3069 = vperm.slane %v3036, %v283
  %v3070 = vsel %vm285, %v3069, %v3068
  %v3071 = vperm.slane %v3037, %v281
  %v3072 = vperm.slane %v3038, %v283
  %v3073 = vsel %vm285, %v3072, %v3071
  %v3074 = vperm.slane %v3039, %v281
  %v3075 = vperm.slane %v3040, %v283
  %v3076 = vsel %vm285, %v3075, %v3074
  %v3077 = vperm.slane %v3041, %v281
  %v3078 = vperm.slane %v3042, %v283
  %v3079 = vsel %vm285, %v3078, %v3077
  %v3080 = vperm.slane %v3043, %v281
  %v3081 = vperm.slane %v3044, %v283
  %v3082 = vsel %vm285, %v3081, %v3080
  %v3083 = vperm.slane %v3045, %v281
  %v3084 = vperm.slane %v3046, %v283
  %v3085 = vsel %vm285, %v3084, %v3083
  %v3086 = vperm.slane %v3047, %v281
  %v3087 = vperm.slane %v3048, %v283
  %v3088 = vsel %vm285, %v3087, %v3086
  %v3089 = vsel %vm308, %v3070, %v3067
  %v3090 = vsel %vm310, %v3073, %v3089
  %v3091 = vsel %vm312, %v3076, %v3090
  %v3092 = vsel %vm314, %v3079, %v3091
  %v3093 = vsel %vm316, %v3082, %v3092
  %v3094 = vsel %vm318, %v3085, %v3093
  %v3095 = vsel %vm320, %v3088, %v3094
  %v3097 = vsel %vm323, %v3095, -inf
  %3098 = vmax.xlane.f32.xlu0 %v3097
  %v3099 = vpop.xlane.xlu0 %3098
  %v3101 = vperm.slane %v3099, 0
  %v3102 = vperm.slane %v3099, 1
  %v3103 = vperm.slane %v3099, 2
  %v3104 = vperm.slane %v3099, 3
  %v3105 = vperm.slane %v3099, 4
  %v3106 = vperm.slane %v3099, 5
  %v3107 = vperm.slane %v3099, 6
  %v3108 = vperm.slane %v3099, 7
  %v3117 = vsub.f32 %v3033, %v3101
  %v3118 = vsub.f32 %v3034, %v3101
  %v3119 = vsub.f32 %v3035, %v3102
  %v3120 = vsub.f32 %v3036, %v3102
  %v3121 = vsub.f32 %v3037, %v3103
  %v3122 = vsub.f32 %v3038, %v3103
  %v3123 = vsub.f32 %v3039, %v3104
  %v3124 = vsub.f32 %v3040, %v3104
  %v3125 = vsub.f32 %v3041, %v3105
  %v3126 = vsub.f32 %v3042, %v3105
  %v3127 = vsub.f32 %v3043, %v3106
  %v3128 = vsub.f32 %v3044, %v3106
  %v3129 = vsub.f32 %v3045, %v3107
  %v3130 = vsub.f32 %v3046, %v3107
  %v3131 = vsub.f32 %v3047, %v3108
  %v3132 = vsub.f32 %v3048, %v3108
  %v3133 = vmul.f32 %v3117, 1.442695
  %v3134 = vpow.pop %v3133
  %v3135 = vmul.f32 %v3118, 1.442695
  %v3136 = vpow.pop %v3135
  %v3137 = vmul.f32 %v3119, 1.442695
  %v3138 = vpow.pop %v3137
  %v3139 = vmul.f32 %v3120, 1.442695
  %v3140 = vpow.pop %v3139
  %v3141 = vmul.f32 %v3121, 1.442695
  %v3142 = vpow.pop %v3141
  %v3143 = vmul.f32 %v3122, 1.442695
  %v3144 = vpow.pop %v3143
  %v3145 = vmul.f32 %v3123, 1.442695
  %v3146 = vpow.pop %v3145
  %v3147 = vmul.f32 %v3124, 1.442695
  %v3148 = vpow.pop %v3147
  %v3149 = vmul.f32 %v3125, 1.442695
  %v3150 = vpow.pop %v3149
  %v3151 = vmul.f32 %v3126, 1.442695
  %v3152 = vpow.pop %v3151
  %v3153 = vmul.f32 %v3127, 1.442695
  %v3154 = vpow.pop %v3153
  %v3155 = vmul.f32 %v3128, 1.442695
  %v3156 = vpow.pop %v3155
  %v3157 = vmul.f32 %v3129, 1.442695
  %v3158 = vpow.pop %v3157
  %v3159 = vmul.f32 %v3130, 1.442695
  %v3160 = vpow.pop %v3159
  %v3161 = vmul.f32 %v3131, 1.442695
  %v3162 = vpow.pop %v3161
  %v3163 = vmul.f32 %v3132, 1.442695
  %v3164 = vpow.pop %v3163
  %3181 = vset.pattern.permute.xlu0 0
  %3182 = vperm.xlu0 %3181, %v3134
  %v3183 = vpop.permute.xlu0 %3182
  %3184 = vset.pattern.permute.xlu0 0
  %3185 = vperm.xlu0 %3184, %v3136
  %v3186 = vpop.permute.xlu0 %3185
  %3187 = vset.pattern.permute.xlu0 0
  %3188 = vperm.xlu0 %3187, %v3138
  %v3189 = vpop.permute.xlu0 %3188
  %3190 = vset.pattern.permute.xlu0 0
  %3191 = vperm.xlu0 %3190, %v3140
  %v3192 = vpop.permute.xlu0 %3191
  %3193 = vset.pattern.permute.xlu0 0
  %3194 = vperm.xlu0 %3193, %v3142
  %v3195 = vpop.permute.xlu0 %3194
  %3196 = vset.pattern.permute.xlu0 0
  %3197 = vperm.xlu0 %3196, %v3144
  %v3198 = vpop.permute.xlu0 %3197
  %3199 = vset.pattern.permute.xlu0 0
  %3200 = vperm.xlu0 %3199, %v3146
  %v3201 = vpop.permute.xlu0 %3200
  %3202 = vset.pattern.permute.xlu0 0
  %3203 = vperm.xlu0 %3202, %v3148
  %v3204 = vpop.permute.xlu0 %3203
  %3205 = vset.pattern.permute.xlu0 0
  %3206 = vperm.xlu0 %3205, %v3150
  %v3207 = vpop.permute.xlu0 %3206
  %3208 = vset.pattern.permute.xlu0 0
  %3209 = vperm.xlu0 %3208, %v3152
  %v3210 = vpop.permute.xlu0 %3209
  %3211 = vset.pattern.permute.xlu0 0
  %3212 = vperm.xlu0 %3211, %v3154
  %v3213 = vpop.permute.xlu0 %3212
  %3214 = vset.pattern.permute.xlu0 0
  %3215 = vperm.xlu0 %3214, %v3156
  %v3216 = vpop.permute.xlu0 %3215
  %3217 = vset.pattern.permute.xlu0 0
  %3218 = vperm.xlu0 %3217, %v3158
  %v3219 = vpop.permute.xlu0 %3218
  %3220 = vset.pattern.permute.xlu0 0
  %3221 = vperm.xlu0 %3220, %v3160
  %v3222 = vpop.permute.xlu0 %3221
  %3223 = vset.pattern.permute.xlu0 0
  %3224 = vperm.xlu0 %3223, %v3162
  %v3225 = vpop.permute.xlu0 %3224
  %3226 = vset.pattern.permute.xlu0 0
  %3227 = vperm.xlu0 %3226, %v3164
  %v3228 = vpop.permute.xlu0 %3227
  %v3229 = vperm.slane %v3183, %v281
  %v3230 = vperm.slane %v3186, %v283
  %v3231 = vsel %vm285, %v3230, %v3229
  %v3232 = vperm.slane %v3189, %v281
  %v3233 = vperm.slane %v3192, %v283
  %v3234 = vsel %vm285, %v3233, %v3232
  %v3235 = vperm.slane %v3195, %v281
  %v3236 = vperm.slane %v3198, %v283
  %v3237 = vsel %vm285, %v3236, %v3235
  %v3238 = vperm.slane %v3201, %v281
  %v3239 = vperm.slane %v3204, %v283
  %v3240 = vsel %vm285, %v3239, %v3238
  %v3241 = vperm.slane %v3207, %v281
  %v3242 = vperm.slane %v3210, %v283
  %v3243 = vsel %vm285, %v3242, %v3241
  %v3244 = vperm.slane %v3213, %v281
  %v3245 = vperm.slane %v3216, %v283
  %v3246 = vsel %vm285, %v3245, %v3244
  %v3247 = vperm.slane %v3219, %v281
  %v3248 = vperm.slane %v3222, %v283
  %v3249 = vsel %vm285, %v3248, %v3247
  %v3250 = vperm.slane %v3225, %v281
  %v3251 = vperm.slane %v3228, %v283
  %v3252 = vsel %vm285, %v3251, %v3250
  %v3253 = vsel %vm308, %v3234, %v3231
  %v3254 = vsel %vm310, %v3237, %v3253
  %v3255 = vsel %vm312, %v3240, %v3254
  %v3256 = vsel %vm314, %v3243, %v3255
  %v3257 = vsel %vm316, %v3246, %v3256
  %v3258 = vsel %vm318, %v3249, %v3257
  %v3259 = vsel %vm320, %v3252, %v3258
  %v3261 = vsel %vm323, %v3259, 0.0
  %3262 = vadd.xlane.f32.xlu0 %v3261
  %v3263 = vpop.xlane.xlu0 %3262
  %v3265 = vperm.slane %v3263, 0
  %v3266 = vperm.slane %v3263, 1
  %v3267 = vperm.slane %v3263, 2
  %v3268 = vperm.slane %v3263, 3
  %v3269 = vperm.slane %v3263, 4
  %v3270 = vperm.slane %v3263, 5
  %v3271 = vperm.slane %v3263, 6
  %v3272 = vperm.slane %v3263, 7
  %v3281 = vrcp.pop %v3265
  %v3282 = vmul.f32 %v3265, %v3281
  %v3283 = vsub.f32 1.0, %v3282
  %v3284 = vmul.f32 %v3281, %v3283
  %v3285 = vadd.f32 %v3281, %v3284
  %vm3286 = vweird.f32 %v3265
  %vm3287 = vweird.f32 %v3281
  %vm3288 = vmor %vm3286, %vm3287
  %v3289 = vsel %vm3288, %v3281, %v3285
  %v3290 = vand.u32 2147483647, %v3265
  %vm3291 = vcmp.eq.f32.partialorder %v3290, 8.507059e+37
  %v3292 = vand.u32 %v3265, 2147483648
  %v3293 = vor.u32 1.1754944e-38, %v3292
  %v3294 = vsel %vm3291, %v3293, %v3289
  %v3295 = vmul.f32 %v3134, %v3294
  %v3296 = vmul.f32 %v3136, %v3294
  %v3297 = vrcp.pop %v3266
  %v3298 = vmul.f32 %v3266, %v3297
  %v3299 = vsub.f32 1.0, %v3298
  %v3300 = vmul.f32 %v3297, %v3299
  %v3301 = vadd.f32 %v3297, %v3300
  %vm3302 = vweird.f32 %v3266
  %vm3303 = vweird.f32 %v3297
  %vm3304 = vmor %vm3302, %vm3303
  %v3305 = vsel %vm3304, %v3297, %v3301
  %v3306 = vand.u32 2147483647, %v3266
  %vm3307 = vcmp.eq.f32.partialorder %v3306, 8.507059e+37
  %v3308 = vand.u32 %v3266, 2147483648
  %v3309 = vor.u32 1.1754944e-38, %v3308
  %v3310 = vsel %vm3307, %v3309, %v3305
  %v3311 = vmul.f32 %v3138, %v3310
  %v3312 = vmul.f32 %v3140, %v3310
  %v3313 = vrcp.pop %v3267
  %v3314 = vmul.f32 %v3267, %v3313
  %v3315 = vsub.f32 1.0, %v3314
  %v3316 = vmul.f32 %v3313, %v3315
  %v3317 = vadd.f32 %v3313, %v3316
  %vm3318 = vweird.f32 %v3267
  %vm3319 = vweird.f32 %v3313
  %vm3320 = vmor %vm3318, %vm3319
  %v3321 = vsel %vm3320, %v3313, %v3317
  %v3322 = vand.u32 2147483647, %v3267
  %vm3323 = vcmp.eq.f32.partialorder %v3322, 8.507059e+37
  %v3324 = vand.u32 %v3267, 2147483648
  %v3325 = vor.u32 1.1754944e-38, %v3324
  %v3326 = vsel %vm3323, %v3325, %v3321
  %v3327 = vmul.f32 %v3142, %v3326
  %v3328 = vmul.f32 %v3144, %v3326
  %v3329 = vrcp.pop %v3268
  %v3330 = vmul.f32 %v3268, %v3329
  %v3331 = vsub.f32 1.0, %v3330
  %v3332 = vmul.f32 %v3329, %v3331
  %v3333 = vadd.f32 %v3329, %v3332
  %vm3334 = vweird.f32 %v3268
  %vm3335 = vweird.f32 %v3329
  %vm3336 = vmor %vm3334, %vm3335
  %v3337 = vsel %vm3336, %v3329, %v3333
  %v3338 = vand.u32 2147483647, %v3268
  %vm3339 = vcmp.eq.f32.partialorder %v3338, 8.507059e+37
  %v3340 = vand.u32 %v3268, 2147483648
  %v3341 = vor.u32 1.1754944e-38, %v3340
  %v3342 = vsel %vm3339, %v3341, %v3337
  %v3343 = vmul.f32 %v3146, %v3342
  %v3344 = vmul.f32 %v3148, %v3342
  %v3345 = vrcp.pop %v3269
  %v3346 = vmul.f32 %v3269, %v3345
  %v3347 = vsub.f32 1.0, %v3346
  %v3348 = vmul.f32 %v3345, %v3347
  %v3349 = vadd.f32 %v3345, %v3348
  %vm3350 = vweird.f32 %v3269
  %vm3351 = vweird.f32 %v3345
  %vm3352 = vmor %vm3350, %vm3351
  %v3353 = vsel %vm3352, %v3345, %v3349
  %v3354 = vand.u32 2147483647, %v3269
  %vm3355 = vcmp.eq.f32.partialorder %v3354, 8.507059e+37
  %v3356 = vand.u32 %v3269, 2147483648
  %v3357 = vor.u32 1.1754944e-38, %v3356
  %v3358 = vsel %vm3355, %v3357, %v3353
  %v3359 = vmul.f32 %v3150, %v3358
  %v3360 = vmul.f32 %v3152, %v3358
  %v3361 = vrcp.pop %v3270
  %v3362 = vmul.f32 %v3270, %v3361
  %v3363 = vsub.f32 1.0, %v3362
  %v3364 = vmul.f32 %v3361, %v3363
  %v3365 = vadd.f32 %v3361, %v3364
  %vm3366 = vweird.f32 %v3270
  %vm3367 = vweird.f32 %v3361
  %vm3368 = vmor %vm3366, %vm3367
  %v3369 = vsel %vm3368, %v3361, %v3365
  %v3370 = vand.u32 2147483647, %v3270
  %vm3371 = vcmp.eq.f32.partialorder %v3370, 8.507059e+37
  %v3372 = vand.u32 %v3270, 2147483648
  %v3373 = vor.u32 1.1754944e-38, %v3372
  %v3374 = vsel %vm3371, %v3373, %v3369
  %v3375 = vmul.f32 %v3154, %v3374
  %v3376 = vmul.f32 %v3156, %v3374
  %v3377 = vrcp.pop %v3271
  %v3378 = vmul.f32 %v3271, %v3377
  %v3379 = vsub.f32 1.0, %v3378
  %v3380 = vmul.f32 %v3377, %v3379
  %v3381 = vadd.f32 %v3377, %v3380
  %vm3382 = vweird.f32 %v3271
  %vm3383 = vweird.f32 %v3377
  %vm3384 = vmor %vm3382, %vm3383
  %v3385 = vsel %vm3384, %v3377, %v3381
  %v3386 = vand.u32 2147483647, %v3271
  %vm3387 = vcmp.eq.f32.partialorder %v3386, 8.507059e+37
  %v3388 = vand.u32 %v3271, 2147483648
  %v3389 = vor.u32 1.1754944e-38, %v3388
  %v3390 = vsel %vm3387, %v3389, %v3385
  %v3391 = vmul.f32 %v3158, %v3390
  %v3392 = vmul.f32 %v3160, %v3390
  %v3393 = vrcp.pop %v3272
  %v3394 = vmul.f32 %v3272, %v3393
  %v3395 = vsub.f32 1.0, %v3394
  %v3396 = vmul.f32 %v3393, %v3395
  %v3397 = vadd.f32 %v3393, %v3396
  %vm3398 = vweird.f32 %v3272
  %vm3399 = vweird.f32 %v3393
  %vm3400 = vmor %vm3398, %vm3399
  %v3401 = vsel %vm3400, %v3393, %v3397
  %v3402 = vand.u32 2147483647, %v3272
  %vm3403 = vcmp.eq.f32.partialorder %v3402, 8.507059e+37
  %v3404 = vand.u32 %v3272, 2147483648
  %v3405 = vor.u32 1.1754944e-38, %v3404
  %v3406 = vsel %vm3403, %v3405, %v3401
  %v3407 = vmul.f32 %v3162, %v3406
  %v3408 = vmul.f32 %v3164, %v3406
  %v3409 = vld [vmem:[%s0] sm:$0xff]
  %v3410 = vld [vmem:[%s0 + $0x8] sm:$0xff]
  %v3411 = vld [vmem:[%s0 + $0x10] sm:$0xff]
  %v3412 = vld [vmem:[%s0 + $0x18] sm:$0xff]
  %v3413 = vld [vmem:[%s0 + $0x20] sm:$0xff]
  %v3414 = vld [vmem:[%s0 + $0x28] sm:$0xff]
  %v3415 = vld [vmem:[%s0 + $0x30] sm:$0xff]
  %v3416 = vld [vmem:[%s0 + $0x38] sm:$0xff]
  %v3417 = vld [vmem:[%s0 + $0x40] sm:$0xff]
  %v3418 = vld [vmem:[%s0 + $0x48] sm:$0xff]
  %v3419 = vld [vmem:[%s0 + $0x50] sm:$0xff]
  %v3420 = vld [vmem:[%s0 + $0x58] sm:$0xff]
  %v3421 = vld [vmem:[%s0 + $0x60] sm:$0xff]
  %v3422 = vld [vmem:[%s0 + $0x68] sm:$0xff]
  %v3423 = vld [vmem:[%s0 + $0x70] sm:$0xff]
  %v3424 = vld [vmem:[%s0 + $0x78] sm:$0xff]
  %3426 = vset.pattern.permute.xlu0 0
  %3427 = vperm.xlu0 %3426, %v3295
  %v3428 = vpop.permute.xlu0 %3427
  %3431 = vset.pattern.permute.xlu0 0
  %3432 = vperm.xlu0 %3431, %v3296
  %v3433 = vpop.permute.xlu0 %3432
  %3436 = vset.pattern.permute.xlu0 0
  %3437 = vperm.xlu0 %3436, %v3311
  %v3438 = vpop.permute.xlu0 %3437
  %3441 = vset.pattern.permute.xlu0 0
  %3442 = vperm.xlu0 %3441, %v3312
  %v3443 = vpop.permute.xlu0 %3442
  %3446 = vset.pattern.permute.xlu0 0
  %3447 = vperm.xlu0 %3446, %v3327
  %v3448 = vpop.permute.xlu0 %3447
  %3451 = vset.pattern.permute.xlu0 0
  %3452 = vperm.xlu0 %3451, %v3328
  %v3453 = vpop.permute.xlu0 %3452
  %3456 = vset.pattern.permute.xlu0 0
  %3457 = vperm.xlu0 %3456, %v3343
  %v3458 = vpop.permute.xlu0 %3457
  %3461 = vset.pattern.permute.xlu0 0
  %3462 = vperm.xlu0 %3461, %v3344
  %v3463 = vpop.permute.xlu0 %3462
  %3466 = vset.pattern.permute.xlu0 0
  %3467 = vperm.xlu0 %3466, %v3359
  %v3468 = vpop.permute.xlu0 %3467
  %3471 = vset.pattern.permute.xlu0 0
  %3472 = vperm.xlu0 %3471, %v3360
  %v3473 = vpop.permute.xlu0 %3472
  %3476 = vset.pattern.permute.xlu0 0
  %3477 = vperm.xlu0 %3476, %v3375
  %v3478 = vpop.permute.xlu0 %3477
  %3481 = vset.pattern.permute.xlu0 0
  %3482 = vperm.xlu0 %3481, %v3376
  %v3483 = vpop.permute.xlu0 %3482
  %3486 = vset.pattern.permute.xlu0 0
  %3487 = vperm.xlu0 %3486, %v3391
  %v3488 = vpop.permute.xlu0 %3487
  %3491 = vset.pattern.permute.xlu0 0
  %3492 = vperm.xlu0 %3491, %v3392
  %v3493 = vpop.permute.xlu0 %3492
  %3496 = vset.pattern.permute.xlu0 0
  %3497 = vperm.xlu0 %3496, %v3407
  %v3498 = vpop.permute.xlu0 %3497
  %3501 = vset.pattern.permute.xlu0 0
  %3502 = vperm.xlu0 %3501, %v3408
  %v3503 = vpop.permute.xlu0 %3502
  %v3505 = vmul.f32 %v3409, %v3428
  %v3506 = vmul.f32 %v3410, %v3433
  %v3507 = vmul.f32 %v3411, %v3438
  %v3508 = vmul.f32 %v3412, %v3443
  %v3509 = vmul.f32 %v3413, %v3448
  %v3510 = vmul.f32 %v3414, %v3453
  %v3511 = vmul.f32 %v3415, %v3458
  %v3512 = vmul.f32 %v3416, %v3463
  %v3513 = vmul.f32 %v3417, %v3468
  %v3514 = vmul.f32 %v3418, %v3473
  %v3515 = vmul.f32 %v3419, %v3478
  %v3516 = vmul.f32 %v3420, %v3483
  %v3517 = vmul.f32 %v3421, %v3488
  %v3518 = vmul.f32 %v3422, %v3493
  %v3519 = vmul.f32 %v3423, %v3498
  %v3520 = vmul.f32 %v3424, %v3503
  %v3521 = vadd.f32 %v3505, %v3506
  %v3522 = vrot.slane %v3521, 4
  %v3523 = vadd.f32 %v3521, %v3522
  %v3524 = vrot.slane %v3523, 2
  %v3525 = vadd.f32 %v3523, %v3524
  %v3526 = vrot.slane %v3525, 1
  %v3527 = vadd.f32 %v3525, %v3526
  %v3528 = vadd.f32 %v3507, %v3508
  %v3529 = vrot.slane %v3528, 4
  %v3530 = vadd.f32 %v3528, %v3529
  %v3531 = vrot.slane %v3530, 2
  %v3532 = vadd.f32 %v3530, %v3531
  %v3533 = vrot.slane %v3532, 1
  %v3534 = vadd.f32 %v3532, %v3533
  %v3535 = vadd.f32 %v3509, %v3510
  %v3536 = vrot.slane %v3535, 4
  %v3537 = vadd.f32 %v3535, %v3536
  %v3538 = vrot.slane %v3537, 2
  %v3539 = vadd.f32 %v3537, %v3538
  %v3540 = vrot.slane %v3539, 1
  %v3541 = vadd.f32 %v3539, %v3540
  %v3542 = vadd.f32 %v3511, %v3512
  %v3543 = vrot.slane %v3542, 4
  %v3544 = vadd.f32 %v3542, %v3543
  %v3545 = vrot.slane %v3544, 2
  %v3546 = vadd.f32 %v3544, %v3545
  %v3547 = vrot.slane %v3546, 1
  %v3548 = vadd.f32 %v3546, %v3547
  %v3549 = vadd.f32 %v3513, %v3514
  %v3550 = vrot.slane %v3549, 4
  %v3551 = vadd.f32 %v3549, %v3550
  %v3552 = vrot.slane %v3551, 2
  %v3553 = vadd.f32 %v3551, %v3552
  %v3554 = vrot.slane %v3553, 1
  %v3555 = vadd.f32 %v3553, %v3554
  %v3556 = vadd.f32 %v3515, %v3516
  %v3557 = vrot.slane %v3556, 4
  %v3558 = vadd.f32 %v3556, %v3557
  %v3559 = vrot.slane %v3558, 2
  %v3560 = vadd.f32 %v3558, %v3559
  %v3561 = vrot.slane %v3560, 1
  %v3562 = vadd.f32 %v3560, %v3561
  %v3563 = vadd.f32 %v3517, %v3518
  %v3564 = vrot.slane %v3563, 4
  %v3565 = vadd.f32 %v3563, %v3564
  %v3566 = vrot.slane %v3565, 2
  %v3567 = vadd.f32 %v3565, %v3566
  %v3568 = vrot.slane %v3567, 1
  %v3569 = vadd.f32 %v3567, %v3568
  %v3570 = vadd.f32 %v3519, %v3520
  %v3571 = vrot.slane %v3570, 4
  %v3572 = vadd.f32 %v3570, %v3571
  %v3573 = vrot.slane %v3572, 2
  %v3574 = vadd.f32 %v3572, %v3573
  %v3575 = vrot.slane %v3574, 1
  %v3576 = vadd.f32 %v3574, %v3575
  %v3577 = vpack.c.bf16 %v3527, %v3527
  %v3578 = vpack.c.bf16 %v3534, %v3534
  %v3579 = vpack.c.bf16 %v3541, %v3541
  %v3580 = vpack.c.bf16 %v3548, %v3548
  %v3581 = vpack.c.bf16 %v3555, %v3555
  %v3582 = vpack.c.bf16 %v3562, %v3562
  %v3583 = vpack.c.bf16 %v3569, %v3569
  %v3584 = vpack.c.bf16 %v3576, %v3576
  %v3593 = vperm.slane %v3577, 0
  %v3594 = vperm.slane %v3578, 0
  %v3595 = vperm.slane %v3579, 0
  %v3596 = vperm.slane %v3580, 0
  %v3597 = vperm.slane %v3581, 0
  %v3598 = vperm.slane %v3582, 0
  %v3599 = vperm.slane %v3583, 0
  %v3600 = vperm.slane %v3584, 0
  %v3601 = vunpack.c.l.b16 %v3593
  %v3602 = vunpack.c.l.b16 %v3594
  %v3603 = vunpack.c.l.b16 %v3595
  %v3604 = vunpack.c.l.b16 %v3596
  %v3605 = vunpack.c.l.b16 %v3597
  %v3606 = vunpack.c.l.b16 %v3598
  %v3607 = vunpack.c.l.b16 %v3599
  %v3608 = vunpack.c.l.b16 %v3600
  %v3609 = vsel %vm308, %v3602, %v3601
  %v3610 = vsel %vm310, %v3603, %v3609
  %v3611 = vsel %vm312, %v3604, %v3610
  %v3612 = vsel %vm314, %v3605, %v3611
  %v3613 = vsel %vm316, %v3606, %v3612
  %v3614 = vsel %vm318, %v3607, %v3613
  %v3615 = vsel %vm320, %v3608, %v3614
  %v3616 = vpack.c.b16 %v3615, %v3615
  %s3618 = scalar_lea.vmem %s2, 64
  %v3619 = vld [vmem:[%s3618] sm:$0xff]
  %v3620 = vld [vmem:[%s3618 + $0x8] sm:$0xff]
  %v3621 = vld [vmem:[%s3618 + $0x10] sm:$0xff]
  %v3622 = vld [vmem:[%s3618 + $0x18] sm:$0xff]
  %v3623 = vld [vmem:[%s9] sm:$0xff]
  %v3624 = vld [vmem:[%s9 + $0x8] sm:$0xff]
  %v3625 = vld [vmem:[%s9 + $0x10] sm:$0xff]
  %v3626 = vld [vmem:[%s9 + $0x18] sm:$0xff]
  %v3627 = vld [vmem:[%s9 + $0x20] sm:$0xff]
  %v3628 = vld [vmem:[%s9 + $0x28] sm:$0xff]
  %v3629 = vld [vmem:[%s9 + $0x30] sm:$0xff]
  %v3630 = vld [vmem:[%s9 + $0x38] sm:$0xff]
  %v3631 = vld [vmem:[%s9 + $0x40] sm:$0xff]
  %v3632 = vld [vmem:[%s9 + $0x48] sm:$0xff]
  %v3633 = vld [vmem:[%s9 + $0x50] sm:$0xff]
  %v3634 = vld [vmem:[%s9 + $0x58] sm:$0xff]
  %v3635 = vld [vmem:[%s9 + $0x60] sm:$0xff]
  %v3636 = vld [vmem:[%s9 + $0x68] sm:$0xff]
  %v3637 = vld [vmem:[%s9 + $0x70] sm:$0xff]
  %v3638 = vld [vmem:[%s9 + $0x78] sm:$0xff]
  %v3639 = vld [vmem:[%s9 + $0x80] sm:$0xff]
  %v3640 = vld [vmem:[%s9 + $0x88] sm:$0xff]
  %v3641 = vld [vmem:[%s9 + $0x90] sm:$0xff]
  %v3642 = vld [vmem:[%s9 + $0x98] sm:$0xff]
  %v3643 = vld [vmem:[%s9 + $0xa0] sm:$0xff]
  %v3644 = vld [vmem:[%s9 + $0xa8] sm:$0xff]
  %v3645 = vld [vmem:[%s9 + $0xb0] sm:$0xff]
  %v3646 = vld [vmem:[%s9 + $0xb8] sm:$0xff]
  %v3647 = vld [vmem:[%s9 + $0xc0] sm:$0xff]
  %v3648 = vld [vmem:[%s9 + $0xc8] sm:$0xff]
  %v3649 = vld [vmem:[%s9 + $0xd0] sm:$0xff]
  %v3650 = vld [vmem:[%s9 + $0xd8] sm:$0xff]
  %v3651 = vld [vmem:[%s9 + $0xe0] sm:$0xff]
  %v3652 = vld [vmem:[%s9 + $0xe8] sm:$0xff]
  %v3653 = vld [vmem:[%s9 + $0xf0] sm:$0xff]
  %v3654 = vld [vmem:[%s9 + $0xf8] sm:$0xff]
  %v3655 = vld [vmem:[%s9 + $0x100] sm:$0xff]
  %v3656 = vld [vmem:[%s9 + $0x108] sm:$0xff]
  %v3657 = vld [vmem:[%s9 + $0x110] sm:$0xff]
  %v3658 = vld [vmem:[%s9 + $0x118] sm:$0xff]
  %v3659 = vld [vmem:[%s9 + $0x120] sm:$0xff]
  %v3660 = vld [vmem:[%s9 + $0x128] sm:$0xff]
  %v3661 = vld [vmem:[%s9 + $0x130] sm:$0xff]
  %v3662 = vld [vmem:[%s9 + $0x138] sm:$0xff]
  %v3663 = vld [vmem:[%s9 + $0x140] sm:$0xff]
  %v3664 = vld [vmem:[%s9 + $0x148] sm:$0xff]
  %v3665 = vld [vmem:[%s9 + $0x150] sm:$0xff]
  %v3666 = vld [vmem:[%s9 + $0x158] sm:$0xff]
  %v3667 = vld [vmem:[%s9 + $0x160] sm:$0xff]
  %v3668 = vld [vmem:[%s9 + $0x168] sm:$0xff]
  %v3669 = vld [vmem:[%s9 + $0x170] sm:$0xff]
  %v3670 = vld [vmem:[%s9 + $0x178] sm:$0xff]
  %v3671 = vld [vmem:[%s9 + $0x180] sm:$0xff]
  %v3672 = vld [vmem:[%s9 + $0x188] sm:$0xff]
  %v3673 = vld [vmem:[%s9 + $0x190] sm:$0xff]
  %v3674 = vld [vmem:[%s9 + $0x198] sm:$0xff]
  %v3675 = vld [vmem:[%s9 + $0x1a0] sm:$0xff]
  %v3676 = vld [vmem:[%s9 + $0x1a8] sm:$0xff]
  %v3677 = vld [vmem:[%s9 + $0x1b0] sm:$0xff]
  %v3678 = vld [vmem:[%s9 + $0x1b8] sm:$0xff]
  %v3679 = vld [vmem:[%s9 + $0x1c0] sm:$0xff]
  %v3680 = vld [vmem:[%s9 + $0x1c8] sm:$0xff]
  %v3681 = vld [vmem:[%s9 + $0x1d0] sm:$0xff]
  %v3682 = vld [vmem:[%s9 + $0x1d8] sm:$0xff]
  %v3683 = vld [vmem:[%s9 + $0x1e0] sm:$0xff]
  %v3684 = vld [vmem:[%s9 + $0x1e8] sm:$0xff]
  %v3685 = vld [vmem:[%s9 + $0x1f0] sm:$0xff]
  %v3686 = vld [vmem:[%s9 + $0x1f8] sm:$0xff]
  %v3751 = vunpack.c.l.b16 %v3623
  %v3752 = vunpack.c.h.b16 %v3623
  %v3753 = vunpack.c.l.b16 %v3624
  %v3754 = vunpack.c.h.b16 %v3624
  %v3755 = vunpack.c.l.b16 %v3625
  %v3756 = vunpack.c.h.b16 %v3625
  %v3757 = vunpack.c.l.b16 %v3626
  %v3758 = vunpack.c.h.b16 %v3626
  %v3759 = vunpack.c.l.b16 %v3627
  %v3760 = vunpack.c.h.b16 %v3627
  %v3761 = vunpack.c.l.b16 %v3628
  %v3762 = vunpack.c.h.b16 %v3628
  %v3763 = vunpack.c.l.b16 %v3629
  %v3764 = vunpack.c.h.b16 %v3629
  %v3765 = vunpack.c.l.b16 %v3630
  %v3766 = vunpack.c.h.b16 %v3630
  %v3767 = vunpack.c.l.b16 %v3631
  %v3768 = vunpack.c.h.b16 %v3631
  %v3769 = vunpack.c.l.b16 %v3632
  %v3770 = vunpack.c.h.b16 %v3632
  %v3771 = vunpack.c.l.b16 %v3633
  %v3772 = vunpack.c.h.b16 %v3633
  %v3773 = vunpack.c.l.b16 %v3634
  %v3774 = vunpack.c.h.b16 %v3634
  %v3775 = vunpack.c.l.b16 %v3635
  %v3776 = vunpack.c.h.b16 %v3635
  %v3777 = vunpack.c.l.b16 %v3636
  %v3778 = vunpack.c.h.b16 %v3636
  %v3779 = vunpack.c.l.b16 %v3637
  %v3780 = vunpack.c.h.b16 %v3637
  %v3781 = vunpack.c.l.b16 %v3638
  %v3782 = vunpack.c.h.b16 %v3638
  %v3783 = vunpack.c.l.b16 %v3639
  %v3784 = vunpack.c.h.b16 %v3639
  %v3785 = vunpack.c.l.b16 %v3640
  %v3786 = vunpack.c.h.b16 %v3640
  %v3787 = vunpack.c.l.b16 %v3641
  %v3788 = vunpack.c.h.b16 %v3641
  %v3789 = vunpack.c.l.b16 %v3642
  %v3790 = vunpack.c.h.b16 %v3642
  %v3791 = vunpack.c.l.b16 %v3643
  %v3792 = vunpack.c.h.b16 %v3643
  %v3793 = vunpack.c.l.b16 %v3644
  %v3794 = vunpack.c.h.b16 %v3644
  %v3795 = vunpack.c.l.b16 %v3645
  %v3796 = vunpack.c.h.b16 %v3645
  %v3797 = vunpack.c.l.b16 %v3646
  %v3798 = vunpack.c.h.b16 %v3646
  %v3799 = vunpack.c.l.b16 %v3647
  %v3800 = vunpack.c.h.b16 %v3647
  %v3801 = vunpack.c.l.b16 %v3648
  %v3802 = vunpack.c.h.b16 %v3648
  %v3803 = vunpack.c.l.b16 %v3649
  %v3804 = vunpack.c.h.b16 %v3649
  %v3805 = vunpack.c.l.b16 %v3650
  %v3806 = vunpack.c.h.b16 %v3650
  %v3807 = vunpack.c.l.b16 %v3651
  %v3808 = vunpack.c.h.b16 %v3651
  %v3809 = vunpack.c.l.b16 %v3652
  %v3810 = vunpack.c.h.b16 %v3652
  %v3811 = vunpack.c.l.b16 %v3653
  %v3812 = vunpack.c.h.b16 %v3653
  %v3813 = vunpack.c.l.b16 %v3654
  %v3814 = vunpack.c.h.b16 %v3654
  %v3815 = vunpack.c.l.b16 %v3655
  %v3816 = vunpack.c.h.b16 %v3655
  %v3817 = vunpack.c.l.b16 %v3656
  %v3818 = vunpack.c.h.b16 %v3656
  %v3819 = vunpack.c.l.b16 %v3657
  %v3820 = vunpack.c.h.b16 %v3657
  %v3821 = vunpack.c.l.b16 %v3658
  %v3822 = vunpack.c.h.b16 %v3658
  %v3823 = vunpack.c.l.b16 %v3659
  %v3824 = vunpack.c.h.b16 %v3659
  %v3825 = vunpack.c.l.b16 %v3660
  %v3826 = vunpack.c.h.b16 %v3660
  %v3827 = vunpack.c.l.b16 %v3661
  %v3828 = vunpack.c.h.b16 %v3661
  %v3829 = vunpack.c.l.b16 %v3662
  %v3830 = vunpack.c.h.b16 %v3662
  %v3831 = vunpack.c.l.b16 %v3663
  %v3832 = vunpack.c.h.b16 %v3663
  %v3833 = vunpack.c.l.b16 %v3664
  %v3834 = vunpack.c.h.b16 %v3664
  %v3835 = vunpack.c.l.b16 %v3665
  %v3836 = vunpack.c.h.b16 %v3665
  %v3837 = vunpack.c.l.b16 %v3666
  %v3838 = vunpack.c.h.b16 %v3666
  %v3839 = vunpack.c.l.b16 %v3667
  %v3840 = vunpack.c.h.b16 %v3667
  %v3841 = vunpack.c.l.b16 %v3668
  %v3842 = vunpack.c.h.b16 %v3668
  %v3843 = vunpack.c.l.b16 %v3669
  %v3844 = vunpack.c.h.b16 %v3669
  %v3845 = vunpack.c.l.b16 %v3670
  %v3846 = vunpack.c.h.b16 %v3670
  %v3847 = vunpack.c.l.b16 %v3671
  %v3848 = vunpack.c.h.b16 %v3671
  %v3849 = vunpack.c.l.b16 %v3672
  %v3850 = vunpack.c.h.b16 %v3672
  %v3851 = vunpack.c.l.b16 %v3673
  %v3852 = vunpack.c.h.b16 %v3673
  %v3853 = vunpack.c.l.b16 %v3674
  %v3854 = vunpack.c.h.b16 %v3674
  %v3855 = vunpack.c.l.b16 %v3675
  %v3856 = vunpack.c.h.b16 %v3675
  %v3857 = vunpack.c.l.b16 %v3676
  %v3858 = vunpack.c.h.b16 %v3676
  %v3859 = vunpack.c.l.b16 %v3677
  %v3860 = vunpack.c.h.b16 %v3677
  %v3861 = vunpack.c.l.b16 %v3678
  %v3862 = vunpack.c.h.b16 %v3678
  %v3863 = vunpack.c.l.b16 %v3679
  %v3864 = vunpack.c.h.b16 %v3679
  %v3865 = vunpack.c.l.b16 %v3680
  %v3866 = vunpack.c.h.b16 %v3680
  %v3867 = vunpack.c.l.b16 %v3681
  %v3868 = vunpack.c.h.b16 %v3681
  %v3869 = vunpack.c.l.b16 %v3682
  %v3870 = vunpack.c.h.b16 %v3682
  %v3871 = vunpack.c.l.b16 %v3683
  %v3872 = vunpack.c.h.b16 %v3683
  %v3873 = vunpack.c.l.b16 %v3684
  %v3874 = vunpack.c.h.b16 %v3684
  %v3875 = vunpack.c.l.b16 %v3685
  %v3876 = vunpack.c.h.b16 %v3685
  %v3877 = vunpack.c.l.b16 %v3686
  %v3878 = vunpack.c.h.b16 %v3686
  %v3879 = vpack.c.b16 %v3755, %v3751
  %v3880 = vpack.c.b16 %v3756, %v3752
  %v3881 = vpack.c.b16 %v3757, %v3753
  %v3882 = vpack.c.b16 %v3758, %v3754
  %v3883 = vpack.c.b16 %v3763, %v3759
  %v3884 = vpack.c.b16 %v3764, %v3760
  %v3885 = vpack.c.b16 %v3765, %v3761
  %v3886 = vpack.c.b16 %v3766, %v3762
  %v3887 = vpack.c.b16 %v3771, %v3767
  %v3888 = vpack.c.b16 %v3772, %v3768
  %v3889 = vpack.c.b16 %v3773, %v3769
  %v3890 = vpack.c.b16 %v3774, %v3770
  %v3891 = vpack.c.b16 %v3779, %v3775
  %v3892 = vpack.c.b16 %v3780, %v3776
  %v3893 = vpack.c.b16 %v3781, %v3777
  %v3894 = vpack.c.b16 %v3782, %v3778
  %v3895 = vpack.c.b16 %v3787, %v3783
  %v3896 = vpack.c.b16 %v3788, %v3784
  %v3897 = vpack.c.b16 %v3789, %v3785
  %v3898 = vpack.c.b16 %v3790, %v3786
  %v3899 = vpack.c.b16 %v3795, %v3791
  %v3900 = vpack.c.b16 %v3796, %v3792
  %v3901 = vpack.c.b16 %v3797, %v3793
  %v3902 = vpack.c.b16 %v3798, %v3794
  %v3903 = vpack.c.b16 %v3803, %v3799
  %v3904 = vpack.c.b16 %v3804, %v3800
  %v3905 = vpack.c.b16 %v3805, %v3801
  %v3906 = vpack.c.b16 %v3806, %v3802
  %v3907 = vpack.c.b16 %v3811, %v3807
  %v3908 = vpack.c.b16 %v3812, %v3808
  %v3909 = vpack.c.b16 %v3813, %v3809
  %v3910 = vpack.c.b16 %v3814, %v3810
  %v3911 = vpack.c.b16 %v3819, %v3815
  %v3912 = vpack.c.b16 %v3820, %v3816
  %v3913 = vpack.c.b16 %v3821, %v3817
  %v3914 = vpack.c.b16 %v3822, %v3818
  %v3915 = vpack.c.b16 %v3827, %v3823
  %v3916 = vpack.c.b16 %v3828, %v3824
  %v3917 = vpack.c.b16 %v3829, %v3825
  %v3918 = vpack.c.b16 %v3830, %v3826
  %v3919 = vpack.c.b16 %v3835, %v3831
  %v3920 = vpack.c.b16 %v3836, %v3832
  %v3921 = vpack.c.b16 %v3837, %v3833
  %v3922 = vpack.c.b16 %v3838, %v3834
  %v3923 = vpack.c.b16 %v3843, %v3839
  %v3924 = vpack.c.b16 %v3844, %v3840
  %v3925 = vpack.c.b16 %v3845, %v3841
  %v3926 = vpack.c.b16 %v3846, %v3842
  %v3927 = vpack.c.b16 %v3851, %v3847
  %v3928 = vpack.c.b16 %v3852, %v3848
  %v3929 = vpack.c.b16 %v3853, %v3849
  %v3930 = vpack.c.b16 %v3854, %v3850
  %v3931 = vpack.c.b16 %v3859, %v3855
  %v3932 = vpack.c.b16 %v3860, %v3856
  %v3933 = vpack.c.b16 %v3861, %v3857
  %v3934 = vpack.c.b16 %v3862, %v3858
  %v3935 = vpack.c.b16 %v3867, %v3863
  %v3936 = vpack.c.b16 %v3868, %v3864
  %v3937 = vpack.c.b16 %v3869, %v3865
  %v3938 = vpack.c.b16 %v3870, %v3866
  %v3939 = vpack.c.b16 %v3875, %v3871
  %v3940 = vpack.c.b16 %v3876, %v3872
  %v3941 = vpack.c.b16 %v3877, %v3873
  %v3942 = vpack.c.b16 %v3878, %v3874
  %4007 = vmatpush.bf16.msra.mxu0 %v3907
  %4008 = vmatpush.bf16.msra.mxu0 %v3903
  %4009 = vmatpush.bf16.msra.mxu0 %v3899
  %4010 = vmatpush.bf16.msra.mxu0 %v3895
  %4011 = vmatpush.bf16.msra.mxu0 %v3891
  %4012 = vmatpush.bf16.msra.mxu0 %v3887
  %4013 = vmatpush.bf16.msra.mxu0 %v3883
  %4014 = vmatpush.bf16.msra.mxu0 %v3879
  %4015 = vmatmul.bf16.gmra.mxu0 %v3616
  %v4016 = vpop.f32.mrf.mxu0
  %v4017 = vadd.f32 0.0, %v4016
  %v4018 = vpop.f32.mrf.mxu0
  %4019 = vdwg.mxu0
  %4020 = vmatpush.bf16.msra.mxu0 %v3939
  %4021 = vmatpush.bf16.msra.mxu0 %v3935
  %4022 = vmatpush.bf16.msra.mxu0 %v3931
  %4023 = vmatpush.bf16.msra.mxu0 %v3927
  %4024 = vmatpush.bf16.msra.mxu0 %v3923
  %4025 = vmatpush.bf16.msra.mxu0 %v3919
  %4026 = vmatpush.bf16.msra.mxu0 %v3915
  %4027 = vmatpush.bf16.msra.mxu0 %v3911
  %4028 = vmatmul.bf16.gmra.mxu0 %v2827
  %v4029 = vpop.f32.mrf.mxu0
  %v4030 = vadd.f32 %v4017, %v4029
  %v4031 = vpop.f32.mrf.mxu0
  %4032 = vdwg.mxu0
  %4033 = vmatpush.bf16.msra.mxu0 %v3908
  %4034 = vmatpush.bf16.msra.mxu0 %v3904
  %4035 = vmatpush.bf16.msra.mxu0 %v3900
  %4036 = vmatpush.bf16.msra.mxu0 %v3896
  %4037 = vmatpush.bf16.msra.mxu0 %v3892
  %4038 = vmatpush.bf16.msra.mxu0 %v3888
  %4039 = vmatpush.bf16.msra.mxu0 %v3884
  %4040 = vmatpush.bf16.msra.mxu0 %v3880
  %4041 = vmatmul.bf16.gmra.mxu0 %v3616
  %v4042 = vpop.f32.mrf.mxu0
  %v4043 = vadd.f32 0.0, %v4042
  %v4044 = vpop.f32.mrf.mxu0
  %4045 = vdwg.mxu0
  %4046 = vmatpush.bf16.msra.mxu0 %v3940
  %4047 = vmatpush.bf16.msra.mxu0 %v3936
  %4048 = vmatpush.bf16.msra.mxu0 %v3932
  %4049 = vmatpush.bf16.msra.mxu0 %v3928
  %4050 = vmatpush.bf16.msra.mxu0 %v3924
  %4051 = vmatpush.bf16.msra.mxu0 %v3920
  %4052 = vmatpush.bf16.msra.mxu0 %v3916
  %4053 = vmatpush.bf16.msra.mxu0 %v3912
  %4054 = vmatmul.bf16.gmra.mxu0 %v2827
  %v4055 = vpop.f32.mrf.mxu0
  %v4056 = vadd.f32 %v4043, %v4055
  %v4057 = vpop.f32.mrf.mxu0
  %4058 = vdwg.mxu0
  %4059 = vmatpush.bf16.msra.mxu0 %v3909
  %4060 = vmatpush.bf16.msra.mxu0 %v3905
  %4061 = vmatpush.bf16.msra.mxu0 %v3901
  %4062 = vmatpush.bf16.msra.mxu0 %v3897
  %4063 = vmatpush.bf16.msra.mxu0 %v3893
  %4064 = vmatpush.bf16.msra.mxu0 %v3889
  %4065 = vmatpush.bf16.msra.mxu0 %v3885
  %4066 = vmatpush.bf16.msra.mxu0 %v3881
  %4067 = vmatmul.bf16.gmra.mxu0 %v3616
  %v4068 = vpop.f32.mrf.mxu0
  %v4069 = vadd.f32 0.0, %v4068
  %v4070 = vpop.f32.mrf.mxu0
  %4071 = vdwg.mxu0
  %4072 = vmatpush.bf16.msra.mxu0 %v3941
  %4073 = vmatpush.bf16.msra.mxu0 %v3937
  %4074 = vmatpush.bf16.msra.mxu0 %v3933
  %4075 = vmatpush.bf16.msra.mxu0 %v3929
  %4076 = vmatpush.bf16.msra.mxu0 %v3925
  %4077 = vmatpush.bf16.msra.mxu0 %v3921
  %4078 = vmatpush.bf16.msra.mxu0 %v3917
  %4079 = vmatpush.bf16.msra.mxu0 %v3913
  %4080 = vmatmul.bf16.gmra.mxu0 %v2827
  %v4081 = vpop.f32.mrf.mxu0
  %v4082 = vadd.f32 %v4069, %v4081
  %v4083 = vpop.f32.mrf.mxu0
  %4084 = vdwg.mxu0
  %4085 = vmatpush.bf16.msra.mxu0 %v3910
  %4086 = vmatpush.bf16.msra.mxu0 %v3906
  %4087 = vmatpush.bf16.msra.mxu0 %v3902
  %4088 = vmatpush.bf16.msra.mxu0 %v3898
  %4089 = vmatpush.bf16.msra.mxu0 %v3894
  %4090 = vmatpush.bf16.msra.mxu0 %v3890
  %4091 = vmatpush.bf16.msra.mxu0 %v3886
  %4092 = vmatpush.bf16.msra.mxu0 %v3882
  %4093 = vmatmul.bf16.gmra.mxu0 %v3616
  %v4094 = vpop.f32.mrf.mxu0
  %v4095 = vadd.f32 0.0, %v4094
  %v4096 = vpop.f32.mrf.mxu0
  %4097 = vdwg.mxu0
  %4098 = vmatpush.bf16.msra.mxu0 %v3942
  %4099 = vmatpush.bf16.msra.mxu0 %v3938
  %4100 = vmatpush.bf16.msra.mxu0 %v3934
  %4101 = vmatpush.bf16.msra.mxu0 %v3930
  %4102 = vmatpush.bf16.msra.mxu0 %v3926
  %4103 = vmatpush.bf16.msra.mxu0 %v3922
  %4104 = vmatpush.bf16.msra.mxu0 %v3918
  %4105 = vmatpush.bf16.msra.mxu0 %v3914
  %4106 = vmatmul.bf16.gmra.mxu0 %v2827
  %v4107 = vpop.f32.mrf.mxu0
  %v4108 = vadd.f32 %v4095, %v4107
  %v4109 = vpop.f32.mrf.mxu0
  %4110 = vdwg.mxu0
  %v4111 = vadd.f32 %v3619, %v4030
  %v4112 = vadd.f32 %v3620, %v4056
  %v4113 = vadd.f32 %v3621, %v4082
  %v4114 = vadd.f32 %v3622, %v4108
  %v4115 = vxor.u32 %v4111, 2147483648
  %v4116 = vmul.f32 %v4115, 1.442695
  %v4117 = vpow.pop %v4116
  %v4118 = vadd.f32 %v4117, 1.0
  %v4119 = vrcp.pop %v4118
  %v4120 = vmul.f32 %v4118, %v4119
  %v4121 = vsub.f32 1.0, %v4120
  %v4122 = vmul.f32 %v4119, %v4121
  %v4123 = vadd.f32 %v4119, %v4122
  %vm4124 = vweird.f32 %v4118
  %vm4125 = vweird.f32 %v4119
  %vm4126 = vmor %vm4124, %vm4125
  %v4127 = vsel %vm4126, %v4119, %v4123
  %v4128 = vand.u32 2147483647, %v4118
  %vm4129 = vcmp.eq.f32.partialorder %v4128, 8.507059e+37
  %v4130 = vand.u32 %v4118, 2147483648
  %v4131 = vor.u32 1.1754944e-38, %v4130
  %v4132 = vsel %vm4129, %v4131, %v4127
  %v4133 = vmul.f32 1.0, %v4132
  %v4134 = vxor.u32 %v4112, 2147483648
  %v4135 = vmul.f32 %v4134, 1.442695
  %v4136 = vpow.pop %v4135
  %v4137 = vadd.f32 %v4136, 1.0
  %v4138 = vrcp.pop %v4137
  %v4139 = vmul.f32 %v4137, %v4138
  %v4140 = vsub.f32 1.0, %v4139
  %v4141 = vmul.f32 %v4138, %v4140
  %v4142 = vadd.f32 %v4138, %v4141
  %vm4143 = vweird.f32 %v4137
  %vm4144 = vweird.f32 %v4138
  %vm4145 = vmor %vm4143, %vm4144
  %v4146 = vsel %vm4145, %v4138, %v4142
  %v4147 = vand.u32 2147483647, %v4137
  %vm4148 = vcmp.eq.f32.partialorder %v4147, 8.507059e+37
  %v4149 = vand.u32 %v4137, 2147483648
  %v4150 = vor.u32 1.1754944e-38, %v4149
  %v4151 = vsel %vm4148, %v4150, %v4146
  %v4152 = vmul.f32 1.0, %v4151
  %v4153 = vtanh.pop %v4113
  %v4154 = vxor.u32 %v4114, 2147483648
  %v4155 = vmul.f32 %v4154, 1.442695
  %v4156 = vpow.pop %v4155
  %v4157 = vadd.f32 %v4156, 1.0
  %v4158 = vrcp.pop %v4157
  %v4159 = vmul.f32 %v4157, %v4158
  %v4160 = vsub.f32 1.0, %v4159
  %v4161 = vmul.f32 %v4158, %v4160
  %v4162 = vadd.f32 %v4158, %v4161
  %vm4163 = vweird.f32 %v4157
  %vm4164 = vweird.f32 %v4158
  %vm4165 = vmor %vm4163, %vm4164
  %v4166 = vsel %vm4165, %v4158, %v4162
  %v4167 = vand.u32 2147483647, %v4157
  %vm4168 = vcmp.eq.f32.partialorder %v4167, 8.507059e+37
  %v4169 = vand.u32 %v4157, 2147483648
  %v4170 = vor.u32 1.1754944e-38, %v4169
  %v4171 = vsel %vm4168, %v4170, %v4166
  %v4172 = vmul.f32 1.0, %v4171
  %v4173 = vmul.f32 %v4152, %v2787
  %v4174 = vmul.f32 %v4133, %v4153
  %v4175 = vadd.f32 %v4173, %v4174
  %v4176 = vtanh.pop %v4175
  %v4177 = vmul.f32 %v4172, %v4176
  %s4178 = scalar_lea.vmem %s10, 16
  %4179 = vst [vmem:[%s4178] sm:$0xff] %v4177
  %v4180 = vperm.slane %v3428, %v281
  %v4181 = vperm.slane %v3433, %v283
  %v4182 = vsel %vm285, %v4181, %v4180
  %v4183 = vperm.slane %v3438, %v281
  %v4184 = vperm.slane %v3443, %v283
  %v4185 = vsel %vm285, %v4184, %v4183
  %v4186 = vperm.slane %v3448, %v281
  %v4187 = vperm.slane %v3453, %v283
  %v4188 = vsel %vm285, %v4187, %v4186
  %v4189 = vperm.slane %v3458, %v281
  %v4190 = vperm.slane %v3463, %v283
  %v4191 = vsel %vm285, %v4190, %v4189
  %v4192 = vperm.slane %v3468, %v281
  %v4193 = vperm.slane %v3473, %v283
  %v4194 = vsel %vm285, %v4193, %v4192
  %v4195 = vperm.slane %v3478, %v281
  %v4196 = vperm.slane %v3483, %v283
  %v4197 = vsel %vm285, %v4196, %v4195
  %v4198 = vperm.slane %v3488, %v281
  %v4199 = vperm.slane %v3493, %v283
  %v4200 = vsel %vm285, %v4199, %v4198
  %v4201 = vperm.slane %v3498, %v281
  %v4202 = vperm.slane %v3503, %v283
  %v4203 = vsel %vm285, %v4202, %v4201
  %v4204 = vsel %vm308, %v4185, %v4182
  %v4205 = vsel %vm310, %v4188, %v4204
  %v4206 = vsel %vm312, %v4191, %v4205
  %v4207 = vsel %vm314, %v4194, %v4206
  %v4208 = vsel %vm316, %v4197, %v4207
  %v4209 = vsel %vm318, %v4200, %v4208
  %v4210 = vsel %vm320, %v4203, %v4209
  %v4212 = vsel %vm323, %v4210, 0.0
  %s4213 = scalar_lea.vmem %s11, 16
  %4214 = vst [vmem:[%s4213] sm:$0xff] %v4212
  %v4215 = vpack.c.bf16 %v4177, %v4177
  %v4216 = vld [vmem:[%s5] sm:$0xf]
  %v4217 = vld [vmem:[%s5 + $0x4] sm:$0xf]
  %v4218 = vld [vmem:[%s5 + $0x8] sm:$0xf]
  %v4219 = vld [vmem:[%s5 + $0xc] sm:$0xf]
  %v4220 = vld [vmem:[%s5 + $0x10] sm:$0xf]
  %v4221 = vld [vmem:[%s5 + $0x14] sm:$0xf]
  %v4222 = vld [vmem:[%s5 + $0x18] sm:$0xf]
  %v4223 = vld [vmem:[%s5 + $0x1c] sm:$0xf]
  %v4224 = vld [vmem:[%s5 + $0x20] sm:$0xf]
  %v4225 = vld [vmem:[%s5 + $0x24] sm:$0xf]
  %v4226 = vld [vmem:[%s5 + $0x28] sm:$0xf]
  %v4227 = vld [vmem:[%s5 + $0x2c] sm:$0xf]
  %v4228 = vld [vmem:[%s5 + $0x30] sm:$0xf]
  %v4229 = vld [vmem:[%s5 + $0x34] sm:$0xf]
  %v4230 = vld [vmem:[%s5 + $0x38] sm:$0xf]
  %v4231 = vld [vmem:[%s5 + $0x3c] sm:$0xf]
  %v4232 = vld [vmem:[%s6] sm:$0x1]
  %v4234 = vperm.slane %v4232, 0
  %v4252 = vunpack.c.l.b16 %v4216
  %v4253 = vunpack.c.l.b16 %v4217
  %v4254 = vunpack.c.l.b16 %v4218
  %v4255 = vunpack.c.l.b16 %v4219
  %v4256 = vunpack.c.l.b16 %v4220
  %v4257 = vunpack.c.l.b16 %v4221
  %v4258 = vunpack.c.l.b16 %v4222
  %v4259 = vunpack.c.l.b16 %v4223
  %v4260 = vunpack.c.l.b16 %v4224
  %v4261 = vunpack.c.l.b16 %v4225
  %v4262 = vunpack.c.l.b16 %v4226
  %v4263 = vunpack.c.l.b16 %v4227
  %v4264 = vunpack.c.l.b16 %v4228
  %v4265 = vunpack.c.l.b16 %v4229
  %v4266 = vunpack.c.l.b16 %v4230
  %v4267 = vunpack.c.l.b16 %v4231
  %v4268 = vpack.c.b16 %v4253, %v4252
  %v4269 = vpack.c.b16 %v4255, %v4254
  %v4270 = vpack.c.b16 %v4257, %v4256
  %v4271 = vpack.c.b16 %v4259, %v4258
  %v4272 = vpack.c.b16 %v4261, %v4260
  %v4273 = vpack.c.b16 %v4263, %v4262
  %v4274 = vpack.c.b16 %v4265, %v4264
  %v4275 = vpack.c.b16 %v4267, %v4266
  %4284 = vmatpush.bf16.msra.mxu0 %v4275
  %4285 = vmatpush.bf16.msra.mxu0 %v4274
  %4286 = vmatpush.bf16.msra.mxu0 %v4273
  %4287 = vmatpush.bf16.msra.mxu0 %v4272
  %4288 = vmatpush.bf16.msra.mxu0 %v4271
  %4289 = vmatpush.bf16.msra.mxu0 %v4270
  %4290 = vmatpush.bf16.msra.mxu0 %v4269
  %4291 = vmatpush.bf16.msra.mxu0 %v4268
  %4292 = vmatmul.bf16.gmra.mxu0 %v4215
  %v4293 = vpop.f32.mrf.mxu0
  %v4294 = vadd.f32 %v4234, %v4293
  %v4295 = vpop.f32.mrf.mxu0
  %4296 = vdwg.mxu0
  %v4297 = vld [vmem:[%s1] sm:$0xff]
  %v4298 = vld [vmem:[%s1 + $0x8] sm:$0xff]
  %v4299 = vld [vmem:[%s1 + $0x10] sm:$0xff]
  %v4300 = vld [vmem:[%s1 + $0x18] sm:$0xff]
  %v4301 = vld [vmem:[%s1 + $0x20] sm:$0xff]
  %v4302 = vld [vmem:[%s1 + $0x28] sm:$0xff]
  %v4303 = vld [vmem:[%s1 + $0x30] sm:$0xff]
  %v4304 = vld [vmem:[%s1 + $0x38] sm:$0xff]
  %v4305 = vld [vmem:[%s1 + $0x40] sm:$0xff]
  %v4306 = vld [vmem:[%s1 + $0x48] sm:$0xff]
  %v4307 = vld [vmem:[%s1 + $0x50] sm:$0xff]
  %v4308 = vld [vmem:[%s1 + $0x58] sm:$0xff]
  %v4309 = vld [vmem:[%s1 + $0x60] sm:$0xff]
  %v4310 = vld [vmem:[%s1 + $0x68] sm:$0xff]
  %v4311 = vld [vmem:[%s1 + $0x70] sm:$0xff]
  %v4312 = vld [vmem:[%s1 + $0x78] sm:$0xff]
  %v4314 = vrot.slane %v4294, 1
  %v4315 = vrot.slane %v4294, 2
  %v4316 = vrot.slane %v4294, 3
  %v4317 = vrot.slane %v4294, 4
  %v4318 = vrot.slane %v4294, 5
  %v4319 = vrot.slane %v4294, 6
  %v4320 = vrot.slane %v4294, 7
  %v4321 = vperm.slane %v4294, 0
  %v4322 = vperm.slane %v4314, 0
  %v4323 = vperm.slane %v4315, 0
  %v4324 = vperm.slane %v4316, 0
  %v4325 = vperm.slane %v4317, 0
  %v4326 = vperm.slane %v4318, 0
  %v4327 = vperm.slane %v4319, 0
  %v4328 = vperm.slane %v4320, 0
  %v4337 = vadd.f32 %v4297, %v4321
  %v4338 = vadd.f32 %v4298, %v4321
  %v4339 = vadd.f32 %v4299, %v4322
  %v4340 = vadd.f32 %v4300, %v4322
  %v4341 = vadd.f32 %v4301, %v4323
  %v4342 = vadd.f32 %v4302, %v4323
  %v4343 = vadd.f32 %v4303, %v4324
  %v4344 = vadd.f32 %v4304, %v4324
  %v4345 = vadd.f32 %v4305, %v4325
  %v4346 = vadd.f32 %v4306, %v4325
  %v4347 = vadd.f32 %v4307, %v4326
  %v4348 = vadd.f32 %v4308, %v4326
  %v4349 = vadd.f32 %v4309, %v4327
  %v4350 = vadd.f32 %v4310, %v4327
  %v4351 = vadd.f32 %v4311, %v4328
  %v4352 = vadd.f32 %v4312, %v4328
  %v4353 = vtanh.pop %v4337
  %v4354 = vtanh.pop %v4338
  %v4355 = vtanh.pop %v4339
  %v4356 = vtanh.pop %v4340
  %v4357 = vtanh.pop %v4341
  %v4358 = vtanh.pop %v4342
  %v4359 = vtanh.pop %v4343
  %v4360 = vtanh.pop %v4344
  %v4361 = vtanh.pop %v4345
  %v4362 = vtanh.pop %v4346
  %v4363 = vtanh.pop %v4347
  %v4364 = vtanh.pop %v4348
  %v4365 = vtanh.pop %v4349
  %v4366 = vtanh.pop %v4350
  %v4367 = vtanh.pop %v4351
  %v4368 = vtanh.pop %v4352
  %v4369 = vld [vmem:[%s7] sm:$0x1]
  %v4371 = vperm.slane %v4369, 0
  %v4373 = vmul.f32 %v4353, %v4371
  %v4374 = vmul.f32 %v4354, %v4371
  %v4375 = vmul.f32 %v4355, %v4371
  %v4376 = vmul.f32 %v4356, %v4371
  %v4377 = vmul.f32 %v4357, %v4371
  %v4378 = vmul.f32 %v4358, %v4371
  %v4379 = vmul.f32 %v4359, %v4371
  %v4380 = vmul.f32 %v4360, %v4371
  %v4381 = vmul.f32 %v4361, %v4371
  %v4382 = vmul.f32 %v4362, %v4371
  %v4383 = vmul.f32 %v4363, %v4371
  %v4384 = vmul.f32 %v4364, %v4371
  %v4385 = vmul.f32 %v4365, %v4371
  %v4386 = vmul.f32 %v4366, %v4371
  %v4387 = vmul.f32 %v4367, %v4371
  %v4388 = vmul.f32 %v4368, %v4371
  %4389 = vadd.xlane.f32.xlu0 %v4373
  %v4390 = vpop.xlane.xlu0 %4389
  %4391 = vadd.xlane.f32.xlu0 %v4374
  %v4392 = vpop.xlane.xlu0 %4391
  %4393 = vadd.xlane.f32.xlu0 %v4375
  %v4394 = vpop.xlane.xlu0 %4393
  %4395 = vadd.xlane.f32.xlu0 %v4376
  %v4396 = vpop.xlane.xlu0 %4395
  %4397 = vadd.xlane.f32.xlu0 %v4377
  %v4398 = vpop.xlane.xlu0 %4397
  %4399 = vadd.xlane.f32.xlu0 %v4378
  %v4400 = vpop.xlane.xlu0 %4399
  %4401 = vadd.xlane.f32.xlu0 %v4379
  %v4402 = vpop.xlane.xlu0 %4401
  %4403 = vadd.xlane.f32.xlu0 %v4380
  %v4404 = vpop.xlane.xlu0 %4403
  %4405 = vadd.xlane.f32.xlu0 %v4381
  %v4406 = vpop.xlane.xlu0 %4405
  %4407 = vadd.xlane.f32.xlu0 %v4382
  %v4408 = vpop.xlane.xlu0 %4407
  %4409 = vadd.xlane.f32.xlu0 %v4383
  %v4410 = vpop.xlane.xlu0 %4409
  %4411 = vadd.xlane.f32.xlu0 %v4384
  %v4412 = vpop.xlane.xlu0 %4411
  %4413 = vadd.xlane.f32.xlu0 %v4385
  %v4414 = vpop.xlane.xlu0 %4413
  %4415 = vadd.xlane.f32.xlu0 %v4386
  %v4416 = vpop.xlane.xlu0 %4415
  %4417 = vadd.xlane.f32.xlu0 %v4387
  %v4418 = vpop.xlane.xlu0 %4417
  %4419 = vadd.xlane.f32.xlu0 %v4388
  %v4420 = vpop.xlane.xlu0 %4419
  %v4421 = vadd.f32 %v4390, %v247
  %v4422 = vadd.f32 %v4392, %v247
  %v4423 = vadd.f32 %v4394, %v247
  %v4424 = vadd.f32 %v4396, %v247
  %v4425 = vadd.f32 %v4398, %v247
  %v4426 = vadd.f32 %v4400, %v247
  %v4427 = vadd.f32 %v4402, %v247
  %v4428 = vadd.f32 %v4404, %v247
  %v4429 = vadd.f32 %v4406, %v247
  %v4430 = vadd.f32 %v4408, %v247
  %v4431 = vadd.f32 %v4410, %v247
  %v4432 = vadd.f32 %v4412, %v247
  %v4433 = vadd.f32 %v4414, %v247
  %v4434 = vadd.f32 %v4416, %v247
  %v4435 = vadd.f32 %v4418, %v247
  %v4436 = vadd.f32 %v4420, %v247
  %v4453 = vperm.slane %v4421, %v281
  %v4454 = vperm.slane %v4422, %v283
  %v4455 = vsel %vm285, %v4454, %v4453
  %v4456 = vperm.slane %v4423, %v281
  %v4457 = vperm.slane %v4424, %v283
  %v4458 = vsel %vm285, %v4457, %v4456
  %v4459 = vperm.slane %v4425, %v281
  %v4460 = vperm.slane %v4426, %v283
  %v4461 = vsel %vm285, %v4460, %v4459
  %v4462 = vperm.slane %v4427, %v281
  %v4463 = vperm.slane %v4428, %v283
  %v4464 = vsel %vm285, %v4463, %v4462
  %v4465 = vperm.slane %v4429, %v281
  %v4466 = vperm.slane %v4430, %v283
  %v4467 = vsel %vm285, %v4466, %v4465
  %v4468 = vperm.slane %v4431, %v281
  %v4469 = vperm.slane %v4432, %v283
  %v4470 = vsel %vm285, %v4469, %v4468
  %v4471 = vperm.slane %v4433, %v281
  %v4472 = vperm.slane %v4434, %v283
  %v4473 = vsel %vm285, %v4472, %v4471
  %v4474 = vperm.slane %v4435, %v281
  %v4475 = vperm.slane %v4436, %v283
  %v4476 = vsel %vm285, %v4475, %v4474
  %v4477 = vsel %vm308, %v4458, %v4455
  %v4478 = vsel %vm310, %v4461, %v4477
  %v4479 = vsel %vm312, %v4464, %v4478
  %v4480 = vsel %vm314, %v4467, %v4479
  %v4481 = vsel %vm316, %v4470, %v4480
  %v4482 = vsel %vm318, %v4473, %v4481
  %v4483 = vsel %vm320, %v4476, %v4482
  %v4485 = vsel %vm323, %v4483, -inf
  %4486 = vmax.xlane.f32.xlu0 %v4485
  %v4487 = vpop.xlane.xlu0 %4486
  %v4489 = vperm.slane %v4487, 0
  %v4490 = vperm.slane %v4487, 1
  %v4491 = vperm.slane %v4487, 2
  %v4492 = vperm.slane %v4487, 3
  %v4493 = vperm.slane %v4487, 4
  %v4494 = vperm.slane %v4487, 5
  %v4495 = vperm.slane %v4487, 6
  %v4496 = vperm.slane %v4487, 7
  %v4505 = vsub.f32 %v4421, %v4489
  %v4506 = vsub.f32 %v4422, %v4489
  %v4507 = vsub.f32 %v4423, %v4490
  %v4508 = vsub.f32 %v4424, %v4490
  %v4509 = vsub.f32 %v4425, %v4491
  %v4510 = vsub.f32 %v4426, %v4491
  %v4511 = vsub.f32 %v4427, %v4492
  %v4512 = vsub.f32 %v4428, %v4492
  %v4513 = vsub.f32 %v4429, %v4493
  %v4514 = vsub.f32 %v4430, %v4493
  %v4515 = vsub.f32 %v4431, %v4494
  %v4516 = vsub.f32 %v4432, %v4494
  %v4517 = vsub.f32 %v4433, %v4495
  %v4518 = vsub.f32 %v4434, %v4495
  %v4519 = vsub.f32 %v4435, %v4496
  %v4520 = vsub.f32 %v4436, %v4496
  %v4521 = vmul.f32 %v4505, 1.442695
  %v4522 = vpow.pop %v4521
  %v4523 = vmul.f32 %v4506, 1.442695
  %v4524 = vpow.pop %v4523
  %v4525 = vmul.f32 %v4507, 1.442695
  %v4526 = vpow.pop %v4525
  %v4527 = vmul.f32 %v4508, 1.442695
  %v4528 = vpow.pop %v4527
  %v4529 = vmul.f32 %v4509, 1.442695
  %v4530 = vpow.pop %v4529
  %v4531 = vmul.f32 %v4510, 1.442695
  %v4532 = vpow.pop %v4531
  %v4533 = vmul.f32 %v4511, 1.442695
  %v4534 = vpow.pop %v4533
  %v4535 = vmul.f32 %v4512, 1.442695
  %v4536 = vpow.pop %v4535
  %v4537 = vmul.f32 %v4513, 1.442695
  %v4538 = vpow.pop %v4537
  %v4539 = vmul.f32 %v4514, 1.442695
  %v4540 = vpow.pop %v4539
  %v4541 = vmul.f32 %v4515, 1.442695
  %v4542 = vpow.pop %v4541
  %v4543 = vmul.f32 %v4516, 1.442695
  %v4544 = vpow.pop %v4543
  %v4545 = vmul.f32 %v4517, 1.442695
  %v4546 = vpow.pop %v4545
  %v4547 = vmul.f32 %v4518, 1.442695
  %v4548 = vpow.pop %v4547
  %v4549 = vmul.f32 %v4519, 1.442695
  %v4550 = vpow.pop %v4549
  %v4551 = vmul.f32 %v4520, 1.442695
  %v4552 = vpow.pop %v4551
  %4569 = vset.pattern.permute.xlu0 0
  %4570 = vperm.xlu0 %4569, %v4522
  %v4571 = vpop.permute.xlu0 %4570
  %4572 = vset.pattern.permute.xlu0 0
  %4573 = vperm.xlu0 %4572, %v4524
  %v4574 = vpop.permute.xlu0 %4573
  %4575 = vset.pattern.permute.xlu0 0
  %4576 = vperm.xlu0 %4575, %v4526
  %v4577 = vpop.permute.xlu0 %4576
  %4578 = vset.pattern.permute.xlu0 0
  %4579 = vperm.xlu0 %4578, %v4528
  %v4580 = vpop.permute.xlu0 %4579
  %4581 = vset.pattern.permute.xlu0 0
  %4582 = vperm.xlu0 %4581, %v4530
  %v4583 = vpop.permute.xlu0 %4582
  %4584 = vset.pattern.permute.xlu0 0
  %4585 = vperm.xlu0 %4584, %v4532
  %v4586 = vpop.permute.xlu0 %4585
  %4587 = vset.pattern.permute.xlu0 0
  %4588 = vperm.xlu0 %4587, %v4534
  %v4589 = vpop.permute.xlu0 %4588
  %4590 = vset.pattern.permute.xlu0 0
  %4591 = vperm.xlu0 %4590, %v4536
  %v4592 = vpop.permute.xlu0 %4591
  %4593 = vset.pattern.permute.xlu0 0
  %4594 = vperm.xlu0 %4593, %v4538
  %v4595 = vpop.permute.xlu0 %4594
  %4596 = vset.pattern.permute.xlu0 0
  %4597 = vperm.xlu0 %4596, %v4540
  %v4598 = vpop.permute.xlu0 %4597
  %4599 = vset.pattern.permute.xlu0 0
  %4600 = vperm.xlu0 %4599, %v4542
  %v4601 = vpop.permute.xlu0 %4600
  %4602 = vset.pattern.permute.xlu0 0
  %4603 = vperm.xlu0 %4602, %v4544
  %v4604 = vpop.permute.xlu0 %4603
  %4605 = vset.pattern.permute.xlu0 0
  %4606 = vperm.xlu0 %4605, %v4546
  %v4607 = vpop.permute.xlu0 %4606
  %4608 = vset.pattern.permute.xlu0 0
  %4609 = vperm.xlu0 %4608, %v4548
  %v4610 = vpop.permute.xlu0 %4609
  %4611 = vset.pattern.permute.xlu0 0
  %4612 = vperm.xlu0 %4611, %v4550
  %v4613 = vpop.permute.xlu0 %4612
  %4614 = vset.pattern.permute.xlu0 0
  %4615 = vperm.xlu0 %4614, %v4552
  %v4616 = vpop.permute.xlu0 %4615
  %v4617 = vperm.slane %v4571, %v281
  %v4618 = vperm.slane %v4574, %v283
  %v4619 = vsel %vm285, %v4618, %v4617
  %v4620 = vperm.slane %v4577, %v281
  %v4621 = vperm.slane %v4580, %v283
  %v4622 = vsel %vm285, %v4621, %v4620
  %v4623 = vperm.slane %v4583, %v281
  %v4624 = vperm.slane %v4586, %v283
  %v4625 = vsel %vm285, %v4624, %v4623
  %v4626 = vperm.slane %v4589, %v281
  %v4627 = vperm.slane %v4592, %v283
  %v4628 = vsel %vm285, %v4627, %v4626
  %v4629 = vperm.slane %v4595, %v281
  %v4630 = vperm.slane %v4598, %v283
  %v4631 = vsel %vm285, %v4630, %v4629
  %v4632 = vperm.slane %v4601, %v281
  %v4633 = vperm.slane %v4604, %v283
  %v4634 = vsel %vm285, %v4633, %v4632
  %v4635 = vperm.slane %v4607, %v281
  %v4636 = vperm.slane %v4610, %v283
  %v4637 = vsel %vm285, %v4636, %v4635
  %v4638 = vperm.slane %v4613, %v281
  %v4639 = vperm.slane %v4616, %v283
  %v4640 = vsel %vm285, %v4639, %v4638
  %v4641 = vsel %vm308, %v4622, %v4619
  %v4642 = vsel %vm310, %v4625, %v4641
  %v4643 = vsel %vm312, %v4628, %v4642
  %v4644 = vsel %vm314, %v4631, %v4643
  %v4645 = vsel %vm316, %v4634, %v4644
  %v4646 = vsel %vm318, %v4637, %v4645
  %v4647 = vsel %vm320, %v4640, %v4646
  %v4649 = vsel %vm323, %v4647, 0.0
  %4650 = vadd.xlane.f32.xlu0 %v4649
  %v4651 = vpop.xlane.xlu0 %4650
  %v4653 = vperm.slane %v4651, 0
  %v4654 = vperm.slane %v4651, 1
  %v4655 = vperm.slane %v4651, 2
  %v4656 = vperm.slane %v4651, 3
  %v4657 = vperm.slane %v4651, 4
  %v4658 = vperm.slane %v4651, 5
  %v4659 = vperm.slane %v4651, 6
  %v4660 = vperm.slane %v4651, 7
  %v4669 = vrcp.pop %v4653
  %v4670 = vmul.f32 %v4653, %v4669
  %v4671 = vsub.f32 1.0, %v4670
  %v4672 = vmul.f32 %v4669, %v4671
  %v4673 = vadd.f32 %v4669, %v4672
  %vm4674 = vweird.f32 %v4653
  %vm4675 = vweird.f32 %v4669
  %vm4676 = vmor %vm4674, %vm4675
  %v4677 = vsel %vm4676, %v4669, %v4673
  %v4678 = vand.u32 2147483647, %v4653
  %vm4679 = vcmp.eq.f32.partialorder %v4678, 8.507059e+37
  %v4680 = vand.u32 %v4653, 2147483648
  %v4681 = vor.u32 1.1754944e-38, %v4680
  %v4682 = vsel %vm4679, %v4681, %v4677
  %v4683 = vmul.f32 %v4522, %v4682
  %v4684 = vmul.f32 %v4524, %v4682
  %v4685 = vrcp.pop %v4654
  %v4686 = vmul.f32 %v4654, %v4685
  %v4687 = vsub.f32 1.0, %v4686
  %v4688 = vmul.f32 %v4685, %v4687
  %v4689 = vadd.f32 %v4685, %v4688
  %vm4690 = vweird.f32 %v4654
  %vm4691 = vweird.f32 %v4685
  %vm4692 = vmor %vm4690, %vm4691
  %v4693 = vsel %vm4692, %v4685, %v4689
  %v4694 = vand.u32 2147483647, %v4654
  %vm4695 = vcmp.eq.f32.partialorder %v4694, 8.507059e+37
  %v4696 = vand.u32 %v4654, 2147483648
  %v4697 = vor.u32 1.1754944e-38, %v4696
  %v4698 = vsel %vm4695, %v4697, %v4693
  %v4699 = vmul.f32 %v4526, %v4698
  %v4700 = vmul.f32 %v4528, %v4698
  %v4701 = vrcp.pop %v4655
  %v4702 = vmul.f32 %v4655, %v4701
  %v4703 = vsub.f32 1.0, %v4702
  %v4704 = vmul.f32 %v4701, %v4703
  %v4705 = vadd.f32 %v4701, %v4704
  %vm4706 = vweird.f32 %v4655
  %vm4707 = vweird.f32 %v4701
  %vm4708 = vmor %vm4706, %vm4707
  %v4709 = vsel %vm4708, %v4701, %v4705
  %v4710 = vand.u32 2147483647, %v4655
  %vm4711 = vcmp.eq.f32.partialorder %v4710, 8.507059e+37
  %v4712 = vand.u32 %v4655, 2147483648
  %v4713 = vor.u32 1.1754944e-38, %v4712
  %v4714 = vsel %vm4711, %v4713, %v4709
  %v4715 = vmul.f32 %v4530, %v4714
  %v4716 = vmul.f32 %v4532, %v4714
  %v4717 = vrcp.pop %v4656
  %v4718 = vmul.f32 %v4656, %v4717
  %v4719 = vsub.f32 1.0, %v4718
  %v4720 = vmul.f32 %v4717, %v4719
  %v4721 = vadd.f32 %v4717, %v4720
  %vm4722 = vweird.f32 %v4656
  %vm4723 = vweird.f32 %v4717
  %vm4724 = vmor %vm4722, %vm4723
  %v4725 = vsel %vm4724, %v4717, %v4721
  %v4726 = vand.u32 2147483647, %v4656
  %vm4727 = vcmp.eq.f32.partialorder %v4726, 8.507059e+37
  %v4728 = vand.u32 %v4656, 2147483648
  %v4729 = vor.u32 1.1754944e-38, %v4728
  %v4730 = vsel %vm4727, %v4729, %v4725
  %v4731 = vmul.f32 %v4534, %v4730
  %v4732 = vmul.f32 %v4536, %v4730
  %v4733 = vrcp.pop %v4657
  %v4734 = vmul.f32 %v4657, %v4733
  %v4735 = vsub.f32 1.0, %v4734
  %v4736 = vmul.f32 %v4733, %v4735
  %v4737 = vadd.f32 %v4733, %v4736
  %vm4738 = vweird.f32 %v4657
  %vm4739 = vweird.f32 %v4733
  %vm4740 = vmor %vm4738, %vm4739
  %v4741 = vsel %vm4740, %v4733, %v4737
  %v4742 = vand.u32 2147483647, %v4657
  %vm4743 = vcmp.eq.f32.partialorder %v4742, 8.507059e+37
  %v4744 = vand.u32 %v4657, 2147483648
  %v4745 = vor.u32 1.1754944e-38, %v4744
  %v4746 = vsel %vm4743, %v4745, %v4741
  %v4747 = vmul.f32 %v4538, %v4746
  %v4748 = vmul.f32 %v4540, %v4746
  %v4749 = vrcp.pop %v4658
  %v4750 = vmul.f32 %v4658, %v4749
  %v4751 = vsub.f32 1.0, %v4750
  %v4752 = vmul.f32 %v4749, %v4751
  %v4753 = vadd.f32 %v4749, %v4752
  %vm4754 = vweird.f32 %v4658
  %vm4755 = vweird.f32 %v4749
  %vm4756 = vmor %vm4754, %vm4755
  %v4757 = vsel %vm4756, %v4749, %v4753
  %v4758 = vand.u32 2147483647, %v4658
  %vm4759 = vcmp.eq.f32.partialorder %v4758, 8.507059e+37
  %v4760 = vand.u32 %v4658, 2147483648
  %v4761 = vor.u32 1.1754944e-38, %v4760
  %v4762 = vsel %vm4759, %v4761, %v4757
  %v4763 = vmul.f32 %v4542, %v4762
  %v4764 = vmul.f32 %v4544, %v4762
  %v4765 = vrcp.pop %v4659
  %v4766 = vmul.f32 %v4659, %v4765
  %v4767 = vsub.f32 1.0, %v4766
  %v4768 = vmul.f32 %v4765, %v4767
  %v4769 = vadd.f32 %v4765, %v4768
  %vm4770 = vweird.f32 %v4659
  %vm4771 = vweird.f32 %v4765
  %vm4772 = vmor %vm4770, %vm4771
  %v4773 = vsel %vm4772, %v4765, %v4769
  %v4774 = vand.u32 2147483647, %v4659
  %vm4775 = vcmp.eq.f32.partialorder %v4774, 8.507059e+37
  %v4776 = vand.u32 %v4659, 2147483648
  %v4777 = vor.u32 1.1754944e-38, %v4776
  %v4778 = vsel %vm4775, %v4777, %v4773
  %v4779 = vmul.f32 %v4546, %v4778
  %v4780 = vmul.f32 %v4548, %v4778
  %v4781 = vrcp.pop %v4660
  %v4782 = vmul.f32 %v4660, %v4781
  %v4783 = vsub.f32 1.0, %v4782
  %v4784 = vmul.f32 %v4781, %v4783
  %v4785 = vadd.f32 %v4781, %v4784
  %vm4786 = vweird.f32 %v4660
  %vm4787 = vweird.f32 %v4781
  %vm4788 = vmor %vm4786, %vm4787
  %v4789 = vsel %vm4788, %v4781, %v4785
  %v4790 = vand.u32 2147483647, %v4660
  %vm4791 = vcmp.eq.f32.partialorder %v4790, 8.507059e+37
  %v4792 = vand.u32 %v4660, 2147483648
  %v4793 = vor.u32 1.1754944e-38, %v4792
  %v4794 = vsel %vm4791, %v4793, %v4789
  %v4795 = vmul.f32 %v4550, %v4794
  %v4796 = vmul.f32 %v4552, %v4794
  %v4797 = vld [vmem:[%s0] sm:$0xff]
  %v4798 = vld [vmem:[%s0 + $0x8] sm:$0xff]
  %v4799 = vld [vmem:[%s0 + $0x10] sm:$0xff]
  %v4800 = vld [vmem:[%s0 + $0x18] sm:$0xff]
  %v4801 = vld [vmem:[%s0 + $0x20] sm:$0xff]
  %v4802 = vld [vmem:[%s0 + $0x28] sm:$0xff]
  %v4803 = vld [vmem:[%s0 + $0x30] sm:$0xff]
  %v4804 = vld [vmem:[%s0 + $0x38] sm:$0xff]
  %v4805 = vld [vmem:[%s0 + $0x40] sm:$0xff]
  %v4806 = vld [vmem:[%s0 + $0x48] sm:$0xff]
  %v4807 = vld [vmem:[%s0 + $0x50] sm:$0xff]
  %v4808 = vld [vmem:[%s0 + $0x58] sm:$0xff]
  %v4809 = vld [vmem:[%s0 + $0x60] sm:$0xff]
  %v4810 = vld [vmem:[%s0 + $0x68] sm:$0xff]
  %v4811 = vld [vmem:[%s0 + $0x70] sm:$0xff]
  %v4812 = vld [vmem:[%s0 + $0x78] sm:$0xff]
  %4814 = vset.pattern.permute.xlu0 0
  %4815 = vperm.xlu0 %4814, %v4683
  %v4816 = vpop.permute.xlu0 %4815
  %4819 = vset.pattern.permute.xlu0 0
  %4820 = vperm.xlu0 %4819, %v4684
  %v4821 = vpop.permute.xlu0 %4820
  %4824 = vset.pattern.permute.xlu0 0
  %4825 = vperm.xlu0 %4824, %v4699
  %v4826 = vpop.permute.xlu0 %4825
  %4829 = vset.pattern.permute.xlu0 0
  %4830 = vperm.xlu0 %4829, %v4700
  %v4831 = vpop.permute.xlu0 %4830
  %4834 = vset.pattern.permute.xlu0 0
  %4835 = vperm.xlu0 %4834, %v4715
  %v4836 = vpop.permute.xlu0 %4835
  %4839 = vset.pattern.permute.xlu0 0
  %4840 = vperm.xlu0 %4839, %v4716
  %v4841 = vpop.permute.xlu0 %4840
  %4844 = vset.pattern.permute.xlu0 0
  %4845 = vperm.xlu0 %4844, %v4731
  %v4846 = vpop.permute.xlu0 %4845
  %4849 = vset.pattern.permute.xlu0 0
  %4850 = vperm.xlu0 %4849, %v4732
  %v4851 = vpop.permute.xlu0 %4850
  %4854 = vset.pattern.permute.xlu0 0
  %4855 = vperm.xlu0 %4854, %v4747
  %v4856 = vpop.permute.xlu0 %4855
  %4859 = vset.pattern.permute.xlu0 0
  %4860 = vperm.xlu0 %4859, %v4748
  %v4861 = vpop.permute.xlu0 %4860
  %4864 = vset.pattern.permute.xlu0 0
  %4865 = vperm.xlu0 %4864, %v4763
  %v4866 = vpop.permute.xlu0 %4865
  %4869 = vset.pattern.permute.xlu0 0
  %4870 = vperm.xlu0 %4869, %v4764
  %v4871 = vpop.permute.xlu0 %4870
  %4874 = vset.pattern.permute.xlu0 0
  %4875 = vperm.xlu0 %4874, %v4779
  %v4876 = vpop.permute.xlu0 %4875
  %4879 = vset.pattern.permute.xlu0 0
  %4880 = vperm.xlu0 %4879, %v4780
  %v4881 = vpop.permute.xlu0 %4880
  %4884 = vset.pattern.permute.xlu0 0
  %4885 = vperm.xlu0 %4884, %v4795
  %v4886 = vpop.permute.xlu0 %4885
  %4889 = vset.pattern.permute.xlu0 0
  %4890 = vperm.xlu0 %4889, %v4796
  %v4891 = vpop.permute.xlu0 %4890
  %v4893 = vmul.f32 %v4797, %v4816
  %v4894 = vmul.f32 %v4798, %v4821
  %v4895 = vmul.f32 %v4799, %v4826
  %v4896 = vmul.f32 %v4800, %v4831
  %v4897 = vmul.f32 %v4801, %v4836
  %v4898 = vmul.f32 %v4802, %v4841
  %v4899 = vmul.f32 %v4803, %v4846
  %v4900 = vmul.f32 %v4804, %v4851
  %v4901 = vmul.f32 %v4805, %v4856
  %v4902 = vmul.f32 %v4806, %v4861
  %v4903 = vmul.f32 %v4807, %v4866
  %v4904 = vmul.f32 %v4808, %v4871
  %v4905 = vmul.f32 %v4809, %v4876
  %v4906 = vmul.f32 %v4810, %v4881
  %v4907 = vmul.f32 %v4811, %v4886
  %v4908 = vmul.f32 %v4812, %v4891
  %v4909 = vadd.f32 %v4893, %v4894
  %v4910 = vrot.slane %v4909, 4
  %v4911 = vadd.f32 %v4909, %v4910
  %v4912 = vrot.slane %v4911, 2
  %v4913 = vadd.f32 %v4911, %v4912
  %v4914 = vrot.slane %v4913, 1
  %v4915 = vadd.f32 %v4913, %v4914
  %v4916 = vadd.f32 %v4895, %v4896
  %v4917 = vrot.slane %v4916, 4
  %v4918 = vadd.f32 %v4916, %v4917
  %v4919 = vrot.slane %v4918, 2
  %v4920 = vadd.f32 %v4918, %v4919
  %v4921 = vrot.slane %v4920, 1
  %v4922 = vadd.f32 %v4920, %v4921
  %v4923 = vadd.f32 %v4897, %v4898
  %v4924 = vrot.slane %v4923, 4
  %v4925 = vadd.f32 %v4923, %v4924
  %v4926 = vrot.slane %v4925, 2
  %v4927 = vadd.f32 %v4925, %v4926
  %v4928 = vrot.slane %v4927, 1
  %v4929 = vadd.f32 %v4927, %v4928
  %v4930 = vadd.f32 %v4899, %v4900
  %v4931 = vrot.slane %v4930, 4
  %v4932 = vadd.f32 %v4930, %v4931
  %v4933 = vrot.slane %v4932, 2
  %v4934 = vadd.f32 %v4932, %v4933
  %v4935 = vrot.slane %v4934, 1
  %v4936 = vadd.f32 %v4934, %v4935
  %v4937 = vadd.f32 %v4901, %v4902
  %v4938 = vrot.slane %v4937, 4
  %v4939 = vadd.f32 %v4937, %v4938
  %v4940 = vrot.slane %v4939, 2
  %v4941 = vadd.f32 %v4939, %v4940
  %v4942 = vrot.slane %v4941, 1
  %v4943 = vadd.f32 %v4941, %v4942
  %v4944 = vadd.f32 %v4903, %v4904
  %v4945 = vrot.slane %v4944, 4
  %v4946 = vadd.f32 %v4944, %v4945
  %v4947 = vrot.slane %v4946, 2
  %v4948 = vadd.f32 %v4946, %v4947
  %v4949 = vrot.slane %v4948, 1
  %v4950 = vadd.f32 %v4948, %v4949
  %v4951 = vadd.f32 %v4905, %v4906
  %v4952 = vrot.slane %v4951, 4
  %v4953 = vadd.f32 %v4951, %v4952
  %v4954 = vrot.slane %v4953, 2
  %v4955 = vadd.f32 %v4953, %v4954
  %v4956 = vrot.slane %v4955, 1
  %v4957 = vadd.f32 %v4955, %v4956
  %v4958 = vadd.f32 %v4907, %v4908
  %v4959 = vrot.slane %v4958, 4
  %v4960 = vadd.f32 %v4958, %v4959
  %v4961 = vrot.slane %v4960, 2
  %v4962 = vadd.f32 %v4960, %v4961
  %v4963 = vrot.slane %v4962, 1
  %v4964 = vadd.f32 %v4962, %v4963
  %v4965 = vpack.c.bf16 %v4915, %v4915
  %v4966 = vpack.c.bf16 %v4922, %v4922
  %v4967 = vpack.c.bf16 %v4929, %v4929
  %v4968 = vpack.c.bf16 %v4936, %v4936
  %v4969 = vpack.c.bf16 %v4943, %v4943
  %v4970 = vpack.c.bf16 %v4950, %v4950
  %v4971 = vpack.c.bf16 %v4957, %v4957
  %v4972 = vpack.c.bf16 %v4964, %v4964
  %v4981 = vperm.slane %v4965, 0
  %v4982 = vperm.slane %v4966, 0
  %v4983 = vperm.slane %v4967, 0
  %v4984 = vperm.slane %v4968, 0
  %v4985 = vperm.slane %v4969, 0
  %v4986 = vperm.slane %v4970, 0
  %v4987 = vperm.slane %v4971, 0
  %v4988 = vperm.slane %v4972, 0
  %v4989 = vunpack.c.l.b16 %v4981
  %v4990 = vunpack.c.l.b16 %v4982
  %v4991 = vunpack.c.l.b16 %v4983
  %v4992 = vunpack.c.l.b16 %v4984
  %v4993 = vunpack.c.l.b16 %v4985
  %v4994 = vunpack.c.l.b16 %v4986
  %v4995 = vunpack.c.l.b16 %v4987
  %v4996 = vunpack.c.l.b16 %v4988
  %v4997 = vsel %vm308, %v4990, %v4989
  %v4998 = vsel %vm310, %v4991, %v4997
  %v4999 = vsel %vm312, %v4992, %v4998
  %v5000 = vsel %vm314, %v4993, %v4999
  %v5001 = vsel %vm316, %v4994, %v5000
  %v5002 = vsel %vm318, %v4995, %v5001
  %v5003 = vsel %vm320, %v4996, %v5002
  %v5004 = vpack.c.b16 %v5003, %v5003
  %s5006 = scalar_lea.vmem %s2, 96
  %v5007 = vld [vmem:[%s5006] sm:$0xff]
  %v5008 = vld [vmem:[%s5006 + $0x8] sm:$0xff]
  %v5009 = vld [vmem:[%s5006 + $0x10] sm:$0xff]
  %v5010 = vld [vmem:[%s5006 + $0x18] sm:$0xff]
  %v5011 = vld [vmem:[%s9] sm:$0xff]
  %v5012 = vld [vmem:[%s9 + $0x8] sm:$0xff]
  %v5013 = vld [vmem:[%s9 + $0x10] sm:$0xff]
  %v5014 = vld [vmem:[%s9 + $0x18] sm:$0xff]
  %v5015 = vld [vmem:[%s9 + $0x20] sm:$0xff]
  %v5016 = vld [vmem:[%s9 + $0x28] sm:$0xff]
  %v5017 = vld [vmem:[%s9 + $0x30] sm:$0xff]
  %v5018 = vld [vmem:[%s9 + $0x38] sm:$0xff]
  %v5019 = vld [vmem:[%s9 + $0x40] sm:$0xff]
  %v5020 = vld [vmem:[%s9 + $0x48] sm:$0xff]
  %v5021 = vld [vmem:[%s9 + $0x50] sm:$0xff]
  %v5022 = vld [vmem:[%s9 + $0x58] sm:$0xff]
  %v5023 = vld [vmem:[%s9 + $0x60] sm:$0xff]
  %v5024 = vld [vmem:[%s9 + $0x68] sm:$0xff]
  %v5025 = vld [vmem:[%s9 + $0x70] sm:$0xff]
  %v5026 = vld [vmem:[%s9 + $0x78] sm:$0xff]
  %v5027 = vld [vmem:[%s9 + $0x80] sm:$0xff]
  %v5028 = vld [vmem:[%s9 + $0x88] sm:$0xff]
  %v5029 = vld [vmem:[%s9 + $0x90] sm:$0xff]
  %v5030 = vld [vmem:[%s9 + $0x98] sm:$0xff]
  %v5031 = vld [vmem:[%s9 + $0xa0] sm:$0xff]
  %v5032 = vld [vmem:[%s9 + $0xa8] sm:$0xff]
  %v5033 = vld [vmem:[%s9 + $0xb0] sm:$0xff]
  %v5034 = vld [vmem:[%s9 + $0xb8] sm:$0xff]
  %v5035 = vld [vmem:[%s9 + $0xc0] sm:$0xff]
  %v5036 = vld [vmem:[%s9 + $0xc8] sm:$0xff]
  %v5037 = vld [vmem:[%s9 + $0xd0] sm:$0xff]
  %v5038 = vld [vmem:[%s9 + $0xd8] sm:$0xff]
  %v5039 = vld [vmem:[%s9 + $0xe0] sm:$0xff]
  %v5040 = vld [vmem:[%s9 + $0xe8] sm:$0xff]
  %v5041 = vld [vmem:[%s9 + $0xf0] sm:$0xff]
  %v5042 = vld [vmem:[%s9 + $0xf8] sm:$0xff]
  %v5043 = vld [vmem:[%s9 + $0x100] sm:$0xff]
  %v5044 = vld [vmem:[%s9 + $0x108] sm:$0xff]
  %v5045 = vld [vmem:[%s9 + $0x110] sm:$0xff]
  %v5046 = vld [vmem:[%s9 + $0x118] sm:$0xff]
  %v5047 = vld [vmem:[%s9 + $0x120] sm:$0xff]
  %v5048 = vld [vmem:[%s9 + $0x128] sm:$0xff]
  %v5049 = vld [vmem:[%s9 + $0x130] sm:$0xff]
  %v5050 = vld [vmem:[%s9 + $0x138] sm:$0xff]
  %v5051 = vld [vmem:[%s9 + $0x140] sm:$0xff]
  %v5052 = vld [vmem:[%s9 + $0x148] sm:$0xff]
  %v5053 = vld [vmem:[%s9 + $0x150] sm:$0xff]
  %v5054 = vld [vmem:[%s9 + $0x158] sm:$0xff]
  %v5055 = vld [vmem:[%s9 + $0x160] sm:$0xff]
  %v5056 = vld [vmem:[%s9 + $0x168] sm:$0xff]
  %v5057 = vld [vmem:[%s9 + $0x170] sm:$0xff]
  %v5058 = vld [vmem:[%s9 + $0x178] sm:$0xff]
  %v5059 = vld [vmem:[%s9 + $0x180] sm:$0xff]
  %v5060 = vld [vmem:[%s9 + $0x188] sm:$0xff]
  %v5061 = vld [vmem:[%s9 + $0x190] sm:$0xff]
  %v5062 = vld [vmem:[%s9 + $0x198] sm:$0xff]
  %v5063 = vld [vmem:[%s9 + $0x1a0] sm:$0xff]
  %v5064 = vld [vmem:[%s9 + $0x1a8] sm:$0xff]
  %v5065 = vld [vmem:[%s9 + $0x1b0] sm:$0xff]
  %v5066 = vld [vmem:[%s9 + $0x1b8] sm:$0xff]
  %v5067 = vld [vmem:[%s9 + $0x1c0] sm:$0xff]
  %v5068 = vld [vmem:[%s9 + $0x1c8] sm:$0xff]
  %v5069 = vld [vmem:[%s9 + $0x1d0] sm:$0xff]
  %v5070 = vld [vmem:[%s9 + $0x1d8] sm:$0xff]
  %v5071 = vld [vmem:[%s9 + $0x1e0] sm:$0xff]
  %v5072 = vld [vmem:[%s9 + $0x1e8] sm:$0xff]
  %v5073 = vld [vmem:[%s9 + $0x1f0] sm:$0xff]
  %v5074 = vld [vmem:[%s9 + $0x1f8] sm:$0xff]
  %v5139 = vunpack.c.l.b16 %v5011
  %v5140 = vunpack.c.h.b16 %v5011
  %v5141 = vunpack.c.l.b16 %v5012
  %v5142 = vunpack.c.h.b16 %v5012
  %v5143 = vunpack.c.l.b16 %v5013
  %v5144 = vunpack.c.h.b16 %v5013
  %v5145 = vunpack.c.l.b16 %v5014
  %v5146 = vunpack.c.h.b16 %v5014
  %v5147 = vunpack.c.l.b16 %v5015
  %v5148 = vunpack.c.h.b16 %v5015
  %v5149 = vunpack.c.l.b16 %v5016
  %v5150 = vunpack.c.h.b16 %v5016
  %v5151 = vunpack.c.l.b16 %v5017
  %v5152 = vunpack.c.h.b16 %v5017
  %v5153 = vunpack.c.l.b16 %v5018
  %v5154 = vunpack.c.h.b16 %v5018
  %v5155 = vunpack.c.l.b16 %v5019
  %v5156 = vunpack.c.h.b16 %v5019
  %v5157 = vunpack.c.l.b16 %v5020
  %v5158 = vunpack.c.h.b16 %v5020
  %v5159 = vunpack.c.l.b16 %v5021
  %v5160 = vunpack.c.h.b16 %v5021
  %v5161 = vunpack.c.l.b16 %v5022
  %v5162 = vunpack.c.h.b16 %v5022
  %v5163 = vunpack.c.l.b16 %v5023
  %v5164 = vunpack.c.h.b16 %v5023
  %v5165 = vunpack.c.l.b16 %v5024
  %v5166 = vunpack.c.h.b16 %v5024
  %v5167 = vunpack.c.l.b16 %v5025
  %v5168 = vunpack.c.h.b16 %v5025
  %v5169 = vunpack.c.l.b16 %v5026
  %v5170 = vunpack.c.h.b16 %v5026
  %v5171 = vunpack.c.l.b16 %v5027
  %v5172 = vunpack.c.h.b16 %v5027
  %v5173 = vunpack.c.l.b16 %v5028
  %v5174 = vunpack.c.h.b16 %v5028
  %v5175 = vunpack.c.l.b16 %v5029
  %v5176 = vunpack.c.h.b16 %v5029
  %v5177 = vunpack.c.l.b16 %v5030
  %v5178 = vunpack.c.h.b16 %v5030
  %v5179 = vunpack.c.l.b16 %v5031
  %v5180 = vunpack.c.h.b16 %v5031
  %v5181 = vunpack.c.l.b16 %v5032
  %v5182 = vunpack.c.h.b16 %v5032
  %v5183 = vunpack.c.l.b16 %v5033
  %v5184 = vunpack.c.h.b16 %v5033
  %v5185 = vunpack.c.l.b16 %v5034
  %v5186 = vunpack.c.h.b16 %v5034
  %v5187 = vunpack.c.l.b16 %v5035
  %v5188 = vunpack.c.h.b16 %v5035
  %v5189 = vunpack.c.l.b16 %v5036
  %v5190 = vunpack.c.h.b16 %v5036
  %v5191 = vunpack.c.l.b16 %v5037
  %v5192 = vunpack.c.h.b16 %v5037
  %v5193 = vunpack.c.l.b16 %v5038
  %v5194 = vunpack.c.h.b16 %v5038
  %v5195 = vunpack.c.l.b16 %v5039
  %v5196 = vunpack.c.h.b16 %v5039
  %v5197 = vunpack.c.l.b16 %v5040
  %v5198 = vunpack.c.h.b16 %v5040
  %v5199 = vunpack.c.l.b16 %v5041
  %v5200 = vunpack.c.h.b16 %v5041
  %v5201 = vunpack.c.l.b16 %v5042
  %v5202 = vunpack.c.h.b16 %v5042
  %v5203 = vunpack.c.l.b16 %v5043
  %v5204 = vunpack.c.h.b16 %v5043
  %v5205 = vunpack.c.l.b16 %v5044
  %v5206 = vunpack.c.h.b16 %v5044
  %v5207 = vunpack.c.l.b16 %v5045
  %v5208 = vunpack.c.h.b16 %v5045
  %v5209 = vunpack.c.l.b16 %v5046
  %v5210 = vunpack.c.h.b16 %v5046
  %v5211 = vunpack.c.l.b16 %v5047
  %v5212 = vunpack.c.h.b16 %v5047
  %v5213 = vunpack.c.l.b16 %v5048
  %v5214 = vunpack.c.h.b16 %v5048
  %v5215 = vunpack.c.l.b16 %v5049
  %v5216 = vunpack.c.h.b16 %v5049
  %v5217 = vunpack.c.l.b16 %v5050
  %v5218 = vunpack.c.h.b16 %v5050
  %v5219 = vunpack.c.l.b16 %v5051
  %v5220 = vunpack.c.h.b16 %v5051
  %v5221 = vunpack.c.l.b16 %v5052
  %v5222 = vunpack.c.h.b16 %v5052
  %v5223 = vunpack.c.l.b16 %v5053
  %v5224 = vunpack.c.h.b16 %v5053
  %v5225 = vunpack.c.l.b16 %v5054
  %v5226 = vunpack.c.h.b16 %v5054
  %v5227 = vunpack.c.l.b16 %v5055
  %v5228 = vunpack.c.h.b16 %v5055
  %v5229 = vunpack.c.l.b16 %v5056
  %v5230 = vunpack.c.h.b16 %v5056
  %v5231 = vunpack.c.l.b16 %v5057
  %v5232 = vunpack.c.h.b16 %v5057
  %v5233 = vunpack.c.l.b16 %v5058
  %v5234 = vunpack.c.h.b16 %v5058
  %v5235 = vunpack.c.l.b16 %v5059
  %v5236 = vunpack.c.h.b16 %v5059
  %v5237 = vunpack.c.l.b16 %v5060
  %v5238 = vunpack.c.h.b16 %v5060
  %v5239 = vunpack.c.l.b16 %v5061
  %v5240 = vunpack.c.h.b16 %v5061
  %v5241 = vunpack.c.l.b16 %v5062
  %v5242 = vunpack.c.h.b16 %v5062
  %v5243 = vunpack.c.l.b16 %v5063
  %v5244 = vunpack.c.h.b16 %v5063
  %v5245 = vunpack.c.l.b16 %v5064
  %v5246 = vunpack.c.h.b16 %v5064
  %v5247 = vunpack.c.l.b16 %v5065
  %v5248 = vunpack.c.h.b16 %v5065
  %v5249 = vunpack.c.l.b16 %v5066
  %v5250 = vunpack.c.h.b16 %v5066
  %v5251 = vunpack.c.l.b16 %v5067
  %v5252 = vunpack.c.h.b16 %v5067
  %v5253 = vunpack.c.l.b16 %v5068
  %v5254 = vunpack.c.h.b16 %v5068
  %v5255 = vunpack.c.l.b16 %v5069
  %v5256 = vunpack.c.h.b16 %v5069
  %v5257 = vunpack.c.l.b16 %v5070
  %v5258 = vunpack.c.h.b16 %v5070
  %v5259 = vunpack.c.l.b16 %v5071
  %v5260 = vunpack.c.h.b16 %v5071
  %v5261 = vunpack.c.l.b16 %v5072
  %v5262 = vunpack.c.h.b16 %v5072
  %v5263 = vunpack.c.l.b16 %v5073
  %v5264 = vunpack.c.h.b16 %v5073
  %v5265 = vunpack.c.l.b16 %v5074
  %v5266 = vunpack.c.h.b16 %v5074
  %v5267 = vpack.c.b16 %v5143, %v5139
  %v5268 = vpack.c.b16 %v5144, %v5140
  %v5269 = vpack.c.b16 %v5145, %v5141
  %v5270 = vpack.c.b16 %v5146, %v5142
  %v5271 = vpack.c.b16 %v5151, %v5147
  %v5272 = vpack.c.b16 %v5152, %v5148
  %v5273 = vpack.c.b16 %v5153, %v5149
  %v5274 = vpack.c.b16 %v5154, %v5150
  %v5275 = vpack.c.b16 %v5159, %v5155
  %v5276 = vpack.c.b16 %v5160, %v5156
  %v5277 = vpack.c.b16 %v5161, %v5157
  %v5278 = vpack.c.b16 %v5162, %v5158
  %v5279 = vpack.c.b16 %v5167, %v5163
  %v5280 = vpack.c.b16 %v5168, %v5164
  %v5281 = vpack.c.b16 %v5169, %v5165
  %v5282 = vpack.c.b16 %v5170, %v5166
  %v5283 = vpack.c.b16 %v5175, %v5171
  %v5284 = vpack.c.b16 %v5176, %v5172
  %v5285 = vpack.c.b16 %v5177, %v5173
  %v5286 = vpack.c.b16 %v5178, %v5174
  %v5287 = vpack.c.b16 %v5183, %v5179
  %v5288 = vpack.c.b16 %v5184, %v5180
  %v5289 = vpack.c.b16 %v5185, %v5181
  %v5290 = vpack.c.b16 %v5186, %v5182
  %v5291 = vpack.c.b16 %v5191, %v5187
  %v5292 = vpack.c.b16 %v5192, %v5188
  %v5293 = vpack.c.b16 %v5193, %v5189
  %v5294 = vpack.c.b16 %v5194, %v5190
  %v5295 = vpack.c.b16 %v5199, %v5195
  %v5296 = vpack.c.b16 %v5200, %v5196
  %v5297 = vpack.c.b16 %v5201, %v5197
  %v5298 = vpack.c.b16 %v5202, %v5198
  %v5299 = vpack.c.b16 %v5207, %v5203
  %v5300 = vpack.c.b16 %v5208, %v5204
  %v5301 = vpack.c.b16 %v5209, %v5205
  %v5302 = vpack.c.b16 %v5210, %v5206
  %v5303 = vpack.c.b16 %v5215, %v5211
  %v5304 = vpack.c.b16 %v5216, %v5212
  %v5305 = vpack.c.b16 %v5217, %v5213
  %v5306 = vpack.c.b16 %v5218, %v5214
  %v5307 = vpack.c.b16 %v5223, %v5219
  %v5308 = vpack.c.b16 %v5224, %v5220
  %v5309 = vpack.c.b16 %v5225, %v5221
  %v5310 = vpack.c.b16 %v5226, %v5222
  %v5311 = vpack.c.b16 %v5231, %v5227
  %v5312 = vpack.c.b16 %v5232, %v5228
  %v5313 = vpack.c.b16 %v5233, %v5229
  %v5314 = vpack.c.b16 %v5234, %v5230
  %v5315 = vpack.c.b16 %v5239, %v5235
  %v5316 = vpack.c.b16 %v5240, %v5236
  %v5317 = vpack.c.b16 %v5241, %v5237
  %v5318 = vpack.c.b16 %v5242, %v5238
  %v5319 = vpack.c.b16 %v5247, %v5243
  %v5320 = vpack.c.b16 %v5248, %v5244
  %v5321 = vpack.c.b16 %v5249, %v5245
  %v5322 = vpack.c.b16 %v5250, %v5246
  %v5323 = vpack.c.b16 %v5255, %v5251
  %v5324 = vpack.c.b16 %v5256, %v5252
  %v5325 = vpack.c.b16 %v5257, %v5253
  %v5326 = vpack.c.b16 %v5258, %v5254
  %v5327 = vpack.c.b16 %v5263, %v5259
  %v5328 = vpack.c.b16 %v5264, %v5260
  %v5329 = vpack.c.b16 %v5265, %v5261
  %v5330 = vpack.c.b16 %v5266, %v5262
  %5395 = vmatpush.bf16.msra.mxu0 %v5295
  %5396 = vmatpush.bf16.msra.mxu0 %v5291
  %5397 = vmatpush.bf16.msra.mxu0 %v5287
  %5398 = vmatpush.bf16.msra.mxu0 %v5283
  %5399 = vmatpush.bf16.msra.mxu0 %v5279
  %5400 = vmatpush.bf16.msra.mxu0 %v5275
  %5401 = vmatpush.bf16.msra.mxu0 %v5271
  %5402 = vmatpush.bf16.msra.mxu0 %v5267
  %5403 = vmatmul.bf16.gmra.mxu0 %v5004
  %v5404 = vpop.f32.mrf.mxu0
  %v5405 = vadd.f32 0.0, %v5404
  %v5406 = vpop.f32.mrf.mxu0
  %5407 = vdwg.mxu0
  %5408 = vmatpush.bf16.msra.mxu0 %v5327
  %5409 = vmatpush.bf16.msra.mxu0 %v5323
  %5410 = vmatpush.bf16.msra.mxu0 %v5319
  %5411 = vmatpush.bf16.msra.mxu0 %v5315
  %5412 = vmatpush.bf16.msra.mxu0 %v5311
  %5413 = vmatpush.bf16.msra.mxu0 %v5307
  %5414 = vmatpush.bf16.msra.mxu0 %v5303
  %5415 = vmatpush.bf16.msra.mxu0 %v5299
  %5416 = vmatmul.bf16.gmra.mxu0 %v4215
  %v5417 = vpop.f32.mrf.mxu0
  %v5418 = vadd.f32 %v5405, %v5417
  %v5419 = vpop.f32.mrf.mxu0
  %5420 = vdwg.mxu0
  %5421 = vmatpush.bf16.msra.mxu0 %v5296
  %5422 = vmatpush.bf16.msra.mxu0 %v5292
  %5423 = vmatpush.bf16.msra.mxu0 %v5288
  %5424 = vmatpush.bf16.msra.mxu0 %v5284
  %5425 = vmatpush.bf16.msra.mxu0 %v5280
  %5426 = vmatpush.bf16.msra.mxu0 %v5276
  %5427 = vmatpush.bf16.msra.mxu0 %v5272
  %5428 = vmatpush.bf16.msra.mxu0 %v5268
  %5429 = vmatmul.bf16.gmra.mxu0 %v5004
  %v5430 = vpop.f32.mrf.mxu0
  %v5431 = vadd.f32 0.0, %v5430
  %v5432 = vpop.f32.mrf.mxu0
  %5433 = vdwg.mxu0
  %5434 = vmatpush.bf16.msra.mxu0 %v5328
  %5435 = vmatpush.bf16.msra.mxu0 %v5324
  %5436 = vmatpush.bf16.msra.mxu0 %v5320
  %5437 = vmatpush.bf16.msra.mxu0 %v5316
  %5438 = vmatpush.bf16.msra.mxu0 %v5312
  %5439 = vmatpush.bf16.msra.mxu0 %v5308
  %5440 = vmatpush.bf16.msra.mxu0 %v5304
  %5441 = vmatpush.bf16.msra.mxu0 %v5300
  %5442 = vmatmul.bf16.gmra.mxu0 %v4215
  %v5443 = vpop.f32.mrf.mxu0
  %v5444 = vadd.f32 %v5431, %v5443
  %v5445 = vpop.f32.mrf.mxu0
  %5446 = vdwg.mxu0
  %5447 = vmatpush.bf16.msra.mxu0 %v5297
  %5448 = vmatpush.bf16.msra.mxu0 %v5293
  %5449 = vmatpush.bf16.msra.mxu0 %v5289
  %5450 = vmatpush.bf16.msra.mxu0 %v5285
  %5451 = vmatpush.bf16.msra.mxu0 %v5281
  %5452 = vmatpush.bf16.msra.mxu0 %v5277
  %5453 = vmatpush.bf16.msra.mxu0 %v5273
  %5454 = vmatpush.bf16.msra.mxu0 %v5269
  %5455 = vmatmul.bf16.gmra.mxu0 %v5004
  %v5456 = vpop.f32.mrf.mxu0
  %v5457 = vadd.f32 0.0, %v5456
  %v5458 = vpop.f32.mrf.mxu0
  %5459 = vdwg.mxu0
  %5460 = vmatpush.bf16.msra.mxu0 %v5329
  %5461 = vmatpush.bf16.msra.mxu0 %v5325
  %5462 = vmatpush.bf16.msra.mxu0 %v5321
  %5463 = vmatpush.bf16.msra.mxu0 %v5317
  %5464 = vmatpush.bf16.msra.mxu0 %v5313
  %5465 = vmatpush.bf16.msra.mxu0 %v5309
  %5466 = vmatpush.bf16.msra.mxu0 %v5305
  %5467 = vmatpush.bf16.msra.mxu0 %v5301
  %5468 = vmatmul.bf16.gmra.mxu0 %v4215
  %v5469 = vpop.f32.mrf.mxu0
  %v5470 = vadd.f32 %v5457, %v5469
  %v5471 = vpop.f32.mrf.mxu0
  %5472 = vdwg.mxu0
  %5473 = vmatpush.bf16.msra.mxu0 %v5298
  %5474 = vmatpush.bf16.msra.mxu0 %v5294
  %5475 = vmatpush.bf16.msra.mxu0 %v5290
  %5476 = vmatpush.bf16.msra.mxu0 %v5286
  %5477 = vmatpush.bf16.msra.mxu0 %v5282
  %5478 = vmatpush.bf16.msra.mxu0 %v5278
  %5479 = vmatpush.bf16.msra.mxu0 %v5274
  %5480 = vmatpush.bf16.msra.mxu0 %v5270
  %5481 = vmatmul.bf16.gmra.mxu0 %v5004
  %v5482 = vpop.f32.mrf.mxu0
  %v5483 = vadd.f32 0.0, %v5482
  %v5484 = vpop.f32.mrf.mxu0
  %5485 = vdwg.mxu0
  %5486 = vmatpush.bf16.msra.mxu0 %v5330
  %5487 = vmatpush.bf16.msra.mxu0 %v5326
  %5488 = vmatpush.bf16.msra.mxu0 %v5322
  %5489 = vmatpush.bf16.msra.mxu0 %v5318
  %5490 = vmatpush.bf16.msra.mxu0 %v5314
  %5491 = vmatpush.bf16.msra.mxu0 %v5310
  %5492 = vmatpush.bf16.msra.mxu0 %v5306
  %5493 = vmatpush.bf16.msra.mxu0 %v5302
  %5494 = vmatmul.bf16.gmra.mxu0 %v4215
  %v5495 = vpop.f32.mrf.mxu0
  %v5496 = vadd.f32 %v5483, %v5495
  %v5497 = vpop.f32.mrf.mxu0
  %5498 = vdwg.mxu0
  %v5499 = vadd.f32 %v5007, %v5418
  %v5500 = vadd.f32 %v5008, %v5444
  %v5501 = vadd.f32 %v5009, %v5470
  %v5502 = vadd.f32 %v5010, %v5496
  %v5503 = vxor.u32 %v5499, 2147483648
  %v5504 = vmul.f32 %v5503, 1.442695
  %v5505 = vpow.pop %v5504
  %v5506 = vadd.f32 %v5505, 1.0
  %v5507 = vrcp.pop %v5506
  %v5508 = vmul.f32 %v5506, %v5507
  %v5509 = vsub.f32 1.0, %v5508
  %v5510 = vmul.f32 %v5507, %v5509
  %v5511 = vadd.f32 %v5507, %v5510
  %vm5512 = vweird.f32 %v5506
  %vm5513 = vweird.f32 %v5507
  %vm5514 = vmor %vm5512, %vm5513
  %v5515 = vsel %vm5514, %v5507, %v5511
  %v5516 = vand.u32 2147483647, %v5506
  %vm5517 = vcmp.eq.f32.partialorder %v5516, 8.507059e+37
  %v5518 = vand.u32 %v5506, 2147483648
  %v5519 = vor.u32 1.1754944e-38, %v5518
  %v5520 = vsel %vm5517, %v5519, %v5515
  %v5521 = vmul.f32 1.0, %v5520
  %v5522 = vxor.u32 %v5500, 2147483648
  %v5523 = vmul.f32 %v5522, 1.442695
  %v5524 = vpow.pop %v5523
  %v5525 = vadd.f32 %v5524, 1.0
  %v5526 = vrcp.pop %v5525
  %v5527 = vmul.f32 %v5525, %v5526
  %v5528 = vsub.f32 1.0, %v5527
  %v5529 = vmul.f32 %v5526, %v5528
  %v5530 = vadd.f32 %v5526, %v5529
  %vm5531 = vweird.f32 %v5525
  %vm5532 = vweird.f32 %v5526
  %vm5533 = vmor %vm5531, %vm5532
  %v5534 = vsel %vm5533, %v5526, %v5530
  %v5535 = vand.u32 2147483647, %v5525
  %vm5536 = vcmp.eq.f32.partialorder %v5535, 8.507059e+37
  %v5537 = vand.u32 %v5525, 2147483648
  %v5538 = vor.u32 1.1754944e-38, %v5537
  %v5539 = vsel %vm5536, %v5538, %v5534
  %v5540 = vmul.f32 1.0, %v5539
  %v5541 = vtanh.pop %v5501
  %v5542 = vxor.u32 %v5502, 2147483648
  %v5543 = vmul.f32 %v5542, 1.442695
  %v5544 = vpow.pop %v5543
  %v5545 = vadd.f32 %v5544, 1.0
  %v5546 = vrcp.pop %v5545
  %v5547 = vmul.f32 %v5545, %v5546
  %v5548 = vsub.f32 1.0, %v5547
  %v5549 = vmul.f32 %v5546, %v5548
  %v5550 = vadd.f32 %v5546, %v5549
  %vm5551 = vweird.f32 %v5545
  %vm5552 = vweird.f32 %v5546
  %vm5553 = vmor %vm5551, %vm5552
  %v5554 = vsel %vm5553, %v5546, %v5550
  %v5555 = vand.u32 2147483647, %v5545
  %vm5556 = vcmp.eq.f32.partialorder %v5555, 8.507059e+37
  %v5557 = vand.u32 %v5545, 2147483648
  %v5558 = vor.u32 1.1754944e-38, %v5557
  %v5559 = vsel %vm5556, %v5558, %v5554
  %v5560 = vmul.f32 1.0, %v5559
  %v5561 = vmul.f32 %v5540, %v4175
  %v5562 = vmul.f32 %v5521, %v5541
  %v5563 = vadd.f32 %v5561, %v5562
  %v5564 = vtanh.pop %v5563
  %v5565 = vmul.f32 %v5560, %v5564
  %s5566 = scalar_lea.vmem %s10, 24
  %5567 = vst [vmem:[%s5566] sm:$0xff] %v5565
  %v5568 = vperm.slane %v4816, %v281
  %v5569 = vperm.slane %v4821, %v283
  %v5570 = vsel %vm285, %v5569, %v5568
  %v5571 = vperm.slane %v4826, %v281
  %v5572 = vperm.slane %v4831, %v283
  %v5573 = vsel %vm285, %v5572, %v5571
  %v5574 = vperm.slane %v4836, %v281
  %v5575 = vperm.slane %v4841, %v283
  %v5576 = vsel %vm285, %v5575, %v5574
  %v5577 = vperm.slane %v4846, %v281
  %v5578 = vperm.slane %v4851, %v283
  %v5579 = vsel %vm285, %v5578, %v5577
  %v5580 = vperm.slane %v4856, %v281
  %v5581 = vperm.slane %v4861, %v283
  %v5582 = vsel %vm285, %v5581, %v5580
  %v5583 = vperm.slane %v4866, %v281
  %v5584 = vperm.slane %v4871, %v283
  %v5585 = vsel %vm285, %v5584, %v5583
  %v5586 = vperm.slane %v4876, %v281
  %v5587 = vperm.slane %v4881, %v283
  %v5588 = vsel %vm285, %v5587, %v5586
  %v5589 = vperm.slane %v4886, %v281
  %v5590 = vperm.slane %v4891, %v283
  %v5591 = vsel %vm285, %v5590, %v5589
  %v5592 = vsel %vm308, %v5573, %v5570
  %v5593 = vsel %vm310, %v5576, %v5592
  %v5594 = vsel %vm312, %v5579, %v5593
  %v5595 = vsel %vm314, %v5582, %v5594
  %v5596 = vsel %vm316, %v5585, %v5595
  %v5597 = vsel %vm318, %v5588, %v5596
  %v5598 = vsel %vm320, %v5591, %v5597
  %v5600 = vsel %vm323, %v5598, 0.0
  %s5601 = scalar_lea.vmem %s11, 24
  %5602 = vst [vmem:[%s5601] sm:$0xff] %v5600
  %v5603 = vpack.c.bf16 %v5565, %v5565
  %v5604 = vld [vmem:[%s5] sm:$0xf]
  %v5605 = vld [vmem:[%s5 + $0x4] sm:$0xf]
  %v5606 = vld [vmem:[%s5 + $0x8] sm:$0xf]
  %v5607 = vld [vmem:[%s5 + $0xc] sm:$0xf]
  %v5608 = vld [vmem:[%s5 + $0x10] sm:$0xf]
  %v5609 = vld [vmem:[%s5 + $0x14] sm:$0xf]
  %v5610 = vld [vmem:[%s5 + $0x18] sm:$0xf]
  %v5611 = vld [vmem:[%s5 + $0x1c] sm:$0xf]
  %v5612 = vld [vmem:[%s5 + $0x20] sm:$0xf]
  %v5613 = vld [vmem:[%s5 + $0x24] sm:$0xf]
  %v5614 = vld [vmem:[%s5 + $0x28] sm:$0xf]
  %v5615 = vld [vmem:[%s5 + $0x2c] sm:$0xf]
  %v5616 = vld [vmem:[%s5 + $0x30] sm:$0xf]
  %v5617 = vld [vmem:[%s5 + $0x34] sm:$0xf]
  %v5618 = vld [vmem:[%s5 + $0x38] sm:$0xf]
  %v5619 = vld [vmem:[%s5 + $0x3c] sm:$0xf]
  %v5620 = vld [vmem:[%s6] sm:$0x1]
  %v5622 = vperm.slane %v5620, 0
  %v5640 = vunpack.c.l.b16 %v5604
  %v5641 = vunpack.c.l.b16 %v5605
  %v5642 = vunpack.c.l.b16 %v5606
  %v5643 = vunpack.c.l.b16 %v5607
  %v5644 = vunpack.c.l.b16 %v5608
  %v5645 = vunpack.c.l.b16 %v5609
  %v5646 = vunpack.c.l.b16 %v5610
  %v5647 = vunpack.c.l.b16 %v5611
  %v5648 = vunpack.c.l.b16 %v5612
  %v5649 = vunpack.c.l.b16 %v5613
  %v5650 = vunpack.c.l.b16 %v5614
  %v5651 = vunpack.c.l.b16 %v5615
  %v5652 = vunpack.c.l.b16 %v5616
  %v5653 = vunpack.c.l.b16 %v5617
  %v5654 = vunpack.c.l.b16 %v5618
  %v5655 = vunpack.c.l.b16 %v5619
  %v5656 = vpack.c.b16 %v5641, %v5640
  %v5657 = vpack.c.b16 %v5643, %v5642
  %v5658 = vpack.c.b16 %v5645, %v5644
  %v5659 = vpack.c.b16 %v5647, %v5646
  %v5660 = vpack.c.b16 %v5649, %v5648
  %v5661 = vpack.c.b16 %v5651, %v5650
  %v5662 = vpack.c.b16 %v5653, %v5652
  %v5663 = vpack.c.b16 %v5655, %v5654
  %5672 = vmatpush.bf16.msra.mxu0 %v5663
  %5673 = vmatpush.bf16.msra.mxu0 %v5662
  %5674 = vmatpush.bf16.msra.mxu0 %v5661
  %5675 = vmatpush.bf16.msra.mxu0 %v5660
  %5676 = vmatpush.bf16.msra.mxu0 %v5659
  %5677 = vmatpush.bf16.msra.mxu0 %v5658
  %5678 = vmatpush.bf16.msra.mxu0 %v5657
  %5679 = vmatpush.bf16.msra.mxu0 %v5656
  %5680 = vmatmul.bf16.gmra.mxu0 %v5603
  %v5681 = vpop.f32.mrf.mxu0
  %v5682 = vadd.f32 %v5622, %v5681
  %v5683 = vpop.f32.mrf.mxu0
  %5684 = vdwg.mxu0
  %v5685 = vld [vmem:[%s1] sm:$0xff]
  %v5686 = vld [vmem:[%s1 + $0x8] sm:$0xff]
  %v5687 = vld [vmem:[%s1 + $0x10] sm:$0xff]
  %v5688 = vld [vmem:[%s1 + $0x18] sm:$0xff]
  %v5689 = vld [vmem:[%s1 + $0x20] sm:$0xff]
  %v5690 = vld [vmem:[%s1 + $0x28] sm:$0xff]
  %v5691 = vld [vmem:[%s1 + $0x30] sm:$0xff]
  %v5692 = vld [vmem:[%s1 + $0x38] sm:$0xff]
  %v5693 = vld [vmem:[%s1 + $0x40] sm:$0xff]
  %v5694 = vld [vmem:[%s1 + $0x48] sm:$0xff]
  %v5695 = vld [vmem:[%s1 + $0x50] sm:$0xff]
  %v5696 = vld [vmem:[%s1 + $0x58] sm:$0xff]
  %v5697 = vld [vmem:[%s1 + $0x60] sm:$0xff]
  %v5698 = vld [vmem:[%s1 + $0x68] sm:$0xff]
  %v5699 = vld [vmem:[%s1 + $0x70] sm:$0xff]
  %v5700 = vld [vmem:[%s1 + $0x78] sm:$0xff]
  %v5702 = vrot.slane %v5682, 1
  %v5703 = vrot.slane %v5682, 2
  %v5704 = vrot.slane %v5682, 3
  %v5705 = vrot.slane %v5682, 4
  %v5706 = vrot.slane %v5682, 5
  %v5707 = vrot.slane %v5682, 6
  %v5708 = vrot.slane %v5682, 7
  %v5709 = vperm.slane %v5682, 0
  %v5710 = vperm.slane %v5702, 0
  %v5711 = vperm.slane %v5703, 0
  %v5712 = vperm.slane %v5704, 0
  %v5713 = vperm.slane %v5705, 0
  %v5714 = vperm.slane %v5706, 0
  %v5715 = vperm.slane %v5707, 0
  %v5716 = vperm.slane %v5708, 0
  %v5725 = vadd.f32 %v5685, %v5709
  %v5726 = vadd.f32 %v5686, %v5709
  %v5727 = vadd.f32 %v5687, %v5710
  %v5728 = vadd.f32 %v5688, %v5710
  %v5729 = vadd.f32 %v5689, %v5711
  %v5730 = vadd.f32 %v5690, %v5711
  %v5731 = vadd.f32 %v5691, %v5712
  %v5732 = vadd.f32 %v5692, %v5712
  %v5733 = vadd.f32 %v5693, %v5713
  %v5734 = vadd.f32 %v5694, %v5713
  %v5735 = vadd.f32 %v5695, %v5714
  %v5736 = vadd.f32 %v5696, %v5714
  %v5737 = vadd.f32 %v5697, %v5715
  %v5738 = vadd.f32 %v5698, %v5715
  %v5739 = vadd.f32 %v5699, %v5716
  %v5740 = vadd.f32 %v5700, %v5716
  %v5741 = vtanh.pop %v5725
  %v5742 = vtanh.pop %v5726
  %v5743 = vtanh.pop %v5727
  %v5744 = vtanh.pop %v5728
  %v5745 = vtanh.pop %v5729
  %v5746 = vtanh.pop %v5730
  %v5747 = vtanh.pop %v5731
  %v5748 = vtanh.pop %v5732
  %v5749 = vtanh.pop %v5733
  %v5750 = vtanh.pop %v5734
  %v5751 = vtanh.pop %v5735
  %v5752 = vtanh.pop %v5736
  %v5753 = vtanh.pop %v5737
  %v5754 = vtanh.pop %v5738
  %v5755 = vtanh.pop %v5739
  %v5756 = vtanh.pop %v5740
  %v5757 = vld [vmem:[%s7] sm:$0x1]
  %v5759 = vperm.slane %v5757, 0
  %v5761 = vmul.f32 %v5741, %v5759
  %v5762 = vmul.f32 %v5742, %v5759
  %v5763 = vmul.f32 %v5743, %v5759
  %v5764 = vmul.f32 %v5744, %v5759
  %v5765 = vmul.f32 %v5745, %v5759
  %v5766 = vmul.f32 %v5746, %v5759
  %v5767 = vmul.f32 %v5747, %v5759
  %v5768 = vmul.f32 %v5748, %v5759
  %v5769 = vmul.f32 %v5749, %v5759
  %v5770 = vmul.f32 %v5750, %v5759
  %v5771 = vmul.f32 %v5751, %v5759
  %v5772 = vmul.f32 %v5752, %v5759
  %v5773 = vmul.f32 %v5753, %v5759
  %v5774 = vmul.f32 %v5754, %v5759
  %v5775 = vmul.f32 %v5755, %v5759
  %v5776 = vmul.f32 %v5756, %v5759
  %5777 = vadd.xlane.f32.xlu0 %v5761
  %v5778 = vpop.xlane.xlu0 %5777
  %5779 = vadd.xlane.f32.xlu0 %v5762
  %v5780 = vpop.xlane.xlu0 %5779
  %5781 = vadd.xlane.f32.xlu0 %v5763
  %v5782 = vpop.xlane.xlu0 %5781
  %5783 = vadd.xlane.f32.xlu0 %v5764
  %v5784 = vpop.xlane.xlu0 %5783
  %5785 = vadd.xlane.f32.xlu0 %v5765
  %v5786 = vpop.xlane.xlu0 %5785
  %5787 = vadd.xlane.f32.xlu0 %v5766
  %v5788 = vpop.xlane.xlu0 %5787
  %5789 = vadd.xlane.f32.xlu0 %v5767
  %v5790 = vpop.xlane.xlu0 %5789
  %5791 = vadd.xlane.f32.xlu0 %v5768
  %v5792 = vpop.xlane.xlu0 %5791
  %5793 = vadd.xlane.f32.xlu0 %v5769
  %v5794 = vpop.xlane.xlu0 %5793
  %5795 = vadd.xlane.f32.xlu0 %v5770
  %v5796 = vpop.xlane.xlu0 %5795
  %5797 = vadd.xlane.f32.xlu0 %v5771
  %v5798 = vpop.xlane.xlu0 %5797
  %5799 = vadd.xlane.f32.xlu0 %v5772
  %v5800 = vpop.xlane.xlu0 %5799
  %5801 = vadd.xlane.f32.xlu0 %v5773
  %v5802 = vpop.xlane.xlu0 %5801
  %5803 = vadd.xlane.f32.xlu0 %v5774
  %v5804 = vpop.xlane.xlu0 %5803
  %5805 = vadd.xlane.f32.xlu0 %v5775
  %v5806 = vpop.xlane.xlu0 %5805
  %5807 = vadd.xlane.f32.xlu0 %v5776
  %v5808 = vpop.xlane.xlu0 %5807
  %v5809 = vadd.f32 %v5778, %v247
  %v5810 = vadd.f32 %v5780, %v247
  %v5811 = vadd.f32 %v5782, %v247
  %v5812 = vadd.f32 %v5784, %v247
  %v5813 = vadd.f32 %v5786, %v247
  %v5814 = vadd.f32 %v5788, %v247
  %v5815 = vadd.f32 %v5790, %v247
  %v5816 = vadd.f32 %v5792, %v247
  %v5817 = vadd.f32 %v5794, %v247
  %v5818 = vadd.f32 %v5796, %v247
  %v5819 = vadd.f32 %v5798, %v247
  %v5820 = vadd.f32 %v5800, %v247
  %v5821 = vadd.f32 %v5802, %v247
  %v5822 = vadd.f32 %v5804, %v247
  %v5823 = vadd.f32 %v5806, %v247
  %v5824 = vadd.f32 %v5808, %v247
  %v5841 = vperm.slane %v5809, %v281
  %v5842 = vperm.slane %v5810, %v283
  %v5843 = vsel %vm285, %v5842, %v5841
  %v5844 = vperm.slane %v5811, %v281
  %v5845 = vperm.slane %v5812, %v283
  %v5846 = vsel %vm285, %v5845, %v5844
  %v5847 = vperm.slane %v5813, %v281
  %v5848 = vperm.slane %v5814, %v283
  %v5849 = vsel %vm285, %v5848, %v5847
  %v5850 = vperm.slane %v5815, %v281
  %v5851 = vperm.slane %v5816, %v283
  %v5852 = vsel %vm285, %v5851, %v5850
  %v5853 = vperm.slane %v5817, %v281
  %v5854 = vperm.slane %v5818, %v283
  %v5855 = vsel %vm285, %v5854, %v5853
  %v5856 = vperm.slane %v5819, %v281
  %v5857 = vperm.slane %v5820, %v283
  %v5858 = vsel %vm285, %v5857, %v5856
  %v5859 = vperm.slane %v5821, %v281
  %v5860 = vperm.slane %v5822, %v283
  %v5861 = vsel %vm285, %v5860, %v5859
  %v5862 = vperm.slane %v5823, %v281
  %v5863 = vperm.slane %v5824, %v283
  %v5864 = vsel %vm285, %v5863, %v5862
  %v5865 = vsel %vm308, %v5846, %v5843
  %v5866 = vsel %vm310, %v5849, %v5865
  %v5867 = vsel %vm312, %v5852, %v5866
  %v5868 = vsel %vm314, %v5855, %v5867
  %v5869 = vsel %vm316, %v5858, %v5868
  %v5870 = vsel %vm318, %v5861, %v5869
  %v5871 = vsel %vm320, %v5864, %v5870
  %v5873 = vsel %vm323, %v5871, -inf
  %5874 = vmax.xlane.f32.xlu0 %v5873
  %v5875 = vpop.xlane.xlu0 %5874
  %v5877 = vperm.slane %v5875, 0
  %v5878 = vperm.slane %v5875, 1
  %v5879 = vperm.slane %v5875, 2
  %v5880 = vperm.slane %v5875, 3
  %v5881 = vperm.slane %v5875, 4
  %v5882 = vperm.slane %v5875, 5
  %v5883 = vperm.slane %v5875, 6
  %v5884 = vperm.slane %v5875, 7
  %v5893 = vsub.f32 %v5809, %v5877
  %v5894 = vsub.f32 %v5810, %v5877
  %v5895 = vsub.f32 %v5811, %v5878
  %v5896 = vsub.f32 %v5812, %v5878
  %v5897 = vsub.f32 %v5813, %v5879
  %v5898 = vsub.f32 %v5814, %v5879
  %v5899 = vsub.f32 %v5815, %v5880
  %v5900 = vsub.f32 %v5816, %v5880
  %v5901 = vsub.f32 %v5817, %v5881
  %v5902 = vsub.f32 %v5818, %v5881
  %v5903 = vsub.f32 %v5819, %v5882
  %v5904 = vsub.f32 %v5820, %v5882
  %v5905 = vsub.f32 %v5821, %v5883
  %v5906 = vsub.f32 %v5822, %v5883
  %v5907 = vsub.f32 %v5823, %v5884
  %v5908 = vsub.f32 %v5824, %v5884
  %v5909 = vmul.f32 %v5893, 1.442695
  %v5910 = vpow.pop %v5909
  %v5911 = vmul.f32 %v5894, 1.442695
  %v5912 = vpow.pop %v5911
  %v5913 = vmul.f32 %v5895, 1.442695
  %v5914 = vpow.pop %v5913
  %v5915 = vmul.f32 %v5896, 1.442695
  %v5916 = vpow.pop %v5915
  %v5917 = vmul.f32 %v5897, 1.442695
  %v5918 = vpow.pop %v5917
  %v5919 = vmul.f32 %v5898, 1.442695
  %v5920 = vpow.pop %v5919
  %v5921 = vmul.f32 %v5899, 1.442695
  %v5922 = vpow.pop %v5921
  %v5923 = vmul.f32 %v5900, 1.442695
  %v5924 = vpow.pop %v5923
  %v5925 = vmul.f32 %v5901, 1.442695
  %v5926 = vpow.pop %v5925
  %v5927 = vmul.f32 %v5902, 1.442695
  %v5928 = vpow.pop %v5927
  %v5929 = vmul.f32 %v5903, 1.442695
  %v5930 = vpow.pop %v5929
  %v5931 = vmul.f32 %v5904, 1.442695
  %v5932 = vpow.pop %v5931
  %v5933 = vmul.f32 %v5905, 1.442695
  %v5934 = vpow.pop %v5933
  %v5935 = vmul.f32 %v5906, 1.442695
  %v5936 = vpow.pop %v5935
  %v5937 = vmul.f32 %v5907, 1.442695
  %v5938 = vpow.pop %v5937
  %v5939 = vmul.f32 %v5908, 1.442695
  %v5940 = vpow.pop %v5939
  %5957 = vset.pattern.permute.xlu0 0
  %5958 = vperm.xlu0 %5957, %v5910
  %v5959 = vpop.permute.xlu0 %5958
  %5960 = vset.pattern.permute.xlu0 0
  %5961 = vperm.xlu0 %5960, %v5912
  %v5962 = vpop.permute.xlu0 %5961
  %5963 = vset.pattern.permute.xlu0 0
  %5964 = vperm.xlu0 %5963, %v5914
  %v5965 = vpop.permute.xlu0 %5964
  %5966 = vset.pattern.permute.xlu0 0
  %5967 = vperm.xlu0 %5966, %v5916
  %v5968 = vpop.permute.xlu0 %5967
  %5969 = vset.pattern.permute.xlu0 0
  %5970 = vperm.xlu0 %5969, %v5918
  %v5971 = vpop.permute.xlu0 %5970
  %5972 = vset.pattern.permute.xlu0 0
  %5973 = vperm.xlu0 %5972, %v5920
  %v5974 = vpop.permute.xlu0 %5973
  %5975 = vset.pattern.permute.xlu0 0
  %5976 = vperm.xlu0 %5975, %v5922
  %v5977 = vpop.permute.xlu0 %5976
  %5978 = vset.pattern.permute.xlu0 0
  %5979 = vperm.xlu0 %5978, %v5924
  %v5980 = vpop.permute.xlu0 %5979
  %5981 = vset.pattern.permute.xlu0 0
  %5982 = vperm.xlu0 %5981, %v5926
  %v5983 = vpop.permute.xlu0 %5982
  %5984 = vset.pattern.permute.xlu0 0
  %5985 = vperm.xlu0 %5984, %v5928
  %v5986 = vpop.permute.xlu0 %5985
  %5987 = vset.pattern.permute.xlu0 0
  %5988 = vperm.xlu0 %5987, %v5930
  %v5989 = vpop.permute.xlu0 %5988
  %5990 = vset.pattern.permute.xlu0 0
  %5991 = vperm.xlu0 %5990, %v5932
  %v5992 = vpop.permute.xlu0 %5991
  %5993 = vset.pattern.permute.xlu0 0
  %5994 = vperm.xlu0 %5993, %v5934
  %v5995 = vpop.permute.xlu0 %5994
  %5996 = vset.pattern.permute.xlu0 0
  %5997 = vperm.xlu0 %5996, %v5936
  %v5998 = vpop.permute.xlu0 %5997
  %5999 = vset.pattern.permute.xlu0 0
  %6000 = vperm.xlu0 %5999, %v5938
  %v6001 = vpop.permute.xlu0 %6000
  %6002 = vset.pattern.permute.xlu0 0
  %6003 = vperm.xlu0 %6002, %v5940
  %v6004 = vpop.permute.xlu0 %6003
  %v6005 = vperm.slane %v5959, %v281
  %v6006 = vperm.slane %v5962, %v283
  %v6007 = vsel %vm285, %v6006, %v6005
  %v6008 = vperm.slane %v5965, %v281
  %v6009 = vperm.slane %v5968, %v283
  %v6010 = vsel %vm285, %v6009, %v6008
  %v6011 = vperm.slane %v5971, %v281
  %v6012 = vperm.slane %v5974, %v283
  %v6013 = vsel %vm285, %v6012, %v6011
  %v6014 = vperm.slane %v5977, %v281
  %v6015 = vperm.slane %v5980, %v283
  %v6016 = vsel %vm285, %v6015, %v6014
  %v6017 = vperm.slane %v5983, %v281
  %v6018 = vperm.slane %v5986, %v283
  %v6019 = vsel %vm285, %v6018, %v6017
  %v6020 = vperm.slane %v5989, %v281
  %v6021 = vperm.slane %v5992, %v283
  %v6022 = vsel %vm285, %v6021, %v6020
  %v6023 = vperm.slane %v5995, %v281
  %v6024 = vperm.slane %v5998, %v283
  %v6025 = vsel %vm285, %v6024, %v6023
  %v6026 = vperm.slane %v6001, %v281
  %v6027 = vperm.slane %v6004, %v283
  %v6028 = vsel %vm285, %v6027, %v6026
  %v6029 = vsel %vm308, %v6010, %v6007
  %v6030 = vsel %vm310, %v6013, %v6029
  %v6031 = vsel %vm312, %v6016, %v6030
  %v6032 = vsel %vm314, %v6019, %v6031
  %v6033 = vsel %vm316, %v6022, %v6032
  %v6034 = vsel %vm318, %v6025, %v6033
  %v6035 = vsel %vm320, %v6028, %v6034
  %v6037 = vsel %vm323, %v6035, 0.0
  %6038 = vadd.xlane.f32.xlu0 %v6037
  %v6039 = vpop.xlane.xlu0 %6038
  %v6041 = vperm.slane %v6039, 0
  %v6042 = vperm.slane %v6039, 1
  %v6043 = vperm.slane %v6039, 2
  %v6044 = vperm.slane %v6039, 3
  %v6045 = vperm.slane %v6039, 4
  %v6046 = vperm.slane %v6039, 5
  %v6047 = vperm.slane %v6039, 6
  %v6048 = vperm.slane %v6039, 7
  %v6057 = vrcp.pop %v6041
  %v6058 = vmul.f32 %v6041, %v6057
  %v6059 = vsub.f32 1.0, %v6058
  %v6060 = vmul.f32 %v6057, %v6059
  %v6061 = vadd.f32 %v6057, %v6060
  %vm6062 = vweird.f32 %v6041
  %vm6063 = vweird.f32 %v6057
  %vm6064 = vmor %vm6062, %vm6063
  %v6065 = vsel %vm6064, %v6057, %v6061
  %v6066 = vand.u32 2147483647, %v6041
  %vm6067 = vcmp.eq.f32.partialorder %v6066, 8.507059e+37
  %v6068 = vand.u32 %v6041, 2147483648
  %v6069 = vor.u32 1.1754944e-38, %v6068
  %v6070 = vsel %vm6067, %v6069, %v6065
  %v6071 = vmul.f32 %v5910, %v6070
  %v6072 = vmul.f32 %v5912, %v6070
  %v6073 = vrcp.pop %v6042
  %v6074 = vmul.f32 %v6042, %v6073
  %v6075 = vsub.f32 1.0, %v6074
  %v6076 = vmul.f32 %v6073, %v6075
  %v6077 = vadd.f32 %v6073, %v6076
  %vm6078 = vweird.f32 %v6042
  %vm6079 = vweird.f32 %v6073
  %vm6080 = vmor %vm6078, %vm6079
  %v6081 = vsel %vm6080, %v6073, %v6077
  %v6082 = vand.u32 2147483647, %v6042
  %vm6083 = vcmp.eq.f32.partialorder %v6082, 8.507059e+37
  %v6084 = vand.u32 %v6042, 2147483648
  %v6085 = vor.u32 1.1754944e-38, %v6084
  %v6086 = vsel %vm6083, %v6085, %v6081
  %v6087 = vmul.f32 %v5914, %v6086
  %v6088 = vmul.f32 %v5916, %v6086
  %v6089 = vrcp.pop %v6043
  %v6090 = vmul.f32 %v6043, %v6089
  %v6091 = vsub.f32 1.0, %v6090
  %v6092 = vmul.f32 %v6089, %v6091
  %v6093 = vadd.f32 %v6089, %v6092
  %vm6094 = vweird.f32 %v6043
  %vm6095 = vweird.f32 %v6089
  %vm6096 = vmor %vm6094, %vm6095
  %v6097 = vsel %vm6096, %v6089, %v6093
  %v6098 = vand.u32 2147483647, %v6043
  %vm6099 = vcmp.eq.f32.partialorder %v6098, 8.507059e+37
  %v6100 = vand.u32 %v6043, 2147483648
  %v6101 = vor.u32 1.1754944e-38, %v6100
  %v6102 = vsel %vm6099, %v6101, %v6097
  %v6103 = vmul.f32 %v5918, %v6102
  %v6104 = vmul.f32 %v5920, %v6102
  %v6105 = vrcp.pop %v6044
  %v6106 = vmul.f32 %v6044, %v6105
  %v6107 = vsub.f32 1.0, %v6106
  %v6108 = vmul.f32 %v6105, %v6107
  %v6109 = vadd.f32 %v6105, %v6108
  %vm6110 = vweird.f32 %v6044
  %vm6111 = vweird.f32 %v6105
  %vm6112 = vmor %vm6110, %vm6111
  %v6113 = vsel %vm6112, %v6105, %v6109
  %v6114 = vand.u32 2147483647, %v6044
  %vm6115 = vcmp.eq.f32.partialorder %v6114, 8.507059e+37
  %v6116 = vand.u32 %v6044, 2147483648
  %v6117 = vor.u32 1.1754944e-38, %v6116
  %v6118 = vsel %vm6115, %v6117, %v6113
  %v6119 = vmul.f32 %v5922, %v6118
  %v6120 = vmul.f32 %v5924, %v6118
  %v6121 = vrcp.pop %v6045
  %v6122 = vmul.f32 %v6045, %v6121
  %v6123 = vsub.f32 1.0, %v6122
  %v6124 = vmul.f32 %v6121, %v6123
  %v6125 = vadd.f32 %v6121, %v6124
  %vm6126 = vweird.f32 %v6045
  %vm6127 = vweird.f32 %v6121
  %vm6128 = vmor %vm6126, %vm6127
  %v6129 = vsel %vm6128, %v6121, %v6125
  %v6130 = vand.u32 2147483647, %v6045
  %vm6131 = vcmp.eq.f32.partialorder %v6130, 8.507059e+37
  %v6132 = vand.u32 %v6045, 2147483648
  %v6133 = vor.u32 1.1754944e-38, %v6132
  %v6134 = vsel %vm6131, %v6133, %v6129
  %v6135 = vmul.f32 %v5926, %v6134
  %v6136 = vmul.f32 %v5928, %v6134
  %v6137 = vrcp.pop %v6046
  %v6138 = vmul.f32 %v6046, %v6137
  %v6139 = vsub.f32 1.0, %v6138
  %v6140 = vmul.f32 %v6137, %v6139
  %v6141 = vadd.f32 %v6137, %v6140
  %vm6142 = vweird.f32 %v6046
  %vm6143 = vweird.f32 %v6137
  %vm6144 = vmor %vm6142, %vm6143
  %v6145 = vsel %vm6144, %v6137, %v6141
  %v6146 = vand.u32 2147483647, %v6046
  %vm6147 = vcmp.eq.f32.partialorder %v6146, 8.507059e+37
  %v6148 = vand.u32 %v6046, 2147483648
  %v6149 = vor.u32 1.1754944e-38, %v6148
  %v6150 = vsel %vm6147, %v6149, %v6145
  %v6151 = vmul.f32 %v5930, %v6150
  %v6152 = vmul.f32 %v5932, %v6150
  %v6153 = vrcp.pop %v6047
  %v6154 = vmul.f32 %v6047, %v6153
  %v6155 = vsub.f32 1.0, %v6154
  %v6156 = vmul.f32 %v6153, %v6155
  %v6157 = vadd.f32 %v6153, %v6156
  %vm6158 = vweird.f32 %v6047
  %vm6159 = vweird.f32 %v6153
  %vm6160 = vmor %vm6158, %vm6159
  %v6161 = vsel %vm6160, %v6153, %v6157
  %v6162 = vand.u32 2147483647, %v6047
  %vm6163 = vcmp.eq.f32.partialorder %v6162, 8.507059e+37
  %v6164 = vand.u32 %v6047, 2147483648
  %v6165 = vor.u32 1.1754944e-38, %v6164
  %v6166 = vsel %vm6163, %v6165, %v6161
  %v6167 = vmul.f32 %v5934, %v6166
  %v6168 = vmul.f32 %v5936, %v6166
  %v6169 = vrcp.pop %v6048
  %v6170 = vmul.f32 %v6048, %v6169
  %v6171 = vsub.f32 1.0, %v6170
  %v6172 = vmul.f32 %v6169, %v6171
  %v6173 = vadd.f32 %v6169, %v6172
  %vm6174 = vweird.f32 %v6048
  %vm6175 = vweird.f32 %v6169
  %vm6176 = vmor %vm6174, %vm6175
  %v6177 = vsel %vm6176, %v6169, %v6173
  %v6178 = vand.u32 2147483647, %v6048
  %vm6179 = vcmp.eq.f32.partialorder %v6178, 8.507059e+37
  %v6180 = vand.u32 %v6048, 2147483648
  %v6181 = vor.u32 1.1754944e-38, %v6180
  %v6182 = vsel %vm6179, %v6181, %v6177
  %v6183 = vmul.f32 %v5938, %v6182
  %v6184 = vmul.f32 %v5940, %v6182
  %v6185 = vld [vmem:[%s0] sm:$0xff]
  %v6186 = vld [vmem:[%s0 + $0x8] sm:$0xff]
  %v6187 = vld [vmem:[%s0 + $0x10] sm:$0xff]
  %v6188 = vld [vmem:[%s0 + $0x18] sm:$0xff]
  %v6189 = vld [vmem:[%s0 + $0x20] sm:$0xff]
  %v6190 = vld [vmem:[%s0 + $0x28] sm:$0xff]
  %v6191 = vld [vmem:[%s0 + $0x30] sm:$0xff]
  %v6192 = vld [vmem:[%s0 + $0x38] sm:$0xff]
  %v6193 = vld [vmem:[%s0 + $0x40] sm:$0xff]
  %v6194 = vld [vmem:[%s0 + $0x48] sm:$0xff]
  %v6195 = vld [vmem:[%s0 + $0x50] sm:$0xff]
  %v6196 = vld [vmem:[%s0 + $0x58] sm:$0xff]
  %v6197 = vld [vmem:[%s0 + $0x60] sm:$0xff]
  %v6198 = vld [vmem:[%s0 + $0x68] sm:$0xff]
  %v6199 = vld [vmem:[%s0 + $0x70] sm:$0xff]
  %v6200 = vld [vmem:[%s0 + $0x78] sm:$0xff]
  %6202 = vset.pattern.permute.xlu0 0
  %6203 = vperm.xlu0 %6202, %v6071
  %v6204 = vpop.permute.xlu0 %6203
  %6207 = vset.pattern.permute.xlu0 0
  %6208 = vperm.xlu0 %6207, %v6072
  %v6209 = vpop.permute.xlu0 %6208
  %6212 = vset.pattern.permute.xlu0 0
  %6213 = vperm.xlu0 %6212, %v6087
  %v6214 = vpop.permute.xlu0 %6213
  %6217 = vset.pattern.permute.xlu0 0
  %6218 = vperm.xlu0 %6217, %v6088
  %v6219 = vpop.permute.xlu0 %6218
  %6222 = vset.pattern.permute.xlu0 0
  %6223 = vperm.xlu0 %6222, %v6103
  %v6224 = vpop.permute.xlu0 %6223
  %6227 = vset.pattern.permute.xlu0 0
  %6228 = vperm.xlu0 %6227, %v6104
  %v6229 = vpop.permute.xlu0 %6228
  %6232 = vset.pattern.permute.xlu0 0
  %6233 = vperm.xlu0 %6232, %v6119
  %v6234 = vpop.permute.xlu0 %6233
  %6237 = vset.pattern.permute.xlu0 0
  %6238 = vperm.xlu0 %6237, %v6120
  %v6239 = vpop.permute.xlu0 %6238
  %6242 = vset.pattern.permute.xlu0 0
  %6243 = vperm.xlu0 %6242, %v6135
  %v6244 = vpop.permute.xlu0 %6243
  %6247 = vset.pattern.permute.xlu0 0
  %6248 = vperm.xlu0 %6247, %v6136
  %v6249 = vpop.permute.xlu0 %6248
  %6252 = vset.pattern.permute.xlu0 0
  %6253 = vperm.xlu0 %6252, %v6151
  %v6254 = vpop.permute.xlu0 %6253
  %6257 = vset.pattern.permute.xlu0 0
  %6258 = vperm.xlu0 %6257, %v6152
  %v6259 = vpop.permute.xlu0 %6258
  %6262 = vset.pattern.permute.xlu0 0
  %6263 = vperm.xlu0 %6262, %v6167
  %v6264 = vpop.permute.xlu0 %6263
  %6267 = vset.pattern.permute.xlu0 0
  %6268 = vperm.xlu0 %6267, %v6168
  %v6269 = vpop.permute.xlu0 %6268
  %6272 = vset.pattern.permute.xlu0 0
  %6273 = vperm.xlu0 %6272, %v6183
  %v6274 = vpop.permute.xlu0 %6273
  %6277 = vset.pattern.permute.xlu0 0
  %6278 = vperm.xlu0 %6277, %v6184
  %v6279 = vpop.permute.xlu0 %6278
  %v6281 = vmul.f32 %v6185, %v6204
  %v6282 = vmul.f32 %v6186, %v6209
  %v6283 = vmul.f32 %v6187, %v6214
  %v6284 = vmul.f32 %v6188, %v6219
  %v6285 = vmul.f32 %v6189, %v6224
  %v6286 = vmul.f32 %v6190, %v6229
  %v6287 = vmul.f32 %v6191, %v6234
  %v6288 = vmul.f32 %v6192, %v6239
  %v6289 = vmul.f32 %v6193, %v6244
  %v6290 = vmul.f32 %v6194, %v6249
  %v6291 = vmul.f32 %v6195, %v6254
  %v6292 = vmul.f32 %v6196, %v6259
  %v6293 = vmul.f32 %v6197, %v6264
  %v6294 = vmul.f32 %v6198, %v6269
  %v6295 = vmul.f32 %v6199, %v6274
  %v6296 = vmul.f32 %v6200, %v6279
  %v6297 = vadd.f32 %v6281, %v6282
  %v6298 = vrot.slane %v6297, 4
  %v6299 = vadd.f32 %v6297, %v6298
  %v6300 = vrot.slane %v6299, 2
  %v6301 = vadd.f32 %v6299, %v6300
  %v6302 = vrot.slane %v6301, 1
  %v6303 = vadd.f32 %v6301, %v6302
  %v6304 = vadd.f32 %v6283, %v6284
  %v6305 = vrot.slane %v6304, 4
  %v6306 = vadd.f32 %v6304, %v6305
  %v6307 = vrot.slane %v6306, 2
  %v6308 = vadd.f32 %v6306, %v6307
  %v6309 = vrot.slane %v6308, 1
  %v6310 = vadd.f32 %v6308, %v6309
  %v6311 = vadd.f32 %v6285, %v6286
  %v6312 = vrot.slane %v6311, 4
  %v6313 = vadd.f32 %v6311, %v6312
  %v6314 = vrot.slane %v6313, 2
  %v6315 = vadd.f32 %v6313, %v6314
  %v6316 = vrot.slane %v6315, 1
  %v6317 = vadd.f32 %v6315, %v6316
  %v6318 = vadd.f32 %v6287, %v6288
  %v6319 = vrot.slane %v6318, 4
  %v6320 = vadd.f32 %v6318, %v6319
  %v6321 = vrot.slane %v6320, 2
  %v6322 = vadd.f32 %v6320, %v6321
  %v6323 = vrot.slane %v6322, 1
  %v6324 = vadd.f32 %v6322, %v6323
  %v6325 = vadd.f32 %v6289, %v6290
  %v6326 = vrot.slane %v6325, 4
  %v6327 = vadd.f32 %v6325, %v6326
  %v6328 = vrot.slane %v6327, 2
  %v6329 = vadd.f32 %v6327, %v6328
  %v6330 = vrot.slane %v6329, 1
  %v6331 = vadd.f32 %v6329, %v6330
  %v6332 = vadd.f32 %v6291, %v6292
  %v6333 = vrot.slane %v6332, 4
  %v6334 = vadd.f32 %v6332, %v6333
  %v6335 = vrot.slane %v6334, 2
  %v6336 = vadd.f32 %v6334, %v6335
  %v6337 = vrot.slane %v6336, 1
  %v6338 = vadd.f32 %v6336, %v6337
  %v6339 = vadd.f32 %v6293, %v6294
  %v6340 = vrot.slane %v6339, 4
  %v6341 = vadd.f32 %v6339, %v6340
  %v6342 = vrot.slane %v6341, 2
  %v6343 = vadd.f32 %v6341, %v6342
  %v6344 = vrot.slane %v6343, 1
  %v6345 = vadd.f32 %v6343, %v6344
  %v6346 = vadd.f32 %v6295, %v6296
  %v6347 = vrot.slane %v6346, 4
  %v6348 = vadd.f32 %v6346, %v6347
  %v6349 = vrot.slane %v6348, 2
  %v6350 = vadd.f32 %v6348, %v6349
  %v6351 = vrot.slane %v6350, 1
  %v6352 = vadd.f32 %v6350, %v6351
  %v6353 = vpack.c.bf16 %v6303, %v6303
  %v6354 = vpack.c.bf16 %v6310, %v6310
  %v6355 = vpack.c.bf16 %v6317, %v6317
  %v6356 = vpack.c.bf16 %v6324, %v6324
  %v6357 = vpack.c.bf16 %v6331, %v6331
  %v6358 = vpack.c.bf16 %v6338, %v6338
  %v6359 = vpack.c.bf16 %v6345, %v6345
  %v6360 = vpack.c.bf16 %v6352, %v6352
  %v6369 = vperm.slane %v6353, 0
  %v6370 = vperm.slane %v6354, 0
  %v6371 = vperm.slane %v6355, 0
  %v6372 = vperm.slane %v6356, 0
  %v6373 = vperm.slane %v6357, 0
  %v6374 = vperm.slane %v6358, 0
  %v6375 = vperm.slane %v6359, 0
  %v6376 = vperm.slane %v6360, 0
  %v6377 = vunpack.c.l.b16 %v6369
  %v6378 = vunpack.c.l.b16 %v6370
  %v6379 = vunpack.c.l.b16 %v6371
  %v6380 = vunpack.c.l.b16 %v6372
  %v6381 = vunpack.c.l.b16 %v6373
  %v6382 = vunpack.c.l.b16 %v6374
  %v6383 = vunpack.c.l.b16 %v6375
  %v6384 = vunpack.c.l.b16 %v6376
  %v6385 = vsel %vm308, %v6378, %v6377
  %v6386 = vsel %vm310, %v6379, %v6385
  %v6387 = vsel %vm312, %v6380, %v6386
  %v6388 = vsel %vm314, %v6381, %v6387
  %v6389 = vsel %vm316, %v6382, %v6388
  %v6390 = vsel %vm318, %v6383, %v6389
  %v6391 = vsel %vm320, %v6384, %v6390
  %v6392 = vpack.c.b16 %v6391, %v6391
  %s6394 = scalar_lea.vmem %s2, 128
  %v6395 = vld [vmem:[%s6394] sm:$0xff]
  %v6396 = vld [vmem:[%s6394 + $0x8] sm:$0xff]
  %v6397 = vld [vmem:[%s6394 + $0x10] sm:$0xff]
  %v6398 = vld [vmem:[%s6394 + $0x18] sm:$0xff]
  %v6399 = vld [vmem:[%s9] sm:$0xff]
  %v6400 = vld [vmem:[%s9 + $0x8] sm:$0xff]
  %v6401 = vld [vmem:[%s9 + $0x10] sm:$0xff]
  %v6402 = vld [vmem:[%s9 + $0x18] sm:$0xff]
  %v6403 = vld [vmem:[%s9 + $0x20] sm:$0xff]
  %v6404 = vld [vmem:[%s9 + $0x28] sm:$0xff]
  %v6405 = vld [vmem:[%s9 + $0x30] sm:$0xff]
  %v6406 = vld [vmem:[%s9 + $0x38] sm:$0xff]
  %v6407 = vld [vmem:[%s9 + $0x40] sm:$0xff]
  %v6408 = vld [vmem:[%s9 + $0x48] sm:$0xff]
  %v6409 = vld [vmem:[%s9 + $0x50] sm:$0xff]
  %v6410 = vld [vmem:[%s9 + $0x58] sm:$0xff]
  %v6411 = vld [vmem:[%s9 + $0x60] sm:$0xff]
  %v6412 = vld [vmem:[%s9 + $0x68] sm:$0xff]
  %v6413 = vld [vmem:[%s9 + $0x70] sm:$0xff]
  %v6414 = vld [vmem:[%s9 + $0x78] sm:$0xff]
  %v6415 = vld [vmem:[%s9 + $0x80] sm:$0xff]
  %v6416 = vld [vmem:[%s9 + $0x88] sm:$0xff]
  %v6417 = vld [vmem:[%s9 + $0x90] sm:$0xff]
  %v6418 = vld [vmem:[%s9 + $0x98] sm:$0xff]
  %v6419 = vld [vmem:[%s9 + $0xa0] sm:$0xff]
  %v6420 = vld [vmem:[%s9 + $0xa8] sm:$0xff]
  %v6421 = vld [vmem:[%s9 + $0xb0] sm:$0xff]
  %v6422 = vld [vmem:[%s9 + $0xb8] sm:$0xff]
  %v6423 = vld [vmem:[%s9 + $0xc0] sm:$0xff]
  %v6424 = vld [vmem:[%s9 + $0xc8] sm:$0xff]
  %v6425 = vld [vmem:[%s9 + $0xd0] sm:$0xff]
  %v6426 = vld [vmem:[%s9 + $0xd8] sm:$0xff]
  %v6427 = vld [vmem:[%s9 + $0xe0] sm:$0xff]
  %v6428 = vld [vmem:[%s9 + $0xe8] sm:$0xff]
  %v6429 = vld [vmem:[%s9 + $0xf0] sm:$0xff]
  %v6430 = vld [vmem:[%s9 + $0xf8] sm:$0xff]
  %v6431 = vld [vmem:[%s9 + $0x100] sm:$0xff]
  %v6432 = vld [vmem:[%s9 + $0x108] sm:$0xff]
  %v6433 = vld [vmem:[%s9 + $0x110] sm:$0xff]
  %v6434 = vld [vmem:[%s9 + $0x118] sm:$0xff]
  %v6435 = vld [vmem:[%s9 + $0x120] sm:$0xff]
  %v6436 = vld [vmem:[%s9 + $0x128] sm:$0xff]
  %v6437 = vld [vmem:[%s9 + $0x130] sm:$0xff]
  %v6438 = vld [vmem:[%s9 + $0x138] sm:$0xff]
  %v6439 = vld [vmem:[%s9 + $0x140] sm:$0xff]
  %v6440 = vld [vmem:[%s9 + $0x148] sm:$0xff]
  %v6441 = vld [vmem:[%s9 + $0x150] sm:$0xff]
  %v6442 = vld [vmem:[%s9 + $0x158] sm:$0xff]
  %v6443 = vld [vmem:[%s9 + $0x160] sm:$0xff]
  %v6444 = vld [vmem:[%s9 + $0x168] sm:$0xff]
  %v6445 = vld [vmem:[%s9 + $0x170] sm:$0xff]
  %v6446 = vld [vmem:[%s9 + $0x178] sm:$0xff]
  %v6447 = vld [vmem:[%s9 + $0x180] sm:$0xff]
  %v6448 = vld [vmem:[%s9 + $0x188] sm:$0xff]
  %v6449 = vld [vmem:[%s9 + $0x190] sm:$0xff]
  %v6450 = vld [vmem:[%s9 + $0x198] sm:$0xff]
  %v6451 = vld [vmem:[%s9 + $0x1a0] sm:$0xff]
  %v6452 = vld [vmem:[%s9 + $0x1a8] sm:$0xff]
  %v6453 = vld [vmem:[%s9 + $0x1b0] sm:$0xff]
  %v6454 = vld [vmem:[%s9 + $0x1b8] sm:$0xff]
  %v6455 = vld [vmem:[%s9 + $0x1c0] sm:$0xff]
  %v6456 = vld [vmem:[%s9 + $0x1c8] sm:$0xff]
  %v6457 = vld [vmem:[%s9 + $0x1d0] sm:$0xff]
  %v6458 = vld [vmem:[%s9 + $0x1d8] sm:$0xff]
  %v6459 = vld [vmem:[%s9 + $0x1e0] sm:$0xff]
  %v6460 = vld [vmem:[%s9 + $0x1e8] sm:$0xff]
  %v6461 = vld [vmem:[%s9 + $0x1f0] sm:$0xff]
  %v6462 = vld [vmem:[%s9 + $0x1f8] sm:$0xff]
  %v6527 = vunpack.c.l.b16 %v6399
  %v6528 = vunpack.c.h.b16 %v6399
  %v6529 = vunpack.c.l.b16 %v6400
  %v6530 = vunpack.c.h.b16 %v6400
  %v6531 = vunpack.c.l.b16 %v6401
  %v6532 = vunpack.c.h.b16 %v6401
  %v6533 = vunpack.c.l.b16 %v6402
  %v6534 = vunpack.c.h.b16 %v6402
  %v6535 = vunpack.c.l.b16 %v6403
  %v6536 = vunpack.c.h.b16 %v6403
  %v6537 = vunpack.c.l.b16 %v6404
  %v6538 = vunpack.c.h.b16 %v6404
  %v6539 = vunpack.c.l.b16 %v6405
  %v6540 = vunpack.c.h.b16 %v6405
  %v6541 = vunpack.c.l.b16 %v6406
  %v6542 = vunpack.c.h.b16 %v6406
  %v6543 = vunpack.c.l.b16 %v6407
  %v6544 = vunpack.c.h.b16 %v6407
  %v6545 = vunpack.c.l.b16 %v6408
  %v6546 = vunpack.c.h.b16 %v6408
  %v6547 = vunpack.c.l.b16 %v6409
  %v6548 = vunpack.c.h.b16 %v6409
  %v6549 = vunpack.c.l.b16 %v6410
  %v6550 = vunpack.c.h.b16 %v6410
  %v6551 = vunpack.c.l.b16 %v6411
  %v6552 = vunpack.c.h.b16 %v6411
  %v6553 = vunpack.c.l.b16 %v6412
  %v6554 = vunpack.c.h.b16 %v6412
  %v6555 = vunpack.c.l.b16 %v6413
  %v6556 = vunpack.c.h.b16 %v6413
  %v6557 = vunpack.c.l.b16 %v6414
  %v6558 = vunpack.c.h.b16 %v6414
  %v6559 = vunpack.c.l.b16 %v6415
  %v6560 = vunpack.c.h.b16 %v6415
  %v6561 = vunpack.c.l.b16 %v6416
  %v6562 = vunpack.c.h.b16 %v6416
  %v6563 = vunpack.c.l.b16 %v6417
  %v6564 = vunpack.c.h.b16 %v6417
  %v6565 = vunpack.c.l.b16 %v6418
  %v6566 = vunpack.c.h.b16 %v6418
  %v6567 = vunpack.c.l.b16 %v6419
  %v6568 = vunpack.c.h.b16 %v6419
  %v6569 = vunpack.c.l.b16 %v6420
  %v6570 = vunpack.c.h.b16 %v6420
  %v6571 = vunpack.c.l.b16 %v6421
  %v6572 = vunpack.c.h.b16 %v6421
  %v6573 = vunpack.c.l.b16 %v6422
  %v6574 = vunpack.c.h.b16 %v6422
  %v6575 = vunpack.c.l.b16 %v6423
  %v6576 = vunpack.c.h.b16 %v6423
  %v6577 = vunpack.c.l.b16 %v6424
  %v6578 = vunpack.c.h.b16 %v6424
  %v6579 = vunpack.c.l.b16 %v6425
  %v6580 = vunpack.c.h.b16 %v6425
  %v6581 = vunpack.c.l.b16 %v6426
  %v6582 = vunpack.c.h.b16 %v6426
  %v6583 = vunpack.c.l.b16 %v6427
  %v6584 = vunpack.c.h.b16 %v6427
  %v6585 = vunpack.c.l.b16 %v6428
  %v6586 = vunpack.c.h.b16 %v6428
  %v6587 = vunpack.c.l.b16 %v6429
  %v6588 = vunpack.c.h.b16 %v6429
  %v6589 = vunpack.c.l.b16 %v6430
  %v6590 = vunpack.c.h.b16 %v6430
  %v6591 = vunpack.c.l.b16 %v6431
  %v6592 = vunpack.c.h.b16 %v6431
  %v6593 = vunpack.c.l.b16 %v6432
  %v6594 = vunpack.c.h.b16 %v6432
  %v6595 = vunpack.c.l.b16 %v6433
  %v6596 = vunpack.c.h.b16 %v6433
  %v6597 = vunpack.c.l.b16 %v6434
  %v6598 = vunpack.c.h.b16 %v6434
  %v6599 = vunpack.c.l.b16 %v6435
  %v6600 = vunpack.c.h.b16 %v6435
  %v6601 = vunpack.c.l.b16 %v6436
  %v6602 = vunpack.c.h.b16 %v6436
  %v6603 = vunpack.c.l.b16 %v6437
  %v6604 = vunpack.c.h.b16 %v6437
  %v6605 = vunpack.c.l.b16 %v6438
  %v6606 = vunpack.c.h.b16 %v6438
  %v6607 = vunpack.c.l.b16 %v6439
  %v6608 = vunpack.c.h.b16 %v6439
  %v6609 = vunpack.c.l.b16 %v6440
  %v6610 = vunpack.c.h.b16 %v6440
  %v6611 = vunpack.c.l.b16 %v6441
  %v6612 = vunpack.c.h.b16 %v6441
  %v6613 = vunpack.c.l.b16 %v6442
  %v6614 = vunpack.c.h.b16 %v6442
  %v6615 = vunpack.c.l.b16 %v6443
  %v6616 = vunpack.c.h.b16 %v6443
  %v6617 = vunpack.c.l.b16 %v6444
  %v6618 = vunpack.c.h.b16 %v6444
  %v6619 = vunpack.c.l.b16 %v6445
  %v6620 = vunpack.c.h.b16 %v6445
  %v6621 = vunpack.c.l.b16 %v6446
  %v6622 = vunpack.c.h.b16 %v6446
  %v6623 = vunpack.c.l.b16 %v6447
  %v6624 = vunpack.c.h.b16 %v6447
  %v6625 = vunpack.c.l.b16 %v6448
  %v6626 = vunpack.c.h.b16 %v6448
  %v6627 = vunpack.c.l.b16 %v6449
  %v6628 = vunpack.c.h.b16 %v6449
  %v6629 = vunpack.c.l.b16 %v6450
  %v6630 = vunpack.c.h.b16 %v6450
  %v6631 = vunpack.c.l.b16 %v6451
  %v6632 = vunpack.c.h.b16 %v6451
  %v6633 = vunpack.c.l.b16 %v6452
  %v6634 = vunpack.c.h.b16 %v6452
  %v6635 = vunpack.c.l.b16 %v6453
  %v6636 = vunpack.c.h.b16 %v6453
  %v6637 = vunpack.c.l.b16 %v6454
  %v6638 = vunpack.c.h.b16 %v6454
  %v6639 = vunpack.c.l.b16 %v6455
  %v6640 = vunpack.c.h.b16 %v6455
  %v6641 = vunpack.c.l.b16 %v6456
  %v6642 = vunpack.c.h.b16 %v6456
  %v6643 = vunpack.c.l.b16 %v6457
  %v6644 = vunpack.c.h.b16 %v6457
  %v6645 = vunpack.c.l.b16 %v6458
  %v6646 = vunpack.c.h.b16 %v6458
  %v6647 = vunpack.c.l.b16 %v6459
  %v6648 = vunpack.c.h.b16 %v6459
  %v6649 = vunpack.c.l.b16 %v6460
  %v6650 = vunpack.c.h.b16 %v6460
  %v6651 = vunpack.c.l.b16 %v6461
  %v6652 = vunpack.c.h.b16 %v6461
  %v6653 = vunpack.c.l.b16 %v6462
  %v6654 = vunpack.c.h.b16 %v6462
  %v6655 = vpack.c.b16 %v6531, %v6527
  %v6656 = vpack.c.b16 %v6532, %v6528
  %v6657 = vpack.c.b16 %v6533, %v6529
  %v6658 = vpack.c.b16 %v6534, %v6530
  %v6659 = vpack.c.b16 %v6539, %v6535
  %v6660 = vpack.c.b16 %v6540, %v6536
  %v6661 = vpack.c.b16 %v6541, %v6537
  %v6662 = vpack.c.b16 %v6542, %v6538
  %v6663 = vpack.c.b16 %v6547, %v6543
  %v6664 = vpack.c.b16 %v6548, %v6544
  %v6665 = vpack.c.b16 %v6549, %v6545
  %v6666 = vpack.c.b16 %v6550, %v6546
  %v6667 = vpack.c.b16 %v6555, %v6551
  %v6668 = vpack.c.b16 %v6556, %v6552
  %v6669 = vpack.c.b16 %v6557, %v6553
  %v6670 = vpack.c.b16 %v6558, %v6554
  %v6671 = vpack.c.b16 %v6563, %v6559
  %v6672 = vpack.c.b16 %v6564, %v6560
  %v6673 = vpack.c.b16 %v6565, %v6561
  %v6674 = vpack.c.b16 %v6566, %v6562
  %v6675 = vpack.c.b16 %v6571, %v6567
  %v6676 = vpack.c.b16 %v6572, %v6568
  %v6677 = vpack.c.b16 %v6573, %v6569
  %v6678 = vpack.c.b16 %v6574, %v6570
  %v6679 = vpack.c.b16 %v6579, %v6575
  %v6680 = vpack.c.b16 %v6580, %v6576
  %v6681 = vpack.c.b16 %v6581, %v6577
  %v6682 = vpack.c.b16 %v6582, %v6578
  %v6683 = vpack.c.b16 %v6587, %v6583
  %v6684 = vpack.c.b16 %v6588, %v6584
  %v6685 = vpack.c.b16 %v6589, %v6585
  %v6686 = vpack.c.b16 %v6590, %v6586
  %v6687 = vpack.c.b16 %v6595, %v6591
  %v6688 = vpack.c.b16 %v6596, %v6592
  %v6689 = vpack.c.b16 %v6597, %v6593
  %v6690 = vpack.c.b16 %v6598, %v6594
  %v6691 = vpack.c.b16 %v6603, %v6599
  %v6692 = vpack.c.b16 %v6604, %v6600
  %v6693 = vpack.c.b16 %v6605, %v6601
  %v6694 = vpack.c.b16 %v6606, %v6602
  %v6695 = vpack.c.b16 %v6611, %v6607
  %v6696 = vpack.c.b16 %v6612, %v6608
  %v6697 = vpack.c.b16 %v6613, %v6609
  %v6698 = vpack.c.b16 %v6614, %v6610
  %v6699 = vpack.c.b16 %v6619, %v6615
  %v6700 = vpack.c.b16 %v6620, %v6616
  %v6701 = vpack.c.b16 %v6621, %v6617
  %v6702 = vpack.c.b16 %v6622, %v6618
  %v6703 = vpack.c.b16 %v6627, %v6623
  %v6704 = vpack.c.b16 %v6628, %v6624
  %v6705 = vpack.c.b16 %v6629, %v6625
  %v6706 = vpack.c.b16 %v6630, %v6626
  %v6707 = vpack.c.b16 %v6635, %v6631
  %v6708 = vpack.c.b16 %v6636, %v6632
  %v6709 = vpack.c.b16 %v6637, %v6633
  %v6710 = vpack.c.b16 %v6638, %v6634
  %v6711 = vpack.c.b16 %v6643, %v6639
  %v6712 = vpack.c.b16 %v6644, %v6640
  %v6713 = vpack.c.b16 %v6645, %v6641
  %v6714 = vpack.c.b16 %v6646, %v6642
  %v6715 = vpack.c.b16 %v6651, %v6647
  %v6716 = vpack.c.b16 %v6652, %v6648
  %v6717 = vpack.c.b16 %v6653, %v6649
  %v6718 = vpack.c.b16 %v6654, %v6650
  %6783 = vmatpush.bf16.msra.mxu0 %v6683
  %6784 = vmatpush.bf16.msra.mxu0 %v6679
  %6785 = vmatpush.bf16.msra.mxu0 %v6675
  %6786 = vmatpush.bf16.msra.mxu0 %v6671
  %6787 = vmatpush.bf16.msra.mxu0 %v6667
  %6788 = vmatpush.bf16.msra.mxu0 %v6663
  %6789 = vmatpush.bf16.msra.mxu0 %v6659
  %6790 = vmatpush.bf16.msra.mxu0 %v6655
  %6791 = vmatmul.bf16.gmra.mxu0 %v6392
  %v6792 = vpop.f32.mrf.mxu0
  %v6793 = vadd.f32 0.0, %v6792
  %v6794 = vpop.f32.mrf.mxu0
  %6795 = vdwg.mxu0
  %6796 = vmatpush.bf16.msra.mxu0 %v6715
  %6797 = vmatpush.bf16.msra.mxu0 %v6711
  %6798 = vmatpush.bf16.msra.mxu0 %v6707
  %6799 = vmatpush.bf16.msra.mxu0 %v6703
  %6800 = vmatpush.bf16.msra.mxu0 %v6699
  %6801 = vmatpush.bf16.msra.mxu0 %v6695
  %6802 = vmatpush.bf16.msra.mxu0 %v6691
  %6803 = vmatpush.bf16.msra.mxu0 %v6687
  %6804 = vmatmul.bf16.gmra.mxu0 %v5603
  %v6805 = vpop.f32.mrf.mxu0
  %v6806 = vadd.f32 %v6793, %v6805
  %v6807 = vpop.f32.mrf.mxu0
  %6808 = vdwg.mxu0
  %6809 = vmatpush.bf16.msra.mxu0 %v6684
  %6810 = vmatpush.bf16.msra.mxu0 %v6680
  %6811 = vmatpush.bf16.msra.mxu0 %v6676
  %6812 = vmatpush.bf16.msra.mxu0 %v6672
  %6813 = vmatpush.bf16.msra.mxu0 %v6668
  %6814 = vmatpush.bf16.msra.mxu0 %v6664
  %6815 = vmatpush.bf16.msra.mxu0 %v6660
  %6816 = vmatpush.bf16.msra.mxu0 %v6656
  %6817 = vmatmul.bf16.gmra.mxu0 %v6392
  %v6818 = vpop.f32.mrf.mxu0
  %v6819 = vadd.f32 0.0, %v6818
  %v6820 = vpop.f32.mrf.mxu0
  %6821 = vdwg.mxu0
  %6822 = vmatpush.bf16.msra.mxu0 %v6716
  %6823 = vmatpush.bf16.msra.mxu0 %v6712
  %6824 = vmatpush.bf16.msra.mxu0 %v6708
  %6825 = vmatpush.bf16.msra.mxu0 %v6704
  %6826 = vmatpush.bf16.msra.mxu0 %v6700
  %6827 = vmatpush.bf16.msra.mxu0 %v6696
  %6828 = vmatpush.bf16.msra.mxu0 %v6692
  %6829 = vmatpush.bf16.msra.mxu0 %v6688
  %6830 = vmatmul.bf16.gmra.mxu0 %v5603
  %v6831 = vpop.f32.mrf.mxu0
  %v6832 = vadd.f32 %v6819, %v6831
  %v6833 = vpop.f32.mrf.mxu0
  %6834 = vdwg.mxu0
  %6835 = vmatpush.bf16.msra.mxu0 %v6685
  %6836 = vmatpush.bf16.msra.mxu0 %v6681
  %6837 = vmatpush.bf16.msra.mxu0 %v6677
  %6838 = vmatpush.bf16.msra.mxu0 %v6673
  %6839 = vmatpush.bf16.msra.mxu0 %v6669
  %6840 = vmatpush.bf16.msra.mxu0 %v6665
  %6841 = vmatpush.bf16.msra.mxu0 %v6661
  %6842 = vmatpush.bf16.msra.mxu0 %v6657
  %6843 = vmatmul.bf16.gmra.mxu0 %v6392
  %v6844 = vpop.f32.mrf.mxu0
  %v6845 = vadd.f32 0.0, %v6844
  %v6846 = vpop.f32.mrf.mxu0
  %6847 = vdwg.mxu0
  %6848 = vmatpush.bf16.msra.mxu0 %v6717
  %6849 = vmatpush.bf16.msra.mxu0 %v6713
  %6850 = vmatpush.bf16.msra.mxu0 %v6709
  %6851 = vmatpush.bf16.msra.mxu0 %v6705
  %6852 = vmatpush.bf16.msra.mxu0 %v6701
  %6853 = vmatpush.bf16.msra.mxu0 %v6697
  %6854 = vmatpush.bf16.msra.mxu0 %v6693
  %6855 = vmatpush.bf16.msra.mxu0 %v6689
  %6856 = vmatmul.bf16.gmra.mxu0 %v5603
  %v6857 = vpop.f32.mrf.mxu0
  %v6858 = vadd.f32 %v6845, %v6857
  %v6859 = vpop.f32.mrf.mxu0
  %6860 = vdwg.mxu0
  %6861 = vmatpush.bf16.msra.mxu0 %v6686
  %6862 = vmatpush.bf16.msra.mxu0 %v6682
  %6863 = vmatpush.bf16.msra.mxu0 %v6678
  %6864 = vmatpush.bf16.msra.mxu0 %v6674
  %6865 = vmatpush.bf16.msra.mxu0 %v6670
  %6866 = vmatpush.bf16.msra.mxu0 %v6666
  %6867 = vmatpush.bf16.msra.mxu0 %v6662
  %6868 = vmatpush.bf16.msra.mxu0 %v6658
  %6869 = vmatmul.bf16.gmra.mxu0 %v6392
  %v6870 = vpop.f32.mrf.mxu0
  %v6871 = vadd.f32 0.0, %v6870
  %v6872 = vpop.f32.mrf.mxu0
  %6873 = vdwg.mxu0
  %6874 = vmatpush.bf16.msra.mxu0 %v6718
  %6875 = vmatpush.bf16.msra.mxu0 %v6714
  %6876 = vmatpush.bf16.msra.mxu0 %v6710
  %6877 = vmatpush.bf16.msra.mxu0 %v6706
  %6878 = vmatpush.bf16.msra.mxu0 %v6702
  %6879 = vmatpush.bf16.msra.mxu0 %v6698
  %6880 = vmatpush.bf16.msra.mxu0 %v6694
  %6881 = vmatpush.bf16.msra.mxu0 %v6690
  %6882 = vmatmul.bf16.gmra.mxu0 %v5603
  %v6883 = vpop.f32.mrf.mxu0
  %v6884 = vadd.f32 %v6871, %v6883
  %v6885 = vpop.f32.mrf.mxu0
  %6886 = vdwg.mxu0
  %v6887 = vadd.f32 %v6395, %v6806
  %v6888 = vadd.f32 %v6396, %v6832
  %v6889 = vadd.f32 %v6397, %v6858
  %v6890 = vadd.f32 %v6398, %v6884
  %v6891 = vxor.u32 %v6887, 2147483648
  %v6892 = vmul.f32 %v6891, 1.442695
  %v6893 = vpow.pop %v6892
  %v6894 = vadd.f32 %v6893, 1.0
  %v6895 = vrcp.pop %v6894
  %v6896 = vmul.f32 %v6894, %v6895
  %v6897 = vsub.f32 1.0, %v6896
  %v6898 = vmul.f32 %v6895, %v6897
  %v6899 = vadd.f32 %v6895, %v6898
  %vm6900 = vweird.f32 %v6894
  %vm6901 = vweird.f32 %v6895
  %vm6902 = vmor %vm6900, %vm6901
  %v6903 = vsel %vm6902, %v6895, %v6899
  %v6904 = vand.u32 2147483647, %v6894
  %vm6905 = vcmp.eq.f32.partialorder %v6904, 8.507059e+37
  %v6906 = vand.u32 %v6894, 2147483648
  %v6907 = vor.u32 1.1754944e-38, %v6906
  %v6908 = vsel %vm6905, %v6907, %v6903
  %v6909 = vmul.f32 1.0, %v6908
  %v6910 = vxor.u32 %v6888, 2147483648
  %v6911 = vmul.f32 %v6910, 1.442695
  %v6912 = vpow.pop %v6911
  %v6913 = vadd.f32 %v6912, 1.0
  %v6914 = vrcp.pop %v6913
  %v6915 = vmul.f32 %v6913, %v6914
  %v6916 = vsub.f32 1.0, %v6915
  %v6917 = vmul.f32 %v6914, %v6916
  %v6918 = vadd.f32 %v6914, %v6917
  %vm6919 = vweird.f32 %v6913
  %vm6920 = vweird.f32 %v6914
  %vm6921 = vmor %vm6919, %vm6920
  %v6922 = vsel %vm6921, %v6914, %v6918
  %v6923 = vand.u32 2147483647, %v6913
  %vm6924 = vcmp.eq.f32.partialorder %v6923, 8.507059e+37
  %v6925 = vand.u32 %v6913, 2147483648
  %v6926 = vor.u32 1.1754944e-38, %v6925
  %v6927 = vsel %vm6924, %v6926, %v6922
  %v6928 = vmul.f32 1.0, %v6927
  %v6929 = vtanh.pop %v6889
  %v6930 = vxor.u32 %v6890, 2147483648
  %v6931 = vmul.f32 %v6930, 1.442695
  %v6932 = vpow.pop %v6931
  %v6933 = vadd.f32 %v6932, 1.0
  %v6934 = vrcp.pop %v6933
  %v6935 = vmul.f32 %v6933, %v6934
  %v6936 = vsub.f32 1.0, %v6935
  %v6937 = vmul.f32 %v6934, %v6936
  %v6938 = vadd.f32 %v6934, %v6937
  %vm6939 = vweird.f32 %v6933
  %vm6940 = vweird.f32 %v6934
  %vm6941 = vmor %vm6939, %vm6940
  %v6942 = vsel %vm6941, %v6934, %v6938
  %v6943 = vand.u32 2147483647, %v6933
  %vm6944 = vcmp.eq.f32.partialorder %v6943, 8.507059e+37
  %v6945 = vand.u32 %v6933, 2147483648
  %v6946 = vor.u32 1.1754944e-38, %v6945
  %v6947 = vsel %vm6944, %v6946, %v6942
  %v6948 = vmul.f32 1.0, %v6947
  %v6949 = vmul.f32 %v6928, %v5563
  %v6950 = vmul.f32 %v6909, %v6929
  %v6951 = vadd.f32 %v6949, %v6950
  %v6952 = vtanh.pop %v6951
  %v6953 = vmul.f32 %v6948, %v6952
  %s6954 = scalar_lea.vmem %s10, 32
  %6955 = vst [vmem:[%s6954] sm:$0xff] %v6953
  %v6956 = vperm.slane %v6204, %v281
  %v6957 = vperm.slane %v6209, %v283
  %v6958 = vsel %vm285, %v6957, %v6956
  %v6959 = vperm.slane %v6214, %v281
  %v6960 = vperm.slane %v6219, %v283
  %v6961 = vsel %vm285, %v6960, %v6959
  %v6962 = vperm.slane %v6224, %v281
  %v6963 = vperm.slane %v6229, %v283
  %v6964 = vsel %vm285, %v6963, %v6962
  %v6965 = vperm.slane %v6234, %v281
  %v6966 = vperm.slane %v6239, %v283
  %v6967 = vsel %vm285, %v6966, %v6965
  %v6968 = vperm.slane %v6244, %v281
  %v6969 = vperm.slane %v6249, %v283
  %v6970 = vsel %vm285, %v6969, %v6968
  %v6971 = vperm.slane %v6254, %v281
  %v6972 = vperm.slane %v6259, %v283
  %v6973 = vsel %vm285, %v6972, %v6971
  %v6974 = vperm.slane %v6264, %v281
  %v6975 = vperm.slane %v6269, %v283
  %v6976 = vsel %vm285, %v6975, %v6974
  %v6977 = vperm.slane %v6274, %v281
  %v6978 = vperm.slane %v6279, %v283
  %v6979 = vsel %vm285, %v6978, %v6977
  %v6980 = vsel %vm308, %v6961, %v6958
  %v6981 = vsel %vm310, %v6964, %v6980
  %v6982 = vsel %vm312, %v6967, %v6981
  %v6983 = vsel %vm314, %v6970, %v6982
  %v6984 = vsel %vm316, %v6973, %v6983
  %v6985 = vsel %vm318, %v6976, %v6984
  %v6986 = vsel %vm320, %v6979, %v6985
  %v6988 = vsel %vm323, %v6986, 0.0
  %s6989 = scalar_lea.vmem %s11, 32
  %6990 = vst [vmem:[%s6989] sm:$0xff] %v6988
  %v6991 = vpack.c.bf16 %v6953, %v6953
  %v6992 = vld [vmem:[%s5] sm:$0xf]
  %v6993 = vld [vmem:[%s5 + $0x4] sm:$0xf]
  %v6994 = vld [vmem:[%s5 + $0x8] sm:$0xf]
  %v6995 = vld [vmem:[%s5 + $0xc] sm:$0xf]
  %v6996 = vld [vmem:[%s5 + $0x10] sm:$0xf]
  %v6997 = vld [vmem:[%s5 + $0x14] sm:$0xf]
  %v6998 = vld [vmem:[%s5 + $0x18] sm:$0xf]
  %v6999 = vld [vmem:[%s5 + $0x1c] sm:$0xf]
  %v7000 = vld [vmem:[%s5 + $0x20] sm:$0xf]
  %v7001 = vld [vmem:[%s5 + $0x24] sm:$0xf]
  %v7002 = vld [vmem:[%s5 + $0x28] sm:$0xf]
  %v7003 = vld [vmem:[%s5 + $0x2c] sm:$0xf]
  %v7004 = vld [vmem:[%s5 + $0x30] sm:$0xf]
  %v7005 = vld [vmem:[%s5 + $0x34] sm:$0xf]
  %v7006 = vld [vmem:[%s5 + $0x38] sm:$0xf]
  %v7007 = vld [vmem:[%s5 + $0x3c] sm:$0xf]
  %v7008 = vld [vmem:[%s6] sm:$0x1]
  %v7010 = vperm.slane %v7008, 0
  %v7028 = vunpack.c.l.b16 %v6992
  %v7029 = vunpack.c.l.b16 %v6993
  %v7030 = vunpack.c.l.b16 %v6994
  %v7031 = vunpack.c.l.b16 %v6995
  %v7032 = vunpack.c.l.b16 %v6996
  %v7033 = vunpack.c.l.b16 %v6997
  %v7034 = vunpack.c.l.b16 %v6998
  %v7035 = vunpack.c.l.b16 %v6999
  %v7036 = vunpack.c.l.b16 %v7000
  %v7037 = vunpack.c.l.b16 %v7001
  %v7038 = vunpack.c.l.b16 %v7002
  %v7039 = vunpack.c.l.b16 %v7003
  %v7040 = vunpack.c.l.b16 %v7004
  %v7041 = vunpack.c.l.b16 %v7005
  %v7042 = vunpack.c.l.b16 %v7006
  %v7043 = vunpack.c.l.b16 %v7007
  %v7044 = vpack.c.b16 %v7029, %v7028
  %v7045 = vpack.c.b16 %v7031, %v7030
  %v7046 = vpack.c.b16 %v7033, %v7032
  %v7047 = vpack.c.b16 %v7035, %v7034
  %v7048 = vpack.c.b16 %v7037, %v7036
  %v7049 = vpack.c.b16 %v7039, %v7038
  %v7050 = vpack.c.b16 %v7041, %v7040
  %v7051 = vpack.c.b16 %v7043, %v7042
  %7060 = vmatpush.bf16.msra.mxu0 %v7051
  %7061 = vmatpush.bf16.msra.mxu0 %v7050
  %7062 = vmatpush.bf16.msra.mxu0 %v7049
  %7063 = vmatpush.bf16.msra.mxu0 %v7048
  %7064 = vmatpush.bf16.msra.mxu0 %v7047
  %7065 = vmatpush.bf16.msra.mxu0 %v7046
  %7066 = vmatpush.bf16.msra.mxu0 %v7045
  %7067 = vmatpush.bf16.msra.mxu0 %v7044
  %7068 = vmatmul.bf16.gmra.mxu0 %v6991
  %v7069 = vpop.f32.mrf.mxu0
  %v7070 = vadd.f32 %v7010, %v7069
  %v7071 = vpop.f32.mrf.mxu0
  %7072 = vdwg.mxu0
  %v7073 = vld [vmem:[%s1] sm:$0xff]
  %v7074 = vld [vmem:[%s1 + $0x8] sm:$0xff]
  %v7075 = vld [vmem:[%s1 + $0x10] sm:$0xff]
  %v7076 = vld [vmem:[%s1 + $0x18] sm:$0xff]
  %v7077 = vld [vmem:[%s1 + $0x20] sm:$0xff]
  %v7078 = vld [vmem:[%s1 + $0x28] sm:$0xff]
  %v7079 = vld [vmem:[%s1 + $0x30] sm:$0xff]
  %v7080 = vld [vmem:[%s1 + $0x38] sm:$0xff]
  %v7081 = vld [vmem:[%s1 + $0x40] sm:$0xff]
  %v7082 = vld [vmem:[%s1 + $0x48] sm:$0xff]
  %v7083 = vld [vmem:[%s1 + $0x50] sm:$0xff]
  %v7084 = vld [vmem:[%s1 + $0x58] sm:$0xff]
  %v7085 = vld [vmem:[%s1 + $0x60] sm:$0xff]
  %v7086 = vld [vmem:[%s1 + $0x68] sm:$0xff]
  %v7087 = vld [vmem:[%s1 + $0x70] sm:$0xff]
  %v7088 = vld [vmem:[%s1 + $0x78] sm:$0xff]
  %v7090 = vrot.slane %v7070, 1
  %v7091 = vrot.slane %v7070, 2
  %v7092 = vrot.slane %v7070, 3
  %v7093 = vrot.slane %v7070, 4
  %v7094 = vrot.slane %v7070, 5
  %v7095 = vrot.slane %v7070, 6
  %v7096 = vrot.slane %v7070, 7
  %v7097 = vperm.slane %v7070, 0
  %v7098 = vperm.slane %v7090, 0
  %v7099 = vperm.slane %v7091, 0
  %v7100 = vperm.slane %v7092, 0
  %v7101 = vperm.slane %v7093, 0
  %v7102 = vperm.slane %v7094, 0
  %v7103 = vperm.slane %v7095, 0
  %v7104 = vperm.slane %v7096, 0
  %v7113 = vadd.f32 %v7073, %v7097
  %v7114 = vadd.f32 %v7074, %v7097
  %v7115 = vadd.f32 %v7075, %v7098
  %v7116 = vadd.f32 %v7076, %v7098
  %v7117 = vadd.f32 %v7077, %v7099
  %v7118 = vadd.f32 %v7078, %v7099
  %v7119 = vadd.f32 %v7079, %v7100
  %v7120 = vadd.f32 %v7080, %v7100
  %v7121 = vadd.f32 %v7081, %v7101
  %v7122 = vadd.f32 %v7082, %v7101
  %v7123 = vadd.f32 %v7083, %v7102
  %v7124 = vadd.f32 %v7084, %v7102
  %v7125 = vadd.f32 %v7085, %v7103
  %v7126 = vadd.f32 %v7086, %v7103
  %v7127 = vadd.f32 %v7087, %v7104
  %v7128 = vadd.f32 %v7088, %v7104
  %v7129 = vtanh.pop %v7113
  %v7130 = vtanh.pop %v7114
  %v7131 = vtanh.pop %v7115
  %v7132 = vtanh.pop %v7116
  %v7133 = vtanh.pop %v7117
  %v7134 = vtanh.pop %v7118
  %v7135 = vtanh.pop %v7119
  %v7136 = vtanh.pop %v7120
  %v7137 = vtanh.pop %v7121
  %v7138 = vtanh.pop %v7122
  %v7139 = vtanh.pop %v7123
  %v7140 = vtanh.pop %v7124
  %v7141 = vtanh.pop %v7125
  %v7142 = vtanh.pop %v7126
  %v7143 = vtanh.pop %v7127
  %v7144 = vtanh.pop %v7128
  %v7145 = vld [vmem:[%s7] sm:$0x1]
  %v7147 = vperm.slane %v7145, 0
  %v7149 = vmul.f32 %v7129, %v7147
  %v7150 = vmul.f32 %v7130, %v7147
  %v7151 = vmul.f32 %v7131, %v7147
  %v7152 = vmul.f32 %v7132, %v7147
  %v7153 = vmul.f32 %v7133, %v7147
  %v7154 = vmul.f32 %v7134, %v7147
  %v7155 = vmul.f32 %v7135, %v7147
  %v7156 = vmul.f32 %v7136, %v7147
  %v7157 = vmul.f32 %v7137, %v7147
  %v7158 = vmul.f32 %v7138, %v7147
  %v7159 = vmul.f32 %v7139, %v7147
  %v7160 = vmul.f32 %v7140, %v7147
  %v7161 = vmul.f32 %v7141, %v7147
  %v7162 = vmul.f32 %v7142, %v7147
  %v7163 = vmul.f32 %v7143, %v7147
  %v7164 = vmul.f32 %v7144, %v7147
  %7165 = vadd.xlane.f32.xlu0 %v7149
  %v7166 = vpop.xlane.xlu0 %7165
  %7167 = vadd.xlane.f32.xlu0 %v7150
  %v7168 = vpop.xlane.xlu0 %7167
  %7169 = vadd.xlane.f32.xlu0 %v7151
  %v7170 = vpop.xlane.xlu0 %7169
  %7171 = vadd.xlane.f32.xlu0 %v7152
  %v7172 = vpop.xlane.xlu0 %7171
  %7173 = vadd.xlane.f32.xlu0 %v7153
  %v7174 = vpop.xlane.xlu0 %7173
  %7175 = vadd.xlane.f32.xlu0 %v7154
  %v7176 = vpop.xlane.xlu0 %7175
  %7177 = vadd.xlane.f32.xlu0 %v7155
  %v7178 = vpop.xlane.xlu0 %7177
  %7179 = vadd.xlane.f32.xlu0 %v7156
  %v7180 = vpop.xlane.xlu0 %7179
  %7181 = vadd.xlane.f32.xlu0 %v7157
  %v7182 = vpop.xlane.xlu0 %7181
  %7183 = vadd.xlane.f32.xlu0 %v7158
  %v7184 = vpop.xlane.xlu0 %7183
  %7185 = vadd.xlane.f32.xlu0 %v7159
  %v7186 = vpop.xlane.xlu0 %7185
  %7187 = vadd.xlane.f32.xlu0 %v7160
  %v7188 = vpop.xlane.xlu0 %7187
  %7189 = vadd.xlane.f32.xlu0 %v7161
  %v7190 = vpop.xlane.xlu0 %7189
  %7191 = vadd.xlane.f32.xlu0 %v7162
  %v7192 = vpop.xlane.xlu0 %7191
  %7193 = vadd.xlane.f32.xlu0 %v7163
  %v7194 = vpop.xlane.xlu0 %7193
  %7195 = vadd.xlane.f32.xlu0 %v7164
  %v7196 = vpop.xlane.xlu0 %7195
  %v7197 = vadd.f32 %v7166, %v247
  %v7198 = vadd.f32 %v7168, %v247
  %v7199 = vadd.f32 %v7170, %v247
  %v7200 = vadd.f32 %v7172, %v247
  %v7201 = vadd.f32 %v7174, %v247
  %v7202 = vadd.f32 %v7176, %v247
  %v7203 = vadd.f32 %v7178, %v247
  %v7204 = vadd.f32 %v7180, %v247
  %v7205 = vadd.f32 %v7182, %v247
  %v7206 = vadd.f32 %v7184, %v247
  %v7207 = vadd.f32 %v7186, %v247
  %v7208 = vadd.f32 %v7188, %v247
  %v7209 = vadd.f32 %v7190, %v247
  %v7210 = vadd.f32 %v7192, %v247
  %v7211 = vadd.f32 %v7194, %v247
  %v7212 = vadd.f32 %v7196, %v247
  %v7229 = vperm.slane %v7197, %v281
  %v7230 = vperm.slane %v7198, %v283
  %v7231 = vsel %vm285, %v7230, %v7229
  %v7232 = vperm.slane %v7199, %v281
  %v7233 = vperm.slane %v7200, %v283
  %v7234 = vsel %vm285, %v7233, %v7232
  %v7235 = vperm.slane %v7201, %v281
  %v7236 = vperm.slane %v7202, %v283
  %v7237 = vsel %vm285, %v7236, %v7235
  %v7238 = vperm.slane %v7203, %v281
  %v7239 = vperm.slane %v7204, %v283
  %v7240 = vsel %vm285, %v7239, %v7238
  %v7241 = vperm.slane %v7205, %v281
  %v7242 = vperm.slane %v7206, %v283
  %v7243 = vsel %vm285, %v7242, %v7241
  %v7244 = vperm.slane %v7207, %v281
  %v7245 = vperm.slane %v7208, %v283
  %v7246 = vsel %vm285, %v7245, %v7244
  %v7247 = vperm.slane %v7209, %v281
  %v7248 = vperm.slane %v7210, %v283
  %v7249 = vsel %vm285, %v7248, %v7247
  %v7250 = vperm.slane %v7211, %v281
  %v7251 = vperm.slane %v7212, %v283
  %v7252 = vsel %vm285, %v7251, %v7250
  %v7253 = vsel %vm308, %v7234, %v7231
  %v7254 = vsel %vm310, %v7237, %v7253
  %v7255 = vsel %vm312, %v7240, %v7254
  %v7256 = vsel %vm314, %v7243, %v7255
  %v7257 = vsel %vm316, %v7246, %v7256
  %v7258 = vsel %vm318, %v7249, %v7257
  %v7259 = vsel %vm320, %v7252, %v7258
  %v7261 = vsel %vm323, %v7259, -inf
  %7262 = vmax.xlane.f32.xlu0 %v7261
  %v7263 = vpop.xlane.xlu0 %7262
  %v7265 = vperm.slane %v7263, 0
  %v7266 = vperm.slane %v7263, 1
  %v7267 = vperm.slane %v7263, 2
  %v7268 = vperm.slane %v7263, 3
  %v7269 = vperm.slane %v7263, 4
  %v7270 = vperm.slane %v7263, 5
  %v7271 = vperm.slane %v7263, 6
  %v7272 = vperm.slane %v7263, 7
  %v7281 = vsub.f32 %v7197, %v7265
  %v7282 = vsub.f32 %v7198, %v7265
  %v7283 = vsub.f32 %v7199, %v7266
  %v7284 = vsub.f32 %v7200, %v7266
  %v7285 = vsub.f32 %v7201, %v7267
  %v7286 = vsub.f32 %v7202, %v7267
  %v7287 = vsub.f32 %v7203, %v7268
  %v7288 = vsub.f32 %v7204, %v7268
  %v7289 = vsub.f32 %v7205, %v7269
  %v7290 = vsub.f32 %v7206, %v7269
  %v7291 = vsub.f32 %v7207, %v7270
  %v7292 = vsub.f32 %v7208, %v7270
  %v7293 = vsub.f32 %v7209, %v7271
  %v7294 = vsub.f32 %v7210, %v7271
  %v7295 = vsub.f32 %v7211, %v7272
  %v7296 = vsub.f32 %v7212, %v7272
  %v7297 = vmul.f32 %v7281, 1.442695
  %v7298 = vpow.pop %v7297
  %v7299 = vmul.f32 %v7282, 1.442695
  %v7300 = vpow.pop %v7299
  %v7301 = vmul.f32 %v7283, 1.442695
  %v7302 = vpow.pop %v7301
  %v7303 = vmul.f32 %v7284, 1.442695
  %v7304 = vpow.pop %v7303
  %v7305 = vmul.f32 %v7285, 1.442695
  %v7306 = vpow.pop %v7305
  %v7307 = vmul.f32 %v7286, 1.442695
  %v7308 = vpow.pop %v7307
  %v7309 = vmul.f32 %v7287, 1.442695
  %v7310 = vpow.pop %v7309
  %v7311 = vmul.f32 %v7288, 1.442695
  %v7312 = vpow.pop %v7311
  %v7313 = vmul.f32 %v7289, 1.442695
  %v7314 = vpow.pop %v7313
  %v7315 = vmul.f32 %v7290, 1.442695
  %v7316 = vpow.pop %v7315
  %v7317 = vmul.f32 %v7291, 1.442695
  %v7318 = vpow.pop %v7317
  %v7319 = vmul.f32 %v7292, 1.442695
  %v7320 = vpow.pop %v7319
  %v7321 = vmul.f32 %v7293, 1.442695
  %v7322 = vpow.pop %v7321
  %v7323 = vmul.f32 %v7294, 1.442695
  %v7324 = vpow.pop %v7323
  %v7325 = vmul.f32 %v7295, 1.442695
  %v7326 = vpow.pop %v7325
  %v7327 = vmul.f32 %v7296, 1.442695
  %v7328 = vpow.pop %v7327
  %7345 = vset.pattern.permute.xlu0 0
  %7346 = vperm.xlu0 %7345, %v7298
  %v7347 = vpop.permute.xlu0 %7346
  %7348 = vset.pattern.permute.xlu0 0
  %7349 = vperm.xlu0 %7348, %v7300
  %v7350 = vpop.permute.xlu0 %7349
  %7351 = vset.pattern.permute.xlu0 0
  %7352 = vperm.xlu0 %7351, %v7302
  %v7353 = vpop.permute.xlu0 %7352
  %7354 = vset.pattern.permute.xlu0 0
  %7355 = vperm.xlu0 %7354, %v7304
  %v7356 = vpop.permute.xlu0 %7355
  %7357 = vset.pattern.permute.xlu0 0
  %7358 = vperm.xlu0 %7357, %v7306
  %v7359 = vpop.permute.xlu0 %7358
  %7360 = vset.pattern.permute.xlu0 0
  %7361 = vperm.xlu0 %7360, %v7308
  %v7362 = vpop.permute.xlu0 %7361
  %7363 = vset.pattern.permute.xlu0 0
  %7364 = vperm.xlu0 %7363, %v7310
  %v7365 = vpop.permute.xlu0 %7364
  %7366 = vset.pattern.permute.xlu0 0
  %7367 = vperm.xlu0 %7366, %v7312
  %v7368 = vpop.permute.xlu0 %7367
  %7369 = vset.pattern.permute.xlu0 0
  %7370 = vperm.xlu0 %7369, %v7314
  %v7371 = vpop.permute.xlu0 %7370
  %7372 = vset.pattern.permute.xlu0 0
  %7373 = vperm.xlu0 %7372, %v7316
  %v7374 = vpop.permute.xlu0 %7373
  %7375 = vset.pattern.permute.xlu0 0
  %7376 = vperm.xlu0 %7375, %v7318
  %v7377 = vpop.permute.xlu0 %7376
  %7378 = vset.pattern.permute.xlu0 0
  %7379 = vperm.xlu0 %7378, %v7320
  %v7380 = vpop.permute.xlu0 %7379
  %7381 = vset.pattern.permute.xlu0 0
  %7382 = vperm.xlu0 %7381, %v7322
  %v7383 = vpop.permute.xlu0 %7382
  %7384 = vset.pattern.permute.xlu0 0
  %7385 = vperm.xlu0 %7384, %v7324
  %v7386 = vpop.permute.xlu0 %7385
  %7387 = vset.pattern.permute.xlu0 0
  %7388 = vperm.xlu0 %7387, %v7326
  %v7389 = vpop.permute.xlu0 %7388
  %7390 = vset.pattern.permute.xlu0 0
  %7391 = vperm.xlu0 %7390, %v7328
  %v7392 = vpop.permute.xlu0 %7391
  %v7393 = vperm.slane %v7347, %v281
  %v7394 = vperm.slane %v7350, %v283
  %v7395 = vsel %vm285, %v7394, %v7393
  %v7396 = vperm.slane %v7353, %v281
  %v7397 = vperm.slane %v7356, %v283
  %v7398 = vsel %vm285, %v7397, %v7396
  %v7399 = vperm.slane %v7359, %v281
  %v7400 = vperm.slane %v7362, %v283
  %v7401 = vsel %vm285, %v7400, %v7399
  %v7402 = vperm.slane %v7365, %v281
  %v7403 = vperm.slane %v7368, %v283
  %v7404 = vsel %vm285, %v7403, %v7402
  %v7405 = vperm.slane %v7371, %v281
  %v7406 = vperm.slane %v7374, %v283
  %v7407 = vsel %vm285, %v7406, %v7405
  %v7408 = vperm.slane %v7377, %v281
  %v7409 = vperm.slane %v7380, %v283
  %v7410 = vsel %vm285, %v7409, %v7408
  %v7411 = vperm.slane %v7383, %v281
  %v7412 = vperm.slane %v7386, %v283
  %v7413 = vsel %vm285, %v7412, %v7411
  %v7414 = vperm.slane %v7389, %v281
  %v7415 = vperm.slane %v7392, %v283
  %v7416 = vsel %vm285, %v7415, %v7414
  %v7417 = vsel %vm308, %v7398, %v7395
  %v7418 = vsel %vm310, %v7401, %v7417
  %v7419 = vsel %vm312, %v7404, %v7418
  %v7420 = vsel %vm314, %v7407, %v7419
  %v7421 = vsel %vm316, %v7410, %v7420
  %v7422 = vsel %vm318, %v7413, %v7421
  %v7423 = vsel %vm320, %v7416, %v7422
  %v7425 = vsel %vm323, %v7423, 0.0
  %7426 = vadd.xlane.f32.xlu0 %v7425
  %v7427 = vpop.xlane.xlu0 %7426
  %v7429 = vperm.slane %v7427, 0
  %v7430 = vperm.slane %v7427, 1
  %v7431 = vperm.slane %v7427, 2
  %v7432 = vperm.slane %v7427, 3
  %v7433 = vperm.slane %v7427, 4
  %v7434 = vperm.slane %v7427, 5
  %v7435 = vperm.slane %v7427, 6
  %v7436 = vperm.slane %v7427, 7
  %v7445 = vrcp.pop %v7429
  %v7446 = vmul.f32 %v7429, %v7445
  %v7447 = vsub.f32 1.0, %v7446
  %v7448 = vmul.f32 %v7445, %v7447
  %v7449 = vadd.f32 %v7445, %v7448
  %vm7450 = vweird.f32 %v7429
  %vm7451 = vweird.f32 %v7445
  %vm7452 = vmor %vm7450, %vm7451
  %v7453 = vsel %vm7452, %v7445, %v7449
  %v7454 = vand.u32 2147483647, %v7429
  %vm7455 = vcmp.eq.f32.partialorder %v7454, 8.507059e+37
  %v7456 = vand.u32 %v7429, 2147483648
  %v7457 = vor.u32 1.1754944e-38, %v7456
  %v7458 = vsel %vm7455, %v7457, %v7453
  %v7459 = vmul.f32 %v7298, %v7458
  %v7460 = vmul.f32 %v7300, %v7458
  %v7461 = vrcp.pop %v7430
  %v7462 = vmul.f32 %v7430, %v7461
  %v7463 = vsub.f32 1.0, %v7462
  %v7464 = vmul.f32 %v7461, %v7463
  %v7465 = vadd.f32 %v7461, %v7464
  %vm7466 = vweird.f32 %v7430
  %vm7467 = vweird.f32 %v7461
  %vm7468 = vmor %vm7466, %vm7467
  %v7469 = vsel %vm7468, %v7461, %v7465
  %v7470 = vand.u32 2147483647, %v7430
  %vm7471 = vcmp.eq.f32.partialorder %v7470, 8.507059e+37
  %v7472 = vand.u32 %v7430, 2147483648
  %v7473 = vor.u32 1.1754944e-38, %v7472
  %v7474 = vsel %vm7471, %v7473, %v7469
  %v7475 = vmul.f32 %v7302, %v7474
  %v7476 = vmul.f32 %v7304, %v7474
  %v7477 = vrcp.pop %v7431
  %v7478 = vmul.f32 %v7431, %v7477
  %v7479 = vsub.f32 1.0, %v7478
  %v7480 = vmul.f32 %v7477, %v7479
  %v7481 = vadd.f32 %v7477, %v7480
  %vm7482 = vweird.f32 %v7431
  %vm7483 = vweird.f32 %v7477
  %vm7484 = vmor %vm7482, %vm7483
  %v7485 = vsel %vm7484, %v7477, %v7481
  %v7486 = vand.u32 2147483647, %v7431
  %vm7487 = vcmp.eq.f32.partialorder %v7486, 8.507059e+37
  %v7488 = vand.u32 %v7431, 2147483648
  %v7489 = vor.u32 1.1754944e-38, %v7488
  %v7490 = vsel %vm7487, %v7489, %v7485
  %v7491 = vmul.f32 %v7306, %v7490
  %v7492 = vmul.f32 %v7308, %v7490
  %v7493 = vrcp.pop %v7432
  %v7494 = vmul.f32 %v7432, %v7493
  %v7495 = vsub.f32 1.0, %v7494
  %v7496 = vmul.f32 %v7493, %v7495
  %v7497 = vadd.f32 %v7493, %v7496
  %vm7498 = vweird.f32 %v7432
  %vm7499 = vweird.f32 %v7493
  %vm7500 = vmor %vm7498, %vm7499
  %v7501 = vsel %vm7500, %v7493, %v7497
  %v7502 = vand.u32 2147483647, %v7432
  %vm7503 = vcmp.eq.f32.partialorder %v7502, 8.507059e+37
  %v7504 = vand.u32 %v7432, 2147483648
  %v7505 = vor.u32 1.1754944e-38, %v7504
  %v7506 = vsel %vm7503, %v7505, %v7501
  %v7507 = vmul.f32 %v7310, %v7506
  %v7508 = vmul.f32 %v7312, %v7506
  %v7509 = vrcp.pop %v7433
  %v7510 = vmul.f32 %v7433, %v7509
  %v7511 = vsub.f32 1.0, %v7510
  %v7512 = vmul.f32 %v7509, %v7511
  %v7513 = vadd.f32 %v7509, %v7512
  %vm7514 = vweird.f32 %v7433
  %vm7515 = vweird.f32 %v7509
  %vm7516 = vmor %vm7514, %vm7515
  %v7517 = vsel %vm7516, %v7509, %v7513
  %v7518 = vand.u32 2147483647, %v7433
  %vm7519 = vcmp.eq.f32.partialorder %v7518, 8.507059e+37
  %v7520 = vand.u32 %v7433, 2147483648
  %v7521 = vor.u32 1.1754944e-38, %v7520
  %v7522 = vsel %vm7519, %v7521, %v7517
  %v7523 = vmul.f32 %v7314, %v7522
  %v7524 = vmul.f32 %v7316, %v7522
  %v7525 = vrcp.pop %v7434
  %v7526 = vmul.f32 %v7434, %v7525
  %v7527 = vsub.f32 1.0, %v7526
  %v7528 = vmul.f32 %v7525, %v7527
  %v7529 = vadd.f32 %v7525, %v7528
  %vm7530 = vweird.f32 %v7434
  %vm7531 = vweird.f32 %v7525
  %vm7532 = vmor %vm7530, %vm7531
  %v7533 = vsel %vm7532, %v7525, %v7529
  %v7534 = vand.u32 2147483647, %v7434
  %vm7535 = vcmp.eq.f32.partialorder %v7534, 8.507059e+37
  %v7536 = vand.u32 %v7434, 2147483648
  %v7537 = vor.u32 1.1754944e-38, %v7536
  %v7538 = vsel %vm7535, %v7537, %v7533
  %v7539 = vmul.f32 %v7318, %v7538
  %v7540 = vmul.f32 %v7320, %v7538
  %v7541 = vrcp.pop %v7435
  %v7542 = vmul.f32 %v7435, %v7541
  %v7543 = vsub.f32 1.0, %v7542
  %v7544 = vmul.f32 %v7541, %v7543
  %v7545 = vadd.f32 %v7541, %v7544
  %vm7546 = vweird.f32 %v7435
  %vm7547 = vweird.f32 %v7541
  %vm7548 = vmor %vm7546, %vm7547
  %v7549 = vsel %vm7548, %v7541, %v7545
  %v7550 = vand.u32 2147483647, %v7435
  %vm7551 = vcmp.eq.f32.partialorder %v7550, 8.507059e+37
  %v7552 = vand.u32 %v7435, 2147483648
  %v7553 = vor.u32 1.1754944e-38, %v7552
  %v7554 = vsel %vm7551, %v7553, %v7549
  %v7555 = vmul.f32 %v7322, %v7554
  %v7556 = vmul.f32 %v7324, %v7554
  %v7557 = vrcp.pop %v7436
  %v7558 = vmul.f32 %v7436, %v7557
  %v7559 = vsub.f32 1.0, %v7558
  %v7560 = vmul.f32 %v7557, %v7559
  %v7561 = vadd.f32 %v7557, %v7560
  %vm7562 = vweird.f32 %v7436
  %vm7563 = vweird.f32 %v7557
  %vm7564 = vmor %vm7562, %vm7563
  %v7565 = vsel %vm7564, %v7557, %v7561
  %v7566 = vand.u32 2147483647, %v7436
  %vm7567 = vcmp.eq.f32.partialorder %v7566, 8.507059e+37
  %v7568 = vand.u32 %v7436, 2147483648
  %v7569 = vor.u32 1.1754944e-38, %v7568
  %v7570 = vsel %vm7567, %v7569, %v7565
  %v7571 = vmul.f32 %v7326, %v7570
  %v7572 = vmul.f32 %v7328, %v7570
  %v7573 = vld [vmem:[%s0] sm:$0xff]
  %v7574 = vld [vmem:[%s0 + $0x8] sm:$0xff]
  %v7575 = vld [vmem:[%s0 + $0x10] sm:$0xff]
  %v7576 = vld [vmem:[%s0 + $0x18] sm:$0xff]
  %v7577 = vld [vmem:[%s0 + $0x20] sm:$0xff]
  %v7578 = vld [vmem:[%s0 + $0x28] sm:$0xff]
  %v7579 = vld [vmem:[%s0 + $0x30] sm:$0xff]
  %v7580 = vld [vmem:[%s0 + $0x38] sm:$0xff]
  %v7581 = vld [vmem:[%s0 + $0x40] sm:$0xff]
  %v7582 = vld [vmem:[%s0 + $0x48] sm:$0xff]
  %v7583 = vld [vmem:[%s0 + $0x50] sm:$0xff]
  %v7584 = vld [vmem:[%s0 + $0x58] sm:$0xff]
  %v7585 = vld [vmem:[%s0 + $0x60] sm:$0xff]
  %v7586 = vld [vmem:[%s0 + $0x68] sm:$0xff]
  %v7587 = vld [vmem:[%s0 + $0x70] sm:$0xff]
  %v7588 = vld [vmem:[%s0 + $0x78] sm:$0xff]
  %7590 = vset.pattern.permute.xlu0 0
  %7591 = vperm.xlu0 %7590, %v7459
  %v7592 = vpop.permute.xlu0 %7591
  %7595 = vset.pattern.permute.xlu0 0
  %7596 = vperm.xlu0 %7595, %v7460
  %v7597 = vpop.permute.xlu0 %7596
  %7600 = vset.pattern.permute.xlu0 0
  %7601 = vperm.xlu0 %7600, %v7475
  %v7602 = vpop.permute.xlu0 %7601
  %7605 = vset.pattern.permute.xlu0 0
  %7606 = vperm.xlu0 %7605, %v7476
  %v7607 = vpop.permute.xlu0 %7606
  %7610 = vset.pattern.permute.xlu0 0
  %7611 = vperm.xlu0 %7610, %v7491
  %v7612 = vpop.permute.xlu0 %7611
  %7615 = vset.pattern.permute.xlu0 0
  %7616 = vperm.xlu0 %7615, %v7492
  %v7617 = vpop.permute.xlu0 %7616
  %7620 = vset.pattern.permute.xlu0 0
  %7621 = vperm.xlu0 %7620, %v7507
  %v7622 = vpop.permute.xlu0 %7621
  %7625 = vset.pattern.permute.xlu0 0
  %7626 = vperm.xlu0 %7625, %v7508
  %v7627 = vpop.permute.xlu0 %7626
  %7630 = vset.pattern.permute.xlu0 0
  %7631 = vperm.xlu0 %7630, %v7523
  %v7632 = vpop.permute.xlu0 %7631
  %7635 = vset.pattern.permute.xlu0 0
  %7636 = vperm.xlu0 %7635, %v7524
  %v7637 = vpop.permute.xlu0 %7636
  %7640 = vset.pattern.permute.xlu0 0
  %7641 = vperm.xlu0 %7640, %v7539
  %v7642 = vpop.permute.xlu0 %7641
  %7645 = vset.pattern.permute.xlu0 0
  %7646 = vperm.xlu0 %7645, %v7540
  %v7647 = vpop.permute.xlu0 %7646
  %7650 = vset.pattern.permute.xlu0 0
  %7651 = vperm.xlu0 %7650, %v7555
  %v7652 = vpop.permute.xlu0 %7651
  %7655 = vset.pattern.permute.xlu0 0
  %7656 = vperm.xlu0 %7655, %v7556
  %v7657 = vpop.permute.xlu0 %7656
  %7660 = vset.pattern.permute.xlu0 0
  %7661 = vperm.xlu0 %7660, %v7571
  %v7662 = vpop.permute.xlu0 %7661
  %7665 = vset.pattern.permute.xlu0 0
  %7666 = vperm.xlu0 %7665, %v7572
  %v7667 = vpop.permute.xlu0 %7666
  %v7669 = vmul.f32 %v7573, %v7592
  %v7670 = vmul.f32 %v7574, %v7597
  %v7671 = vmul.f32 %v7575, %v7602
  %v7672 = vmul.f32 %v7576, %v7607
  %v7673 = vmul.f32 %v7577, %v7612
  %v7674 = vmul.f32 %v7578, %v7617
  %v7675 = vmul.f32 %v7579, %v7622
  %v7676 = vmul.f32 %v7580, %v7627
  %v7677 = vmul.f32 %v7581, %v7632
  %v7678 = vmul.f32 %v7582, %v7637
  %v7679 = vmul.f32 %v7583, %v7642
  %v7680 = vmul.f32 %v7584, %v7647
  %v7681 = vmul.f32 %v7585, %v7652
  %v7682 = vmul.f32 %v7586, %v7657
  %v7683 = vmul.f32 %v7587, %v7662
  %v7684 = vmul.f32 %v7588, %v7667
  %v7685 = vadd.f32 %v7669, %v7670
  %v7686 = vrot.slane %v7685, 4
  %v7687 = vadd.f32 %v7685, %v7686
  %v7688 = vrot.slane %v7687, 2
  %v7689 = vadd.f32 %v7687, %v7688
  %v7690 = vrot.slane %v7689, 1
  %v7691 = vadd.f32 %v7689, %v7690
  %v7692 = vadd.f32 %v7671, %v7672
  %v7693 = vrot.slane %v7692, 4
  %v7694 = vadd.f32 %v7692, %v7693
  %v7695 = vrot.slane %v7694, 2
  %v7696 = vadd.f32 %v7694, %v7695
  %v7697 = vrot.slane %v7696, 1
  %v7698 = vadd.f32 %v7696, %v7697
  %v7699 = vadd.f32 %v7673, %v7674
  %v7700 = vrot.slane %v7699, 4
  %v7701 = vadd.f32 %v7699, %v7700
  %v7702 = vrot.slane %v7701, 2
  %v7703 = vadd.f32 %v7701, %v7702
  %v7704 = vrot.slane %v7703, 1
  %v7705 = vadd.f32 %v7703, %v7704
  %v7706 = vadd.f32 %v7675, %v7676
  %v7707 = vrot.slane %v7706, 4
  %v7708 = vadd.f32 %v7706, %v7707
  %v7709 = vrot.slane %v7708, 2
  %v7710 = vadd.f32 %v7708, %v7709
  %v7711 = vrot.slane %v7710, 1
  %v7712 = vadd.f32 %v7710, %v7711
  %v7713 = vadd.f32 %v7677, %v7678
  %v7714 = vrot.slane %v7713, 4
  %v7715 = vadd.f32 %v7713, %v7714
  %v7716 = vrot.slane %v7715, 2
  %v7717 = vadd.f32 %v7715, %v7716
  %v7718 = vrot.slane %v7717, 1
  %v7719 = vadd.f32 %v7717, %v7718
  %v7720 = vadd.f32 %v7679, %v7680
  %v7721 = vrot.slane %v7720, 4
  %v7722 = vadd.f32 %v7720, %v7721
  %v7723 = vrot.slane %v7722, 2
  %v7724 = vadd.f32 %v7722, %v7723
  %v7725 = vrot.slane %v7724, 1
  %v7726 = vadd.f32 %v7724, %v7725
  %v7727 = vadd.f32 %v7681, %v7682
  %v7728 = vrot.slane %v7727, 4
  %v7729 = vadd.f32 %v7727, %v7728
  %v7730 = vrot.slane %v7729, 2
  %v7731 = vadd.f32 %v7729, %v7730
  %v7732 = vrot.slane %v7731, 1
  %v7733 = vadd.f32 %v7731, %v7732
  %v7734 = vadd.f32 %v7683, %v7684
  %v7735 = vrot.slane %v7734, 4
  %v7736 = vadd.f32 %v7734, %v7735
  %v7737 = vrot.slane %v7736, 2
  %v7738 = vadd.f32 %v7736, %v7737
  %v7739 = vrot.slane %v7738, 1
  %v7740 = vadd.f32 %v7738, %v7739
  %v7741 = vpack.c.bf16 %v7691, %v7691
  %v7742 = vpack.c.bf16 %v7698, %v7698
  %v7743 = vpack.c.bf16 %v7705, %v7705
  %v7744 = vpack.c.bf16 %v7712, %v7712
  %v7745 = vpack.c.bf16 %v7719, %v7719
  %v7746 = vpack.c.bf16 %v7726, %v7726
  %v7747 = vpack.c.bf16 %v7733, %v7733
  %v7748 = vpack.c.bf16 %v7740, %v7740
  %v7757 = vperm.slane %v7741, 0
  %v7758 = vperm.slane %v7742, 0
  %v7759 = vperm.slane %v7743, 0
  %v7760 = vperm.slane %v7744, 0
  %v7761 = vperm.slane %v7745, 0
  %v7762 = vperm.slane %v7746, 0
  %v7763 = vperm.slane %v7747, 0
  %v7764 = vperm.slane %v7748, 0
  %v7765 = vunpack.c.l.b16 %v7757
  %v7766 = vunpack.c.l.b16 %v7758
  %v7767 = vunpack.c.l.b16 %v7759
  %v7768 = vunpack.c.l.b16 %v7760
  %v7769 = vunpack.c.l.b16 %v7761
  %v7770 = vunpack.c.l.b16 %v7762
  %v7771 = vunpack.c.l.b16 %v7763
  %v7772 = vunpack.c.l.b16 %v7764
  %v7773 = vsel %vm308, %v7766, %v7765
  %v7774 = vsel %vm310, %v7767, %v7773
  %v7775 = vsel %vm312, %v7768, %v7774
  %v7776 = vsel %vm314, %v7769, %v7775
  %v7777 = vsel %vm316, %v7770, %v7776
  %v7778 = vsel %vm318, %v7771, %v7777
  %v7779 = vsel %vm320, %v7772, %v7778
  %v7780 = vpack.c.b16 %v7779, %v7779
  %s7782 = scalar_lea.vmem %s2, 160
  %v7783 = vld [vmem:[%s7782] sm:$0xff]
  %v7784 = vld [vmem:[%s7782 + $0x8] sm:$0xff]
  %v7785 = vld [vmem:[%s7782 + $0x10] sm:$0xff]
  %v7786 = vld [vmem:[%s7782 + $0x18] sm:$0xff]
  %v7787 = vld [vmem:[%s9] sm:$0xff]
  %v7788 = vld [vmem:[%s9 + $0x8] sm:$0xff]
  %v7789 = vld [vmem:[%s9 + $0x10] sm:$0xff]
  %v7790 = vld [vmem:[%s9 + $0x18] sm:$0xff]
  %v7791 = vld [vmem:[%s9 + $0x20] sm:$0xff]
  %v7792 = vld [vmem:[%s9 + $0x28] sm:$0xff]
  %v7793 = vld [vmem:[%s9 + $0x30] sm:$0xff]
  %v7794 = vld [vmem:[%s9 + $0x38] sm:$0xff]
  %v7795 = vld [vmem:[%s9 + $0x40] sm:$0xff]
  %v7796 = vld [vmem:[%s9 + $0x48] sm:$0xff]
  %v7797 = vld [vmem:[%s9 + $0x50] sm:$0xff]
  %v7798 = vld [vmem:[%s9 + $0x58] sm:$0xff]
  %v7799 = vld [vmem:[%s9 + $0x60] sm:$0xff]
  %v7800 = vld [vmem:[%s9 + $0x68] sm:$0xff]
  %v7801 = vld [vmem:[%s9 + $0x70] sm:$0xff]
  %v7802 = vld [vmem:[%s9 + $0x78] sm:$0xff]
  %v7803 = vld [vmem:[%s9 + $0x80] sm:$0xff]
  %v7804 = vld [vmem:[%s9 + $0x88] sm:$0xff]
  %v7805 = vld [vmem:[%s9 + $0x90] sm:$0xff]
  %v7806 = vld [vmem:[%s9 + $0x98] sm:$0xff]
  %v7807 = vld [vmem:[%s9 + $0xa0] sm:$0xff]
  %v7808 = vld [vmem:[%s9 + $0xa8] sm:$0xff]
  %v7809 = vld [vmem:[%s9 + $0xb0] sm:$0xff]
  %v7810 = vld [vmem:[%s9 + $0xb8] sm:$0xff]
  %v7811 = vld [vmem:[%s9 + $0xc0] sm:$0xff]
  %v7812 = vld [vmem:[%s9 + $0xc8] sm:$0xff]
  %v7813 = vld [vmem:[%s9 + $0xd0] sm:$0xff]
  %v7814 = vld [vmem:[%s9 + $0xd8] sm:$0xff]
  %v7815 = vld [vmem:[%s9 + $0xe0] sm:$0xff]
  %v7816 = vld [vmem:[%s9 + $0xe8] sm:$0xff]
  %v7817 = vld [vmem:[%s9 + $0xf0] sm:$0xff]
  %v7818 = vld [vmem:[%s9 + $0xf8] sm:$0xff]
  %v7819 = vld [vmem:[%s9 + $0x100] sm:$0xff]
  %v7820 = vld [vmem:[%s9 + $0x108] sm:$0xff]
  %v7821 = vld [vmem:[%s9 + $0x110] sm:$0xff]
  %v7822 = vld [vmem:[%s9 + $0x118] sm:$0xff]
  %v7823 = vld [vmem:[%s9 + $0x120] sm:$0xff]
  %v7824 = vld [vmem:[%s9 + $0x128] sm:$0xff]
  %v7825 = vld [vmem:[%s9 + $0x130] sm:$0xff]
  %v7826 = vld [vmem:[%s9 + $0x138] sm:$0xff]
  %v7827 = vld [vmem:[%s9 + $0x140] sm:$0xff]
  %v7828 = vld [vmem:[%s9 + $0x148] sm:$0xff]
  %v7829 = vld [vmem:[%s9 + $0x150] sm:$0xff]
  %v7830 = vld [vmem:[%s9 + $0x158] sm:$0xff]
  %v7831 = vld [vmem:[%s9 + $0x160] sm:$0xff]
  %v7832 = vld [vmem:[%s9 + $0x168] sm:$0xff]
  %v7833 = vld [vmem:[%s9 + $0x170] sm:$0xff]
  %v7834 = vld [vmem:[%s9 + $0x178] sm:$0xff]
  %v7835 = vld [vmem:[%s9 + $0x180] sm:$0xff]
  %v7836 = vld [vmem:[%s9 + $0x188] sm:$0xff]
  %v7837 = vld [vmem:[%s9 + $0x190] sm:$0xff]
  %v7838 = vld [vmem:[%s9 + $0x198] sm:$0xff]
  %v7839 = vld [vmem:[%s9 + $0x1a0] sm:$0xff]
  %v7840 = vld [vmem:[%s9 + $0x1a8] sm:$0xff]
  %v7841 = vld [vmem:[%s9 + $0x1b0] sm:$0xff]
  %v7842 = vld [vmem:[%s9 + $0x1b8] sm:$0xff]
  %v7843 = vld [vmem:[%s9 + $0x1c0] sm:$0xff]
  %v7844 = vld [vmem:[%s9 + $0x1c8] sm:$0xff]
  %v7845 = vld [vmem:[%s9 + $0x1d0] sm:$0xff]
  %v7846 = vld [vmem:[%s9 + $0x1d8] sm:$0xff]
  %v7847 = vld [vmem:[%s9 + $0x1e0] sm:$0xff]
  %v7848 = vld [vmem:[%s9 + $0x1e8] sm:$0xff]
  %v7849 = vld [vmem:[%s9 + $0x1f0] sm:$0xff]
  %v7850 = vld [vmem:[%s9 + $0x1f8] sm:$0xff]
  %v7915 = vunpack.c.l.b16 %v7787
  %v7916 = vunpack.c.h.b16 %v7787
  %v7917 = vunpack.c.l.b16 %v7788
  %v7918 = vunpack.c.h.b16 %v7788
  %v7919 = vunpack.c.l.b16 %v7789
  %v7920 = vunpack.c.h.b16 %v7789
  %v7921 = vunpack.c.l.b16 %v7790
  %v7922 = vunpack.c.h.b16 %v7790
  %v7923 = vunpack.c.l.b16 %v7791
  %v7924 = vunpack.c.h.b16 %v7791
  %v7925 = vunpack.c.l.b16 %v7792
  %v7926 = vunpack.c.h.b16 %v7792
  %v7927 = vunpack.c.l.b16 %v7793
  %v7928 = vunpack.c.h.b16 %v7793
  %v7929 = vunpack.c.l.b16 %v7794
  %v7930 = vunpack.c.h.b16 %v7794
  %v7931 = vunpack.c.l.b16 %v7795
  %v7932 = vunpack.c.h.b16 %v7795
  %v7933 = vunpack.c.l.b16 %v7796
  %v7934 = vunpack.c.h.b16 %v7796
  %v7935 = vunpack.c.l.b16 %v7797
  %v7936 = vunpack.c.h.b16 %v7797
  %v7937 = vunpack.c.l.b16 %v7798
  %v7938 = vunpack.c.h.b16 %v7798
  %v7939 = vunpack.c.l.b16 %v7799
  %v7940 = vunpack.c.h.b16 %v7799
  %v7941 = vunpack.c.l.b16 %v7800
  %v7942 = vunpack.c.h.b16 %v7800
  %v7943 = vunpack.c.l.b16 %v7801
  %v7944 = vunpack.c.h.b16 %v7801
  %v7945 = vunpack.c.l.b16 %v7802
  %v7946 = vunpack.c.h.b16 %v7802
  %v7947 = vunpack.c.l.b16 %v7803
  %v7948 = vunpack.c.h.b16 %v7803
  %v7949 = vunpack.c.l.b16 %v7804
  %v7950 = vunpack.c.h.b16 %v7804
  %v7951 = vunpack.c.l.b16 %v7805
  %v7952 = vunpack.c.h.b16 %v7805
  %v7953 = vunpack.c.l.b16 %v7806
  %v7954 = vunpack.c.h.b16 %v7806
  %v7955 = vunpack.c.l.b16 %v7807
  %v7956 = vunpack.c.h.b16 %v7807
  %v7957 = vunpack.c.l.b16 %v7808
  %v7958 = vunpack.c.h.b16 %v7808
  %v7959 = vunpack.c.l.b16 %v7809
  %v7960 = vunpack.c.h.b16 %v7809
  %v7961 = vunpack.c.l.b16 %v7810
  %v7962 = vunpack.c.h.b16 %v7810
  %v7963 = vunpack.c.l.b16 %v7811
  %v7964 = vunpack.c.h.b16 %v7811
  %v7965 = vunpack.c.l.b16 %v7812
  %v7966 = vunpack.c.h.b16 %v7812
  %v7967 = vunpack.c.l.b16 %v7813
  %v7968 = vunpack.c.h.b16 %v7813
  %v7969 = vunpack.c.l.b16 %v7814
  %v7970 = vunpack.c.h.b16 %v7814
  %v7971 = vunpack.c.l.b16 %v7815
  %v7972 = vunpack.c.h.b16 %v7815
  %v7973 = vunpack.c.l.b16 %v7816
  %v7974 = vunpack.c.h.b16 %v7816
  %v7975 = vunpack.c.l.b16 %v7817
  %v7976 = vunpack.c.h.b16 %v7817
  %v7977 = vunpack.c.l.b16 %v7818
  %v7978 = vunpack.c.h.b16 %v7818
  %v7979 = vunpack.c.l.b16 %v7819
  %v7980 = vunpack.c.h.b16 %v7819
  %v7981 = vunpack.c.l.b16 %v7820
  %v7982 = vunpack.c.h.b16 %v7820
  %v7983 = vunpack.c.l.b16 %v7821
  %v7984 = vunpack.c.h.b16 %v7821
  %v7985 = vunpack.c.l.b16 %v7822
  %v7986 = vunpack.c.h.b16 %v7822
  %v7987 = vunpack.c.l.b16 %v7823
  %v7988 = vunpack.c.h.b16 %v7823
  %v7989 = vunpack.c.l.b16 %v7824
  %v7990 = vunpack.c.h.b16 %v7824
  %v7991 = vunpack.c.l.b16 %v7825
  %v7992 = vunpack.c.h.b16 %v7825
  %v7993 = vunpack.c.l.b16 %v7826
  %v7994 = vunpack.c.h.b16 %v7826
  %v7995 = vunpack.c.l.b16 %v7827
  %v7996 = vunpack.c.h.b16 %v7827
  %v7997 = vunpack.c.l.b16 %v7828
  %v7998 = vunpack.c.h.b16 %v7828
  %v7999 = vunpack.c.l.b16 %v7829
  %v8000 = vunpack.c.h.b16 %v7829
  %v8001 = vunpack.c.l.b16 %v7830
  %v8002 = vunpack.c.h.b16 %v7830
  %v8003 = vunpack.c.l.b16 %v7831
  %v8004 = vunpack.c.h.b16 %v7831
  %v8005 = vunpack.c.l.b16 %v7832
  %v8006 = vunpack.c.h.b16 %v7832
  %v8007 = vunpack.c.l.b16 %v7833
  %v8008 = vunpack.c.h.b16 %v7833
  %v8009 = vunpack.c.l.b16 %v7834
  %v8010 = vunpack.c.h.b16 %v7834
  %v8011 = vunpack.c.l.b16 %v7835
  %v8012 = vunpack.c.h.b16 %v7835
  %v8013 = vunpack.c.l.b16 %v7836
  %v8014 = vunpack.c.h.b16 %v7836
  %v8015 = vunpack.c.l.b16 %v7837
  %v8016 = vunpack.c.h.b16 %v7837
  %v8017 = vunpack.c.l.b16 %v7838
  %v8018 = vunpack.c.h.b16 %v7838
  %v8019 = vunpack.c.l.b16 %v7839
  %v8020 = vunpack.c.h.b16 %v7839
  %v8021 = vunpack.c.l.b16 %v7840
  %v8022 = vunpack.c.h.b16 %v7840
  %v8023 = vunpack.c.l.b16 %v7841
  %v8024 = vunpack.c.h.b16 %v7841
  %v8025 = vunpack.c.l.b16 %v7842
  %v8026 = vunpack.c.h.b16 %v7842
  %v8027 = vunpack.c.l.b16 %v7843
  %v8028 = vunpack.c.h.b16 %v7843
  %v8029 = vunpack.c.l.b16 %v7844
  %v8030 = vunpack.c.h.b16 %v7844
  %v8031 = vunpack.c.l.b16 %v7845
  %v8032 = vunpack.c.h.b16 %v7845
  %v8033 = vunpack.c.l.b16 %v7846
  %v8034 = vunpack.c.h.b16 %v7846
  %v8035 = vunpack.c.l.b16 %v7847
  %v8036 = vunpack.c.h.b16 %v7847
  %v8037 = vunpack.c.l.b16 %v7848
  %v8038 = vunpack.c.h.b16 %v7848
  %v8039 = vunpack.c.l.b16 %v7849
  %v8040 = vunpack.c.h.b16 %v7849
  %v8041 = vunpack.c.l.b16 %v7850
  %v8042 = vunpack.c.h.b16 %v7850
  %v8043 = vpack.c.b16 %v7919, %v7915
  %v8044 = vpack.c.b16 %v7920, %v7916
  %v8045 = vpack.c.b16 %v7921, %v7917
  %v8046 = vpack.c.b16 %v7922, %v7918
  %v8047 = vpack.c.b16 %v7927, %v7923
  %v8048 = vpack.c.b16 %v7928, %v7924
  %v8049 = vpack.c.b16 %v7929, %v7925
  %v8050 = vpack.c.b16 %v7930, %v7926
  %v8051 = vpack.c.b16 %v7935, %v7931
  %v8052 = vpack.c.b16 %v7936, %v7932
  %v8053 = vpack.c.b16 %v7937, %v7933
  %v8054 = vpack.c.b16 %v7938, %v7934
  %v8055 = vpack.c.b16 %v7943, %v7939
  %v8056 = vpack.c.b16 %v7944, %v7940
  %v8057 = vpack.c.b16 %v7945, %v7941
  %v8058 = vpack.c.b16 %v7946, %v7942
  %v8059 = vpack.c.b16 %v7951, %v7947
  %v8060 = vpack.c.b16 %v7952, %v7948
  %v8061 = vpack.c.b16 %v7953, %v7949
  %v8062 = vpack.c.b16 %v7954, %v7950
  %v8063 = vpack.c.b16 %v7959, %v7955
  %v8064 = vpack.c.b16 %v7960, %v7956
  %v8065 = vpack.c.b16 %v7961, %v7957
  %v8066 = vpack.c.b16 %v7962, %v7958
  %v8067 = vpack.c.b16 %v7967, %v7963
  %v8068 = vpack.c.b16 %v7968, %v7964
  %v8069 = vpack.c.b16 %v7969, %v7965
  %v8070 = vpack.c.b16 %v7970, %v7966
  %v8071 = vpack.c.b16 %v7975, %v7971
  %v8072 = vpack.c.b16 %v7976, %v7972
  %v8073 = vpack.c.b16 %v7977, %v7973
  %v8074 = vpack.c.b16 %v7978, %v7974
  %v8075 = vpack.c.b16 %v7983, %v7979
  %v8076 = vpack.c.b16 %v7984, %v7980
  %v8077 = vpack.c.b16 %v7985, %v7981
  %v8078 = vpack.c.b16 %v7986, %v7982
  %v8079 = vpack.c.b16 %v7991, %v7987
  %v8080 = vpack.c.b16 %v7992, %v7988
  %v8081 = vpack.c.b16 %v7993, %v7989
  %v8082 = vpack.c.b16 %v7994, %v7990
  %v8083 = vpack.c.b16 %v7999, %v7995
  %v8084 = vpack.c.b16 %v8000, %v7996
  %v8085 = vpack.c.b16 %v8001, %v7997
  %v8086 = vpack.c.b16 %v8002, %v7998
  %v8087 = vpack.c.b16 %v8007, %v8003
  %v8088 = vpack.c.b16 %v8008, %v8004
  %v8089 = vpack.c.b16 %v8009, %v8005
  %v8090 = vpack.c.b16 %v8010, %v8006
  %v8091 = vpack.c.b16 %v8015, %v8011
  %v8092 = vpack.c.b16 %v8016, %v8012
  %v8093 = vpack.c.b16 %v8017, %v8013
  %v8094 = vpack.c.b16 %v8018, %v8014
  %v8095 = vpack.c.b16 %v8023, %v8019
  %v8096 = vpack.c.b16 %v8024, %v8020
  %v8097 = vpack.c.b16 %v8025, %v8021
  %v8098 = vpack.c.b16 %v8026, %v8022
  %v8099 = vpack.c.b16 %v8031, %v8027
  %v8100 = vpack.c.b16 %v8032, %v8028
  %v8101 = vpack.c.b16 %v8033, %v8029
  %v8102 = vpack.c.b16 %v8034, %v8030
  %v8103 = vpack.c.b16 %v8039, %v8035
  %v8104 = vpack.c.b16 %v8040, %v8036
  %v8105 = vpack.c.b16 %v8041, %v8037
  %v8106 = vpack.c.b16 %v8042, %v8038
  %8171 = vmatpush.bf16.msra.mxu0 %v8071
  %8172 = vmatpush.bf16.msra.mxu0 %v8067
  %8173 = vmatpush.bf16.msra.mxu0 %v8063
  %8174 = vmatpush.bf16.msra.mxu0 %v8059
  %8175 = vmatpush.bf16.msra.mxu0 %v8055
  %8176 = vmatpush.bf16.msra.mxu0 %v8051
  %8177 = vmatpush.bf16.msra.mxu0 %v8047
  %8178 = vmatpush.bf16.msra.mxu0 %v8043
  %8179 = vmatmul.bf16.gmra.mxu0 %v7780
  %v8180 = vpop.f32.mrf.mxu0
  %v8181 = vadd.f32 0.0, %v8180
  %v8182 = vpop.f32.mrf.mxu0
  %8183 = vdwg.mxu0
  %8184 = vmatpush.bf16.msra.mxu0 %v8103
  %8185 = vmatpush.bf16.msra.mxu0 %v8099
  %8186 = vmatpush.bf16.msra.mxu0 %v8095
  %8187 = vmatpush.bf16.msra.mxu0 %v8091
  %8188 = vmatpush.bf16.msra.mxu0 %v8087
  %8189 = vmatpush.bf16.msra.mxu0 %v8083
  %8190 = vmatpush.bf16.msra.mxu0 %v8079
  %8191 = vmatpush.bf16.msra.mxu0 %v8075
  %8192 = vmatmul.bf16.gmra.mxu0 %v6991
  %v8193 = vpop.f32.mrf.mxu0
  %v8194 = vadd.f32 %v8181, %v8193
  %v8195 = vpop.f32.mrf.mxu0
  %8196 = vdwg.mxu0
  %8197 = vmatpush.bf16.msra.mxu0 %v8072
  %8198 = vmatpush.bf16.msra.mxu0 %v8068
  %8199 = vmatpush.bf16.msra.mxu0 %v8064
  %8200 = vmatpush.bf16.msra.mxu0 %v8060
  %8201 = vmatpush.bf16.msra.mxu0 %v8056
  %8202 = vmatpush.bf16.msra.mxu0 %v8052
  %8203 = vmatpush.bf16.msra.mxu0 %v8048
  %8204 = vmatpush.bf16.msra.mxu0 %v8044
  %8205 = vmatmul.bf16.gmra.mxu0 %v7780
  %v8206 = vpop.f32.mrf.mxu0
  %v8207 = vadd.f32 0.0, %v8206
  %v8208 = vpop.f32.mrf.mxu0
  %8209 = vdwg.mxu0
  %8210 = vmatpush.bf16.msra.mxu0 %v8104
  %8211 = vmatpush.bf16.msra.mxu0 %v8100
  %8212 = vmatpush.bf16.msra.mxu0 %v8096
  %8213 = vmatpush.bf16.msra.mxu0 %v8092
  %8214 = vmatpush.bf16.msra.mxu0 %v8088
  %8215 = vmatpush.bf16.msra.mxu0 %v8084
  %8216 = vmatpush.bf16.msra.mxu0 %v8080
  %8217 = vmatpush.bf16.msra.mxu0 %v8076
  %8218 = vmatmul.bf16.gmra.mxu0 %v6991
  %v8219 = vpop.f32.mrf.mxu0
  %v8220 = vadd.f32 %v8207, %v8219
  %v8221 = vpop.f32.mrf.mxu0
  %8222 = vdwg.mxu0
  %8223 = vmatpush.bf16.msra.mxu0 %v8073
  %8224 = vmatpush.bf16.msra.mxu0 %v8069
  %8225 = vmatpush.bf16.msra.mxu0 %v8065
  %8226 = vmatpush.bf16.msra.mxu0 %v8061
  %8227 = vmatpush.bf16.msra.mxu0 %v8057
  %8228 = vmatpush.bf16.msra.mxu0 %v8053
  %8229 = vmatpush.bf16.msra.mxu0 %v8049
  %8230 = vmatpush.bf16.msra.mxu0 %v8045
  %8231 = vmatmul.bf16.gmra.mxu0 %v7780
  %v8232 = vpop.f32.mrf.mxu0
  %v8233 = vadd.f32 0.0, %v8232
  %v8234 = vpop.f32.mrf.mxu0
  %8235 = vdwg.mxu0
  %8236 = vmatpush.bf16.msra.mxu0 %v8105
  %8237 = vmatpush.bf16.msra.mxu0 %v8101
  %8238 = vmatpush.bf16.msra.mxu0 %v8097
  %8239 = vmatpush.bf16.msra.mxu0 %v8093
  %8240 = vmatpush.bf16.msra.mxu0 %v8089
  %8241 = vmatpush.bf16.msra.mxu0 %v8085
  %8242 = vmatpush.bf16.msra.mxu0 %v8081
  %8243 = vmatpush.bf16.msra.mxu0 %v8077
  %8244 = vmatmul.bf16.gmra.mxu0 %v6991
  %v8245 = vpop.f32.mrf.mxu0
  %v8246 = vadd.f32 %v8233, %v8245
  %v8247 = vpop.f32.mrf.mxu0
  %8248 = vdwg.mxu0
  %8249 = vmatpush.bf16.msra.mxu0 %v8074
  %8250 = vmatpush.bf16.msra.mxu0 %v8070
  %8251 = vmatpush.bf16.msra.mxu0 %v8066
  %8252 = vmatpush.bf16.msra.mxu0 %v8062
  %8253 = vmatpush.bf16.msra.mxu0 %v8058
  %8254 = vmatpush.bf16.msra.mxu0 %v8054
  %8255 = vmatpush.bf16.msra.mxu0 %v8050
  %8256 = vmatpush.bf16.msra.mxu0 %v8046
  %8257 = vmatmul.bf16.gmra.mxu0 %v7780
  %v8258 = vpop.f32.mrf.mxu0
  %v8259 = vadd.f32 0.0, %v8258
  %v8260 = vpop.f32.mrf.mxu0
  %8261 = vdwg.mxu0
  %8262 = vmatpush.bf16.msra.mxu0 %v8106
  %8263 = vmatpush.bf16.msra.mxu0 %v8102
  %8264 = vmatpush.bf16.msra.mxu0 %v8098
  %8265 = vmatpush.bf16.msra.mxu0 %v8094
  %8266 = vmatpush.bf16.msra.mxu0 %v8090
  %8267 = vmatpush.bf16.msra.mxu0 %v8086
  %8268 = vmatpush.bf16.msra.mxu0 %v8082
  %8269 = vmatpush.bf16.msra.mxu0 %v8078
  %8270 = vmatmul.bf16.gmra.mxu0 %v6991
  %v8271 = vpop.f32.mrf.mxu0
  %v8272 = vadd.f32 %v8259, %v8271
  %v8273 = vpop.f32.mrf.mxu0
  %8274 = vdwg.mxu0
  %v8275 = vadd.f32 %v7783, %v8194
  %v8276 = vadd.f32 %v7784, %v8220
  %v8277 = vadd.f32 %v7785, %v8246
  %v8278 = vadd.f32 %v7786, %v8272
  %v8279 = vxor.u32 %v8275, 2147483648
  %v8280 = vmul.f32 %v8279, 1.442695
  %v8281 = vpow.pop %v8280
  %v8282 = vadd.f32 %v8281, 1.0
  %v8283 = vrcp.pop %v8282
  %v8284 = vmul.f32 %v8282, %v8283
  %v8285 = vsub.f32 1.0, %v8284
  %v8286 = vmul.f32 %v8283, %v8285
  %v8287 = vadd.f32 %v8283, %v8286
  %vm8288 = vweird.f32 %v8282
  %vm8289 = vweird.f32 %v8283
  %vm8290 = vmor %vm8288, %vm8289
  %v8291 = vsel %vm8290, %v8283, %v8287
  %v8292 = vand.u32 2147483647, %v8282
  %vm8293 = vcmp.eq.f32.partialorder %v8292, 8.507059e+37
  %v8294 = vand.u32 %v8282, 2147483648
  %v8295 = vor.u32 1.1754944e-38, %v8294
  %v8296 = vsel %vm8293, %v8295, %v8291
  %v8297 = vmul.f32 1.0, %v8296
  %v8298 = vxor.u32 %v8276, 2147483648
  %v8299 = vmul.f32 %v8298, 1.442695
  %v8300 = vpow.pop %v8299
  %v8301 = vadd.f32 %v8300, 1.0
  %v8302 = vrcp.pop %v8301
  %v8303 = vmul.f32 %v8301, %v8302
  %v8304 = vsub.f32 1.0, %v8303
  %v8305 = vmul.f32 %v8302, %v8304
  %v8306 = vadd.f32 %v8302, %v8305
  %vm8307 = vweird.f32 %v8301
  %vm8308 = vweird.f32 %v8302
  %vm8309 = vmor %vm8307, %vm8308
  %v8310 = vsel %vm8309, %v8302, %v8306
  %v8311 = vand.u32 2147483647, %v8301
  %vm8312 = vcmp.eq.f32.partialorder %v8311, 8.507059e+37
  %v8313 = vand.u32 %v8301, 2147483648
  %v8314 = vor.u32 1.1754944e-38, %v8313
  %v8315 = vsel %vm8312, %v8314, %v8310
  %v8316 = vmul.f32 1.0, %v8315
  %v8317 = vtanh.pop %v8277
  %v8318 = vxor.u32 %v8278, 2147483648
  %v8319 = vmul.f32 %v8318, 1.442695
  %v8320 = vpow.pop %v8319
  %v8321 = vadd.f32 %v8320, 1.0
  %v8322 = vrcp.pop %v8321
  %v8323 = vmul.f32 %v8321, %v8322
  %v8324 = vsub.f32 1.0, %v8323
  %v8325 = vmul.f32 %v8322, %v8324
  %v8326 = vadd.f32 %v8322, %v8325
  %vm8327 = vweird.f32 %v8321
  %vm8328 = vweird.f32 %v8322
  %vm8329 = vmor %vm8327, %vm8328
  %v8330 = vsel %vm8329, %v8322, %v8326
  %v8331 = vand.u32 2147483647, %v8321
  %vm8332 = vcmp.eq.f32.partialorder %v8331, 8.507059e+37
  %v8333 = vand.u32 %v8321, 2147483648
  %v8334 = vor.u32 1.1754944e-38, %v8333
  %v8335 = vsel %vm8332, %v8334, %v8330
  %v8336 = vmul.f32 1.0, %v8335
  %v8337 = vmul.f32 %v8316, %v6951
  %v8338 = vmul.f32 %v8297, %v8317
  %v8339 = vadd.f32 %v8337, %v8338
  %v8340 = vtanh.pop %v8339
  %v8341 = vmul.f32 %v8336, %v8340
  %s8342 = scalar_lea.vmem %s10, 40
  %8343 = vst [vmem:[%s8342] sm:$0xff] %v8341
  %v8344 = vperm.slane %v7592, %v281
  %v8345 = vperm.slane %v7597, %v283
  %v8346 = vsel %vm285, %v8345, %v8344
  %v8347 = vperm.slane %v7602, %v281
  %v8348 = vperm.slane %v7607, %v283
  %v8349 = vsel %vm285, %v8348, %v8347
  %v8350 = vperm.slane %v7612, %v281
  %v8351 = vperm.slane %v7617, %v283
  %v8352 = vsel %vm285, %v8351, %v8350
  %v8353 = vperm.slane %v7622, %v281
  %v8354 = vperm.slane %v7627, %v283
  %v8355 = vsel %vm285, %v8354, %v8353
  %v8356 = vperm.slane %v7632, %v281
  %v8357 = vperm.slane %v7637, %v283
  %v8358 = vsel %vm285, %v8357, %v8356
  %v8359 = vperm.slane %v7642, %v281
  %v8360 = vperm.slane %v7647, %v283
  %v8361 = vsel %vm285, %v8360, %v8359
  %v8362 = vperm.slane %v7652, %v281
  %v8363 = vperm.slane %v7657, %v283
  %v8364 = vsel %vm285, %v8363, %v8362
  %v8365 = vperm.slane %v7662, %v281
  %v8366 = vperm.slane %v7667, %v283
  %v8367 = vsel %vm285, %v8366, %v8365
  %v8368 = vsel %vm308, %v8349, %v8346
  %v8369 = vsel %vm310, %v8352, %v8368
  %v8370 = vsel %vm312, %v8355, %v8369
  %v8371 = vsel %vm314, %v8358, %v8370
  %v8372 = vsel %vm316, %v8361, %v8371
  %v8373 = vsel %vm318, %v8364, %v8372
  %v8374 = vsel %vm320, %v8367, %v8373
  %v8376 = vsel %vm323, %v8374, 0.0
  %s8377 = scalar_lea.vmem %s11, 40
  %8378 = vst [vmem:[%s8377] sm:$0xff] %v8376
  %v8379 = vpack.c.bf16 %v8341, %v8341
  %v8380 = vld [vmem:[%s5] sm:$0xf]
  %v8381 = vld [vmem:[%s5 + $0x4] sm:$0xf]
  %v8382 = vld [vmem:[%s5 + $0x8] sm:$0xf]
  %v8383 = vld [vmem:[%s5 + $0xc] sm:$0xf]
  %v8384 = vld [vmem:[%s5 + $0x10] sm:$0xf]
  %v8385 = vld [vmem:[%s5 + $0x14] sm:$0xf]
  %v8386 = vld [vmem:[%s5 + $0x18] sm:$0xf]
  %v8387 = vld [vmem:[%s5 + $0x1c] sm:$0xf]
  %v8388 = vld [vmem:[%s5 + $0x20] sm:$0xf]
  %v8389 = vld [vmem:[%s5 + $0x24] sm:$0xf]
  %v8390 = vld [vmem:[%s5 + $0x28] sm:$0xf]
  %v8391 = vld [vmem:[%s5 + $0x2c] sm:$0xf]
  %v8392 = vld [vmem:[%s5 + $0x30] sm:$0xf]
  %v8393 = vld [vmem:[%s5 + $0x34] sm:$0xf]
  %v8394 = vld [vmem:[%s5 + $0x38] sm:$0xf]
  %v8395 = vld [vmem:[%s5 + $0x3c] sm:$0xf]
  %v8396 = vld [vmem:[%s6] sm:$0x1]
  %v8398 = vperm.slane %v8396, 0
  %v8416 = vunpack.c.l.b16 %v8380
  %v8417 = vunpack.c.l.b16 %v8381
  %v8418 = vunpack.c.l.b16 %v8382
  %v8419 = vunpack.c.l.b16 %v8383
  %v8420 = vunpack.c.l.b16 %v8384
  %v8421 = vunpack.c.l.b16 %v8385
  %v8422 = vunpack.c.l.b16 %v8386
  %v8423 = vunpack.c.l.b16 %v8387
  %v8424 = vunpack.c.l.b16 %v8388
  %v8425 = vunpack.c.l.b16 %v8389
  %v8426 = vunpack.c.l.b16 %v8390
  %v8427 = vunpack.c.l.b16 %v8391
  %v8428 = vunpack.c.l.b16 %v8392
  %v8429 = vunpack.c.l.b16 %v8393
  %v8430 = vunpack.c.l.b16 %v8394
  %v8431 = vunpack.c.l.b16 %v8395
  %v8432 = vpack.c.b16 %v8417, %v8416
  %v8433 = vpack.c.b16 %v8419, %v8418
  %v8434 = vpack.c.b16 %v8421, %v8420
  %v8435 = vpack.c.b16 %v8423, %v8422
  %v8436 = vpack.c.b16 %v8425, %v8424
  %v8437 = vpack.c.b16 %v8427, %v8426
  %v8438 = vpack.c.b16 %v8429, %v8428
  %v8439 = vpack.c.b16 %v8431, %v8430
  %8448 = vmatpush.bf16.msra.mxu0 %v8439
  %8449 = vmatpush.bf16.msra.mxu0 %v8438
  %8450 = vmatpush.bf16.msra.mxu0 %v8437
  %8451 = vmatpush.bf16.msra.mxu0 %v8436
  %8452 = vmatpush.bf16.msra.mxu0 %v8435
  %8453 = vmatpush.bf16.msra.mxu0 %v8434
  %8454 = vmatpush.bf16.msra.mxu0 %v8433
  %8455 = vmatpush.bf16.msra.mxu0 %v8432
  %8456 = vmatmul.bf16.gmra.mxu0 %v8379
  %v8457 = vpop.f32.mrf.mxu0
  %v8458 = vadd.f32 %v8398, %v8457
  %v8459 = vpop.f32.mrf.mxu0
  %8460 = vdwg.mxu0
  %v8461 = vld [vmem:[%s1] sm:$0xff]
  %v8462 = vld [vmem:[%s1 + $0x8] sm:$0xff]
  %v8463 = vld [vmem:[%s1 + $0x10] sm:$0xff]
  %v8464 = vld [vmem:[%s1 + $0x18] sm:$0xff]
  %v8465 = vld [vmem:[%s1 + $0x20] sm:$0xff]
  %v8466 = vld [vmem:[%s1 + $0x28] sm:$0xff]
  %v8467 = vld [vmem:[%s1 + $0x30] sm:$0xff]
  %v8468 = vld [vmem:[%s1 + $0x38] sm:$0xff]
  %v8469 = vld [vmem:[%s1 + $0x40] sm:$0xff]
  %v8470 = vld [vmem:[%s1 + $0x48] sm:$0xff]
  %v8471 = vld [vmem:[%s1 + $0x50] sm:$0xff]
  %v8472 = vld [vmem:[%s1 + $0x58] sm:$0xff]
  %v8473 = vld [vmem:[%s1 + $0x60] sm:$0xff]
  %v8474 = vld [vmem:[%s1 + $0x68] sm:$0xff]
  %v8475 = vld [vmem:[%s1 + $0x70] sm:$0xff]
  %v8476 = vld [vmem:[%s1 + $0x78] sm:$0xff]
  %v8478 = vrot.slane %v8458, 1
  %v8479 = vrot.slane %v8458, 2
  %v8480 = vrot.slane %v8458, 3
  %v8481 = vrot.slane %v8458, 4
  %v8482 = vrot.slane %v8458, 5
  %v8483 = vrot.slane %v8458, 6
  %v8484 = vrot.slane %v8458, 7
  %v8485 = vperm.slane %v8458, 0
  %v8486 = vperm.slane %v8478, 0
  %v8487 = vperm.slane %v8479, 0
  %v8488 = vperm.slane %v8480, 0
  %v8489 = vperm.slane %v8481, 0
  %v8490 = vperm.slane %v8482, 0
  %v8491 = vperm.slane %v8483, 0
  %v8492 = vperm.slane %v8484, 0
  %v8501 = vadd.f32 %v8461, %v8485
  %v8502 = vadd.f32 %v8462, %v8485
  %v8503 = vadd.f32 %v8463, %v8486
  %v8504 = vadd.f32 %v8464, %v8486
  %v8505 = vadd.f32 %v8465, %v8487
  %v8506 = vadd.f32 %v8466, %v8487
  %v8507 = vadd.f32 %v8467, %v8488
  %v8508 = vadd.f32 %v8468, %v8488
  %v8509 = vadd.f32 %v8469, %v8489
  %v8510 = vadd.f32 %v8470, %v8489
  %v8511 = vadd.f32 %v8471, %v8490
  %v8512 = vadd.f32 %v8472, %v8490
  %v8513 = vadd.f32 %v8473, %v8491
  %v8514 = vadd.f32 %v8474, %v8491
  %v8515 = vadd.f32 %v8475, %v8492
  %v8516 = vadd.f32 %v8476, %v8492
  %v8517 = vtanh.pop %v8501
  %v8518 = vtanh.pop %v8502
  %v8519 = vtanh.pop %v8503
  %v8520 = vtanh.pop %v8504
  %v8521 = vtanh.pop %v8505
  %v8522 = vtanh.pop %v8506
  %v8523 = vtanh.pop %v8507
  %v8524 = vtanh.pop %v8508
  %v8525 = vtanh.pop %v8509
  %v8526 = vtanh.pop %v8510
  %v8527 = vtanh.pop %v8511
  %v8528 = vtanh.pop %v8512
  %v8529 = vtanh.pop %v8513
  %v8530 = vtanh.pop %v8514
  %v8531 = vtanh.pop %v8515
  %v8532 = vtanh.pop %v8516
  %v8533 = vld [vmem:[%s7] sm:$0x1]
  %v8535 = vperm.slane %v8533, 0
  %v8537 = vmul.f32 %v8517, %v8535
  %v8538 = vmul.f32 %v8518, %v8535
  %v8539 = vmul.f32 %v8519, %v8535
  %v8540 = vmul.f32 %v8520, %v8535
  %v8541 = vmul.f32 %v8521, %v8535
  %v8542 = vmul.f32 %v8522, %v8535
  %v8543 = vmul.f32 %v8523, %v8535
  %v8544 = vmul.f32 %v8524, %v8535
  %v8545 = vmul.f32 %v8525, %v8535
  %v8546 = vmul.f32 %v8526, %v8535
  %v8547 = vmul.f32 %v8527, %v8535
  %v8548 = vmul.f32 %v8528, %v8535
  %v8549 = vmul.f32 %v8529, %v8535
  %v8550 = vmul.f32 %v8530, %v8535
  %v8551 = vmul.f32 %v8531, %v8535
  %v8552 = vmul.f32 %v8532, %v8535
  %8553 = vadd.xlane.f32.xlu0 %v8537
  %v8554 = vpop.xlane.xlu0 %8553
  %8555 = vadd.xlane.f32.xlu0 %v8538
  %v8556 = vpop.xlane.xlu0 %8555
  %8557 = vadd.xlane.f32.xlu0 %v8539
  %v8558 = vpop.xlane.xlu0 %8557
  %8559 = vadd.xlane.f32.xlu0 %v8540
  %v8560 = vpop.xlane.xlu0 %8559
  %8561 = vadd.xlane.f32.xlu0 %v8541
  %v8562 = vpop.xlane.xlu0 %8561
  %8563 = vadd.xlane.f32.xlu0 %v8542
  %v8564 = vpop.xlane.xlu0 %8563
  %8565 = vadd.xlane.f32.xlu0 %v8543
  %v8566 = vpop.xlane.xlu0 %8565
  %8567 = vadd.xlane.f32.xlu0 %v8544
  %v8568 = vpop.xlane.xlu0 %8567
  %8569 = vadd.xlane.f32.xlu0 %v8545
  %v8570 = vpop.xlane.xlu0 %8569
  %8571 = vadd.xlane.f32.xlu0 %v8546
  %v8572 = vpop.xlane.xlu0 %8571
  %8573 = vadd.xlane.f32.xlu0 %v8547
  %v8574 = vpop.xlane.xlu0 %8573
  %8575 = vadd.xlane.f32.xlu0 %v8548
  %v8576 = vpop.xlane.xlu0 %8575
  %8577 = vadd.xlane.f32.xlu0 %v8549
  %v8578 = vpop.xlane.xlu0 %8577
  %8579 = vadd.xlane.f32.xlu0 %v8550
  %v8580 = vpop.xlane.xlu0 %8579
  %8581 = vadd.xlane.f32.xlu0 %v8551
  %v8582 = vpop.xlane.xlu0 %8581
  %8583 = vadd.xlane.f32.xlu0 %v8552
  %v8584 = vpop.xlane.xlu0 %8583
  %v8585 = vadd.f32 %v8554, %v247
  %v8586 = vadd.f32 %v8556, %v247
  %v8587 = vadd.f32 %v8558, %v247
  %v8588 = vadd.f32 %v8560, %v247
  %v8589 = vadd.f32 %v8562, %v247
  %v8590 = vadd.f32 %v8564, %v247
  %v8591 = vadd.f32 %v8566, %v247
  %v8592 = vadd.f32 %v8568, %v247
  %v8593 = vadd.f32 %v8570, %v247
  %v8594 = vadd.f32 %v8572, %v247
  %v8595 = vadd.f32 %v8574, %v247
  %v8596 = vadd.f32 %v8576, %v247
  %v8597 = vadd.f32 %v8578, %v247
  %v8598 = vadd.f32 %v8580, %v247
  %v8599 = vadd.f32 %v8582, %v247
  %v8600 = vadd.f32 %v8584, %v247
  %v8617 = vperm.slane %v8585, %v281
  %v8618 = vperm.slane %v8586, %v283
  %v8619 = vsel %vm285, %v8618, %v8617
  %v8620 = vperm.slane %v8587, %v281
  %v8621 = vperm.slane %v8588, %v283
  %v8622 = vsel %vm285, %v8621, %v8620
  %v8623 = vperm.slane %v8589, %v281
  %v8624 = vperm.slane %v8590, %v283
  %v8625 = vsel %vm285, %v8624, %v8623
  %v8626 = vperm.slane %v8591, %v281
  %v8627 = vperm.slane %v8592, %v283
  %v8628 = vsel %vm285, %v8627, %v8626
  %v8629 = vperm.slane %v8593, %v281
  %v8630 = vperm.slane %v8594, %v283
  %v8631 = vsel %vm285, %v8630, %v8629
  %v8632 = vperm.slane %v8595, %v281
  %v8633 = vperm.slane %v8596, %v283
  %v8634 = vsel %vm285, %v8633, %v8632
  %v8635 = vperm.slane %v8597, %v281
  %v8636 = vperm.slane %v8598, %v283
  %v8637 = vsel %vm285, %v8636, %v8635
  %v8638 = vperm.slane %v8599, %v281
  %v8639 = vperm.slane %v8600, %v283
  %v8640 = vsel %vm285, %v8639, %v8638
  %v8641 = vsel %vm308, %v8622, %v8619
  %v8642 = vsel %vm310, %v8625, %v8641
  %v8643 = vsel %vm312, %v8628, %v8642
  %v8644 = vsel %vm314, %v8631, %v8643
  %v8645 = vsel %vm316, %v8634, %v8644
  %v8646 = vsel %vm318, %v8637, %v8645
  %v8647 = vsel %vm320, %v8640, %v8646
  %v8649 = vsel %vm323, %v8647, -inf
  %8650 = vmax.xlane.f32.xlu0 %v8649
  %v8651 = vpop.xlane.xlu0 %8650
  %v8653 = vperm.slane %v8651, 0
  %v8654 = vperm.slane %v8651, 1
  %v8655 = vperm.slane %v8651, 2
  %v8656 = vperm.slane %v8651, 3
  %v8657 = vperm.slane %v8651, 4
  %v8658 = vperm.slane %v8651, 5
  %v8659 = vperm.slane %v8651, 6
  %v8660 = vperm.slane %v8651, 7
  %v8669 = vsub.f32 %v8585, %v8653
  %v8670 = vsub.f32 %v8586, %v8653
  %v8671 = vsub.f32 %v8587, %v8654
  %v8672 = vsub.f32 %v8588, %v8654
  %v8673 = vsub.f32 %v8589, %v8655
  %v8674 = vsub.f32 %v8590, %v8655
  %v8675 = vsub.f32 %v8591, %v8656
  %v8676 = vsub.f32 %v8592, %v8656
  %v8677 = vsub.f32 %v8593, %v8657
  %v8678 = vsub.f32 %v8594, %v8657
  %v8679 = vsub.f32 %v8595, %v8658
  %v8680 = vsub.f32 %v8596, %v8658
  %v8681 = vsub.f32 %v8597, %v8659
  %v8682 = vsub.f32 %v8598, %v8659
  %v8683 = vsub.f32 %v8599, %v8660
  %v8684 = vsub.f32 %v8600, %v8660
  %v8685 = vmul.f32 %v8669, 1.442695
  %v8686 = vpow.pop %v8685
  %v8687 = vmul.f32 %v8670, 1.442695
  %v8688 = vpow.pop %v8687
  %v8689 = vmul.f32 %v8671, 1.442695
  %v8690 = vpow.pop %v8689
  %v8691 = vmul.f32 %v8672, 1.442695
  %v8692 = vpow.pop %v8691
  %v8693 = vmul.f32 %v8673, 1.442695
  %v8694 = vpow.pop %v8693
  %v8695 = vmul.f32 %v8674, 1.442695
  %v8696 = vpow.pop %v8695
  %v8697 = vmul.f32 %v8675, 1.442695
  %v8698 = vpow.pop %v8697
  %v8699 = vmul.f32 %v8676, 1.442695
  %v8700 = vpow.pop %v8699
  %v8701 = vmul.f32 %v8677, 1.442695
  %v8702 = vpow.pop %v8701
  %v8703 = vmul.f32 %v8678, 1.442695
  %v8704 = vpow.pop %v8703
  %v8705 = vmul.f32 %v8679, 1.442695
  %v8706 = vpow.pop %v8705
  %v8707 = vmul.f32 %v8680, 1.442695
  %v8708 = vpow.pop %v8707
  %v8709 = vmul.f32 %v8681, 1.442695
  %v8710 = vpow.pop %v8709
  %v8711 = vmul.f32 %v8682, 1.442695
  %v8712 = vpow.pop %v8711
  %v8713 = vmul.f32 %v8683, 1.442695
  %v8714 = vpow.pop %v8713
  %v8715 = vmul.f32 %v8684, 1.442695
  %v8716 = vpow.pop %v8715
  %8733 = vset.pattern.permute.xlu0 0
  %8734 = vperm.xlu0 %8733, %v8686
  %v8735 = vpop.permute.xlu0 %8734
  %8736 = vset.pattern.permute.xlu0 0
  %8737 = vperm.xlu0 %8736, %v8688
  %v8738 = vpop.permute.xlu0 %8737
  %8739 = vset.pattern.permute.xlu0 0
  %8740 = vperm.xlu0 %8739, %v8690
  %v8741 = vpop.permute.xlu0 %8740
  %8742 = vset.pattern.permute.xlu0 0
  %8743 = vperm.xlu0 %8742, %v8692
  %v8744 = vpop.permute.xlu0 %8743
  %8745 = vset.pattern.permute.xlu0 0
  %8746 = vperm.xlu0 %8745, %v8694
  %v8747 = vpop.permute.xlu0 %8746
  %8748 = vset.pattern.permute.xlu0 0
  %8749 = vperm.xlu0 %8748, %v8696
  %v8750 = vpop.permute.xlu0 %8749
  %8751 = vset.pattern.permute.xlu0 0
  %8752 = vperm.xlu0 %8751, %v8698
  %v8753 = vpop.permute.xlu0 %8752
  %8754 = vset.pattern.permute.xlu0 0
  %8755 = vperm.xlu0 %8754, %v8700
  %v8756 = vpop.permute.xlu0 %8755
  %8757 = vset.pattern.permute.xlu0 0
  %8758 = vperm.xlu0 %8757, %v8702
  %v8759 = vpop.permute.xlu0 %8758
  %8760 = vset.pattern.permute.xlu0 0
  %8761 = vperm.xlu0 %8760, %v8704
  %v8762 = vpop.permute.xlu0 %8761
  %8763 = vset.pattern.permute.xlu0 0
  %8764 = vperm.xlu0 %8763, %v8706
  %v8765 = vpop.permute.xlu0 %8764
  %8766 = vset.pattern.permute.xlu0 0
  %8767 = vperm.xlu0 %8766, %v8708
  %v8768 = vpop.permute.xlu0 %8767
  %8769 = vset.pattern.permute.xlu0 0
  %8770 = vperm.xlu0 %8769, %v8710
  %v8771 = vpop.permute.xlu0 %8770
  %8772 = vset.pattern.permute.xlu0 0
  %8773 = vperm.xlu0 %8772, %v8712
  %v8774 = vpop.permute.xlu0 %8773
  %8775 = vset.pattern.permute.xlu0 0
  %8776 = vperm.xlu0 %8775, %v8714
  %v8777 = vpop.permute.xlu0 %8776
  %8778 = vset.pattern.permute.xlu0 0
  %8779 = vperm.xlu0 %8778, %v8716
  %v8780 = vpop.permute.xlu0 %8779
  %v8781 = vperm.slane %v8735, %v281
  %v8782 = vperm.slane %v8738, %v283
  %v8783 = vsel %vm285, %v8782, %v8781
  %v8784 = vperm.slane %v8741, %v281
  %v8785 = vperm.slane %v8744, %v283
  %v8786 = vsel %vm285, %v8785, %v8784
  %v8787 = vperm.slane %v8747, %v281
  %v8788 = vperm.slane %v8750, %v283
  %v8789 = vsel %vm285, %v8788, %v8787
  %v8790 = vperm.slane %v8753, %v281
  %v8791 = vperm.slane %v8756, %v283
  %v8792 = vsel %vm285, %v8791, %v8790
  %v8793 = vperm.slane %v8759, %v281
  %v8794 = vperm.slane %v8762, %v283
  %v8795 = vsel %vm285, %v8794, %v8793
  %v8796 = vperm.slane %v8765, %v281
  %v8797 = vperm.slane %v8768, %v283
  %v8798 = vsel %vm285, %v8797, %v8796
  %v8799 = vperm.slane %v8771, %v281
  %v8800 = vperm.slane %v8774, %v283
  %v8801 = vsel %vm285, %v8800, %v8799
  %v8802 = vperm.slane %v8777, %v281
  %v8803 = vperm.slane %v8780, %v283
  %v8804 = vsel %vm285, %v8803, %v8802
  %v8805 = vsel %vm308, %v8786, %v8783
  %v8806 = vsel %vm310, %v8789, %v8805
  %v8807 = vsel %vm312, %v8792, %v8806
  %v8808 = vsel %vm314, %v8795, %v8807
  %v8809 = vsel %vm316, %v8798, %v8808
  %v8810 = vsel %vm318, %v8801, %v8809
  %v8811 = vsel %vm320, %v8804, %v8810
  %v8813 = vsel %vm323, %v8811, 0.0
  %8814 = vadd.xlane.f32.xlu0 %v8813
  %v8815 = vpop.xlane.xlu0 %8814
  %v8817 = vperm.slane %v8815, 0
  %v8818 = vperm.slane %v8815, 1
  %v8819 = vperm.slane %v8815, 2
  %v8820 = vperm.slane %v8815, 3
  %v8821 = vperm.slane %v8815, 4
  %v8822 = vperm.slane %v8815, 5
  %v8823 = vperm.slane %v8815, 6
  %v8824 = vperm.slane %v8815, 7
  %v8833 = vrcp.pop %v8817
  %v8834 = vmul.f32 %v8817, %v8833
  %v8835 = vsub.f32 1.0, %v8834
  %v8836 = vmul.f32 %v8833, %v8835
  %v8837 = vadd.f32 %v8833, %v8836
  %vm8838 = vweird.f32 %v8817
  %vm8839 = vweird.f32 %v8833
  %vm8840 = vmor %vm8838, %vm8839
  %v8841 = vsel %vm8840, %v8833, %v8837
  %v8842 = vand.u32 2147483647, %v8817
  %vm8843 = vcmp.eq.f32.partialorder %v8842, 8.507059e+37
  %v8844 = vand.u32 %v8817, 2147483648
  %v8845 = vor.u32 1.1754944e-38, %v8844
  %v8846 = vsel %vm8843, %v8845, %v8841
  %v8847 = vmul.f32 %v8686, %v8846
  %v8848 = vmul.f32 %v8688, %v8846
  %v8849 = vrcp.pop %v8818
  %v8850 = vmul.f32 %v8818, %v8849
  %v8851 = vsub.f32 1.0, %v8850
  %v8852 = vmul.f32 %v8849, %v8851
  %v8853 = vadd.f32 %v8849, %v8852
  %vm8854 = vweird.f32 %v8818
  %vm8855 = vweird.f32 %v8849
  %vm8856 = vmor %vm8854, %vm8855
  %v8857 = vsel %vm8856, %v8849, %v8853
  %v8858 = vand.u32 2147483647, %v8818
  %vm8859 = vcmp.eq.f32.partialorder %v8858, 8.507059e+37
  %v8860 = vand.u32 %v8818, 2147483648
  %v8861 = vor.u32 1.1754944e-38, %v8860
  %v8862 = vsel %vm8859, %v8861, %v8857
  %v8863 = vmul.f32 %v8690, %v8862
  %v8864 = vmul.f32 %v8692, %v8862
  %v8865 = vrcp.pop %v8819
  %v8866 = vmul.f32 %v8819, %v8865
  %v8867 = vsub.f32 1.0, %v8866
  %v8868 = vmul.f32 %v8865, %v8867
  %v8869 = vadd.f32 %v8865, %v8868
  %vm8870 = vweird.f32 %v8819
  %vm8871 = vweird.f32 %v8865
  %vm8872 = vmor %vm8870, %vm8871
  %v8873 = vsel %vm8872, %v8865, %v8869
  %v8874 = vand.u32 2147483647, %v8819
  %vm8875 = vcmp.eq.f32.partialorder %v8874, 8.507059e+37
  %v8876 = vand.u32 %v8819, 2147483648
  %v8877 = vor.u32 1.1754944e-38, %v8876
  %v8878 = vsel %vm8875, %v8877, %v8873
  %v8879 = vmul.f32 %v8694, %v8878
  %v8880 = vmul.f32 %v8696, %v8878
  %v8881 = vrcp.pop %v8820
  %v8882 = vmul.f32 %v8820, %v8881
  %v8883 = vsub.f32 1.0, %v8882
  %v8884 = vmul.f32 %v8881, %v8883
  %v8885 = vadd.f32 %v8881, %v8884
  %vm8886 = vweird.f32 %v8820
  %vm8887 = vweird.f32 %v8881
  %vm8888 = vmor %vm8886, %vm8887
  %v8889 = vsel %vm8888, %v8881, %v8885
  %v8890 = vand.u32 2147483647, %v8820
  %vm8891 = vcmp.eq.f32.partialorder %v8890, 8.507059e+37
  %v8892 = vand.u32 %v8820, 2147483648
  %v8893 = vor.u32 1.1754944e-38, %v8892
  %v8894 = vsel %vm8891, %v8893, %v8889
  %v8895 = vmul.f32 %v8698, %v8894
  %v8896 = vmul.f32 %v8700, %v8894
  %v8897 = vrcp.pop %v8821
  %v8898 = vmul.f32 %v8821, %v8897
  %v8899 = vsub.f32 1.0, %v8898
  %v8900 = vmul.f32 %v8897, %v8899
  %v8901 = vadd.f32 %v8897, %v8900
  %vm8902 = vweird.f32 %v8821
  %vm8903 = vweird.f32 %v8897
  %vm8904 = vmor %vm8902, %vm8903
  %v8905 = vsel %vm8904, %v8897, %v8901
  %v8906 = vand.u32 2147483647, %v8821
  %vm8907 = vcmp.eq.f32.partialorder %v8906, 8.507059e+37
  %v8908 = vand.u32 %v8821, 2147483648
  %v8909 = vor.u32 1.1754944e-38, %v8908
  %v8910 = vsel %vm8907, %v8909, %v8905
  %v8911 = vmul.f32 %v8702, %v8910
  %v8912 = vmul.f32 %v8704, %v8910
  %v8913 = vrcp.pop %v8822
  %v8914 = vmul.f32 %v8822, %v8913
  %v8915 = vsub.f32 1.0, %v8914
  %v8916 = vmul.f32 %v8913, %v8915
  %v8917 = vadd.f32 %v8913, %v8916
  %vm8918 = vweird.f32 %v8822
  %vm8919 = vweird.f32 %v8913
  %vm8920 = vmor %vm8918, %vm8919
  %v8921 = vsel %vm8920, %v8913, %v8917
  %v8922 = vand.u32 2147483647, %v8822
  %vm8923 = vcmp.eq.f32.partialorder %v8922, 8.507059e+37
  %v8924 = vand.u32 %v8822, 2147483648
  %v8925 = vor.u32 1.1754944e-38, %v8924
  %v8926 = vsel %vm8923, %v8925, %v8921
  %v8927 = vmul.f32 %v8706, %v8926
  %v8928 = vmul.f32 %v8708, %v8926
  %v8929 = vrcp.pop %v8823
  %v8930 = vmul.f32 %v8823, %v8929
  %v8931 = vsub.f32 1.0, %v8930
  %v8932 = vmul.f32 %v8929, %v8931
  %v8933 = vadd.f32 %v8929, %v8932
  %vm8934 = vweird.f32 %v8823
  %vm8935 = vweird.f32 %v8929
  %vm8936 = vmor %vm8934, %vm8935
  %v8937 = vsel %vm8936, %v8929, %v8933
  %v8938 = vand.u32 2147483647, %v8823
  %vm8939 = vcmp.eq.f32.partialorder %v8938, 8.507059e+37
  %v8940 = vand.u32 %v8823, 2147483648
  %v8941 = vor.u32 1.1754944e-38, %v8940
  %v8942 = vsel %vm8939, %v8941, %v8937
  %v8943 = vmul.f32 %v8710, %v8942
  %v8944 = vmul.f32 %v8712, %v8942
  %v8945 = vrcp.pop %v8824
  %v8946 = vmul.f32 %v8824, %v8945
  %v8947 = vsub.f32 1.0, %v8946
  %v8948 = vmul.f32 %v8945, %v8947
  %v8949 = vadd.f32 %v8945, %v8948
  %vm8950 = vweird.f32 %v8824
  %vm8951 = vweird.f32 %v8945
  %vm8952 = vmor %vm8950, %vm8951
  %v8953 = vsel %vm8952, %v8945, %v8949
  %v8954 = vand.u32 2147483647, %v8824
  %vm8955 = vcmp.eq.f32.partialorder %v8954, 8.507059e+37
  %v8956 = vand.u32 %v8824, 2147483648
  %v8957 = vor.u32 1.1754944e-38, %v8956
  %v8958 = vsel %vm8955, %v8957, %v8953
  %v8959 = vmul.f32 %v8714, %v8958
  %v8960 = vmul.f32 %v8716, %v8958
  %v8961 = vld [vmem:[%s0] sm:$0xff]
  %v8962 = vld [vmem:[%s0 + $0x8] sm:$0xff]
  %v8963 = vld [vmem:[%s0 + $0x10] sm:$0xff]
  %v8964 = vld [vmem:[%s0 + $0x18] sm:$0xff]
  %v8965 = vld [vmem:[%s0 + $0x20] sm:$0xff]
  %v8966 = vld [vmem:[%s0 + $0x28] sm:$0xff]
  %v8967 = vld [vmem:[%s0 + $0x30] sm:$0xff]
  %v8968 = vld [vmem:[%s0 + $0x38] sm:$0xff]
  %v8969 = vld [vmem:[%s0 + $0x40] sm:$0xff]
  %v8970 = vld [vmem:[%s0 + $0x48] sm:$0xff]
  %v8971 = vld [vmem:[%s0 + $0x50] sm:$0xff]
  %v8972 = vld [vmem:[%s0 + $0x58] sm:$0xff]
  %v8973 = vld [vmem:[%s0 + $0x60] sm:$0xff]
  %v8974 = vld [vmem:[%s0 + $0x68] sm:$0xff]
  %v8975 = vld [vmem:[%s0 + $0x70] sm:$0xff]
  %v8976 = vld [vmem:[%s0 + $0x78] sm:$0xff]
  %8978 = vset.pattern.permute.xlu0 0
  %8979 = vperm.xlu0 %8978, %v8847
  %v8980 = vpop.permute.xlu0 %8979
  %8983 = vset.pattern.permute.xlu0 0
  %8984 = vperm.xlu0 %8983, %v8848
  %v8985 = vpop.permute.xlu0 %8984
  %8988 = vset.pattern.permute.xlu0 0
  %8989 = vperm.xlu0 %8988, %v8863
  %v8990 = vpop.permute.xlu0 %8989
  %8993 = vset.pattern.permute.xlu0 0
  %8994 = vperm.xlu0 %8993, %v8864
  %v8995 = vpop.permute.xlu0 %8994
  %8998 = vset.pattern.permute.xlu0 0
  %8999 = vperm.xlu0 %8998, %v8879
  %v9000 = vpop.permute.xlu0 %8999
  %9003 = vset.pattern.permute.xlu0 0
  %9004 = vperm.xlu0 %9003, %v8880
  %v9005 = vpop.permute.xlu0 %9004
  %9008 = vset.pattern.permute.xlu0 0
  %9009 = vperm.xlu0 %9008, %v8895
  %v9010 = vpop.permute.xlu0 %9009
  %9013 = vset.pattern.permute.xlu0 0
  %9014 = vperm.xlu0 %9013, %v8896
  %v9015 = vpop.permute.xlu0 %9014
  %9018 = vset.pattern.permute.xlu0 0
  %9019 = vperm.xlu0 %9018, %v8911
  %v9020 = vpop.permute.xlu0 %9019
  %9023 = vset.pattern.permute.xlu0 0
  %9024 = vperm.xlu0 %9023, %v8912
  %v9025 = vpop.permute.xlu0 %9024
  %9028 = vset.pattern.permute.xlu0 0
  %9029 = vperm.xlu0 %9028, %v8927
  %v9030 = vpop.permute.xlu0 %9029
  %9033 = vset.pattern.permute.xlu0 0
  %9034 = vperm.xlu0 %9033, %v8928
  %v9035 = vpop.permute.xlu0 %9034
  %9038 = vset.pattern.permute.xlu0 0
  %9039 = vperm.xlu0 %9038, %v8943
  %v9040 = vpop.permute.xlu0 %9039
  %9043 = vset.pattern.permute.xlu0 0
  %9044 = vperm.xlu0 %9043, %v8944
  %v9045 = vpop.permute.xlu0 %9044
  %9048 = vset.pattern.permute.xlu0 0
  %9049 = vperm.xlu0 %9048, %v8959
  %v9050 = vpop.permute.xlu0 %9049
  %9053 = vset.pattern.permute.xlu0 0
  %9054 = vperm.xlu0 %9053, %v8960
  %v9055 = vpop.permute.xlu0 %9054
  %v9057 = vmul.f32 %v8961, %v8980
  %v9058 = vmul.f32 %v8962, %v8985
  %v9059 = vmul.f32 %v8963, %v8990
  %v9060 = vmul.f32 %v8964, %v8995
  %v9061 = vmul.f32 %v8965, %v9000
  %v9062 = vmul.f32 %v8966, %v9005
  %v9063 = vmul.f32 %v8967, %v9010
  %v9064 = vmul.f32 %v8968, %v9015
  %v9065 = vmul.f32 %v8969, %v9020
  %v9066 = vmul.f32 %v8970, %v9025
  %v9067 = vmul.f32 %v8971, %v9030
  %v9068 = vmul.f32 %v8972, %v9035
  %v9069 = vmul.f32 %v8973, %v9040
  %v9070 = vmul.f32 %v8974, %v9045
  %v9071 = vmul.f32 %v8975, %v9050
  %v9072 = vmul.f32 %v8976, %v9055
  %v9073 = vadd.f32 %v9057, %v9058
  %v9074 = vrot.slane %v9073, 4
  %v9075 = vadd.f32 %v9073, %v9074
  %v9076 = vrot.slane %v9075, 2
  %v9077 = vadd.f32 %v9075, %v9076
  %v9078 = vrot.slane %v9077, 1
  %v9079 = vadd.f32 %v9077, %v9078
  %v9080 = vadd.f32 %v9059, %v9060
  %v9081 = vrot.slane %v9080, 4
  %v9082 = vadd.f32 %v9080, %v9081
  %v9083 = vrot.slane %v9082, 2
  %v9084 = vadd.f32 %v9082, %v9083
  %v9085 = vrot.slane %v9084, 1
  %v9086 = vadd.f32 %v9084, %v9085
  %v9087 = vadd.f32 %v9061, %v9062
  %v9088 = vrot.slane %v9087, 4
  %v9089 = vadd.f32 %v9087, %v9088
  %v9090 = vrot.slane %v9089, 2
  %v9091 = vadd.f32 %v9089, %v9090
  %v9092 = vrot.slane %v9091, 1
  %v9093 = vadd.f32 %v9091, %v9092
  %v9094 = vadd.f32 %v9063, %v9064
  %v9095 = vrot.slane %v9094, 4
  %v9096 = vadd.f32 %v9094, %v9095
  %v9097 = vrot.slane %v9096, 2
  %v9098 = vadd.f32 %v9096, %v9097
  %v9099 = vrot.slane %v9098, 1
  %v9100 = vadd.f32 %v9098, %v9099
  %v9101 = vadd.f32 %v9065, %v9066
  %v9102 = vrot.slane %v9101, 4
  %v9103 = vadd.f32 %v9101, %v9102
  %v9104 = vrot.slane %v9103, 2
  %v9105 = vadd.f32 %v9103, %v9104
  %v9106 = vrot.slane %v9105, 1
  %v9107 = vadd.f32 %v9105, %v9106
  %v9108 = vadd.f32 %v9067, %v9068
  %v9109 = vrot.slane %v9108, 4
  %v9110 = vadd.f32 %v9108, %v9109
  %v9111 = vrot.slane %v9110, 2
  %v9112 = vadd.f32 %v9110, %v9111
  %v9113 = vrot.slane %v9112, 1
  %v9114 = vadd.f32 %v9112, %v9113
  %v9115 = vadd.f32 %v9069, %v9070
  %v9116 = vrot.slane %v9115, 4
  %v9117 = vadd.f32 %v9115, %v9116
  %v9118 = vrot.slane %v9117, 2
  %v9119 = vadd.f32 %v9117, %v9118
  %v9120 = vrot.slane %v9119, 1
  %v9121 = vadd.f32 %v9119, %v9120
  %v9122 = vadd.f32 %v9071, %v9072
  %v9123 = vrot.slane %v9122, 4
  %v9124 = vadd.f32 %v9122, %v9123
  %v9125 = vrot.slane %v9124, 2
  %v9126 = vadd.f32 %v9124, %v9125
  %v9127 = vrot.slane %v9126, 1
  %v9128 = vadd.f32 %v9126, %v9127
  %v9129 = vpack.c.bf16 %v9079, %v9079
  %v9130 = vpack.c.bf16 %v9086, %v9086
  %v9131 = vpack.c.bf16 %v9093, %v9093
  %v9132 = vpack.c.bf16 %v9100, %v9100
  %v9133 = vpack.c.bf16 %v9107, %v9107
  %v9134 = vpack.c.bf16 %v9114, %v9114
  %v9135 = vpack.c.bf16 %v9121, %v9121
  %v9136 = vpack.c.bf16 %v9128, %v9128
  %v9145 = vperm.slane %v9129, 0
  %v9146 = vperm.slane %v9130, 0
  %v9147 = vperm.slane %v9131, 0
  %v9148 = vperm.slane %v9132, 0
  %v9149 = vperm.slane %v9133, 0
  %v9150 = vperm.slane %v9134, 0
  %v9151 = vperm.slane %v9135, 0
  %v9152 = vperm.slane %v9136, 0
  %v9153 = vunpack.c.l.b16 %v9145
  %v9154 = vunpack.c.l.b16 %v9146
  %v9155 = vunpack.c.l.b16 %v9147
  %v9156 = vunpack.c.l.b16 %v9148
  %v9157 = vunpack.c.l.b16 %v9149
  %v9158 = vunpack.c.l.b16 %v9150
  %v9159 = vunpack.c.l.b16 %v9151
  %v9160 = vunpack.c.l.b16 %v9152
  %v9161 = vsel %vm308, %v9154, %v9153
  %v9162 = vsel %vm310, %v9155, %v9161
  %v9163 = vsel %vm312, %v9156, %v9162
  %v9164 = vsel %vm314, %v9157, %v9163
  %v9165 = vsel %vm316, %v9158, %v9164
  %v9166 = vsel %vm318, %v9159, %v9165
  %v9167 = vsel %vm320, %v9160, %v9166
  %v9168 = vpack.c.b16 %v9167, %v9167
  %s9170 = scalar_lea.vmem %s2, 192
  %v9171 = vld [vmem:[%s9170] sm:$0xff]
  %v9172 = vld [vmem:[%s9170 + $0x8] sm:$0xff]
  %v9173 = vld [vmem:[%s9170 + $0x10] sm:$0xff]
  %v9174 = vld [vmem:[%s9170 + $0x18] sm:$0xff]
  %v9175 = vld [vmem:[%s9] sm:$0xff]
  %v9176 = vld [vmem:[%s9 + $0x8] sm:$0xff]
  %v9177 = vld [vmem:[%s9 + $0x10] sm:$0xff]
  %v9178 = vld [vmem:[%s9 + $0x18] sm:$0xff]
  %v9179 = vld [vmem:[%s9 + $0x20] sm:$0xff]
  %v9180 = vld [vmem:[%s9 + $0x28] sm:$0xff]
  %v9181 = vld [vmem:[%s9 + $0x30] sm:$0xff]
  %v9182 = vld [vmem:[%s9 + $0x38] sm:$0xff]
  %v9183 = vld [vmem:[%s9 + $0x40] sm:$0xff]
  %v9184 = vld [vmem:[%s9 + $0x48] sm:$0xff]
  %v9185 = vld [vmem:[%s9 + $0x50] sm:$0xff]
  %v9186 = vld [vmem:[%s9 + $0x58] sm:$0xff]
  %v9187 = vld [vmem:[%s9 + $0x60] sm:$0xff]
  %v9188 = vld [vmem:[%s9 + $0x68] sm:$0xff]
  %v9189 = vld [vmem:[%s9 + $0x70] sm:$0xff]
  %v9190 = vld [vmem:[%s9 + $0x78] sm:$0xff]
  %v9191 = vld [vmem:[%s9 + $0x80] sm:$0xff]
  %v9192 = vld [vmem:[%s9 + $0x88] sm:$0xff]
  %v9193 = vld [vmem:[%s9 + $0x90] sm:$0xff]
  %v9194 = vld [vmem:[%s9 + $0x98] sm:$0xff]
  %v9195 = vld [vmem:[%s9 + $0xa0] sm:$0xff]
  %v9196 = vld [vmem:[%s9 + $0xa8] sm:$0xff]
  %v9197 = vld [vmem:[%s9 + $0xb0] sm:$0xff]
  %v9198 = vld [vmem:[%s9 + $0xb8] sm:$0xff]
  %v9199 = vld [vmem:[%s9 + $0xc0] sm:$0xff]
  %v9200 = vld [vmem:[%s9 + $0xc8] sm:$0xff]
  %v9201 = vld [vmem:[%s9 + $0xd0] sm:$0xff]
  %v9202 = vld [vmem:[%s9 + $0xd8] sm:$0xff]
  %v9203 = vld [vmem:[%s9 + $0xe0] sm:$0xff]
  %v9204 = vld [vmem:[%s9 + $0xe8] sm:$0xff]
  %v9205 = vld [vmem:[%s9 + $0xf0] sm:$0xff]
  %v9206 = vld [vmem:[%s9 + $0xf8] sm:$0xff]
  %v9207 = vld [vmem:[%s9 + $0x100] sm:$0xff]
  %v9208 = vld [vmem:[%s9 + $0x108] sm:$0xff]
  %v9209 = vld [vmem:[%s9 + $0x110] sm:$0xff]
  %v9210 = vld [vmem:[%s9 + $0x118] sm:$0xff]
  %v9211 = vld [vmem:[%s9 + $0x120] sm:$0xff]
  %v9212 = vld [vmem:[%s9 + $0x128] sm:$0xff]
  %v9213 = vld [vmem:[%s9 + $0x130] sm:$0xff]
  %v9214 = vld [vmem:[%s9 + $0x138] sm:$0xff]
  %v9215 = vld [vmem:[%s9 + $0x140] sm:$0xff]
  %v9216 = vld [vmem:[%s9 + $0x148] sm:$0xff]
  %v9217 = vld [vmem:[%s9 + $0x150] sm:$0xff]
  %v9218 = vld [vmem:[%s9 + $0x158] sm:$0xff]
  %v9219 = vld [vmem:[%s9 + $0x160] sm:$0xff]
  %v9220 = vld [vmem:[%s9 + $0x168] sm:$0xff]
  %v9221 = vld [vmem:[%s9 + $0x170] sm:$0xff]
  %v9222 = vld [vmem:[%s9 + $0x178] sm:$0xff]
  %v9223 = vld [vmem:[%s9 + $0x180] sm:$0xff]
  %v9224 = vld [vmem:[%s9 + $0x188] sm:$0xff]
  %v9225 = vld [vmem:[%s9 + $0x190] sm:$0xff]
  %v9226 = vld [vmem:[%s9 + $0x198] sm:$0xff]
  %v9227 = vld [vmem:[%s9 + $0x1a0] sm:$0xff]
  %v9228 = vld [vmem:[%s9 + $0x1a8] sm:$0xff]
  %v9229 = vld [vmem:[%s9 + $0x1b0] sm:$0xff]
  %v9230 = vld [vmem:[%s9 + $0x1b8] sm:$0xff]
  %v9231 = vld [vmem:[%s9 + $0x1c0] sm:$0xff]
  %v9232 = vld [vmem:[%s9 + $0x1c8] sm:$0xff]
  %v9233 = vld [vmem:[%s9 + $0x1d0] sm:$0xff]
  %v9234 = vld [vmem:[%s9 + $0x1d8] sm:$0xff]
  %v9235 = vld [vmem:[%s9 + $0x1e0] sm:$0xff]
  %v9236 = vld [vmem:[%s9 + $0x1e8] sm:$0xff]
  %v9237 = vld [vmem:[%s9 + $0x1f0] sm:$0xff]
  %v9238 = vld [vmem:[%s9 + $0x1f8] sm:$0xff]
  %v9303 = vunpack.c.l.b16 %v9175
  %v9304 = vunpack.c.h.b16 %v9175
  %v9305 = vunpack.c.l.b16 %v9176
  %v9306 = vunpack.c.h.b16 %v9176
  %v9307 = vunpack.c.l.b16 %v9177
  %v9308 = vunpack.c.h.b16 %v9177
  %v9309 = vunpack.c.l.b16 %v9178
  %v9310 = vunpack.c.h.b16 %v9178
  %v9311 = vunpack.c.l.b16 %v9179
  %v9312 = vunpack.c.h.b16 %v9179
  %v9313 = vunpack.c.l.b16 %v9180
  %v9314 = vunpack.c.h.b16 %v9180
  %v9315 = vunpack.c.l.b16 %v9181
  %v9316 = vunpack.c.h.b16 %v9181
  %v9317 = vunpack.c.l.b16 %v9182
  %v9318 = vunpack.c.h.b16 %v9182
  %v9319 = vunpack.c.l.b16 %v9183
  %v9320 = vunpack.c.h.b16 %v9183
  %v9321 = vunpack.c.l.b16 %v9184
  %v9322 = vunpack.c.h.b16 %v9184
  %v9323 = vunpack.c.l.b16 %v9185
  %v9324 = vunpack.c.h.b16 %v9185
  %v9325 = vunpack.c.l.b16 %v9186
  %v9326 = vunpack.c.h.b16 %v9186
  %v9327 = vunpack.c.l.b16 %v9187
  %v9328 = vunpack.c.h.b16 %v9187
  %v9329 = vunpack.c.l.b16 %v9188
  %v9330 = vunpack.c.h.b16 %v9188
  %v9331 = vunpack.c.l.b16 %v9189
  %v9332 = vunpack.c.h.b16 %v9189
  %v9333 = vunpack.c.l.b16 %v9190
  %v9334 = vunpack.c.h.b16 %v9190
  %v9335 = vunpack.c.l.b16 %v9191
  %v9336 = vunpack.c.h.b16 %v9191
  %v9337 = vunpack.c.l.b16 %v9192
  %v9338 = vunpack.c.h.b16 %v9192
  %v9339 = vunpack.c.l.b16 %v9193
  %v9340 = vunpack.c.h.b16 %v9193
  %v9341 = vunpack.c.l.b16 %v9194
  %v9342 = vunpack.c.h.b16 %v9194
  %v9343 = vunpack.c.l.b16 %v9195
  %v9344 = vunpack.c.h.b16 %v9195
  %v9345 = vunpack.c.l.b16 %v9196
  %v9346 = vunpack.c.h.b16 %v9196
  %v9347 = vunpack.c.l.b16 %v9197
  %v9348 = vunpack.c.h.b16 %v9197
  %v9349 = vunpack.c.l.b16 %v9198
  %v9350 = vunpack.c.h.b16 %v9198
  %v9351 = vunpack.c.l.b16 %v9199
  %v9352 = vunpack.c.h.b16 %v9199
  %v9353 = vunpack.c.l.b16 %v9200
  %v9354 = vunpack.c.h.b16 %v9200
  %v9355 = vunpack.c.l.b16 %v9201
  %v9356 = vunpack.c.h.b16 %v9201
  %v9357 = vunpack.c.l.b16 %v9202
  %v9358 = vunpack.c.h.b16 %v9202
  %v9359 = vunpack.c.l.b16 %v9203
  %v9360 = vunpack.c.h.b16 %v9203
  %v9361 = vunpack.c.l.b16 %v9204
  %v9362 = vunpack.c.h.b16 %v9204
  %v9363 = vunpack.c.l.b16 %v9205
  %v9364 = vunpack.c.h.b16 %v9205
  %v9365 = vunpack.c.l.b16 %v9206
  %v9366 = vunpack.c.h.b16 %v9206
  %v9367 = vunpack.c.l.b16 %v9207
  %v9368 = vunpack.c.h.b16 %v9207
  %v9369 = vunpack.c.l.b16 %v9208
  %v9370 = vunpack.c.h.b16 %v9208
  %v9371 = vunpack.c.l.b16 %v9209
  %v9372 = vunpack.c.h.b16 %v9209
  %v9373 = vunpack.c.l.b16 %v9210
  %v9374 = vunpack.c.h.b16 %v9210
  %v9375 = vunpack.c.l.b16 %v9211
  %v9376 = vunpack.c.h.b16 %v9211
  %v9377 = vunpack.c.l.b16 %v9212
  %v9378 = vunpack.c.h.b16 %v9212
  %v9379 = vunpack.c.l.b16 %v9213
  %v9380 = vunpack.c.h.b16 %v9213
  %v9381 = vunpack.c.l.b16 %v9214
  %v9382 = vunpack.c.h.b16 %v9214
  %v9383 = vunpack.c.l.b16 %v9215
  %v9384 = vunpack.c.h.b16 %v9215
  %v9385 = vunpack.c.l.b16 %v9216
  %v9386 = vunpack.c.h.b16 %v9216
  %v9387 = vunpack.c.l.b16 %v9217
  %v9388 = vunpack.c.h.b16 %v9217
  %v9389 = vunpack.c.l.b16 %v9218
  %v9390 = vunpack.c.h.b16 %v9218
  %v9391 = vunpack.c.l.b16 %v9219
  %v9392 = vunpack.c.h.b16 %v9219
  %v9393 = vunpack.c.l.b16 %v9220
  %v9394 = vunpack.c.h.b16 %v9220
  %v9395 = vunpack.c.l.b16 %v9221
  %v9396 = vunpack.c.h.b16 %v9221
  %v9397 = vunpack.c.l.b16 %v9222
  %v9398 = vunpack.c.h.b16 %v9222
  %v9399 = vunpack.c.l.b16 %v9223
  %v9400 = vunpack.c.h.b16 %v9223
  %v9401 = vunpack.c.l.b16 %v9224
  %v9402 = vunpack.c.h.b16 %v9224
  %v9403 = vunpack.c.l.b16 %v9225
  %v9404 = vunpack.c.h.b16 %v9225
  %v9405 = vunpack.c.l.b16 %v9226
  %v9406 = vunpack.c.h.b16 %v9226
  %v9407 = vunpack.c.l.b16 %v9227
  %v9408 = vunpack.c.h.b16 %v9227
  %v9409 = vunpack.c.l.b16 %v9228
  %v9410 = vunpack.c.h.b16 %v9228
  %v9411 = vunpack.c.l.b16 %v9229
  %v9412 = vunpack.c.h.b16 %v9229
  %v9413 = vunpack.c.l.b16 %v9230
  %v9414 = vunpack.c.h.b16 %v9230
  %v9415 = vunpack.c.l.b16 %v9231
  %v9416 = vunpack.c.h.b16 %v9231
  %v9417 = vunpack.c.l.b16 %v9232
  %v9418 = vunpack.c.h.b16 %v9232
  %v9419 = vunpack.c.l.b16 %v9233
  %v9420 = vunpack.c.h.b16 %v9233
  %v9421 = vunpack.c.l.b16 %v9234
  %v9422 = vunpack.c.h.b16 %v9234
  %v9423 = vunpack.c.l.b16 %v9235
  %v9424 = vunpack.c.h.b16 %v9235
  %v9425 = vunpack.c.l.b16 %v9236
  %v9426 = vunpack.c.h.b16 %v9236
  %v9427 = vunpack.c.l.b16 %v9237
  %v9428 = vunpack.c.h.b16 %v9237
  %v9429 = vunpack.c.l.b16 %v9238
  %v9430 = vunpack.c.h.b16 %v9238
  %v9431 = vpack.c.b16 %v9307, %v9303
  %v9432 = vpack.c.b16 %v9308, %v9304
  %v9433 = vpack.c.b16 %v9309, %v9305
  %v9434 = vpack.c.b16 %v9310, %v9306
  %v9435 = vpack.c.b16 %v9315, %v9311
  %v9436 = vpack.c.b16 %v9316, %v9312
  %v9437 = vpack.c.b16 %v9317, %v9313
  %v9438 = vpack.c.b16 %v9318, %v9314
  %v9439 = vpack.c.b16 %v9323, %v9319
  %v9440 = vpack.c.b16 %v9324, %v9320
  %v9441 = vpack.c.b16 %v9325, %v9321
  %v9442 = vpack.c.b16 %v9326, %v9322
  %v9443 = vpack.c.b16 %v9331, %v9327
  %v9444 = vpack.c.b16 %v9332, %v9328
  %v9445 = vpack.c.b16 %v9333, %v9329
  %v9446 = vpack.c.b16 %v9334, %v9330
  %v9447 = vpack.c.b16 %v9339, %v9335
  %v9448 = vpack.c.b16 %v9340, %v9336
  %v9449 = vpack.c.b16 %v9341, %v9337
  %v9450 = vpack.c.b16 %v9342, %v9338
  %v9451 = vpack.c.b16 %v9347, %v9343
  %v9452 = vpack.c.b16 %v9348, %v9344
  %v9453 = vpack.c.b16 %v9349, %v9345
  %v9454 = vpack.c.b16 %v9350, %v9346
  %v9455 = vpack.c.b16 %v9355, %v9351
  %v9456 = vpack.c.b16 %v9356, %v9352
  %v9457 = vpack.c.b16 %v9357, %v9353
  %v9458 = vpack.c.b16 %v9358, %v9354
  %v9459 = vpack.c.b16 %v9363, %v9359
  %v9460 = vpack.c.b16 %v9364, %v9360
  %v9461 = vpack.c.b16 %v9365, %v9361
  %v9462 = vpack.c.b16 %v9366, %v9362
  %v9463 = vpack.c.b16 %v9371, %v9367
  %v9464 = vpack.c.b16 %v9372, %v9368
  %v9465 = vpack.c.b16 %v9373, %v9369
  %v9466 = vpack.c.b16 %v9374, %v9370
  %v9467 = vpack.c.b16 %v9379, %v9375
  %v9468 = vpack.c.b16 %v9380, %v9376
  %v9469 = vpack.c.b16 %v9381, %v9377
  %v9470 = vpack.c.b16 %v9382, %v9378
  %v9471 = vpack.c.b16 %v9387, %v9383
  %v9472 = vpack.c.b16 %v9388, %v9384
  %v9473 = vpack.c.b16 %v9389, %v9385
  %v9474 = vpack.c.b16 %v9390, %v9386
  %v9475 = vpack.c.b16 %v9395, %v9391
  %v9476 = vpack.c.b16 %v9396, %v9392
  %v9477 = vpack.c.b16 %v9397, %v9393
  %v9478 = vpack.c.b16 %v9398, %v9394
  %v9479 = vpack.c.b16 %v9403, %v9399
  %v9480 = vpack.c.b16 %v9404, %v9400
  %v9481 = vpack.c.b16 %v9405, %v9401
  %v9482 = vpack.c.b16 %v9406, %v9402
  %v9483 = vpack.c.b16 %v9411, %v9407
  %v9484 = vpack.c.b16 %v9412, %v9408
  %v9485 = vpack.c.b16 %v9413, %v9409
  %v9486 = vpack.c.b16 %v9414, %v9410
  %v9487 = vpack.c.b16 %v9419, %v9415
  %v9488 = vpack.c.b16 %v9420, %v9416
  %v9489 = vpack.c.b16 %v9421, %v9417
  %v9490 = vpack.c.b16 %v9422, %v9418
  %v9491 = vpack.c.b16 %v9427, %v9423
  %v9492 = vpack.c.b16 %v9428, %v9424
  %v9493 = vpack.c.b16 %v9429, %v9425
  %v9494 = vpack.c.b16 %v9430, %v9426
  %9559 = vmatpush.bf16.msra.mxu0 %v9459
  %9560 = vmatpush.bf16.msra.mxu0 %v9455
  %9561 = vmatpush.bf16.msra.mxu0 %v9451
  %9562 = vmatpush.bf16.msra.mxu0 %v9447
  %9563 = vmatpush.bf16.msra.mxu0 %v9443
  %9564 = vmatpush.bf16.msra.mxu0 %v9439
  %9565 = vmatpush.bf16.msra.mxu0 %v9435
  %9566 = vmatpush.bf16.msra.mxu0 %v9431
  %9567 = vmatmul.bf16.gmra.mxu0 %v9168
  %v9568 = vpop.f32.mrf.mxu0
  %v9569 = vadd.f32 0.0, %v9568
  %v9570 = vpop.f32.mrf.mxu0
  %9571 = vdwg.mxu0
  %9572 = vmatpush.bf16.msra.mxu0 %v9491
  %9573 = vmatpush.bf16.msra.mxu0 %v9487
  %9574 = vmatpush.bf16.msra.mxu0 %v9483
  %9575 = vmatpush.bf16.msra.mxu0 %v9479
  %9576 = vmatpush.bf16.msra.mxu0 %v9475
  %9577 = vmatpush.bf16.msra.mxu0 %v9471
  %9578 = vmatpush.bf16.msra.mxu0 %v9467
  %9579 = vmatpush.bf16.msra.mxu0 %v9463
  %9580 = vmatmul.bf16.gmra.mxu0 %v8379
  %v9581 = vpop.f32.mrf.mxu0
  %v9582 = vadd.f32 %v9569, %v9581
  %v9583 = vpop.f32.mrf.mxu0
  %9584 = vdwg.mxu0
  %9585 = vmatpush.bf16.msra.mxu0 %v9460
  %9586 = vmatpush.bf16.msra.mxu0 %v9456
  %9587 = vmatpush.bf16.msra.mxu0 %v9452
  %9588 = vmatpush.bf16.msra.mxu0 %v9448
  %9589 = vmatpush.bf16.msra.mxu0 %v9444
  %9590 = vmatpush.bf16.msra.mxu0 %v9440
  %9591 = vmatpush.bf16.msra.mxu0 %v9436
  %9592 = vmatpush.bf16.msra.mxu0 %v9432
  %9593 = vmatmul.bf16.gmra.mxu0 %v9168
  %v9594 = vpop.f32.mrf.mxu0
  %v9595 = vadd.f32 0.0, %v9594
  %v9596 = vpop.f32.mrf.mxu0
  %9597 = vdwg.mxu0
  %9598 = vmatpush.bf16.msra.mxu0 %v9492
  %9599 = vmatpush.bf16.msra.mxu0 %v9488
  %9600 = vmatpush.bf16.msra.mxu0 %v9484
  %9601 = vmatpush.bf16.msra.mxu0 %v9480
  %9602 = vmatpush.bf16.msra.mxu0 %v9476
  %9603 = vmatpush.bf16.msra.mxu0 %v9472
  %9604 = vmatpush.bf16.msra.mxu0 %v9468
  %9605 = vmatpush.bf16.msra.mxu0 %v9464
  %9606 = vmatmul.bf16.gmra.mxu0 %v8379
  %v9607 = vpop.f32.mrf.mxu0
  %v9608 = vadd.f32 %v9595, %v9607
  %v9609 = vpop.f32.mrf.mxu0
  %9610 = vdwg.mxu0
  %9611 = vmatpush.bf16.msra.mxu0 %v9461
  %9612 = vmatpush.bf16.msra.mxu0 %v9457
  %9613 = vmatpush.bf16.msra.mxu0 %v9453
  %9614 = vmatpush.bf16.msra.mxu0 %v9449
  %9615 = vmatpush.bf16.msra.mxu0 %v9445
  %9616 = vmatpush.bf16.msra.mxu0 %v9441
  %9617 = vmatpush.bf16.msra.mxu0 %v9437
  %9618 = vmatpush.bf16.msra.mxu0 %v9433
  %9619 = vmatmul.bf16.gmra.mxu0 %v9168
  %v9620 = vpop.f32.mrf.mxu0
  %v9621 = vadd.f32 0.0, %v9620
  %v9622 = vpop.f32.mrf.mxu0
  %9623 = vdwg.mxu0
  %9624 = vmatpush.bf16.msra.mxu0 %v9493
  %9625 = vmatpush.bf16.msra.mxu0 %v9489
  %9626 = vmatpush.bf16.msra.mxu0 %v9485
  %9627 = vmatpush.bf16.msra.mxu0 %v9481
  %9628 = vmatpush.bf16.msra.mxu0 %v9477
  %9629 = vmatpush.bf16.msra.mxu0 %v9473
  %9630 = vmatpush.bf16.msra.mxu0 %v9469
  %9631 = vmatpush.bf16.msra.mxu0 %v9465
  %9632 = vmatmul.bf16.gmra.mxu0 %v8379
  %v9633 = vpop.f32.mrf.mxu0
  %v9634 = vadd.f32 %v9621, %v9633
  %v9635 = vpop.f32.mrf.mxu0
  %9636 = vdwg.mxu0
  %9637 = vmatpush.bf16.msra.mxu0 %v9462
  %9638 = vmatpush.bf16.msra.mxu0 %v9458
  %9639 = vmatpush.bf16.msra.mxu0 %v9454
  %9640 = vmatpush.bf16.msra.mxu0 %v9450
  %9641 = vmatpush.bf16.msra.mxu0 %v9446
  %9642 = vmatpush.bf16.msra.mxu0 %v9442
  %9643 = vmatpush.bf16.msra.mxu0 %v9438
  %9644 = vmatpush.bf16.msra.mxu0 %v9434
  %9645 = vmatmul.bf16.gmra.mxu0 %v9168
  %v9646 = vpop.f32.mrf.mxu0
  %v9647 = vadd.f32 0.0, %v9646
  %v9648 = vpop.f32.mrf.mxu0
  %9649 = vdwg.mxu0
  %9650 = vmatpush.bf16.msra.mxu0 %v9494
  %9651 = vmatpush.bf16.msra.mxu0 %v9490
  %9652 = vmatpush.bf16.msra.mxu0 %v9486
  %9653 = vmatpush.bf16.msra.mxu0 %v9482
  %9654 = vmatpush.bf16.msra.mxu0 %v9478
  %9655 = vmatpush.bf16.msra.mxu0 %v9474
  %9656 = vmatpush.bf16.msra.mxu0 %v9470
  %9657 = vmatpush.bf16.msra.mxu0 %v9466
  %9658 = vmatmul.bf16.gmra.mxu0 %v8379
  %v9659 = vpop.f32.mrf.mxu0
  %v9660 = vadd.f32 %v9647, %v9659
  %v9661 = vpop.f32.mrf.mxu0
  %9662 = vdwg.mxu0
  %v9663 = vadd.f32 %v9171, %v9582
  %v9664 = vadd.f32 %v9172, %v9608
  %v9665 = vadd.f32 %v9173, %v9634
  %v9666 = vadd.f32 %v9174, %v9660
  %v9667 = vxor.u32 %v9663, 2147483648
  %v9668 = vmul.f32 %v9667, 1.442695
  %v9669 = vpow.pop %v9668
  %v9670 = vadd.f32 %v9669, 1.0
  %v9671 = vrcp.pop %v9670
  %v9672 = vmul.f32 %v9670, %v9671
  %v9673 = vsub.f32 1.0, %v9672
  %v9674 = vmul.f32 %v9671, %v9673
  %v9675 = vadd.f32 %v9671, %v9674
  %vm9676 = vweird.f32 %v9670
  %vm9677 = vweird.f32 %v9671
  %vm9678 = vmor %vm9676, %vm9677
  %v9679 = vsel %vm9678, %v9671, %v9675
  %v9680 = vand.u32 2147483647, %v9670
  %vm9681 = vcmp.eq.f32.partialorder %v9680, 8.507059e+37
  %v9682 = vand.u32 %v9670, 2147483648
  %v9683 = vor.u32 1.1754944e-38, %v9682
  %v9684 = vsel %vm9681, %v9683, %v9679
  %v9685 = vmul.f32 1.0, %v9684
  %v9686 = vxor.u32 %v9664, 2147483648
  %v9687 = vmul.f32 %v9686, 1.442695
  %v9688 = vpow.pop %v9687
  %v9689 = vadd.f32 %v9688, 1.0
  %v9690 = vrcp.pop %v9689
  %v9691 = vmul.f32 %v9689, %v9690
  %v9692 = vsub.f32 1.0, %v9691
  %v9693 = vmul.f32 %v9690, %v9692
  %v9694 = vadd.f32 %v9690, %v9693
  %vm9695 = vweird.f32 %v9689
  %vm9696 = vweird.f32 %v9690
  %vm9697 = vmor %vm9695, %vm9696
  %v9698 = vsel %vm9697, %v9690, %v9694
  %v9699 = vand.u32 2147483647, %v9689
  %vm9700 = vcmp.eq.f32.partialorder %v9699, 8.507059e+37
  %v9701 = vand.u32 %v9689, 2147483648
  %v9702 = vor.u32 1.1754944e-38, %v9701
  %v9703 = vsel %vm9700, %v9702, %v9698
  %v9704 = vmul.f32 1.0, %v9703
  %v9705 = vtanh.pop %v9665
  %v9706 = vxor.u32 %v9666, 2147483648
  %v9707 = vmul.f32 %v9706, 1.442695
  %v9708 = vpow.pop %v9707
  %v9709 = vadd.f32 %v9708, 1.0
  %v9710 = vrcp.pop %v9709
  %v9711 = vmul.f32 %v9709, %v9710
  %v9712 = vsub.f32 1.0, %v9711
  %v9713 = vmul.f32 %v9710, %v9712
  %v9714 = vadd.f32 %v9710, %v9713
  %vm9715 = vweird.f32 %v9709
  %vm9716 = vweird.f32 %v9710
  %vm9717 = vmor %vm9715, %vm9716
  %v9718 = vsel %vm9717, %v9710, %v9714
  %v9719 = vand.u32 2147483647, %v9709
  %vm9720 = vcmp.eq.f32.partialorder %v9719, 8.507059e+37
  %v9721 = vand.u32 %v9709, 2147483648
  %v9722 = vor.u32 1.1754944e-38, %v9721
  %v9723 = vsel %vm9720, %v9722, %v9718
  %v9724 = vmul.f32 1.0, %v9723
  %v9725 = vmul.f32 %v9704, %v8339
  %v9726 = vmul.f32 %v9685, %v9705
  %v9727 = vadd.f32 %v9725, %v9726
  %v9728 = vtanh.pop %v9727
  %v9729 = vmul.f32 %v9724, %v9728
  %s9730 = scalar_lea.vmem %s10, 48
  %9731 = vst [vmem:[%s9730] sm:$0xff] %v9729
  %v9732 = vperm.slane %v8980, %v281
  %v9733 = vperm.slane %v8985, %v283
  %v9734 = vsel %vm285, %v9733, %v9732
  %v9735 = vperm.slane %v8990, %v281
  %v9736 = vperm.slane %v8995, %v283
  %v9737 = vsel %vm285, %v9736, %v9735
  %v9738 = vperm.slane %v9000, %v281
  %v9739 = vperm.slane %v9005, %v283
  %v9740 = vsel %vm285, %v9739, %v9738
  %v9741 = vperm.slane %v9010, %v281
  %v9742 = vperm.slane %v9015, %v283
  %v9743 = vsel %vm285, %v9742, %v9741
  %v9744 = vperm.slane %v9020, %v281
  %v9745 = vperm.slane %v9025, %v283
  %v9746 = vsel %vm285, %v9745, %v9744
  %v9747 = vperm.slane %v9030, %v281
  %v9748 = vperm.slane %v9035, %v283
  %v9749 = vsel %vm285, %v9748, %v9747
  %v9750 = vperm.slane %v9040, %v281
  %v9751 = vperm.slane %v9045, %v283
  %v9752 = vsel %vm285, %v9751, %v9750
  %v9753 = vperm.slane %v9050, %v281
  %v9754 = vperm.slane %v9055, %v283
  %v9755 = vsel %vm285, %v9754, %v9753
  %v9756 = vsel %vm308, %v9737, %v9734
  %v9757 = vsel %vm310, %v9740, %v9756
  %v9758 = vsel %vm312, %v9743, %v9757
  %v9759 = vsel %vm314, %v9746, %v9758
  %v9760 = vsel %vm316, %v9749, %v9759
  %v9761 = vsel %vm318, %v9752, %v9760
  %v9762 = vsel %vm320, %v9755, %v9761
  %v9764 = vsel %vm323, %v9762, 0.0
  %s9765 = scalar_lea.vmem %s11, 48
  %9766 = vst [vmem:[%s9765] sm:$0xff] %v9764
  %v9767 = vpack.c.bf16 %v9729, %v9729
  %v9768 = vld [vmem:[%s5] sm:$0xf]
  %v9769 = vld [vmem:[%s5 + $0x4] sm:$0xf]
  %v9770 = vld [vmem:[%s5 + $0x8] sm:$0xf]
  %v9771 = vld [vmem:[%s5 + $0xc] sm:$0xf]
  %v9772 = vld [vmem:[%s5 + $0x10] sm:$0xf]
  %v9773 = vld [vmem:[%s5 + $0x14] sm:$0xf]
  %v9774 = vld [vmem:[%s5 + $0x18] sm:$0xf]
  %v9775 = vld [vmem:[%s5 + $0x1c] sm:$0xf]
  %v9776 = vld [vmem:[%s5 + $0x20] sm:$0xf]
  %v9777 = vld [vmem:[%s5 + $0x24] sm:$0xf]
  %v9778 = vld [vmem:[%s5 + $0x28] sm:$0xf]
  %v9779 = vld [vmem:[%s5 + $0x2c] sm:$0xf]
  %v9780 = vld [vmem:[%s5 + $0x30] sm:$0xf]
  %v9781 = vld [vmem:[%s5 + $0x34] sm:$0xf]
  %v9782 = vld [vmem:[%s5 + $0x38] sm:$0xf]
  %v9783 = vld [vmem:[%s5 + $0x3c] sm:$0xf]
  %v9784 = vld [vmem:[%s6] sm:$0x1]
  %v9786 = vperm.slane %v9784, 0
  %v9804 = vunpack.c.l.b16 %v9768
  %v9805 = vunpack.c.l.b16 %v9769
  %v9806 = vunpack.c.l.b16 %v9770
  %v9807 = vunpack.c.l.b16 %v9771
  %v9808 = vunpack.c.l.b16 %v9772
  %v9809 = vunpack.c.l.b16 %v9773
  %v9810 = vunpack.c.l.b16 %v9774
  %v9811 = vunpack.c.l.b16 %v9775
  %v9812 = vunpack.c.l.b16 %v9776
  %v9813 = vunpack.c.l.b16 %v9777
  %v9814 = vunpack.c.l.b16 %v9778
  %v9815 = vunpack.c.l.b16 %v9779
  %v9816 = vunpack.c.l.b16 %v9780
  %v9817 = vunpack.c.l.b16 %v9781
  %v9818 = vunpack.c.l.b16 %v9782
  %v9819 = vunpack.c.l.b16 %v9783
  %v9820 = vpack.c.b16 %v9805, %v9804
  %v9821 = vpack.c.b16 %v9807, %v9806
  %v9822 = vpack.c.b16 %v9809, %v9808
  %v9823 = vpack.c.b16 %v9811, %v9810
  %v9824 = vpack.c.b16 %v9813, %v9812
  %v9825 = vpack.c.b16 %v9815, %v9814
  %v9826 = vpack.c.b16 %v9817, %v9816
  %v9827 = vpack.c.b16 %v9819, %v9818
  %9836 = vmatpush.bf16.msra.mxu0 %v9827
  %9837 = vmatpush.bf16.msra.mxu0 %v9826
  %9838 = vmatpush.bf16.msra.mxu0 %v9825
  %9839 = vmatpush.bf16.msra.mxu0 %v9824
  %9840 = vmatpush.bf16.msra.mxu0 %v9823
  %9841 = vmatpush.bf16.msra.mxu0 %v9822
  %9842 = vmatpush.bf16.msra.mxu0 %v9821
  %9843 = vmatpush.bf16.msra.mxu0 %v9820
  %9844 = vmatmul.bf16.gmra.mxu0 %v9767
  %v9845 = vpop.f32.mrf.mxu0
  %v9846 = vadd.f32 %v9786, %v9845
  %v9847 = vpop.f32.mrf.mxu0
  %9848 = vdwg.mxu0
  %v9849 = vld [vmem:[%s1] sm:$0xff]
  %v9850 = vld [vmem:[%s1 + $0x8] sm:$0xff]
  %v9851 = vld [vmem:[%s1 + $0x10] sm:$0xff]
  %v9852 = vld [vmem:[%s1 + $0x18] sm:$0xff]
  %v9853 = vld [vmem:[%s1 + $0x20] sm:$0xff]
  %v9854 = vld [vmem:[%s1 + $0x28] sm:$0xff]
  %v9855 = vld [vmem:[%s1 + $0x30] sm:$0xff]
  %v9856 = vld [vmem:[%s1 + $0x38] sm:$0xff]
  %v9857 = vld [vmem:[%s1 + $0x40] sm:$0xff]
  %v9858 = vld [vmem:[%s1 + $0x48] sm:$0xff]
  %v9859 = vld [vmem:[%s1 + $0x50] sm:$0xff]
  %v9860 = vld [vmem:[%s1 + $0x58] sm:$0xff]
  %v9861 = vld [vmem:[%s1 + $0x60] sm:$0xff]
  %v9862 = vld [vmem:[%s1 + $0x68] sm:$0xff]
  %v9863 = vld [vmem:[%s1 + $0x70] sm:$0xff]
  %v9864 = vld [vmem:[%s1 + $0x78] sm:$0xff]
  %v9866 = vrot.slane %v9846, 1
  %v9867 = vrot.slane %v9846, 2
  %v9868 = vrot.slane %v9846, 3
  %v9869 = vrot.slane %v9846, 4
  %v9870 = vrot.slane %v9846, 5
  %v9871 = vrot.slane %v9846, 6
  %v9872 = vrot.slane %v9846, 7
  %v9873 = vperm.slane %v9846, 0
  %v9874 = vperm.slane %v9866, 0
  %v9875 = vperm.slane %v9867, 0
  %v9876 = vperm.slane %v9868, 0
  %v9877 = vperm.slane %v9869, 0
  %v9878 = vperm.slane %v9870, 0
  %v9879 = vperm.slane %v9871, 0
  %v9880 = vperm.slane %v9872, 0
  %v9889 = vadd.f32 %v9849, %v9873
  %v9890 = vadd.f32 %v9850, %v9873
  %v9891 = vadd.f32 %v9851, %v9874
  %v9892 = vadd.f32 %v9852, %v9874
  %v9893 = vadd.f32 %v9853, %v9875
  %v9894 = vadd.f32 %v9854, %v9875
  %v9895 = vadd.f32 %v9855, %v9876
  %v9896 = vadd.f32 %v9856, %v9876
  %v9897 = vadd.f32 %v9857, %v9877
  %v9898 = vadd.f32 %v9858, %v9877
  %v9899 = vadd.f32 %v9859, %v9878
  %v9900 = vadd.f32 %v9860, %v9878
  %v9901 = vadd.f32 %v9861, %v9879
  %v9902 = vadd.f32 %v9862, %v9879
  %v9903 = vadd.f32 %v9863, %v9880
  %v9904 = vadd.f32 %v9864, %v9880
  %v9905 = vtanh.pop %v9889
  %v9906 = vtanh.pop %v9890
  %v9907 = vtanh.pop %v9891
  %v9908 = vtanh.pop %v9892
  %v9909 = vtanh.pop %v9893
  %v9910 = vtanh.pop %v9894
  %v9911 = vtanh.pop %v9895
  %v9912 = vtanh.pop %v9896
  %v9913 = vtanh.pop %v9897
  %v9914 = vtanh.pop %v9898
  %v9915 = vtanh.pop %v9899
  %v9916 = vtanh.pop %v9900
  %v9917 = vtanh.pop %v9901
  %v9918 = vtanh.pop %v9902
  %v9919 = vtanh.pop %v9903
  %v9920 = vtanh.pop %v9904
  %v9921 = vld [vmem:[%s7] sm:$0x1]
  %v9923 = vperm.slane %v9921, 0
  %v9925 = vmul.f32 %v9905, %v9923
  %v9926 = vmul.f32 %v9906, %v9923
  %v9927 = vmul.f32 %v9907, %v9923
  %v9928 = vmul.f32 %v9908, %v9923
  %v9929 = vmul.f32 %v9909, %v9923
  %v9930 = vmul.f32 %v9910, %v9923
  %v9931 = vmul.f32 %v9911, %v9923
  %v9932 = vmul.f32 %v9912, %v9923
  %v9933 = vmul.f32 %v9913, %v9923
  %v9934 = vmul.f32 %v9914, %v9923
  %v9935 = vmul.f32 %v9915, %v9923
  %v9936 = vmul.f32 %v9916, %v9923
  %v9937 = vmul.f32 %v9917, %v9923
  %v9938 = vmul.f32 %v9918, %v9923
  %v9939 = vmul.f32 %v9919, %v9923
  %v9940 = vmul.f32 %v9920, %v9923
  %9941 = vadd.xlane.f32.xlu0 %v9925
  %v9942 = vpop.xlane.xlu0 %9941
  %9943 = vadd.xlane.f32.xlu0 %v9926
  %v9944 = vpop.xlane.xlu0 %9943
  %9945 = vadd.xlane.f32.xlu0 %v9927
  %v9946 = vpop.xlane.xlu0 %9945
  %9947 = vadd.xlane.f32.xlu0 %v9928
  %v9948 = vpop.xlane.xlu0 %9947
  %9949 = vadd.xlane.f32.xlu0 %v9929
  %v9950 = vpop.xlane.xlu0 %9949
  %9951 = vadd.xlane.f32.xlu0 %v9930
  %v9952 = vpop.xlane.xlu0 %9951
  %9953 = vadd.xlane.f32.xlu0 %v9931
  %v9954 = vpop.xlane.xlu0 %9953
  %9955 = vadd.xlane.f32.xlu0 %v9932
  %v9956 = vpop.xlane.xlu0 %9955
  %9957 = vadd.xlane.f32.xlu0 %v9933
  %v9958 = vpop.xlane.xlu0 %9957
  %9959 = vadd.xlane.f32.xlu0 %v9934
  %v9960 = vpop.xlane.xlu0 %9959
  %9961 = vadd.xlane.f32.xlu0 %v9935
  %v9962 = vpop.xlane.xlu0 %9961
  %9963 = vadd.xlane.f32.xlu0 %v9936
  %v9964 = vpop.xlane.xlu0 %9963
  %9965 = vadd.xlane.f32.xlu0 %v9937
  %v9966 = vpop.xlane.xlu0 %9965
  %9967 = vadd.xlane.f32.xlu0 %v9938
  %v9968 = vpop.xlane.xlu0 %9967
  %9969 = vadd.xlane.f32.xlu0 %v9939
  %v9970 = vpop.xlane.xlu0 %9969
  %9971 = vadd.xlane.f32.xlu0 %v9940
  %v9972 = vpop.xlane.xlu0 %9971
  %v9973 = vadd.f32 %v9942, %v247
  %v9974 = vadd.f32 %v9944, %v247
  %v9975 = vadd.f32 %v9946, %v247
  %v9976 = vadd.f32 %v9948, %v247
  %v9977 = vadd.f32 %v9950, %v247
  %v9978 = vadd.f32 %v9952, %v247
  %v9979 = vadd.f32 %v9954, %v247
  %v9980 = vadd.f32 %v9956, %v247
  %v9981 = vadd.f32 %v9958, %v247
  %v9982 = vadd.f32 %v9960, %v247
  %v9983 = vadd.f32 %v9962, %v247
  %v9984 = vadd.f32 %v9964, %v247
  %v9985 = vadd.f32 %v9966, %v247
  %v9986 = vadd.f32 %v9968, %v247
  %v9987 = vadd.f32 %v9970, %v247
  %v9988 = vadd.f32 %v9972, %v247
  %v10005 = vperm.slane %v9973, %v281
  %v10006 = vperm.slane %v9974, %v283
  %v10007 = vsel %vm285, %v10006, %v10005
  %v10008 = vperm.slane %v9975, %v281
  %v10009 = vperm.slane %v9976, %v283
  %v10010 = vsel %vm285, %v10009, %v10008
  %v10011 = vperm.slane %v9977, %v281
  %v10012 = vperm.slane %v9978, %v283
  %v10013 = vsel %vm285, %v10012, %v10011
  %v10014 = vperm.slane %v9979, %v281
  %v10015 = vperm.slane %v9980, %v283
  %v10016 = vsel %vm285, %v10015, %v10014
  %v10017 = vperm.slane %v9981, %v281
  %v10018 = vperm.slane %v9982, %v283
  %v10019 = vsel %vm285, %v10018, %v10017
  %v10020 = vperm.slane %v9983, %v281
  %v10021 = vperm.slane %v9984, %v283
  %v10022 = vsel %vm285, %v10021, %v10020
  %v10023 = vperm.slane %v9985, %v281
  %v10024 = vperm.slane %v9986, %v283
  %v10025 = vsel %vm285, %v10024, %v10023
  %v10026 = vperm.slane %v9987, %v281
  %v10027 = vperm.slane %v9988, %v283
  %v10028 = vsel %vm285, %v10027, %v10026
  %v10029 = vsel %vm308, %v10010, %v10007
  %v10030 = vsel %vm310, %v10013, %v10029
  %v10031 = vsel %vm312, %v10016, %v10030
  %v10032 = vsel %vm314, %v10019, %v10031
  %v10033 = vsel %vm316, %v10022, %v10032
  %v10034 = vsel %vm318, %v10025, %v10033
  %v10035 = vsel %vm320, %v10028, %v10034
  %v10037 = vsel %vm323, %v10035, -inf
  %10038 = vmax.xlane.f32.xlu0 %v10037
  %v10039 = vpop.xlane.xlu0 %10038
  %v10041 = vperm.slane %v10039, 0
  %v10042 = vperm.slane %v10039, 1
  %v10043 = vperm.slane %v10039, 2
  %v10044 = vperm.slane %v10039, 3
  %v10045 = vperm.slane %v10039, 4
  %v10046 = vperm.slane %v10039, 5
  %v10047 = vperm.slane %v10039, 6
  %v10048 = vperm.slane %v10039, 7
  %v10057 = vsub.f32 %v9973, %v10041
  %v10058 = vsub.f32 %v9974, %v10041
  %v10059 = vsub.f32 %v9975, %v10042
  %v10060 = vsub.f32 %v9976, %v10042
  %v10061 = vsub.f32 %v9977, %v10043
  %v10062 = vsub.f32 %v9978, %v10043
  %v10063 = vsub.f32 %v9979, %v10044
  %v10064 = vsub.f32 %v9980, %v10044
  %v10065 = vsub.f32 %v9981, %v10045
  %v10066 = vsub.f32 %v9982, %v10045
  %v10067 = vsub.f32 %v9983, %v10046
  %v10068 = vsub.f32 %v9984, %v10046
  %v10069 = vsub.f32 %v9985, %v10047
  %v10070 = vsub.f32 %v9986, %v10047
  %v10071 = vsub.f32 %v9987, %v10048
  %v10072 = vsub.f32 %v9988, %v10048
  %v10073 = vmul.f32 %v10057, 1.442695
  %v10074 = vpow.pop %v10073
  %v10075 = vmul.f32 %v10058, 1.442695
  %v10076 = vpow.pop %v10075
  %v10077 = vmul.f32 %v10059, 1.442695
  %v10078 = vpow.pop %v10077
  %v10079 = vmul.f32 %v10060, 1.442695
  %v10080 = vpow.pop %v10079
  %v10081 = vmul.f32 %v10061, 1.442695
  %v10082 = vpow.pop %v10081
  %v10083 = vmul.f32 %v10062, 1.442695
  %v10084 = vpow.pop %v10083
  %v10085 = vmul.f32 %v10063, 1.442695
  %v10086 = vpow.pop %v10085
  %v10087 = vmul.f32 %v10064, 1.442695
  %v10088 = vpow.pop %v10087
  %v10089 = vmul.f32 %v10065, 1.442695
  %v10090 = vpow.pop %v10089
  %v10091 = vmul.f32 %v10066, 1.442695
  %v10092 = vpow.pop %v10091
  %v10093 = vmul.f32 %v10067, 1.442695
  %v10094 = vpow.pop %v10093
  %v10095 = vmul.f32 %v10068, 1.442695
  %v10096 = vpow.pop %v10095
  %v10097 = vmul.f32 %v10069, 1.442695
  %v10098 = vpow.pop %v10097
  %v10099 = vmul.f32 %v10070, 1.442695
  %v10100 = vpow.pop %v10099
  %v10101 = vmul.f32 %v10071, 1.442695
  %v10102 = vpow.pop %v10101
  %v10103 = vmul.f32 %v10072, 1.442695
  %v10104 = vpow.pop %v10103
  %10121 = vset.pattern.permute.xlu0 0
  %10122 = vperm.xlu0 %10121, %v10074
  %v10123 = vpop.permute.xlu0 %10122
  %10124 = vset.pattern.permute.xlu0 0
  %10125 = vperm.xlu0 %10124, %v10076
  %v10126 = vpop.permute.xlu0 %10125
  %10127 = vset.pattern.permute.xlu0 0
  %10128 = vperm.xlu0 %10127, %v10078
  %v10129 = vpop.permute.xlu0 %10128
  %10130 = vset.pattern.permute.xlu0 0
  %10131 = vperm.xlu0 %10130, %v10080
  %v10132 = vpop.permute.xlu0 %10131
  %10133 = vset.pattern.permute.xlu0 0
  %10134 = vperm.xlu0 %10133, %v10082
  %v10135 = vpop.permute.xlu0 %10134
  %10136 = vset.pattern.permute.xlu0 0
  %10137 = vperm.xlu0 %10136, %v10084
  %v10138 = vpop.permute.xlu0 %10137
  %10139 = vset.pattern.permute.xlu0 0
  %10140 = vperm.xlu0 %10139, %v10086
  %v10141 = vpop.permute.xlu0 %10140
  %10142 = vset.pattern.permute.xlu0 0
  %10143 = vperm.xlu0 %10142, %v10088
  %v10144 = vpop.permute.xlu0 %10143
  %10145 = vset.pattern.permute.xlu0 0
  %10146 = vperm.xlu0 %10145, %v10090
  %v10147 = vpop.permute.xlu0 %10146
  %10148 = vset.pattern.permute.xlu0 0
  %10149 = vperm.xlu0 %10148, %v10092
  %v10150 = vpop.permute.xlu0 %10149
  %10151 = vset.pattern.permute.xlu0 0
  %10152 = vperm.xlu0 %10151, %v10094
  %v10153 = vpop.permute.xlu0 %10152
  %10154 = vset.pattern.permute.xlu0 0
  %10155 = vperm.xlu0 %10154, %v10096
  %v10156 = vpop.permute.xlu0 %10155
  %10157 = vset.pattern.permute.xlu0 0
  %10158 = vperm.xlu0 %10157, %v10098
  %v10159 = vpop.permute.xlu0 %10158
  %10160 = vset.pattern.permute.xlu0 0
  %10161 = vperm.xlu0 %10160, %v10100
  %v10162 = vpop.permute.xlu0 %10161
  %10163 = vset.pattern.permute.xlu0 0
  %10164 = vperm.xlu0 %10163, %v10102
  %v10165 = vpop.permute.xlu0 %10164
  %10166 = vset.pattern.permute.xlu0 0
  %10167 = vperm.xlu0 %10166, %v10104
  %v10168 = vpop.permute.xlu0 %10167
  %v10169 = vperm.slane %v10123, %v281
  %v10170 = vperm.slane %v10126, %v283
  %v10171 = vsel %vm285, %v10170, %v10169
  %v10172 = vperm.slane %v10129, %v281
  %v10173 = vperm.slane %v10132, %v283
  %v10174 = vsel %vm285, %v10173, %v10172
  %v10175 = vperm.slane %v10135, %v281
  %v10176 = vperm.slane %v10138, %v283
  %v10177 = vsel %vm285, %v10176, %v10175
  %v10178 = vperm.slane %v10141, %v281
  %v10179 = vperm.slane %v10144, %v283
  %v10180 = vsel %vm285, %v10179, %v10178
  %v10181 = vperm.slane %v10147, %v281
  %v10182 = vperm.slane %v10150, %v283
  %v10183 = vsel %vm285, %v10182, %v10181
  %v10184 = vperm.slane %v10153, %v281
  %v10185 = vperm.slane %v10156, %v283
  %v10186 = vsel %vm285, %v10185, %v10184
  %v10187 = vperm.slane %v10159, %v281
  %v10188 = vperm.slane %v10162, %v283
  %v10189 = vsel %vm285, %v10188, %v10187
  %v10190 = vperm.slane %v10165, %v281
  %v10191 = vperm.slane %v10168, %v283
  %v10192 = vsel %vm285, %v10191, %v10190
  %v10193 = vsel %vm308, %v10174, %v10171
  %v10194 = vsel %vm310, %v10177, %v10193
  %v10195 = vsel %vm312, %v10180, %v10194
  %v10196 = vsel %vm314, %v10183, %v10195
  %v10197 = vsel %vm316, %v10186, %v10196
  %v10198 = vsel %vm318, %v10189, %v10197
  %v10199 = vsel %vm320, %v10192, %v10198
  %v10201 = vsel %vm323, %v10199, 0.0
  %10202 = vadd.xlane.f32.xlu0 %v10201
  %v10203 = vpop.xlane.xlu0 %10202
  %v10205 = vperm.slane %v10203, 0
  %v10206 = vperm.slane %v10203, 1
  %v10207 = vperm.slane %v10203, 2
  %v10208 = vperm.slane %v10203, 3
  %v10209 = vperm.slane %v10203, 4
  %v10210 = vperm.slane %v10203, 5
  %v10211 = vperm.slane %v10203, 6
  %v10212 = vperm.slane %v10203, 7
  %v10221 = vrcp.pop %v10205
  %v10222 = vmul.f32 %v10205, %v10221
  %v10223 = vsub.f32 1.0, %v10222
  %v10224 = vmul.f32 %v10221, %v10223
  %v10225 = vadd.f32 %v10221, %v10224
  %vm10226 = vweird.f32 %v10205
  %vm10227 = vweird.f32 %v10221
  %vm10228 = vmor %vm10226, %vm10227
  %v10229 = vsel %vm10228, %v10221, %v10225
  %v10230 = vand.u32 2147483647, %v10205
  %vm10231 = vcmp.eq.f32.partialorder %v10230, 8.507059e+37
  %v10232 = vand.u32 %v10205, 2147483648
  %v10233 = vor.u32 1.1754944e-38, %v10232
  %v10234 = vsel %vm10231, %v10233, %v10229
  %v10235 = vmul.f32 %v10074, %v10234
  %v10236 = vmul.f32 %v10076, %v10234
  %v10237 = vrcp.pop %v10206
  %v10238 = vmul.f32 %v10206, %v10237
  %v10239 = vsub.f32 1.0, %v10238
  %v10240 = vmul.f32 %v10237, %v10239
  %v10241 = vadd.f32 %v10237, %v10240
  %vm10242 = vweird.f32 %v10206
  %vm10243 = vweird.f32 %v10237
  %vm10244 = vmor %vm10242, %vm10243
  %v10245 = vsel %vm10244, %v10237, %v10241
  %v10246 = vand.u32 2147483647, %v10206
  %vm10247 = vcmp.eq.f32.partialorder %v10246, 8.507059e+37
  %v10248 = vand.u32 %v10206, 2147483648
  %v10249 = vor.u32 1.1754944e-38, %v10248
  %v10250 = vsel %vm10247, %v10249, %v10245
  %v10251 = vmul.f32 %v10078, %v10250
  %v10252 = vmul.f32 %v10080, %v10250
  %v10253 = vrcp.pop %v10207
  %v10254 = vmul.f32 %v10207, %v10253
  %v10255 = vsub.f32 1.0, %v10254
  %v10256 = vmul.f32 %v10253, %v10255
  %v10257 = vadd.f32 %v10253, %v10256
  %vm10258 = vweird.f32 %v10207
  %vm10259 = vweird.f32 %v10253
  %vm10260 = vmor %vm10258, %vm10259
  %v10261 = vsel %vm10260, %v10253, %v10257
  %v10262 = vand.u32 2147483647, %v10207
  %vm10263 = vcmp.eq.f32.partialorder %v10262, 8.507059e+37
  %v10264 = vand.u32 %v10207, 2147483648
  %v10265 = vor.u32 1.1754944e-38, %v10264
  %v10266 = vsel %vm10263, %v10265, %v10261
  %v10267 = vmul.f32 %v10082, %v10266
  %v10268 = vmul.f32 %v10084, %v10266
  %v10269 = vrcp.pop %v10208
  %v10270 = vmul.f32 %v10208, %v10269
  %v10271 = vsub.f32 1.0, %v10270
  %v10272 = vmul.f32 %v10269, %v10271
  %v10273 = vadd.f32 %v10269, %v10272
  %vm10274 = vweird.f32 %v10208
  %vm10275 = vweird.f32 %v10269
  %vm10276 = vmor %vm10274, %vm10275
  %v10277 = vsel %vm10276, %v10269, %v10273
  %v10278 = vand.u32 2147483647, %v10208
  %vm10279 = vcmp.eq.f32.partialorder %v10278, 8.507059e+37
  %v10280 = vand.u32 %v10208, 2147483648
  %v10281 = vor.u32 1.1754944e-38, %v10280
  %v10282 = vsel %vm10279, %v10281, %v10277
  %v10283 = vmul.f32 %v10086, %v10282
  %v10284 = vmul.f32 %v10088, %v10282
  %v10285 = vrcp.pop %v10209
  %v10286 = vmul.f32 %v10209, %v10285
  %v10287 = vsub.f32 1.0, %v10286
  %v10288 = vmul.f32 %v10285, %v10287
  %v10289 = vadd.f32 %v10285, %v10288
  %vm10290 = vweird.f32 %v10209
  %vm10291 = vweird.f32 %v10285
  %vm10292 = vmor %vm10290, %vm10291
  %v10293 = vsel %vm10292, %v10285, %v10289
  %v10294 = vand.u32 2147483647, %v10209
  %vm10295 = vcmp.eq.f32.partialorder %v10294, 8.507059e+37
  %v10296 = vand.u32 %v10209, 2147483648
  %v10297 = vor.u32 1.1754944e-38, %v10296
  %v10298 = vsel %vm10295, %v10297, %v10293
  %v10299 = vmul.f32 %v10090, %v10298
  %v10300 = vmul.f32 %v10092, %v10298
  %v10301 = vrcp.pop %v10210
  %v10302 = vmul.f32 %v10210, %v10301
  %v10303 = vsub.f32 1.0, %v10302
  %v10304 = vmul.f32 %v10301, %v10303
  %v10305 = vadd.f32 %v10301, %v10304
  %vm10306 = vweird.f32 %v10210
  %vm10307 = vweird.f32 %v10301
  %vm10308 = vmor %vm10306, %vm10307
  %v10309 = vsel %vm10308, %v10301, %v10305
  %v10310 = vand.u32 2147483647, %v10210
  %vm10311 = vcmp.eq.f32.partialorder %v10310, 8.507059e+37
  %v10312 = vand.u32 %v10210, 2147483648
  %v10313 = vor.u32 1.1754944e-38, %v10312
  %v10314 = vsel %vm10311, %v10313, %v10309
  %v10315 = vmul.f32 %v10094, %v10314
  %v10316 = vmul.f32 %v10096, %v10314
  %v10317 = vrcp.pop %v10211
  %v10318 = vmul.f32 %v10211, %v10317
  %v10319 = vsub.f32 1.0, %v10318
  %v10320 = vmul.f32 %v10317, %v10319
  %v10321 = vadd.f32 %v10317, %v10320
  %vm10322 = vweird.f32 %v10211
  %vm10323 = vweird.f32 %v10317
  %vm10324 = vmor %vm10322, %vm10323
  %v10325 = vsel %vm10324, %v10317, %v10321
  %v10326 = vand.u32 2147483647, %v10211
  %vm10327 = vcmp.eq.f32.partialorder %v10326, 8.507059e+37
  %v10328 = vand.u32 %v10211, 2147483648
  %v10329 = vor.u32 1.1754944e-38, %v10328
  %v10330 = vsel %vm10327, %v10329, %v10325
  %v10331 = vmul.f32 %v10098, %v10330
  %v10332 = vmul.f32 %v10100, %v10330
  %v10333 = vrcp.pop %v10212
  %v10334 = vmul.f32 %v10212, %v10333
  %v10335 = vsub.f32 1.0, %v10334
  %v10336 = vmul.f32 %v10333, %v10335
  %v10337 = vadd.f32 %v10333, %v10336
  %vm10338 = vweird.f32 %v10212
  %vm10339 = vweird.f32 %v10333
  %vm10340 = vmor %vm10338, %vm10339
  %v10341 = vsel %vm10340, %v10333, %v10337
  %v10342 = vand.u32 2147483647, %v10212
  %vm10343 = vcmp.eq.f32.partialorder %v10342, 8.507059e+37
  %v10344 = vand.u32 %v10212, 2147483648
  %v10345 = vor.u32 1.1754944e-38, %v10344
  %v10346 = vsel %vm10343, %v10345, %v10341
  %v10347 = vmul.f32 %v10102, %v10346
  %v10348 = vmul.f32 %v10104, %v10346
  %v10349 = vld [vmem:[%s0] sm:$0xff]
  %v10350 = vld [vmem:[%s0 + $0x8] sm:$0xff]
  %v10351 = vld [vmem:[%s0 + $0x10] sm:$0xff]
  %v10352 = vld [vmem:[%s0 + $0x18] sm:$0xff]
  %v10353 = vld [vmem:[%s0 + $0x20] sm:$0xff]
  %v10354 = vld [vmem:[%s0 + $0x28] sm:$0xff]
  %v10355 = vld [vmem:[%s0 + $0x30] sm:$0xff]
  %v10356 = vld [vmem:[%s0 + $0x38] sm:$0xff]
  %v10357 = vld [vmem:[%s0 + $0x40] sm:$0xff]
  %v10358 = vld [vmem:[%s0 + $0x48] sm:$0xff]
  %v10359 = vld [vmem:[%s0 + $0x50] sm:$0xff]
  %v10360 = vld [vmem:[%s0 + $0x58] sm:$0xff]
  %v10361 = vld [vmem:[%s0 + $0x60] sm:$0xff]
  %v10362 = vld [vmem:[%s0 + $0x68] sm:$0xff]
  %v10363 = vld [vmem:[%s0 + $0x70] sm:$0xff]
  %v10364 = vld [vmem:[%s0 + $0x78] sm:$0xff]
  %10366 = vset.pattern.permute.xlu0 0
  %10367 = vperm.xlu0 %10366, %v10235
  %v10368 = vpop.permute.xlu0 %10367
  %10371 = vset.pattern.permute.xlu0 0
  %10372 = vperm.xlu0 %10371, %v10236
  %v10373 = vpop.permute.xlu0 %10372
  %10376 = vset.pattern.permute.xlu0 0
  %10377 = vperm.xlu0 %10376, %v10251
  %v10378 = vpop.permute.xlu0 %10377
  %10381 = vset.pattern.permute.xlu0 0
  %10382 = vperm.xlu0 %10381, %v10252
  %v10383 = vpop.permute.xlu0 %10382
  %10386 = vset.pattern.permute.xlu0 0
  %10387 = vperm.xlu0 %10386, %v10267
  %v10388 = vpop.permute.xlu0 %10387
  %10391 = vset.pattern.permute.xlu0 0
  %10392 = vperm.xlu0 %10391, %v10268
  %v10393 = vpop.permute.xlu0 %10392
  %10396 = vset.pattern.permute.xlu0 0
  %10397 = vperm.xlu0 %10396, %v10283
  %v10398 = vpop.permute.xlu0 %10397
  %10401 = vset.pattern.permute.xlu0 0
  %10402 = vperm.xlu0 %10401, %v10284
  %v10403 = vpop.permute.xlu0 %10402
  %10406 = vset.pattern.permute.xlu0 0
  %10407 = vperm.xlu0 %10406, %v10299
  %v10408 = vpop.permute.xlu0 %10407
  %10411 = vset.pattern.permute.xlu0 0
  %10412 = vperm.xlu0 %10411, %v10300
  %v10413 = vpop.permute.xlu0 %10412
  %10416 = vset.pattern.permute.xlu0 0
  %10417 = vperm.xlu0 %10416, %v10315
  %v10418 = vpop.permute.xlu0 %10417
  %10421 = vset.pattern.permute.xlu0 0
  %10422 = vperm.xlu0 %10421, %v10316
  %v10423 = vpop.permute.xlu0 %10422
  %10426 = vset.pattern.permute.xlu0 0
  %10427 = vperm.xlu0 %10426, %v10331
  %v10428 = vpop.permute.xlu0 %10427
  %10431 = vset.pattern.permute.xlu0 0
  %10432 = vperm.xlu0 %10431, %v10332
  %v10433 = vpop.permute.xlu0 %10432
  %10436 = vset.pattern.permute.xlu0 0
  %10437 = vperm.xlu0 %10436, %v10347
  %v10438 = vpop.permute.xlu0 %10437
  %10441 = vset.pattern.permute.xlu0 0
  %10442 = vperm.xlu0 %10441, %v10348
  %v10443 = vpop.permute.xlu0 %10442
  %v10445 = vmul.f32 %v10349, %v10368
  %v10446 = vmul.f32 %v10350, %v10373
  %v10447 = vmul.f32 %v10351, %v10378
  %v10448 = vmul.f32 %v10352, %v10383
  %v10449 = vmul.f32 %v10353, %v10388
  %v10450 = vmul.f32 %v10354, %v10393
  %v10451 = vmul.f32 %v10355, %v10398
  %v10452 = vmul.f32 %v10356, %v10403
  %v10453 = vmul.f32 %v10357, %v10408
  %v10454 = vmul.f32 %v10358, %v10413
  %v10455 = vmul.f32 %v10359, %v10418
  %v10456 = vmul.f32 %v10360, %v10423
  %v10457 = vmul.f32 %v10361, %v10428
  %v10458 = vmul.f32 %v10362, %v10433
  %v10459 = vmul.f32 %v10363, %v10438
  %v10460 = vmul.f32 %v10364, %v10443
  %v10461 = vadd.f32 %v10445, %v10446
  %v10462 = vrot.slane %v10461, 4
  %v10463 = vadd.f32 %v10461, %v10462
  %v10464 = vrot.slane %v10463, 2
  %v10465 = vadd.f32 %v10463, %v10464
  %v10466 = vrot.slane %v10465, 1
  %v10467 = vadd.f32 %v10465, %v10466
  %v10468 = vadd.f32 %v10447, %v10448
  %v10469 = vrot.slane %v10468, 4
  %v10470 = vadd.f32 %v10468, %v10469
  %v10471 = vrot.slane %v10470, 2
  %v10472 = vadd.f32 %v10470, %v10471
  %v10473 = vrot.slane %v10472, 1
  %v10474 = vadd.f32 %v10472, %v10473
  %v10475 = vadd.f32 %v10449, %v10450
  %v10476 = vrot.slane %v10475, 4
  %v10477 = vadd.f32 %v10475, %v10476
  %v10478 = vrot.slane %v10477, 2
  %v10479 = vadd.f32 %v10477, %v10478
  %v10480 = vrot.slane %v10479, 1
  %v10481 = vadd.f32 %v10479, %v10480
  %v10482 = vadd.f32 %v10451, %v10452
  %v10483 = vrot.slane %v10482, 4
  %v10484 = vadd.f32 %v10482, %v10483
  %v10485 = vrot.slane %v10484, 2
  %v10486 = vadd.f32 %v10484, %v10485
  %v10487 = vrot.slane %v10486, 1
  %v10488 = vadd.f32 %v10486, %v10487
  %v10489 = vadd.f32 %v10453, %v10454
  %v10490 = vrot.slane %v10489, 4
  %v10491 = vadd.f32 %v10489, %v10490
  %v10492 = vrot.slane %v10491, 2
  %v10493 = vadd.f32 %v10491, %v10492
  %v10494 = vrot.slane %v10493, 1
  %v10495 = vadd.f32 %v10493, %v10494
  %v10496 = vadd.f32 %v10455, %v10456
  %v10497 = vrot.slane %v10496, 4
  %v10498 = vadd.f32 %v10496, %v10497
  %v10499 = vrot.slane %v10498, 2
  %v10500 = vadd.f32 %v10498, %v10499
  %v10501 = vrot.slane %v10500, 1
  %v10502 = vadd.f32 %v10500, %v10501
  %v10503 = vadd.f32 %v10457, %v10458
  %v10504 = vrot.slane %v10503, 4
  %v10505 = vadd.f32 %v10503, %v10504
  %v10506 = vrot.slane %v10505, 2
  %v10507 = vadd.f32 %v10505, %v10506
  %v10508 = vrot.slane %v10507, 1
  %v10509 = vadd.f32 %v10507, %v10508
  %v10510 = vadd.f32 %v10459, %v10460
  %v10511 = vrot.slane %v10510, 4
  %v10512 = vadd.f32 %v10510, %v10511
  %v10513 = vrot.slane %v10512, 2
  %v10514 = vadd.f32 %v10512, %v10513
  %v10515 = vrot.slane %v10514, 1
  %v10516 = vadd.f32 %v10514, %v10515
  %v10517 = vpack.c.bf16 %v10467, %v10467
  %v10518 = vpack.c.bf16 %v10474, %v10474
  %v10519 = vpack.c.bf16 %v10481, %v10481
  %v10520 = vpack.c.bf16 %v10488, %v10488
  %v10521 = vpack.c.bf16 %v10495, %v10495
  %v10522 = vpack.c.bf16 %v10502, %v10502
  %v10523 = vpack.c.bf16 %v10509, %v10509
  %v10524 = vpack.c.bf16 %v10516, %v10516
  %v10533 = vperm.slane %v10517, 0
  %v10534 = vperm.slane %v10518, 0
  %v10535 = vperm.slane %v10519, 0
  %v10536 = vperm.slane %v10520, 0
  %v10537 = vperm.slane %v10521, 0
  %v10538 = vperm.slane %v10522, 0
  %v10539 = vperm.slane %v10523, 0
  %v10540 = vperm.slane %v10524, 0
  %v10541 = vunpack.c.l.b16 %v10533
  %v10542 = vunpack.c.l.b16 %v10534
  %v10543 = vunpack.c.l.b16 %v10535
  %v10544 = vunpack.c.l.b16 %v10536
  %v10545 = vunpack.c.l.b16 %v10537
  %v10546 = vunpack.c.l.b16 %v10538
  %v10547 = vunpack.c.l.b16 %v10539
  %v10548 = vunpack.c.l.b16 %v10540
  %v10549 = vsel %vm308, %v10542, %v10541
  %v10550 = vsel %vm310, %v10543, %v10549
  %v10551 = vsel %vm312, %v10544, %v10550
  %v10552 = vsel %vm314, %v10545, %v10551
  %v10553 = vsel %vm316, %v10546, %v10552
  %v10554 = vsel %vm318, %v10547, %v10553
  %v10555 = vsel %vm320, %v10548, %v10554
  %v10556 = vpack.c.b16 %v10555, %v10555
  %s10558 = scalar_lea.vmem %s2, 224
  %v10559 = vld [vmem:[%s10558] sm:$0xff]
  %v10560 = vld [vmem:[%s10558 + $0x8] sm:$0xff]
  %v10561 = vld [vmem:[%s10558 + $0x10] sm:$0xff]
  %v10562 = vld [vmem:[%s10558 + $0x18] sm:$0xff]
  %v10563 = vld [vmem:[%s9] sm:$0xff]
  %v10564 = vld [vmem:[%s9 + $0x8] sm:$0xff]
  %v10565 = vld [vmem:[%s9 + $0x10] sm:$0xff]
  %v10566 = vld [vmem:[%s9 + $0x18] sm:$0xff]
  %v10567 = vld [vmem:[%s9 + $0x20] sm:$0xff]
  %v10568 = vld [vmem:[%s9 + $0x28] sm:$0xff]
  %v10569 = vld [vmem:[%s9 + $0x30] sm:$0xff]
  %v10570 = vld [vmem:[%s9 + $0x38] sm:$0xff]
  %v10571 = vld [vmem:[%s9 + $0x40] sm:$0xff]
  %v10572 = vld [vmem:[%s9 + $0x48] sm:$0xff]
  %v10573 = vld [vmem:[%s9 + $0x50] sm:$0xff]
  %v10574 = vld [vmem:[%s9 + $0x58] sm:$0xff]
  %v10575 = vld [vmem:[%s9 + $0x60] sm:$0xff]
  %v10576 = vld [vmem:[%s9 + $0x68] sm:$0xff]
  %v10577 = vld [vmem:[%s9 + $0x70] sm:$0xff]
  %v10578 = vld [vmem:[%s9 + $0x78] sm:$0xff]
  %v10579 = vld [vmem:[%s9 + $0x80] sm:$0xff]
  %v10580 = vld [vmem:[%s9 + $0x88] sm:$0xff]
  %v10581 = vld [vmem:[%s9 + $0x90] sm:$0xff]
  %v10582 = vld [vmem:[%s9 + $0x98] sm:$0xff]
  %v10583 = vld [vmem:[%s9 + $0xa0] sm:$0xff]
  %v10584 = vld [vmem:[%s9 + $0xa8] sm:$0xff]
  %v10585 = vld [vmem:[%s9 + $0xb0] sm:$0xff]
  %v10586 = vld [vmem:[%s9 + $0xb8] sm:$0xff]
  %v10587 = vld [vmem:[%s9 + $0xc0] sm:$0xff]
  %v10588 = vld [vmem:[%s9 + $0xc8] sm:$0xff]
  %v10589 = vld [vmem:[%s9 + $0xd0] sm:$0xff]
  %v10590 = vld [vmem:[%s9 + $0xd8] sm:$0xff]
  %v10591 = vld [vmem:[%s9 + $0xe0] sm:$0xff]
  %v10592 = vld [vmem:[%s9 + $0xe8] sm:$0xff]
  %v10593 = vld [vmem:[%s9 + $0xf0] sm:$0xff]
  %v10594 = vld [vmem:[%s9 + $0xf8] sm:$0xff]
  %v10595 = vld [vmem:[%s9 + $0x100] sm:$0xff]
  %v10596 = vld [vmem:[%s9 + $0x108] sm:$0xff]
  %v10597 = vld [vmem:[%s9 + $0x110] sm:$0xff]
  %v10598 = vld [vmem:[%s9 + $0x118] sm:$0xff]
  %v10599 = vld [vmem:[%s9 + $0x120] sm:$0xff]
  %v10600 = vld [vmem:[%s9 + $0x128] sm:$0xff]
  %v10601 = vld [vmem:[%s9 + $0x130] sm:$0xff]
  %v10602 = vld [vmem:[%s9 + $0x138] sm:$0xff]
  %v10603 = vld [vmem:[%s9 + $0x140] sm:$0xff]
  %v10604 = vld [vmem:[%s9 + $0x148] sm:$0xff]
  %v10605 = vld [vmem:[%s9 + $0x150] sm:$0xff]
  %v10606 = vld [vmem:[%s9 + $0x158] sm:$0xff]
  %v10607 = vld [vmem:[%s9 + $0x160] sm:$0xff]
  %v10608 = vld [vmem:[%s9 + $0x168] sm:$0xff]
  %v10609 = vld [vmem:[%s9 + $0x170] sm:$0xff]
  %v10610 = vld [vmem:[%s9 + $0x178] sm:$0xff]
  %v10611 = vld [vmem:[%s9 + $0x180] sm:$0xff]
  %v10612 = vld [vmem:[%s9 + $0x188] sm:$0xff]
  %v10613 = vld [vmem:[%s9 + $0x190] sm:$0xff]
  %v10614 = vld [vmem:[%s9 + $0x198] sm:$0xff]
  %v10615 = vld [vmem:[%s9 + $0x1a0] sm:$0xff]
  %v10616 = vld [vmem:[%s9 + $0x1a8] sm:$0xff]
  %v10617 = vld [vmem:[%s9 + $0x1b0] sm:$0xff]
  %v10618 = vld [vmem:[%s9 + $0x1b8] sm:$0xff]
  %v10619 = vld [vmem:[%s9 + $0x1c0] sm:$0xff]
  %v10620 = vld [vmem:[%s9 + $0x1c8] sm:$0xff]
  %v10621 = vld [vmem:[%s9 + $0x1d0] sm:$0xff]
  %v10622 = vld [vmem:[%s9 + $0x1d8] sm:$0xff]
  %v10623 = vld [vmem:[%s9 + $0x1e0] sm:$0xff]
  %v10624 = vld [vmem:[%s9 + $0x1e8] sm:$0xff]
  %v10625 = vld [vmem:[%s9 + $0x1f0] sm:$0xff]
  %v10626 = vld [vmem:[%s9 + $0x1f8] sm:$0xff]
  %v10691 = vunpack.c.l.b16 %v10563
  %v10692 = vunpack.c.h.b16 %v10563
  %v10693 = vunpack.c.l.b16 %v10564
  %v10694 = vunpack.c.h.b16 %v10564
  %v10695 = vunpack.c.l.b16 %v10565
  %v10696 = vunpack.c.h.b16 %v10565
  %v10697 = vunpack.c.l.b16 %v10566
  %v10698 = vunpack.c.h.b16 %v10566
  %v10699 = vunpack.c.l.b16 %v10567
  %v10700 = vunpack.c.h.b16 %v10567
  %v10701 = vunpack.c.l.b16 %v10568
  %v10702 = vunpack.c.h.b16 %v10568
  %v10703 = vunpack.c.l.b16 %v10569
  %v10704 = vunpack.c.h.b16 %v10569
  %v10705 = vunpack.c.l.b16 %v10570
  %v10706 = vunpack.c.h.b16 %v10570
  %v10707 = vunpack.c.l.b16 %v10571
  %v10708 = vunpack.c.h.b16 %v10571
  %v10709 = vunpack.c.l.b16 %v10572
  %v10710 = vunpack.c.h.b16 %v10572
  %v10711 = vunpack.c.l.b16 %v10573
  %v10712 = vunpack.c.h.b16 %v10573
  %v10713 = vunpack.c.l.b16 %v10574
  %v10714 = vunpack.c.h.b16 %v10574
  %v10715 = vunpack.c.l.b16 %v10575
  %v10716 = vunpack.c.h.b16 %v10575
  %v10717 = vunpack.c.l.b16 %v10576
  %v10718 = vunpack.c.h.b16 %v10576
  %v10719 = vunpack.c.l.b16 %v10577
  %v10720 = vunpack.c.h.b16 %v10577
  %v10721 = vunpack.c.l.b16 %v10578
  %v10722 = vunpack.c.h.b16 %v10578
  %v10723 = vunpack.c.l.b16 %v10579
  %v10724 = vunpack.c.h.b16 %v10579
  %v10725 = vunpack.c.l.b16 %v10580
  %v10726 = vunpack.c.h.b16 %v10580
  %v10727 = vunpack.c.l.b16 %v10581
  %v10728 = vunpack.c.h.b16 %v10581
  %v10729 = vunpack.c.l.b16 %v10582
  %v10730 = vunpack.c.h.b16 %v10582
  %v10731 = vunpack.c.l.b16 %v10583
  %v10732 = vunpack.c.h.b16 %v10583
  %v10733 = vunpack.c.l.b16 %v10584
  %v10734 = vunpack.c.h.b16 %v10584
  %v10735 = vunpack.c.l.b16 %v10585
  %v10736 = vunpack.c.h.b16 %v10585
  %v10737 = vunpack.c.l.b16 %v10586
  %v10738 = vunpack.c.h.b16 %v10586
  %v10739 = vunpack.c.l.b16 %v10587
  %v10740 = vunpack.c.h.b16 %v10587
  %v10741 = vunpack.c.l.b16 %v10588
  %v10742 = vunpack.c.h.b16 %v10588
  %v10743 = vunpack.c.l.b16 %v10589
  %v10744 = vunpack.c.h.b16 %v10589
  %v10745 = vunpack.c.l.b16 %v10590
  %v10746 = vunpack.c.h.b16 %v10590
  %v10747 = vunpack.c.l.b16 %v10591
  %v10748 = vunpack.c.h.b16 %v10591
  %v10749 = vunpack.c.l.b16 %v10592
  %v10750 = vunpack.c.h.b16 %v10592
  %v10751 = vunpack.c.l.b16 %v10593
  %v10752 = vunpack.c.h.b16 %v10593
  %v10753 = vunpack.c.l.b16 %v10594
  %v10754 = vunpack.c.h.b16 %v10594
  %v10755 = vunpack.c.l.b16 %v10595
  %v10756 = vunpack.c.h.b16 %v10595
  %v10757 = vunpack.c.l.b16 %v10596
  %v10758 = vunpack.c.h.b16 %v10596
  %v10759 = vunpack.c.l.b16 %v10597
  %v10760 = vunpack.c.h.b16 %v10597
  %v10761 = vunpack.c.l.b16 %v10598
  %v10762 = vunpack.c.h.b16 %v10598
  %v10763 = vunpack.c.l.b16 %v10599
  %v10764 = vunpack.c.h.b16 %v10599
  %v10765 = vunpack.c.l.b16 %v10600
  %v10766 = vunpack.c.h.b16 %v10600
  %v10767 = vunpack.c.l.b16 %v10601
  %v10768 = vunpack.c.h.b16 %v10601
  %v10769 = vunpack.c.l.b16 %v10602
  %v10770 = vunpack.c.h.b16 %v10602
  %v10771 = vunpack.c.l.b16 %v10603
  %v10772 = vunpack.c.h.b16 %v10603
  %v10773 = vunpack.c.l.b16 %v10604
  %v10774 = vunpack.c.h.b16 %v10604
  %v10775 = vunpack.c.l.b16 %v10605
  %v10776 = vunpack.c.h.b16 %v10605
  %v10777 = vunpack.c.l.b16 %v10606
  %v10778 = vunpack.c.h.b16 %v10606
  %v10779 = vunpack.c.l.b16 %v10607
  %v10780 = vunpack.c.h.b16 %v10607
  %v10781 = vunpack.c.l.b16 %v10608
  %v10782 = vunpack.c.h.b16 %v10608
  %v10783 = vunpack.c.l.b16 %v10609
  %v10784 = vunpack.c.h.b16 %v10609
  %v10785 = vunpack.c.l.b16 %v10610
  %v10786 = vunpack.c.h.b16 %v10610
  %v10787 = vunpack.c.l.b16 %v10611
  %v10788 = vunpack.c.h.b16 %v10611
  %v10789 = vunpack.c.l.b16 %v10612
  %v10790 = vunpack.c.h.b16 %v10612
  %v10791 = vunpack.c.l.b16 %v10613
  %v10792 = vunpack.c.h.b16 %v10613
  %v10793 = vunpack.c.l.b16 %v10614
  %v10794 = vunpack.c.h.b16 %v10614
  %v10795 = vunpack.c.l.b16 %v10615
  %v10796 = vunpack.c.h.b16 %v10615
  %v10797 = vunpack.c.l.b16 %v10616
  %v10798 = vunpack.c.h.b16 %v10616
  %v10799 = vunpack.c.l.b16 %v10617
  %v10800 = vunpack.c.h.b16 %v10617
  %v10801 = vunpack.c.l.b16 %v10618
  %v10802 = vunpack.c.h.b16 %v10618
  %v10803 = vunpack.c.l.b16 %v10619
  %v10804 = vunpack.c.h.b16 %v10619
  %v10805 = vunpack.c.l.b16 %v10620
  %v10806 = vunpack.c.h.b16 %v10620
  %v10807 = vunpack.c.l.b16 %v10621
  %v10808 = vunpack.c.h.b16 %v10621
  %v10809 = vunpack.c.l.b16 %v10622
  %v10810 = vunpack.c.h.b16 %v10622
  %v10811 = vunpack.c.l.b16 %v10623
  %v10812 = vunpack.c.h.b16 %v10623
  %v10813 = vunpack.c.l.b16 %v10624
  %v10814 = vunpack.c.h.b16 %v10624
  %v10815 = vunpack.c.l.b16 %v10625
  %v10816 = vunpack.c.h.b16 %v10625
  %v10817 = vunpack.c.l.b16 %v10626
  %v10818 = vunpack.c.h.b16 %v10626
  %v10819 = vpack.c.b16 %v10695, %v10691
  %v10820 = vpack.c.b16 %v10696, %v10692
  %v10821 = vpack.c.b16 %v10697, %v10693
  %v10822 = vpack.c.b16 %v10698, %v10694
  %v10823 = vpack.c.b16 %v10703, %v10699
  %v10824 = vpack.c.b16 %v10704, %v10700
  %v10825 = vpack.c.b16 %v10705, %v10701
  %v10826 = vpack.c.b16 %v10706, %v10702
  %v10827 = vpack.c.b16 %v10711, %v10707
  %v10828 = vpack.c.b16 %v10712, %v10708
  %v10829 = vpack.c.b16 %v10713, %v10709
  %v10830 = vpack.c.b16 %v10714, %v10710
  %v10831 = vpack.c.b16 %v10719, %v10715
  %v10832 = vpack.c.b16 %v10720, %v10716
  %v10833 = vpack.c.b16 %v10721, %v10717
  %v10834 = vpack.c.b16 %v10722, %v10718
  %v10835 = vpack.c.b16 %v10727, %v10723
  %v10836 = vpack.c.b16 %v10728, %v10724
  %v10837 = vpack.c.b16 %v10729, %v10725
  %v10838 = vpack.c.b16 %v10730, %v10726
  %v10839 = vpack.c.b16 %v10735, %v10731
  %v10840 = vpack.c.b16 %v10736, %v10732
  %v10841 = vpack.c.b16 %v10737, %v10733
  %v10842 = vpack.c.b16 %v10738, %v10734
  %v10843 = vpack.c.b16 %v10743, %v10739
  %v10844 = vpack.c.b16 %v10744, %v10740
  %v10845 = vpack.c.b16 %v10745, %v10741
  %v10846 = vpack.c.b16 %v10746, %v10742
  %v10847 = vpack.c.b16 %v10751, %v10747
  %v10848 = vpack.c.b16 %v10752, %v10748
  %v10849 = vpack.c.b16 %v10753, %v10749
  %v10850 = vpack.c.b16 %v10754, %v10750
  %v10851 = vpack.c.b16 %v10759, %v10755
  %v10852 = vpack.c.b16 %v10760, %v10756
  %v10853 = vpack.c.b16 %v10761, %v10757
  %v10854 = vpack.c.b16 %v10762, %v10758
  %v10855 = vpack.c.b16 %v10767, %v10763
  %v10856 = vpack.c.b16 %v10768, %v10764
  %v10857 = vpack.c.b16 %v10769, %v10765
  %v10858 = vpack.c.b16 %v10770, %v10766
  %v10859 = vpack.c.b16 %v10775, %v10771
  %v10860 = vpack.c.b16 %v10776, %v10772
  %v10861 = vpack.c.b16 %v10777, %v10773
  %v10862 = vpack.c.b16 %v10778, %v10774
  %v10863 = vpack.c.b16 %v10783, %v10779
  %v10864 = vpack.c.b16 %v10784, %v10780
  %v10865 = vpack.c.b16 %v10785, %v10781
  %v10866 = vpack.c.b16 %v10786, %v10782
  %v10867 = vpack.c.b16 %v10791, %v10787
  %v10868 = vpack.c.b16 %v10792, %v10788
  %v10869 = vpack.c.b16 %v10793, %v10789
  %v10870 = vpack.c.b16 %v10794, %v10790
  %v10871 = vpack.c.b16 %v10799, %v10795
  %v10872 = vpack.c.b16 %v10800, %v10796
  %v10873 = vpack.c.b16 %v10801, %v10797
  %v10874 = vpack.c.b16 %v10802, %v10798
  %v10875 = vpack.c.b16 %v10807, %v10803
  %v10876 = vpack.c.b16 %v10808, %v10804
  %v10877 = vpack.c.b16 %v10809, %v10805
  %v10878 = vpack.c.b16 %v10810, %v10806
  %v10879 = vpack.c.b16 %v10815, %v10811
  %v10880 = vpack.c.b16 %v10816, %v10812
  %v10881 = vpack.c.b16 %v10817, %v10813
  %v10882 = vpack.c.b16 %v10818, %v10814
  %10947 = vmatpush.bf16.msra.mxu0 %v10847
  %10948 = vmatpush.bf16.msra.mxu0 %v10843
  %10949 = vmatpush.bf16.msra.mxu0 %v10839
  %10950 = vmatpush.bf16.msra.mxu0 %v10835
  %10951 = vmatpush.bf16.msra.mxu0 %v10831
  %10952 = vmatpush.bf16.msra.mxu0 %v10827
  %10953 = vmatpush.bf16.msra.mxu0 %v10823
  %10954 = vmatpush.bf16.msra.mxu0 %v10819
  %10955 = vmatmul.bf16.gmra.mxu0 %v10556
  %v10956 = vpop.f32.mrf.mxu0
  %v10957 = vadd.f32 0.0, %v10956
  %v10958 = vpop.f32.mrf.mxu0
  %10959 = vdwg.mxu0
  %10960 = vmatpush.bf16.msra.mxu0 %v10879
  %10961 = vmatpush.bf16.msra.mxu0 %v10875
  %10962 = vmatpush.bf16.msra.mxu0 %v10871
  %10963 = vmatpush.bf16.msra.mxu0 %v10867
  %10964 = vmatpush.bf16.msra.mxu0 %v10863
  %10965 = vmatpush.bf16.msra.mxu0 %v10859
  %10966 = vmatpush.bf16.msra.mxu0 %v10855
  %10967 = vmatpush.bf16.msra.mxu0 %v10851
  %10968 = vmatmul.bf16.gmra.mxu0 %v9767
  %v10969 = vpop.f32.mrf.mxu0
  %v10970 = vadd.f32 %v10957, %v10969
  %v10971 = vpop.f32.mrf.mxu0
  %10972 = vdwg.mxu0
  %10973 = vmatpush.bf16.msra.mxu0 %v10848
  %10974 = vmatpush.bf16.msra.mxu0 %v10844
  %10975 = vmatpush.bf16.msra.mxu0 %v10840
  %10976 = vmatpush.bf16.msra.mxu0 %v10836
  %10977 = vmatpush.bf16.msra.mxu0 %v10832
  %10978 = vmatpush.bf16.msra.mxu0 %v10828
  %10979 = vmatpush.bf16.msra.mxu0 %v10824
  %10980 = vmatpush.bf16.msra.mxu0 %v10820
  %10981 = vmatmul.bf16.gmra.mxu0 %v10556
  %v10982 = vpop.f32.mrf.mxu0
  %v10983 = vadd.f32 0.0, %v10982
  %v10984 = vpop.f32.mrf.mxu0
  %10985 = vdwg.mxu0
  %10986 = vmatpush.bf16.msra.mxu0 %v10880
  %10987 = vmatpush.bf16.msra.mxu0 %v10876
  %10988 = vmatpush.bf16.msra.mxu0 %v10872
  %10989 = vmatpush.bf16.msra.mxu0 %v10868
  %10990 = vmatpush.bf16.msra.mxu0 %v10864
  %10991 = vmatpush.bf16.msra.mxu0 %v10860
  %10992 = vmatpush.bf16.msra.mxu0 %v10856
  %10993 = vmatpush.bf16.msra.mxu0 %v10852
  %10994 = vmatmul.bf16.gmra.mxu0 %v9767
  %v10995 = vpop.f32.mrf.mxu0
  %v10996 = vadd.f32 %v10983, %v10995
  %v10997 = vpop.f32.mrf.mxu0
  %10998 = vdwg.mxu0
  %10999 = vmatpush.bf16.msra.mxu0 %v10849
  %11000 = vmatpush.bf16.msra.mxu0 %v10845
  %11001 = vmatpush.bf16.msra.mxu0 %v10841
  %11002 = vmatpush.bf16.msra.mxu0 %v10837
  %11003 = vmatpush.bf16.msra.mxu0 %v10833
  %11004 = vmatpush.bf16.msra.mxu0 %v10829
  %11005 = vmatpush.bf16.msra.mxu0 %v10825
  %11006 = vmatpush.bf16.msra.mxu0 %v10821
  %11007 = vmatmul.bf16.gmra.mxu0 %v10556
  %v11008 = vpop.f32.mrf.mxu0
  %v11009 = vadd.f32 0.0, %v11008
  %v11010 = vpop.f32.mrf.mxu0
  %11011 = vdwg.mxu0
  %11012 = vmatpush.bf16.msra.mxu0 %v10881
  %11013 = vmatpush.bf16.msra.mxu0 %v10877
  %11014 = vmatpush.bf16.msra.mxu0 %v10873
  %11015 = vmatpush.bf16.msra.mxu0 %v10869
  %11016 = vmatpush.bf16.msra.mxu0 %v10865
  %11017 = vmatpush.bf16.msra.mxu0 %v10861
  %11018 = vmatpush.bf16.msra.mxu0 %v10857
  %11019 = vmatpush.bf16.msra.mxu0 %v10853
  %11020 = vmatmul.bf16.gmra.mxu0 %v9767
  %v11021 = vpop.f32.mrf.mxu0
  %v11022 = vadd.f32 %v11009, %v11021
  %v11023 = vpop.f32.mrf.mxu0
  %11024 = vdwg.mxu0
  %11025 = vmatpush.bf16.msra.mxu0 %v10850
  %11026 = vmatpush.bf16.msra.mxu0 %v10846
  %11027 = vmatpush.bf16.msra.mxu0 %v10842
  %11028 = vmatpush.bf16.msra.mxu0 %v10838
  %11029 = vmatpush.bf16.msra.mxu0 %v10834
  %11030 = vmatpush.bf16.msra.mxu0 %v10830
  %11031 = vmatpush.bf16.msra.mxu0 %v10826
  %11032 = vmatpush.bf16.msra.mxu0 %v10822
  %11033 = vmatmul.bf16.gmra.mxu0 %v10556
  %v11034 = vpop.f32.mrf.mxu0
  %v11035 = vadd.f32 0.0, %v11034
  %v11036 = vpop.f32.mrf.mxu0
  %11037 = vdwg.mxu0
  %11038 = vmatpush.bf16.msra.mxu0 %v10882
  %11039 = vmatpush.bf16.msra.mxu0 %v10878
  %11040 = vmatpush.bf16.msra.mxu0 %v10874
  %11041 = vmatpush.bf16.msra.mxu0 %v10870
  %11042 = vmatpush.bf16.msra.mxu0 %v10866
  %11043 = vmatpush.bf16.msra.mxu0 %v10862
  %11044 = vmatpush.bf16.msra.mxu0 %v10858
  %11045 = vmatpush.bf16.msra.mxu0 %v10854
  %11046 = vmatmul.bf16.gmra.mxu0 %v9767
  %v11047 = vpop.f32.mrf.mxu0
  %v11048 = vadd.f32 %v11035, %v11047
  %v11049 = vpop.f32.mrf.mxu0
  %11050 = vdwg.mxu0
  %v11051 = vadd.f32 %v10559, %v10970
  %v11052 = vadd.f32 %v10560, %v10996
  %v11053 = vadd.f32 %v10561, %v11022
  %v11054 = vadd.f32 %v10562, %v11048
  %v11055 = vxor.u32 %v11051, 2147483648
  %v11056 = vmul.f32 %v11055, 1.442695
  %v11057 = vpow.pop %v11056
  %v11058 = vadd.f32 %v11057, 1.0
  %v11059 = vrcp.pop %v11058
  %v11060 = vmul.f32 %v11058, %v11059
  %v11061 = vsub.f32 1.0, %v11060
  %v11062 = vmul.f32 %v11059, %v11061
  %v11063 = vadd.f32 %v11059, %v11062
  %vm11064 = vweird.f32 %v11058
  %vm11065 = vweird.f32 %v11059
  %vm11066 = vmor %vm11064, %vm11065
  %v11067 = vsel %vm11066, %v11059, %v11063
  %v11068 = vand.u32 2147483647, %v11058
  %vm11069 = vcmp.eq.f32.partialorder %v11068, 8.507059e+37
  %v11070 = vand.u32 %v11058, 2147483648
  %v11071 = vor.u32 1.1754944e-38, %v11070
  %v11072 = vsel %vm11069, %v11071, %v11067
  %v11073 = vmul.f32 1.0, %v11072
  %v11074 = vxor.u32 %v11052, 2147483648
  %v11075 = vmul.f32 %v11074, 1.442695
  %v11076 = vpow.pop %v11075
  %v11077 = vadd.f32 %v11076, 1.0
  %v11078 = vrcp.pop %v11077
  %v11079 = vmul.f32 %v11077, %v11078
  %v11080 = vsub.f32 1.0, %v11079
  %v11081 = vmul.f32 %v11078, %v11080
  %v11082 = vadd.f32 %v11078, %v11081
  %vm11083 = vweird.f32 %v11077
  %vm11084 = vweird.f32 %v11078
  %vm11085 = vmor %vm11083, %vm11084
  %v11086 = vsel %vm11085, %v11078, %v11082
  %v11087 = vand.u32 2147483647, %v11077
  %vm11088 = vcmp.eq.f32.partialorder %v11087, 8.507059e+37
  %v11089 = vand.u32 %v11077, 2147483648
  %v11090 = vor.u32 1.1754944e-38, %v11089
  %v11091 = vsel %vm11088, %v11090, %v11086
  %v11092 = vmul.f32 1.0, %v11091
  %v11093 = vtanh.pop %v11053
  %v11094 = vxor.u32 %v11054, 2147483648
  %v11095 = vmul.f32 %v11094, 1.442695
  %v11096 = vpow.pop %v11095
  %v11097 = vadd.f32 %v11096, 1.0
  %v11098 = vrcp.pop %v11097
  %v11099 = vmul.f32 %v11097, %v11098
  %v11100 = vsub.f32 1.0, %v11099
  %v11101 = vmul.f32 %v11098, %v11100
  %v11102 = vadd.f32 %v11098, %v11101
  %vm11103 = vweird.f32 %v11097
  %vm11104 = vweird.f32 %v11098
  %vm11105 = vmor %vm11103, %vm11104
  %v11106 = vsel %vm11105, %v11098, %v11102
  %v11107 = vand.u32 2147483647, %v11097
  %vm11108 = vcmp.eq.f32.partialorder %v11107, 8.507059e+37
  %v11109 = vand.u32 %v11097, 2147483648
  %v11110 = vor.u32 1.1754944e-38, %v11109
  %v11111 = vsel %vm11108, %v11110, %v11106
  %v11112 = vmul.f32 1.0, %v11111
  %v11113 = vmul.f32 %v11092, %v9727
  %v11114 = vmul.f32 %v11073, %v11093
  %v11115 = vadd.f32 %v11113, %v11114
  %v11116 = vtanh.pop %v11115
  %v11117 = vmul.f32 %v11112, %v11116
  %s11118 = scalar_lea.vmem %s10, 56
  %11119 = vst [vmem:[%s11118] sm:$0xff] %v11117
  %v11120 = vperm.slane %v10368, %v281
  %v11121 = vperm.slane %v10373, %v283
  %v11122 = vsel %vm285, %v11121, %v11120
  %v11123 = vperm.slane %v10378, %v281
  %v11124 = vperm.slane %v10383, %v283
  %v11125 = vsel %vm285, %v11124, %v11123
  %v11126 = vperm.slane %v10388, %v281
  %v11127 = vperm.slane %v10393, %v283
  %v11128 = vsel %vm285, %v11127, %v11126
  %v11129 = vperm.slane %v10398, %v281
  %v11130 = vperm.slane %v10403, %v283
  %v11131 = vsel %vm285, %v11130, %v11129
  %v11132 = vperm.slane %v10408, %v281
  %v11133 = vperm.slane %v10413, %v283
  %v11134 = vsel %vm285, %v11133, %v11132
  %v11135 = vperm.slane %v10418, %v281
  %v11136 = vperm.slane %v10423, %v283
  %v11137 = vsel %vm285, %v11136, %v11135
  %v11138 = vperm.slane %v10428, %v281
  %v11139 = vperm.slane %v10433, %v283
  %v11140 = vsel %vm285, %v11139, %v11138
  %v11141 = vperm.slane %v10438, %v281
  %v11142 = vperm.slane %v10443, %v283
  %v11143 = vsel %vm285, %v11142, %v11141
  %v11144 = vsel %vm308, %v11125, %v11122
  %v11145 = vsel %vm310, %v11128, %v11144
  %v11146 = vsel %vm312, %v11131, %v11145
  %v11147 = vsel %vm314, %v11134, %v11146
  %v11148 = vsel %vm316, %v11137, %v11147
  %v11149 = vsel %vm318, %v11140, %v11148
  %v11150 = vsel %vm320, %v11143, %v11149
  %v11152 = vsel %vm323, %v11150, 0.0
  %s11153 = scalar_lea.vmem %s11, 56
  %11154 = vst [vmem:[%s11153] sm:$0xff] %v11152
  // Predicated region
  $region42: #{encoder_decoder_forward.1} parent=0 // pred_check
    _
  $region43: #{encoder_decoder_forward.1} parent=0 // pred_check_branch
    %11156 = sbr.rel (0) target = $region45
  $region44: #{encoder_decoder_forward.1} parent=0 // pred_region
    _
  $region45: #{encoder_decoder_forward.1} parent=0 // pred_fallthru
    _
  // Predicated region
  $region46: #{encoder_decoder_forward.1} parent=0 // pred_check
    _
  $region47: #{encoder_decoder_forward.1} parent=0 // pred_check_branch
    %11158 = sbr.rel (0) target = $region49
  $region48: #{encoder_decoder_forward.1} parent=0 // pred_region
    _
  $region49: #{encoder_decoder_forward.1} parent=0 // pred_fallthru
    _
  // Predicated region
  $region50: #{encoder_decoder_forward.1} parent=0 // pred_check
    _
  $region51: #{encoder_decoder_forward.1} parent=0 // pred_check_branch
    %11160 = sbr.rel (0) target = $region53
  $region52: #{encoder_decoder_forward.1} parent=0 // pred_region
    _
  $region53: #{encoder_decoder_forward.1} parent=0 // pred_fallthru
    _
  // Predicated region
  $region54: #{encoder_decoder_forward.1} parent=0 // pred_check
    _
  $region55: #{encoder_decoder_forward.1} parent=0 // pred_check_branch
    %11162 = sbr.rel (0) target = $region57
  $region56: #{encoder_decoder_forward.1} parent=0 // pred_region
    _
  $region57: #{encoder_decoder_forward.1} parent=0 // pred_fallthru
    _

</llo_original>
